<compile_context>
chip_gen: v5e
topology: v5e:2x2
jax: 0.10.0
libtpu: 0.0.40
codegen_flags: <defaults>
</compile_context>

<pallas_src>
import functools

import numpy as np

import jax
import jax.numpy as jnp
from jax import lax
from jax.experimental import pallas as pl
from jax.experimental.pallas import tpu as pltpu

BN_EPS = 1e-5
MXU_DTYPE = jnp.bfloat16      # matmul operand dtype (f32 accumulation)
ACT_DTYPE = jnp.bfloat16      # inter-phase activation storage dtype


def _round_up(x, m):
    return (x + m - 1) // m * m


def _conv3x3_kernel(src_ref, imask_ref, scale_ref, shift_ref, w_ref,
                    z_ref, sum_ref, ssq_ref,
                    stage_ref, cols_ref, *, FP, SPAN, W, pre_act):
    """One grid step == one image, channels-last flattened layout.

    src_ref   : (SPAN, Cin)      flattened zero-bordered image (interior rows)
    imask_ref : (SPAN, 1)        1.0 on real interior pixels, 0.0 elsewhere
    scale_ref : (1, Cin)         BN scale applied to the input when pre_act
    shift_ref : (1, Cin)         BN shift applied to the input when pre_act
    w_ref     : (9*Cin, Cout)    conv taps flattened tap-major (bf16)
    z_ref     : (SPAN, Cout)     raw conv output (bf16 storage)
    sum_ref   : (1, Cout)        per-image per-channel sum over interior pixels
    ssq_ref   : (1, Cout)        per-image per-channel sum of squares
    stage_ref : (P2p, Cin) f32   VMEM scratch: zero-padded staging buffer
    cols_ref  : (SPAN, 9*Cin)    VMEM scratch: im2col operand (bf16)
    """
    cin = src_ref.shape[1]

    x = src_ref[...].astype(jnp.float32)
    if pre_act:
        # bn1 + relu fused into conv2's input; the interior mask restores the
        # zero border required by "same" zero padding.
        x = imask_ref[...] * jnp.maximum(
            x * scale_ref[...] + shift_ref[...], 0.0)

    # Stage into the zero-padded per-image buffer so every 3x3 tap is a plain
    # static sublane shift (no masking, no halo DMA).
    zero = jnp.zeros((FP, cin), jnp.float32)
    stage_ref[pl.ds(FP, SPAN), :] = x
    stage_ref[pl.ds(0, FP), :] = zero
    stage_ref[pl.ds(FP + SPAN, FP), :] = zero

    # im2col: pack the 9 statically shifted views along the lane axis so the
    # MXU sees a single matmul with K = 9*Cin (instead of 9 K=Cin matmuls and
    # an accumulator read-modify-write).
    for t in range(9):
        s = (t // 3 - 1) * (W + 2) + (t % 3 - 1)   # shift in padded layout
        cols_ref[:, t * cin:(t + 1) * cin] = (
            stage_ref[pl.ds(FP + s, SPAN), :].astype(MXU_DTYPE))

    z = jnp.dot(cols_ref[...], w_ref[...], preferred_element_type=jnp.float32)
    z_ref[...] = z.astype(z_ref.dtype)

    # Per-image partial BatchNorm statistics (reduced over images in JAX),
    # computed from the f32 accumulator, interior pixels only.
    zi = z * imask_ref[...]
    sum_ref[...] = jnp.sum(zi, axis=0, keepdims=True)
    ssq_ref[...] = jnp.sum(zi * zi, axis=0, keepdims=True)


def _bn_add_relu_kernel(z_ref, x_ref, scale_ref, shift_ref, o_ref):
    """bn2 (precomputed affine) + identity residual + relu, elementwise f32."""
    z = z_ref[...].astype(jnp.float32)
    o_ref[...] = jnp.maximum(
        z * scale_ref[...] + shift_ref[...] + x_ref[...], 0.0)


def _conv_phase(src, imask, scale, shift, w_flat, *, FP, SPAN, W, pre_act):
    N, _, Cin = src.shape
    Cout = w_flat.shape[1]
    P2p = SPAN + 2 * FP
    kernel = functools.partial(_conv3x3_kernel,
                               FP=FP, SPAN=SPAN, W=W, pre_act=pre_act)
    return pl.pallas_call(
        kernel,
        out_shape=(
            jax.ShapeDtypeStruct((N, SPAN, Cout), ACT_DTYPE),
            jax.ShapeDtypeStruct((N, 1, Cout), jnp.float32),
            jax.ShapeDtypeStruct((N, 1, Cout), jnp.float32),
        ),
        grid_spec=pltpu.PrefetchScalarGridSpec(
            num_scalar_prefetch=0,
            grid=(N,),
            in_specs=[
                pl.BlockSpec((None, SPAN, Cin), lambda n: (n, 0, 0)),
                pl.BlockSpec((SPAN, 1), lambda n: (0, 0)),
                pl.BlockSpec((1, Cin), lambda n: (0, 0)),
                pl.BlockSpec((1, Cin), lambda n: (0, 0)),
                pl.BlockSpec((9 * Cin, Cout), lambda n: (0, 0)),
            ],
            out_specs=(
                pl.BlockSpec((None, SPAN, Cout), lambda n: (n, 0, 0)),
                pl.BlockSpec((None, 1, Cout), lambda n: (n, 0, 0)),
                pl.BlockSpec((None, 1, Cout), lambda n: (n, 0, 0)),
            ),
            scratch_shapes=[
                pltpu.VMEM((P2p, Cin), jnp.float32),
                pltpu.VMEM((SPAN, 9 * Cin), MXU_DTYPE),
            ]),
        # Every output block is indexed by the image id -> no revisiting, so the
        # grid axis can be megacore-parallel (2x on v7x, no-op on v5e/v6e).
        compiler_params=pltpu.CompilerParams(
            dimension_semantics=("parallel",)),
    )(src, imask, scale, shift, w_flat)


def _bn_add_relu_phase(z, x, scale, shift):
    N, SPAN, C = z.shape
    return pl.pallas_call(
        _bn_add_relu_kernel,
        out_shape=jax.ShapeDtypeStruct((N, SPAN, C), jnp.float32),
        grid_spec=pltpu.PrefetchScalarGridSpec(
            num_scalar_prefetch=0,
            grid=(N,),
            in_specs=[
                pl.BlockSpec((None, SPAN, C), lambda n: (n, 0, 0)),
                pl.BlockSpec((None, SPAN, C), lambda n: (n, 0, 0)),
                pl.BlockSpec((1, C), lambda n: (0, 0)),
                pl.BlockSpec((1, C), lambda n: (0, 0)),
            ],
            # Single-leaf out_shape -> single BlockSpec (this was the pytree
            # mismatch in the previous version).
            out_specs=pl.BlockSpec((None, SPAN, C), lambda n: (n, 0, 0))),
        compiler_params=pltpu.CompilerParams(
            dimension_semantics=("parallel",)),
    )(z, x, scale, shift)


@jax.jit
def basic_block_forward(x_nchw, w1, g1, b1, w2, g2, b2):
    """x_nchw: (N, C, H, W) float32; conv weights in PyTorch OIHW layout."""
    N, C, H, W = x_nchw.shape
    Cout = w1.shape[0]
    assert Cout == C, "identity residual needs inplanes == planes (stride=1)"

    CELLS = (H + 2) * (W + 2)          # zero-bordered image, flattened
    SPAN = _round_up(CELLS, 8)         # rows stored in HBM / computed per image
    FP = _round_up(W + 3, 8)           # VMEM-only staging pad (covers all taps)

    # ---- glue: channels-last, spatially zero-bordered, per-image flattened ----
    x_nhwc = jnp.transpose(x_nchw, (0, 2, 3, 1)).astype(jnp.float32)
    x_sp = jnp.pad(x_nhwc, ((0, 0), (1, 1), (1, 1), (0, 0)))      # (N,H+2,W+2,C)
    x_span = jnp.pad(x_sp.reshape(N, CELLS, C),
                     ((0, 0), (0, SPAN - CELLS), (0, 0)))          # (N,SPAN,C)

    # interior-pixel mask over the computed span (compile-time constant)
    q = np.arange(SPAN)
    ip, jp = q // (W + 2), q % (W + 2)
    interior = (q < CELLS) & (ip >= 1) & (ip <= H) & (jp >= 1) & (jp <= W)
    imask = jnp.asarray(interior.astype(np.float32)[:, None])      # (SPAN, 1)

    def to_flat(w):  # (Cout, Cin, 3, 3) -> (9*Cin, Cout), tap-major rows, bf16
        cout, cin = w.shape[0], w.shape[1]
        return jnp.transpose(w, (2, 3, 1, 0)).reshape(9 * cin, cout).astype(MXU_DTYPE)

    w1_f, w2_f = to_flat(w1), to_flat(w2)

    count = float(N * H * W)
    ones = jnp.ones((1, C), jnp.float32)
    zeros = jnp.zeros((1, C), jnp.float32)

    def bn_affine(sum_nc, ssq_nc, gamma, beta):
        s = jnp.sum(sum_nc, axis=0)                 # (1, C) over image partials
        ss = jnp.sum(ssq_nc, axis=0)
        mean = s / count
        var = jnp.maximum(ss / count - mean * mean, 0.0)
        scale = gamma.reshape(1, -1).astype(jnp.float32) * lax.rsqrt(var + BN_EPS)
        shift = beta.reshape(1, -1).astype(jnp.float32) - mean * scale
        return scale, shift

    # conv1 (+ per-image partial batch statistics of its raw output)
    z1, s1, ss1 = _conv_phase(x_span, imask, ones, zeros, w1_f,
                              FP=FP, SPAN=SPAN, W=W, pre_act=False)
    scale1, shift1 = bn_affine(s1, ss1, g1, b1)

    # bn1 + relu fused into conv2's input read, conv2 (+ stats of its output)
    z2, s2, ss2 = _conv_phase(z1, imask, scale1, shift1, w2_f,
                              FP=FP, SPAN=SPAN, W=W, pre_act=True)
    scale2, shift2 = bn_affine(s2, ss2, g2, b2)

    # bn2 + identity residual + relu (interior rows only, no pad rows)
    out_span = _bn_add_relu_phase(z2, x_span, scale2, shift2)       # (N,SPAN,C)

    out = out_span[:, :CELLS, :].reshape(N, H + 2, W + 2, C)
    out = out[:, 1:H + 1, 1:W + 1, :]
    return jnp.transpose(out, (0, 3, 1, 2))


def _reference(x, w1, g1, b1, w2, g2, b2):
    """Pure-JAX reference matching the PyTorch module (training-mode BN)."""
    def conv(y, w):
        return lax.conv_general_dilated(y, w, (1, 1), ((1, 1), (1, 1)),
                                        dimension_numbers=("NCHW", "OIHW", "NCHW"))

    def bn(y, g, b):
        mean = y.mean(axis=(0, 2, 3), keepdims=True)
        var = ((y - mean) ** 2).mean(axis=(0, 2, 3), keepdims=True)
        return (y - mean) * lax.rsqrt(var + BN_EPS) * g.reshape(1, -1, 1, 1) \
            + b.reshape(1, -1, 1, 1)

    out = jax.nn.relu(bn(conv(x, w1), g1, b1))
    out = bn(conv(out, w2), g2, b2)
    return jax.nn.relu(out + x)


if __name__ == "__main__":
    key = jax.random.PRNGKey(0)
    ks = jax.random.split(key, 7)
    N, C, H, W = 2, 8, 16, 16

    x = jax.random.normal(ks[0], (N, C, H, W), jnp.float32)
    w1 = jax.random.normal(ks[1], (C, C, 3, 3), jnp.float32) * 0.1
    w2 = jax.random.normal(ks[2], (C, C, 3, 3), jnp.float32) * 0.1
    g1 = jax.random.uniform(ks[3], (C,), jnp.float32, 0.5, 1.5)
    b1 = jax.random.normal(ks[4], (C,), jnp.float32) * 0.1
    g2 = jax.random.uniform(ks[5], (C,), jnp.float32, 0.5, 1.5)
    b2 = jax.random.normal(ks[6], (C,), jnp.float32) * 0.1

    out = jax.block_until_ready(basic_block_forward(x, w1, g1, b1, w2, g2, b2))
    ref = jax.block_until_ready(_reference(x, w1, g1, b1, w2, g2, b2))

    assert out.shape == x.shape, (out.shape, x.shape)
    err = jnp.abs(out - ref)
    max_err = float(jnp.max(err))
    mean_err = float(jnp.mean(err))
    # bf16 MXU operands + bf16 inter-phase activations (per perf review) relax
    # the exact-f32 parity, hence the looser (but still tight) tolerances.
    assert max_err < 0.15, f"max abs error vs reference: {max_err}"
    assert mean_err < 0.02, f"mean abs error vs reference: {mean_err}"
    print("KERNEL_OK")
</pallas_src>

<mosaic_0001>
module attributes {stable_mosaic.version = 11 : i64} {
  func.func @_conv3x3_kernel(%arg0: i32, %arg1: memref<1x328x8xf32, #tpu.memory_space<vmem>>, %arg2: memref<328x1xf32, #tpu.memory_space<vmem>>, %arg3: memref<1x8xf32, #tpu.memory_space<vmem>>, %arg4: memref<1x8xf32, #tpu.memory_space<vmem>>, %arg5: memref<72x8xbf16, #tpu.memory_space<vmem>>, %arg6: memref<1x328x8xbf16, #tpu.memory_space<vmem>>, %arg7: memref<1x1x8xf32, #tpu.memory_space<vmem>>, %arg8: memref<1x1x8xf32, #tpu.memory_space<vmem>>, %arg9: memref<376x8xf32, #tpu.memory_space<vmem>>, %arg10: memref<328x72xbf16, #tpu.memory_space<vmem>>) attributes {dimension_semantics = [#tpu.dimension_semantics<parallel>], iteration_bounds = array<i64: 2>, scalar_prefetch = 0 : i64, scratch_operands = 2 : i64, tpu.core_type = #tpu.core_type<tc>, window_params = [{transform_indices = @transform_0, window_bounds = array<i64: 1, 328, 8>}, {pipeline_mode = #tpu.pipeline_mode<synchronous>, transform_indices = @transform_1, window_bounds = array<i64: 328, 1>}, {pipeline_mode = #tpu.pipeline_mode<synchronous>, transform_indices = @transform_2, window_bounds = array<i64: 1, 8>}, {pipeline_mode = #tpu.pipeline_mode<synchronous>, transform_indices = @transform_3, window_bounds = array<i64: 1, 8>}, {pipeline_mode = #tpu.pipeline_mode<synchronous>, transform_indices = @transform_4, window_bounds = array<i64: 72, 8>}, {transform_indices = @transform_5, window_bounds = array<i64: 1, 328, 8>}, {transform_indices = @transform_6, window_bounds = array<i64: 1, 1, 8>}, {transform_indices = @transform_7, window_bounds = array<i64: 1, 1, 8>}]} {
    %c0 = arith.constant 0 : index
    %c0_0 = arith.constant 0 : index
    %c0_1 = arith.constant 0 : index
    %0 = vector.load %arg1[%c0, %c0_0, %c0_1] : memref<1x328x8xf32, #tpu.memory_space<vmem>>, vector<1x328x8xf32>
    %1 = vector.shape_cast %0 : vector<1x328x8xf32> to vector<328x8xf32>
    %cst = arith.constant 0.000000e+00 : f32
    %2 = vector.broadcast %cst : f32 to vector<24x8xf32>
    %c24 = arith.constant 24 : index
    %c0_2 = arith.constant 0 : index
    %3 = vector.load %arg9[%c24, %c0_2] : memref<376x8xf32, #tpu.memory_space<vmem>>, vector<328x8xf32>
    tpu.vector_store %arg9[%c24, %c0_2], %1 {strides = array<i32>} : memref<376x8xf32, #tpu.memory_space<vmem>>, vector<328x8xf32>,
    %c0_3 = arith.constant 0 : index
    %c0_4 = arith.constant 0 : index
    %4 = vector.load %arg9[%c0_3, %c0_4] : memref<376x8xf32, #tpu.memory_space<vmem>>, vector<24x8xf32>
    tpu.vector_store %arg9[%c0_3, %c0_4], %2 {strides = array<i32>} : memref<376x8xf32, #tpu.memory_space<vmem>>, vector<24x8xf32>,
    %c352 = arith.constant 352 : index
    %c0_5 = arith.constant 0 : index
    %5 = vector.load %arg9[%c352, %c0_5] : memref<376x8xf32, #tpu.memory_space<vmem>>, vector<24x8xf32>
    tpu.vector_store %arg9[%c352, %c0_5], %2 {strides = array<i32>} : memref<376x8xf32, #tpu.memory_space<vmem>>, vector<24x8xf32>,
    %c5 = arith.constant 5 : index
    %c0_6 = arith.constant 0 : index
    %6 = vector.load %arg9[%c5, %c0_6] : memref<376x8xf32, #tpu.memory_space<vmem>>, vector<328x8xf32>
    %7 = arith.truncf %6 : vector<328x8xf32> to vector<328x8xbf16>
    %c0_7 = arith.constant 0 : index
    %c0_8 = arith.constant 0 : index
    %8 = vector.load %arg10[%c0_7, %c0_8] : memref<328x72xbf16, #tpu.memory_space<vmem>>, vector<328x8xbf16>
    tpu.vector_store %arg10[%c0_7, %c0_8], %7 {strides = array<i32>} : memref<328x72xbf16, #tpu.memory_space<vmem>>, vector<328x8xbf16>,
    %c6 = arith.constant 6 : index
    %c0_9 = arith.constant 0 : index
    %9 = vector.load %arg9[%c6, %c0_9] : memref<376x8xf32, #tpu.memory_space<vmem>>, vector<328x8xf32>
    %10 = arith.truncf %9 : vector<328x8xf32> to vector<328x8xbf16>
    %c0_10 = arith.constant 0 : index
    %c8 = arith.constant 8 : index
    %11 = vector.load %arg10[%c0_10, %c8] : memref<328x72xbf16, #tpu.memory_space<vmem>>, vector<328x8xbf16>
    tpu.vector_store %arg10[%c0_10, %c8], %10 {strides = array<i32>} : memref<328x72xbf16, #tpu.memory_space<vmem>>, vector<328x8xbf16>,
    %c7 = arith.constant 7 : index
    %c0_11 = arith.constant 0 : index
    %12 = vector.load %arg9[%c7, %c0_11] : memref<376x8xf32, #tpu.memory_space<vmem>>, vector<328x8xf32>
    %13 = arith.truncf %12 : vector<328x8xf32> to vector<328x8xbf16>
    %c0_12 = arith.constant 0 : index
    %c16 = arith.constant 16 : index
    %14 = vector.load %arg10[%c0_12, %c16] : memref<328x72xbf16, #tpu.memory_space<vmem>>, vector<328x8xbf16>
    tpu.vector_store %arg10[%c0_12, %c16], %13 {strides = array<i32>} : memref<328x72xbf16, #tpu.memory_space<vmem>>, vector<328x8xbf16>,
    %c23 = arith.constant 23 : index
    %c0_13 = arith.constant 0 : index
    %15 = vector.load %arg9[%c23, %c0_13] : memref<376x8xf32, #tpu.memory_space<vmem>>, vector<328x8xf32>
    %16 = arith.truncf %15 : vector<328x8xf32> to vector<328x8xbf16>
    %c0_14 = arith.constant 0 : index
    %c24_15 = arith.constant 24 : index
    %17 = vector.load %arg10[%c0_14, %c24_15] : memref<328x72xbf16, #tpu.memory_space<vmem>>, vector<328x8xbf16>
    tpu.vector_store %arg10[%c0_14, %c24_15], %16 {strides = array<i32>} : memref<328x72xbf16, #tpu.memory_space<vmem>>, vector<328x8xbf16>,
    %c24_16 = arith.constant 24 : index
    %c0_17 = arith.constant 0 : index
    %18 = vector.load %arg9[%c24_16, %c0_17] : memref<376x8xf32, #tpu.memory_space<vmem>>, vector<328x8xf32>
    %19 = arith.truncf %18 : vector<328x8xf32> to vector<328x8xbf16>
    %c0_18 = arith.constant 0 : index
    %c32 = arith.constant 32 : index
    %20 = vector.load %arg10[%c0_18, %c32] : memref<328x72xbf16, #tpu.memory_space<vmem>>, vector<328x8xbf16>
    tpu.vector_store %arg10[%c0_18, %c32], %19 {strides = array<i32>} : memref<328x72xbf16, #tpu.memory_space<vmem>>, vector<328x8xbf16>,
    %c25 = arith.constant 25 : index
    %c0_19 = arith.constant 0 : index
    %21 = vector.load %arg9[%c25, %c0_19] : memref<376x8xf32, #tpu.memory_space<vmem>>, vector<328x8xf32>
    %22 = arith.truncf %21 : vector<328x8xf32> to vector<328x8xbf16>
    %c0_20 = arith.constant 0 : index
    %c40 = arith.constant 40 : index
    %23 = vector.load %arg10[%c0_20, %c40] : memref<328x72xbf16, #tpu.memory_space<vmem>>, vector<328x8xbf16>
    tpu.vector_store %arg10[%c0_20, %c40], %22 {strides = array<i32>} : memref<328x72xbf16, #tpu.memory_space<vmem>>, vector<328x8xbf16>,
    %c41 = arith.constant 41 : index
    %c0_21 = arith.constant 0 : index
    %24 = vector.load %arg9[%c41, %c0_21] : memref<376x8xf32, #tpu.memory_space<vmem>>, vector<328x8xf32>
    %25 = arith.truncf %24 : vector<328x8xf32> to vector<328x8xbf16>
    %c0_22 = arith.constant 0 : index
    %c48 = arith.constant 48 : index
    %26 = vector.load %arg10[%c0_22, %c48] : memref<328x72xbf16, #tpu.memory_space<vmem>>, vector<328x8xbf16>
    tpu.vector_store %arg10[%c0_22, %c48], %25 {strides = array<i32>} : memref<328x72xbf16, #tpu.memory_space<vmem>>, vector<328x8xbf16>,
    %c42 = arith.constant 42 : index
    %c0_23 = arith.constant 0 : index
    %27 = vector.load %arg9[%c42, %c0_23] : memref<376x8xf32, #tpu.memory_space<vmem>>, vector<328x8xf32>
    %28 = arith.truncf %27 : vector<328x8xf32> to vector<328x8xbf16>
    %c0_24 = arith.constant 0 : index
    %c56 = arith.constant 56 : index
    %29 = vector.load %arg10[%c0_24, %c56] : memref<328x72xbf16, #tpu.memory_space<vmem>>, vector<328x8xbf16>
    tpu.vector_store %arg10[%c0_24, %c56], %28 {strides = array<i32>} : memref<328x72xbf16, #tpu.memory_space<vmem>>, vector<328x8xbf16>,
    %c43 = arith.constant 43 : index
    %c0_25 = arith.constant 0 : index
    %30 = vector.load %arg9[%c43, %c0_25] : memref<376x8xf32, #tpu.memory_space<vmem>>, vector<328x8xf32>
    %31 = arith.truncf %30 : vector<328x8xf32> to vector<328x8xbf16>
    %c0_26 = arith.constant 0 : index
    %c64 = arith.constant 64 : index
    %32 = vector.load %arg10[%c0_26, %c64] : memref<328x72xbf16, #tpu.memory_space<vmem>>, vector<328x8xbf16>
    tpu.vector_store %arg10[%c0_26, %c64], %31 {strides = array<i32>} : memref<328x72xbf16, #tpu.memory_space<vmem>>, vector<328x8xbf16>,
    %c0_27 = arith.constant 0 : index
    %c0_28 = arith.constant 0 : index
    %33 = vector.load %arg10[%c0_27, %c0_28] : memref<328x72xbf16, #tpu.memory_space<vmem>>, vector<328x72xbf16>
    %c0_29 = arith.constant 0 : index
    %c0_30 = arith.constant 0 : index
    %34 = vector.load %arg5[%c0_29, %c0_30] : memref<72x8xbf16, #tpu.memory_space<vmem>>, vector<72x8xbf16>
    %cst_31 = arith.constant dense<0.000000e+00> : vector<328x8xf32>
    %35 = tpu.matmul %33, %34, %cst_31 {dimension_numbers = #tpu.dot_dimension_numbers<[1], [0], [0], [1], [0, 0, 1, 1], [], []>} : vector<328x72xbf16>, vector<72x8xbf16>, vector<328x8xf32> -> vector<328x8xf32>
    %36 = arith.truncf %35 : vector<328x8xf32> to vector<328x8xbf16>
    %c0_32 = arith.constant 0 : index
    %c0_33 = arith.constant 0 : index
    %c0_34 = arith.constant 0 : index
    %37 = vector.load %arg6[%c0_32, %c0_33, %c0_34] : memref<1x328x8xbf16, #tpu.memory_space<vmem>>, vector<1x328x8xbf16>
    %38 = vector.shape_cast %37 : vector<1x328x8xbf16> to vector<328x8xbf16>
    %39 = vector.shape_cast %36 : vector<328x8xbf16> to vector<1x328x8xbf16>
    tpu.vector_store %arg6[%c0_32, %c0_33, %c0_34], %39 {strides = array<i32>} : memref<1x328x8xbf16, #tpu.memory_space<vmem>>, vector<1x328x8xbf16>,
    %c0_35 = arith.constant 0 : index
    %c0_36 = arith.constant 0 : index
    %40 = vector.load %arg2[%c0_35, %c0_36] : memref<328x1xf32, #tpu.memory_space<vmem>>, vector<328x1xf32>
    %41 = vector.broadcast %40 : vector<328x1xf32> to vector<328x8xf32>
    %42 = arith.mulf %35, %41 : vector<328x8xf32>
    %cst_37 = arith.constant dense<0.000000e+00> : vector<8xf32>
    %43 = vector.multi_reduction <add>, %42, %cst_37 [0] : vector<328x8xf32> to vector<8xf32>
    %44 = vector.shape_cast %43 : vector<8xf32> to vector<1x8xf32>
    %c0_38 = arith.constant 0 : index
    %c0_39 = arith.constant 0 : index
    %c0_40 = arith.constant 0 : index
    %45 = vector.load %arg7[%c0_38, %c0_39, %c0_40] : memref<1x1x8xf32, #tpu.memory_space<vmem>>, vector<1x1x8xf32>
    %46 = vector.shape_cast %45 : vector<1x1x8xf32> to vector<1x8xf32>
    %47 = vector.shape_cast %44 : vector<1x8xf32> to vector<1x1x8xf32>
    tpu.vector_store %arg7[%c0_38, %c0_39, %c0_40], %47 {strides = array<i32>} : memref<1x1x8xf32, #tpu.memory_space<vmem>>, vector<1x1x8xf32>,
    %48 = arith.mulf %42, %42 : vector<328x8xf32>
    %cst_41 = arith.constant dense<0.000000e+00> : vector<8xf32>
    %49 = vector.multi_reduction <add>, %48, %cst_41 [0] : vector<328x8xf32> to vector<8xf32>
    %50 = vector.shape_cast %49 : vector<8xf32> to vector<1x8xf32>
    %c0_42 = arith.constant 0 : index
    %c0_43 = arith.constant 0 : index
    %c0_44 = arith.constant 0 : index
    %51 = vector.load %arg8[%c0_42, %c0_43, %c0_44] : memref<1x1x8xf32, #tpu.memory_space<vmem>>, vector<1x1x8xf32>
    %52 = vector.shape_cast %51 : vector<1x1x8xf32> to vector<1x8xf32>
    %53 = vector.shape_cast %50 : vector<1x8xf32> to vector<1x1x8xf32>
    tpu.vector_store %arg8[%c0_42, %c0_43, %c0_44], %53 {strides = array<i32>} : memref<1x1x8xf32, #tpu.memory_space<vmem>>, vector<1x1x8xf32>,
    return
  }
  func.func @transform_0(%arg0: i32) -> (i32, i32, i32) {
    %c0_i32 = arith.constant 0 : i32
    %c0_i32_0 = arith.constant 0 : i32
    %c0_i32_1 = arith.constant 0 : i32
    return %arg0, %c0_i32, %c0_i32_0 : i32, i32, i32
  }
  func.func @transform_1(%arg0: i32) -> (i32, i32) {
    %c0_i32 = arith.constant 0 : i32
    %c0_i32_0 = arith.constant 0 : i32
    %c0_i32_1 = arith.constant 0 : i32
    return %c0_i32, %c0_i32_0 : i32, i32
  }
  func.func @transform_2(%arg0: i32) -> (i32, i32) {
    %c0_i32 = arith.constant 0 : i32
    %c0_i32_0 = arith.constant 0 : i32
    %c0_i32_1 = arith.constant 0 : i32
    return %c0_i32, %c0_i32_0 : i32, i32
  }
  func.func @transform_3(%arg0: i32) -> (i32, i32) {
    %c0_i32 = arith.constant 0 : i32
    %c0_i32_0 = arith.constant 0 : i32
    %c0_i32_1 = arith.constant 0 : i32
    return %c0_i32, %c0_i32_0 : i32, i32
  }
  func.func @transform_4(%arg0: i32) -> (i32, i32) {
    %c0_i32 = arith.constant 0 : i32
    %c0_i32_0 = arith.constant 0 : i32
    %c0_i32_1 = arith.constant 0 : i32
    return %c0_i32, %c0_i32_0 : i32, i32
  }
  func.func @transform_5(%arg0: i32) -> (i32, i32, i32) {
    %c0_i32 = arith.constant 0 : i32
    %c0_i32_0 = arith.constant 0 : i32
    %c0_i32_1 = arith.constant 0 : i32
    return %arg0, %c0_i32, %c0_i32_0 : i32, i32, i32
  }
  func.func @transform_6(%arg0: i32) -> (i32, i32, i32) {
    %c0_i32 = arith.constant 0 : i32
    %c0_i32_0 = arith.constant 0 : i32
    %c0_i32_1 = arith.constant 0 : i32
    return %arg0, %c0_i32, %c0_i32_0 : i32, i32, i32
  }
  func.func @transform_7(%arg0: i32) -> (i32, i32, i32) {
    %c0_i32 = arith.constant 0 : i32
    %c0_i32_0 = arith.constant 0 : i32
    %c0_i32_1 = arith.constant 0 : i32
    return %arg0, %c0_i32, %c0_i32_0 : i32, i32, i32
  }
}

module attributes {stable_mosaic.version = 11 : i64} {
  func.func @_conv3x3_kernel(%arg0: i32, %arg1: memref<1x328x8xbf16, #tpu.memory_space<vmem>>, %arg2: memref<328x1xf32, #tpu.memory_space<vmem>>, %arg3: memref<1x8xf32, #tpu.memory_space<vmem>>, %arg4: memref<1x8xf32, #tpu.memory_space<vmem>>, %arg5: memref<72x8xbf16, #tpu.memory_space<vmem>>, %arg6: memref<1x328x8xbf16, #tpu.memory_space<vmem>>, %arg7: memref<1x1x8xf32, #tpu.memory_space<vmem>>, %arg8: memref<1x1x8xf32, #tpu.memory_space<vmem>>, %arg9: memref<376x8xf32, #tpu.memory_space<vmem>>, %arg10: memref<328x72xbf16, #tpu.memory_space<vmem>>) attributes {dimension_semantics = [#tpu.dimension_semantics<parallel>], iteration_bounds = array<i64: 2>, scalar_prefetch = 0 : i64, scratch_operands = 2 : i64, tpu.core_type = #tpu.core_type<tc>, window_params = [{transform_indices = @transform_0, window_bounds = array<i64: 1, 328, 8>}, {pipeline_mode = #tpu.pipeline_mode<synchronous>, transform_indices = @transform_1, window_bounds = array<i64: 328, 1>}, {pipeline_mode = #tpu.pipeline_mode<synchronous>, transform_indices = @transform_2, window_bounds = array<i64: 1, 8>}, {pipeline_mode = #tpu.pipeline_mode<synchronous>, transform_indices = @transform_3, window_bounds = array<i64: 1, 8>}, {pipeline_mode = #tpu.pipeline_mode<synchronous>, transform_indices = @transform_4, window_bounds = array<i64: 72, 8>}, {transform_indices = @transform_5, window_bounds = array<i64: 1, 328, 8>}, {transform_indices = @transform_6, window_bounds = array<i64: 1, 1, 8>}, {transform_indices = @transform_7, window_bounds = array<i64: 1, 1, 8>}]} {
    %c0 = arith.constant 0 : index
    %c0_0 = arith.constant 0 : index
    %c0_1 = arith.constant 0 : index
    %0 = vector.load %arg1[%c0, %c0_0, %c0_1] : memref<1x328x8xbf16, #tpu.memory_space<vmem>>, vector<1x328x8xbf16>
    %1 = vector.shape_cast %0 : vector<1x328x8xbf16> to vector<328x8xbf16>
    %2 = arith.extf %1 : vector<328x8xbf16> to vector<328x8xf32>
    %c0_2 = arith.constant 0 : index
    %c0_3 = arith.constant 0 : index
    %3 = vector.load %arg2[%c0_2, %c0_3] : memref<328x1xf32, #tpu.memory_space<vmem>>, vector<328x1xf32>
    %c0_4 = arith.constant 0 : index
    %c0_5 = arith.constant 0 : index
    %4 = vector.load %arg3[%c0_4, %c0_5] : memref<1x8xf32, #tpu.memory_space<vmem>>, vector<1x8xf32>
    %5 = vector.broadcast %4 : vector<1x8xf32> to vector<328x8xf32>
    %6 = arith.mulf %2, %5 : vector<328x8xf32>
    %c0_6 = arith.constant 0 : index
    %c0_7 = arith.constant 0 : index
    %7 = vector.load %arg4[%c0_6, %c0_7] : memref<1x8xf32, #tpu.memory_space<vmem>>, vector<1x8xf32>
    %8 = vector.broadcast %7 : vector<1x8xf32> to vector<328x8xf32>
    %9 = arith.addf %6, %8 : vector<328x8xf32>
    %cst = arith.constant 0.000000e+00 : f32
    %10 = vector.broadcast %cst : f32 to vector<328x8xf32>
    %11 = arith.maximumf %9, %10 : vector<328x8xf32>
    %12 = vector.broadcast %3 : vector<328x1xf32> to vector<328x8xf32>
    %13 = arith.mulf %12, %11 : vector<328x8xf32>
    %cst_8 = arith.constant 0.000000e+00 : f32
    %14 = vector.broadcast %cst_8 : f32 to vector<24x8xf32>
    %c24 = arith.constant 24 : index
    %c0_9 = arith.constant 0 : index
    %15 = vector.load %arg9[%c24, %c0_9] : memref<376x8xf32, #tpu.memory_space<vmem>>, vector<328x8xf32>
    tpu.vector_store %arg9[%c24, %c0_9], %13 {strides = array<i32>} : memref<376x8xf32, #tpu.memory_space<vmem>>, vector<328x8xf32>,
    %c0_10 = arith.constant 0 : index
    %c0_11 = arith.constant 0 : index
    %16 = vector.load %arg9[%c0_10, %c0_11] : memref<376x8xf32, #tpu.memory_space<vmem>>, vector<24x8xf32>
    tpu.vector_store %arg9[%c0_10, %c0_11], %14 {strides = array<i32>} : memref<376x8xf32, #tpu.memory_space<vmem>>, vector<24x8xf32>,
    %c352 = arith.constant 352 : index
    %c0_12 = arith.constant 0 : index
    %17 = vector.load %arg9[%c352, %c0_12] : memref<376x8xf32, #tpu.memory_space<vmem>>, vector<24x8xf32>
    tpu.vector_store %arg9[%c352, %c0_12], %14 {strides = array<i32>} : memref<376x8xf32, #tpu.memory_space<vmem>>, vector<24x8xf32>,
    %c5 = arith.constant 5 : index
    %c0_13 = arith.constant 0 : index
    %18 = vector.load %arg9[%c5, %c0_13] : memref<376x8xf32, #tpu.memory_space<vmem>>, vector<328x8xf32>
    %19 = arith.truncf %18 : vector<328x8xf32> to vector<328x8xbf16>
    %c0_14 = arith.constant 0 : index
    %c0_15 = arith.constant 0 : index
    %20 = vector.load %arg10[%c0_14, %c0_15] : memref<328x72xbf16, #tpu.memory_space<vmem>>, vector<328x8xbf16>
    tpu.vector_store %arg10[%c0_14, %c0_15], %19 {strides = array<i32>} : memref<328x72xbf16, #tpu.memory_space<vmem>>, vector<328x8xbf16>,
    %c6 = arith.constant 6 : index
    %c0_16 = arith.constant 0 : index
    %21 = vector.load %arg9[%c6, %c0_16] : memref<376x8xf32, #tpu.memory_space<vmem>>, vector<328x8xf32>
    %22 = arith.truncf %21 : vector<328x8xf32> to vector<328x8xbf16>
    %c0_17 = arith.constant 0 : index
    %c8 = arith.constant 8 : index
    %23 = vector.load %arg10[%c0_17, %c8] : memref<328x72xbf16, #tpu.memory_space<vmem>>, vector<328x8xbf16>
    tpu.vector_store %arg10[%c0_17, %c8], %22 {strides = array<i32>} : memref<328x72xbf16, #tpu.memory_space<vmem>>, vector<328x8xbf16>,
    %c7 = arith.constant 7 : index
    %c0_18 = arith.constant 0 : index
    %24 = vector.load %arg9[%c7, %c0_18] : memref<376x8xf32, #tpu.memory_space<vmem>>, vector<328x8xf32>
    %25 = arith.truncf %24 : vector<328x8xf32> to vector<328x8xbf16>
    %c0_19 = arith.constant 0 : index
    %c16 = arith.constant 16 : index
    %26 = vector.load %arg10[%c0_19, %c16] : memref<328x72xbf16, #tpu.memory_space<vmem>>, vector<328x8xbf16>
    tpu.vector_store %arg10[%c0_19, %c16], %25 {strides = array<i32>} : memref<328x72xbf16, #tpu.memory_space<vmem>>, vector<328x8xbf16>,
    %c23 = arith.constant 23 : index
    %c0_20 = arith.constant 0 : index
    %27 = vector.load %arg9[%c23, %c0_20] : memref<376x8xf32, #tpu.memory_space<vmem>>, vector<328x8xf32>
    %28 = arith.truncf %27 : vector<328x8xf32> to vector<328x8xbf16>
    %c0_21 = arith.constant 0 : index
    %c24_22 = arith.constant 24 : index
    %29 = vector.load %arg10[%c0_21, %c24_22] : memref<328x72xbf16, #tpu.memory_space<vmem>>, vector<328x8xbf16>
    tpu.vector_store %arg10[%c0_21, %c24_22], %28 {strides = array<i32>} : memref<328x72xbf16, #tpu.memory_space<vmem>>, vector<328x8xbf16>,
    %c24_23 = arith.constant 24 : index
    %c0_24 = arith.constant 0 : index
    %30 = vector.load %arg9[%c24_23, %c0_24] : memref<376x8xf32, #tpu.memory_space<vmem>>, vector<328x8xf32>
    %31 = arith.truncf %30 : vector<328x8xf32> to vector<328x8xbf16>
    %c0_25 = arith.constant 0 : index
    %c32 = arith.constant 32 : index
    %32 = vector.load %arg10[%c0_25, %c32] : memref<328x72xbf16, #tpu.memory_space<vmem>>, vector<328x8xbf16>
    tpu.vector_store %arg10[%c0_25, %c32], %31 {strides = array<i32>} : memref<328x72xbf16, #tpu.memory_space<vmem>>, vector<328x8xbf16>,
    %c25 = arith.constant 25 : index
    %c0_26 = arith.constant 0 : index
    %33 = vector.load %arg9[%c25, %c0_26] : memref<376x8xf32, #tpu.memory_space<vmem>>, vector<328x8xf32>
    %34 = arith.truncf %33 : vector<328x8xf32> to vector<328x8xbf16>
    %c0_27 = arith.constant 0 : index
    %c40 = arith.constant 40 : index
    %35 = vector.load %arg10[%c0_27, %c40] : memref<328x72xbf16, #tpu.memory_space<vmem>>, vector<328x8xbf16>
    tpu.vector_store %arg10[%c0_27, %c40], %34 {strides = array<i32>} : memref<328x72xbf16, #tpu.memory_space<vmem>>, vector<328x8xbf16>,
    %c41 = arith.constant 41 : index
    %c0_28 = arith.constant 0 : index
    %36 = vector.load %arg9[%c41, %c0_28] : memref<376x8xf32, #tpu.memory_space<vmem>>, vector<328x8xf32>
    %37 = arith.truncf %36 : vector<328x8xf32> to vector<328x8xbf16>
    %c0_29 = arith.constant 0 : index
    %c48 = arith.constant 48 : index
    %38 = vector.load %arg10[%c0_29, %c48] : memref<328x72xbf16, #tpu.memory_space<vmem>>, vector<328x8xbf16>
    tpu.vector_store %arg10[%c0_29, %c48], %37 {strides = array<i32>} : memref<328x72xbf16, #tpu.memory_space<vmem>>, vector<328x8xbf16>,
    %c42 = arith.constant 42 : index
    %c0_30 = arith.constant 0 : index
    %39 = vector.load %arg9[%c42, %c0_30] : memref<376x8xf32, #tpu.memory_space<vmem>>, vector<328x8xf32>
    %40 = arith.truncf %39 : vector<328x8xf32> to vector<328x8xbf16>
    %c0_31 = arith.constant 0 : index
    %c56 = arith.constant 56 : index
    %41 = vector.load %arg10[%c0_31, %c56] : memref<328x72xbf16, #tpu.memory_space<vmem>>, vector<328x8xbf16>
    tpu.vector_store %arg10[%c0_31, %c56], %40 {strides = array<i32>} : memref<328x72xbf16, #tpu.memory_space<vmem>>, vector<328x8xbf16>,
    %c43 = arith.constant 43 : index
    %c0_32 = arith.constant 0 : index
    %42 = vector.load %arg9[%c43, %c0_32] : memref<376x8xf32, #tpu.memory_space<vmem>>, vector<328x8xf32>
    %43 = arith.truncf %42 : vector<328x8xf32> to vector<328x8xbf16>
    %c0_33 = arith.constant 0 : index
    %c64 = arith.constant 64 : index
    %44 = vector.load %arg10[%c0_33, %c64] : memref<328x72xbf16, #tpu.memory_space<vmem>>, vector<328x8xbf16>
    tpu.vector_store %arg10[%c0_33, %c64], %43 {strides = array<i32>} : memref<328x72xbf16, #tpu.memory_space<vmem>>, vector<328x8xbf16>,
    %c0_34 = arith.constant 0 : index
    %c0_35 = arith.constant 0 : index
    %45 = vector.load %arg10[%c0_34, %c0_35] : memref<328x72xbf16, #tpu.memory_space<vmem>>, vector<328x72xbf16>
    %c0_36 = arith.constant 0 : index
    %c0_37 = arith.constant 0 : index
    %46 = vector.load %arg5[%c0_36, %c0_37] : memref<72x8xbf16, #tpu.memory_space<vmem>>, vector<72x8xbf16>
    %cst_38 = arith.constant dense<0.000000e+00> : vector<328x8xf32>
    %47 = tpu.matmul %45, %46, %cst_38 {dimension_numbers = #tpu.dot_dimension_numbers<[1], [0], [0], [1], [0, 0, 1, 1], [], []>} : vector<328x72xbf16>, vector<72x8xbf16>, vector<328x8xf32> -> vector<328x8xf32>
    %48 = arith.truncf %47 : vector<328x8xf32> to vector<328x8xbf16>
    %c0_39 = arith.constant 0 : index
    %c0_40 = arith.constant 0 : index
    %c0_41 = arith.constant 0 : index
    %49 = vector.load %arg6[%c0_39, %c0_40, %c0_41] : memref<1x328x8xbf16, #tpu.memory_space<vmem>>, vector<1x328x8xbf16>
    %50 = vector.shape_cast %49 : vector<1x328x8xbf16> to vector<328x8xbf16>
    %51 = vector.shape_cast %48 : vector<328x8xbf16> to vector<1x328x8xbf16>
    tpu.vector_store %arg6[%c0_39, %c0_40, %c0_41], %51 {strides = array<i32>} : memref<1x328x8xbf16, #tpu.memory_space<vmem>>, vector<1x328x8xbf16>,
    %c0_42 = arith.constant 0 : index
    %c0_43 = arith.constant 0 : index
    %52 = vector.load %arg2[%c0_42, %c0_43] : memref<328x1xf32, #tpu.memory_space<vmem>>, vector<328x1xf32>
    %53 = vector.broadcast %52 : vector<328x1xf32> to vector<328x8xf32>
    %54 = arith.mulf %47, %53 : vector<328x8xf32>
    %cst_44 = arith.constant dense<0.000000e+00> : vector<8xf32>
    %55 = vector.multi_reduction <add>, %54, %cst_44 [0] : vector<328x8xf32> to vector<8xf32>
    %56 = vector.shape_cast %55 : vector<8xf32> to vector<1x8xf32>
    %c0_45 = arith.constant 0 : index
    %c0_46 = arith.constant 0 : index
    %c0_47 = arith.constant 0 : index
    %57 = vector.load %arg7[%c0_45, %c0_46, %c0_47] : memref<1x1x8xf32, #tpu.memory_space<vmem>>, vector<1x1x8xf32>
    %58 = vector.shape_cast %57 : vector<1x1x8xf32> to vector<1x8xf32>
    %59 = vector.shape_cast %56 : vector<1x8xf32> to vector<1x1x8xf32>
    tpu.vector_store %arg7[%c0_45, %c0_46, %c0_47], %59 {strides = array<i32>} : memref<1x1x8xf32, #tpu.memory_space<vmem>>, vector<1x1x8xf32>,
    %60 = arith.mulf %54, %54 : vector<328x8xf32>
    %cst_48 = arith.constant dense<0.000000e+00> : vector<8xf32>
    %61 = vector.multi_reduction <add>, %60, %cst_48 [0] : vector<328x8xf32> to vector<8xf32>
    %62 = vector.shape_cast %61 : vector<8xf32> to vector<1x8xf32>
    %c0_49 = arith.constant 0 : index
    %c0_50 = arith.constant 0 : index
    %c0_51 = arith.constant 0 : index
    %63 = vector.load %arg8[%c0_49, %c0_50, %c0_51] : memref<1x1x8xf32, #tpu.memory_space<vmem>>, vector<1x1x8xf32>
    %64 = vector.shape_cast %63 : vector<1x1x8xf32> to vector<1x8xf32>
    %65 = vector.shape_cast %62 : vector<1x8xf32> to vector<1x1x8xf32>
    tpu.vector_store %arg8[%c0_49, %c0_50, %c0_51], %65 {strides = array<i32>} : memref<1x1x8xf32, #tpu.memory_space<vmem>>, vector<1x1x8xf32>,
    return
  }
  func.func @transform_0(%arg0: i32) -> (i32, i32, i32) {
    %c0_i32 = arith.constant 0 : i32
    %c0_i32_0 = arith.constant 0 : i32
    %c0_i32_1 = arith.constant 0 : i32
    return %arg0, %c0_i32, %c0_i32_0 : i32, i32, i32
  }
  func.func @transform_1(%arg0: i32) -> (i32, i32) {
    %c0_i32 = arith.constant 0 : i32
    %c0_i32_0 = arith.constant 0 : i32
    %c0_i32_1 = arith.constant 0 : i32
    return %c0_i32, %c0_i32_0 : i32, i32
  }
  func.func @transform_2(%arg0: i32) -> (i32, i32) {
    %c0_i32 = arith.constant 0 : i32
    %c0_i32_0 = arith.constant 0 : i32
    %c0_i32_1 = arith.constant 0 : i32
    return %c0_i32, %c0_i32_0 : i32, i32
  }
  func.func @transform_3(%arg0: i32) -> (i32, i32) {
    %c0_i32 = arith.constant 0 : i32
    %c0_i32_0 = arith.constant 0 : i32
    %c0_i32_1 = arith.constant 0 : i32
    return %c0_i32, %c0_i32_0 : i32, i32
  }
  func.func @transform_4(%arg0: i32) -> (i32, i32) {
    %c0_i32 = arith.constant 0 : i32
    %c0_i32_0 = arith.constant 0 : i32
    %c0_i32_1 = arith.constant 0 : i32
    return %c0_i32, %c0_i32_0 : i32, i32
  }
  func.func @transform_5(%arg0: i32) -> (i32, i32, i32) {
    %c0_i32 = arith.constant 0 : i32
    %c0_i32_0 = arith.constant 0 : i32
    %c0_i32_1 = arith.constant 0 : i32
    return %arg0, %c0_i32, %c0_i32_0 : i32, i32, i32
  }
  func.func @transform_6(%arg0: i32) -> (i32, i32, i32) {
    %c0_i32 = arith.constant 0 : i32
    %c0_i32_0 = arith.constant 0 : i32
    %c0_i32_1 = arith.constant 0 : i32
    return %arg0, %c0_i32, %c0_i32_0 : i32, i32, i32
  }
  func.func @transform_7(%arg0: i32) -> (i32, i32, i32) {
    %c0_i32 = arith.constant 0 : i32
    %c0_i32_0 = arith.constant 0 : i32
    %c0_i32_1 = arith.constant 0 : i32
    return %arg0, %c0_i32, %c0_i32_0 : i32, i32, i32
  }
}

module attributes {stable_mosaic.version = 11 : i64} {
  func.func @_bn_add_relu_kernel(%arg0: i32, %arg1: memref<1x328x8xbf16, #tpu.memory_space<vmem>>, %arg2: memref<1x328x8xf32, #tpu.memory_space<vmem>>, %arg3: memref<1x8xf32, #tpu.memory_space<vmem>>, %arg4: memref<1x8xf32, #tpu.memory_space<vmem>>, %arg5: memref<1x328x8xf32, #tpu.memory_space<vmem>>) attributes {dimension_semantics = [#tpu.dimension_semantics<parallel>], iteration_bounds = array<i64: 2>, scalar_prefetch = 0 : i64, scratch_operands = 0 : i64, tpu.core_type = #tpu.core_type<tc>, window_params = [{transform_indices = @transform_0, window_bounds = array<i64: 1, 328, 8>}, {transform_indices = @transform_1, window_bounds = array<i64: 1, 328, 8>}, {pipeline_mode = #tpu.pipeline_mode<synchronous>, transform_indices = @transform_2, window_bounds = array<i64: 1, 8>}, {pipeline_mode = #tpu.pipeline_mode<synchronous>, transform_indices = @transform_3, window_bounds = array<i64: 1, 8>}, {transform_indices = @transform_4, window_bounds = array<i64: 1, 328, 8>}]} {
    %c0 = arith.constant 0 : index
    %c0_0 = arith.constant 0 : index
    %c0_1 = arith.constant 0 : index
    %0 = vector.load %arg1[%c0, %c0_0, %c0_1] : memref<1x328x8xbf16, #tpu.memory_space<vmem>>, vector<1x328x8xbf16>
    %1 = vector.shape_cast %0 : vector<1x328x8xbf16> to vector<328x8xbf16>
    %2 = arith.extf %1 : vector<328x8xbf16> to vector<328x8xf32>
    %c0_2 = arith.constant 0 : index
    %c0_3 = arith.constant 0 : index
    %3 = vector.load %arg3[%c0_2, %c0_3] : memref<1x8xf32, #tpu.memory_space<vmem>>, vector<1x8xf32>
    %4 = vector.broadcast %3 : vector<1x8xf32> to vector<328x8xf32>
    %5 = arith.mulf %2, %4 : vector<328x8xf32>
    %c0_4 = arith.constant 0 : index
    %c0_5 = arith.constant 0 : index
    %6 = vector.load %arg4[%c0_4, %c0_5] : memref<1x8xf32, #tpu.memory_space<vmem>>, vector<1x8xf32>
    %7 = vector.broadcast %6 : vector<1x8xf32> to vector<328x8xf32>
    %8 = arith.addf %5, %7 : vector<328x8xf32>
    %c0_6 = arith.constant 0 : index
    %c0_7 = arith.constant 0 : index
    %c0_8 = arith.constant 0 : index
    %9 = vector.load %arg2[%c0_6, %c0_7, %c0_8] : memref<1x328x8xf32, #tpu.memory_space<vmem>>, vector<1x328x8xf32>
    %10 = vector.shape_cast %9 : vector<1x328x8xf32> to vector<328x8xf32>
    %11 = arith.addf %8, %10 : vector<328x8xf32>
    %cst = arith.constant 0.000000e+00 : f32
    %12 = vector.broadcast %cst : f32 to vector<328x8xf32>
    %13 = arith.maximumf %11, %12 : vector<328x8xf32>
    %c0_9 = arith.constant 0 : index
    %c0_10 = arith.constant 0 : index
    %c0_11 = arith.constant 0 : index
    %14 = vector.load %arg5[%c0_9, %c0_10, %c0_11] : memref<1x328x8xf32, #tpu.memory_space<vmem>>, vector<1x328x8xf32>
    %15 = vector.shape_cast %14 : vector<1x328x8xf32> to vector<328x8xf32>
    %16 = vector.shape_cast %13 : vector<328x8xf32> to vector<1x328x8xf32>
    tpu.vector_store %arg5[%c0_9, %c0_10, %c0_11], %16 {strides = array<i32>} : memref<1x328x8xf32, #tpu.memory_space<vmem>>, vector<1x328x8xf32>,
    return
  }
  func.func @transform_0(%arg0: i32) -> (i32, i32, i32) {
    %c0_i32 = arith.constant 0 : i32
    %c0_i32_0 = arith.constant 0 : i32
    %c0_i32_1 = arith.constant 0 : i32
    return %arg0, %c0_i32, %c0_i32_0 : i32, i32, i32
  }
  func.func @transform_1(%arg0: i32) -> (i32, i32, i32) {
    %c0_i32 = arith.constant 0 : i32
    %c0_i32_0 = arith.constant 0 : i32
    %c0_i32_1 = arith.constant 0 : i32
    return %arg0, %c0_i32, %c0_i32_0 : i32, i32, i32
  }
  func.func @transform_2(%arg0: i32) -> (i32, i32) {
    %c0_i32 = arith.constant 0 : i32
    %c0_i32_0 = arith.constant 0 : i32
    %c0_i32_1 = arith.constant 0 : i32
    return %c0_i32, %c0_i32_0 : i32, i32
  }
  func.func @transform_3(%arg0: i32) -> (i32, i32) {
    %c0_i32 = arith.constant 0 : i32
    %c0_i32_0 = arith.constant 0 : i32
    %c0_i32_1 = arith.constant 0 : i32
    return %c0_i32, %c0_i32_0 : i32, i32
  }
  func.func @transform_4(%arg0: i32) -> (i32, i32, i32) {
    %c0_i32 = arith.constant 0 : i32
    %c0_i32_0 = arith.constant 0 : i32
    %c0_i32_1 = arith.constant 0 : i32
    return %arg0, %c0_i32, %c0_i32_0 : i32, i32, i32
  }
}

</mosaic_0001>

<llo_original>
// kernel: basic_block_forward.5
$region0: #{basic_block_forward.5}
  #allocation0 [shape = 'u32[]', space=smem, size = 0x4, offset = 0x4, fixed_abs, tag = 'smem constant byte address 0x4 - core index']
  #allocation1 [shape = 'u32[72,128]{1,0:T(1,128)}', space=vmem, size = 0x9000, scoped, tag = 'internal scratch']
  %s0 = inlined_call_operand.vmem [shape: bf16[2,328,8], index: 0, kind: input, shape index: {}]
  %s1 = inlined_call_operand.vmem [shape: f32[2,328,8], index: 1, kind: input, shape index: {}]
  %s2 = inlined_call_operand.vmem [shape: f32[1,8], index: 2, kind: input, shape index: {}]
  %s3 = inlined_call_operand.vmem [shape: f32[1,8], index: 3, kind: input, shape index: {}]
  %s4 = inlined_call_operand.vmem [shape: f32[2,328,8], index: 4, kind: output, shape index: {}]
  %s5 = sld [smem:[#allocation0]]
  $region49: #{basic_block_forward.5} parent=0
    _
  %s7 = ssub.s32 1, %s5
  %s8 = scalar_select 0, %s7, %s5
  loop: start=0, step=1, limit=4
  $region2: #{basic_block_forward.5} parent=0 // loop_pre_header
    _
  $region3: #{basic_block_forward.5} parent=0 // loop_header
    %s10 = sphi 0, %s14
    %p11 = scmp.ge.s32.totalorder %s10, 4
    %s20 = sphi 0, %s22
    %s23 = sphi 0, %s20
    %s24 = sphi 0, %s23
    %s40 = sphi 0, %s24
    %s46 = sphi 0, %s48
    %s49 = sphi 0, %s46
    %s50 = sphi 0, %s49
    %s66 = sphi 0, %s50
    %s70 = sphi 0, %s70
    %s72 = sphi 0, %s70
    %s73 = sphi 0, %s72
    %s87 = sphi 0, %s73
    %s91 = sphi 0, %s91
    %s93 = sphi 0, %s91
    %s94 = sphi 0, %s93
    %s108 = sphi 0, %s94
    %s114 = sphi 0, %s116
    %s117 = sphi 0, %s114
    %s118 = sphi 0, %s117
    %s134 = sphi 0, %s118
  $region4: #{basic_block_forward.5} parent=0 // loop_header_branch
    %13 = sbr.rel (%p11) target = $region8
  $region5: #{basic_block_forward.5} parent=0 // loop_body
    %s15 = ssub.s32 %s10, 1
    %s16 = ssub.s32 %s10, 2
    %s17 = sadd.s32 %s10, 1
    %s18 = ssub.s32 %s10, %s17
    %p19 = scmp.eq.s32.totalorder %s18, 0
    %s21 = sadd.s32 %s20, 1
    %s22 = scalar_select %p19, %s20, %s21
    %p25 = pneg %p19
    %p26 = scmp.eq.s32.totalorder %s10, 1
    %p27 = por %p25, %p26
    %p28 = scmp.ne.s32.totalorder %s20, %s23
    %p29 = scmp.eq.s32.totalorder %s10, 0
    %p30 = por %p28, %p29
    %p31 = scmp.ne.s32.totalorder %s20, %s23
    %p32 = scmp.eq.s32.totalorder %s15, 1
    %p33 = por %p31, %p32
    %p34 = scmp.ne.s32.totalorder %s23, %s24
    %p35 = scmp.eq.s32.totalorder %s15, 0
    %p36 = por %p34, %p35
    %p37 = scmp.ne.s32.totalorder %s23, %s24
    %p38 = scmp.eq.s32.totalorder %s16, 1
    %p39 = por %p37, %p38
    %p41 = scmp.ne.s32.totalorder %s24, %s40
    %p42 = scmp.eq.s32.totalorder %s16, 0
    %p43 = por %p41, %p42
    %s44 = ssub.s32 %s10, %s17
    %p45 = scmp.eq.s32.totalorder %s44, 0
    %s47 = sadd.s32 %s46, 1
    %s48 = scalar_select %p45, %s46, %s47
    %p51 = pneg %p45
    %p52 = scmp.eq.s32.totalorder %s10, 1
    %p53 = por %p51, %p52
    %p54 = scmp.ne.s32.totalorder %s46, %s49
    %p55 = scmp.eq.s32.totalorder %s10, 0
    %p56 = por %p54, %p55
    %p57 = scmp.ne.s32.totalorder %s46, %s49
    %p58 = scmp.eq.s32.totalorder %s15, 1
    %p59 = por %p57, %p58
    %p60 = scmp.ne.s32.totalorder %s49, %s50
    %p61 = scmp.eq.s32.totalorder %s15, 0
    %p62 = por %p60, %p61
    %p63 = scmp.ne.s32.totalorder %s49, %s50
    %p64 = scmp.eq.s32.totalorder %s16, 1
    %p65 = por %p63, %p64
    %p67 = scmp.ne.s32.totalorder %s50, %s66
    %p68 = scmp.eq.s32.totalorder %s16, 0
    %p69 = por %p67, %p68
    %s71 = sadd.s32 %s70, 1
    %p74 = scmp.eq.s32.totalorder %s10, 1
    %p75 = scmp.ne.s32.totalorder %s70, %s72
    %p76 = scmp.eq.s32.totalorder %s10, 0
    %p77 = por %p75, %p76
    %p78 = scmp.ne.s32.totalorder %s70, %s72
    %p79 = scmp.eq.s32.totalorder %s15, 1
    %p80 = por %p78, %p79
    %p81 = scmp.ne.s32.totalorder %s72, %s73
    %p82 = scmp.eq.s32.totalorder %s15, 0
    %p83 = por %p81, %p82
    %p84 = scmp.ne.s32.totalorder %s72, %s73
    %p85 = scmp.eq.s32.totalorder %s16, 1
    %p86 = por %p84, %p85
    %p88 = scmp.ne.s32.totalorder %s73, %s87
    %p89 = scmp.eq.s32.totalorder %s16, 0
    %p90 = por %p88, %p89
    %s92 = sadd.s32 %s91, 1
    %p95 = scmp.eq.s32.totalorder %s10, 1
    %p96 = scmp.ne.s32.totalorder %s91, %s93
    %p97 = scmp.eq.s32.totalorder %s10, 0
    %p98 = por %p96, %p97
    %p99 = scmp.ne.s32.totalorder %s91, %s93
    %p100 = scmp.eq.s32.totalorder %s15, 1
    %p101 = por %p99, %p100
    %p102 = scmp.ne.s32.totalorder %s93, %s94
    %p103 = scmp.eq.s32.totalorder %s15, 0
    %p104 = por %p102, %p103
    %p105 = scmp.ne.s32.totalorder %s93, %s94
    %p106 = scmp.eq.s32.totalorder %s16, 1
    %p107 = por %p105, %p106
    %p109 = scmp.ne.s32.totalorder %s94, %s108
    %p110 = scmp.eq.s32.totalorder %s16, 0
    %p111 = por %p109, %p110
    %s112 = ssub.s32 %s10, %s17
    %p113 = scmp.eq.s32.totalorder %s112, 0
    %s115 = sadd.s32 %s114, 1
    %s116 = scalar_select %p113, %s114, %s115
    %p119 = pneg %p113
    %p120 = scmp.eq.s32.totalorder %s10, 1
    %p121 = por %p119, %p120
    %p122 = scmp.ne.s32.totalorder %s114, %s117
    %p123 = scmp.eq.s32.totalorder %s10, 0
    %p124 = por %p122, %p123
    %p125 = scmp.ne.s32.totalorder %s114, %s117
    %p126 = scmp.eq.s32.totalorder %s15, 1
    %p127 = por %p125, %p126
    %p128 = scmp.ne.s32.totalorder %s117, %s118
    %p129 = scmp.eq.s32.totalorder %s15, 0
    %p130 = por %p128, %p129
    %p131 = scmp.ne.s32.totalorder %s117, %s118
    %p132 = scmp.eq.s32.totalorder %s16, 1
    %p133 = por %p131, %p132
    %p135 = scmp.ne.s32.totalorder %s118, %s134
    %p136 = scmp.eq.s32.totalorder %s16, 0
    %p137 = por %p135, %p136
    %p138 = scmp.le.s32.totalorder 1, %s10
    %p139 = scmp.lt.s32.totalorder %s10, 3
    %p140 = pnand %p138, %p139
    %p141 = pneg %p140
    // Predicated region
    $region9: #{basic_block_forward.5} parent=5 // pred_check
      _
    $region10: #{basic_block_forward.5} parent=5 // pred_check_branch
      %143 = sbr.rel (%p140) target = $region12
    $region11: #{basic_block_forward.5} parent=5 // pred_region
      %s144 = ssub.s32 %s10, 1
      // Predicated region
      $region13: #{basic_block_forward.5} parent=11 // pred_check
        %p145 = pneg %p83
      $region14: #{basic_block_forward.5} parent=11 // pred_check_branch
        %147 = sbr.rel (%p145) target = $region16
      $region15: #{basic_block_forward.5} parent=11 // pred_region
        _
      $region16: #{basic_block_forward.5} parent=11 // pred_fallthru
        _
      // Predicated region
      $region17: #{basic_block_forward.5} parent=11 // pred_check
        %p148 = pneg %p104
      $region18: #{basic_block_forward.5} parent=11 // pred_check_branch
        %150 = sbr.rel (%p148) target = $region20
      $region19: #{basic_block_forward.5} parent=11 // pred_region
        _
      $region20: #{basic_block_forward.5} parent=11 // pred_fallthru
        _
    $region12: #{basic_block_forward.5} parent=5 // pred_fallthru
      _
    %p151 = scmp.lt.s32.totalorder %s10, 2
    // Predicated region
    $region21: #{basic_block_forward.5} parent=5 // pred_check
      %p152 = pneg %p151
    $region22: #{basic_block_forward.5} parent=5 // pred_check_branch
      %154 = sbr.rel (%p152) target = $region24
    $region23: #{basic_block_forward.5} parent=5 // pred_region
      // Predicated region
      $region25: #{basic_block_forward.5} parent=23 // pred_check
        %p155 = pneg %p30
      $region26: #{basic_block_forward.5} parent=23 // pred_check_branch
        %157 = sbr.rel (%p155) target = $region28
      $region27: #{basic_block_forward.5} parent=23 // pred_region
        %p158 = scmp.lt.s32.totalorder %s10, 1
        %s159 = scalar_select %p158, %s10, 1
        %s160 = smul.addr %s159, 41
        %s161 = smul.addr %s160, 4
        %s162 = scalar_lea.vmem %s0, %s161
      $region28: #{basic_block_forward.5} parent=23 // pred_fallthru
        _
      // Predicated region
      $region29: #{basic_block_forward.5} parent=23 // pred_check
        %p163 = pneg %p56
      $region30: #{basic_block_forward.5} parent=23 // pred_check_branch
        %165 = sbr.rel (%p163) target = $region32
      $region31: #{basic_block_forward.5} parent=23 // pred_region
        %p166 = scmp.lt.s32.totalorder %s10, 1
        %s167 = scalar_select %p166, %s10, 1
        %s168 = smul.addr %s167, 41
        %s169 = smul.addr %s168, 8
        %s170 = scalar_lea.vmem %s1, %s169
      $region32: #{basic_block_forward.5} parent=23 // pred_fallthru
        _
    $region24: #{basic_block_forward.5} parent=5 // pred_fallthru
      _
    %p171 = scmp.le.s32.totalorder 1, %s10
    %p172 = scmp.lt.s32.totalorder %s10, 3
    %p173 = pnand %p171, %p172
    %p174 = pneg %p173
    // Predicated region
    $region33: #{basic_block_forward.5} parent=5 // pred_check
      _
    $region34: #{basic_block_forward.5} parent=5 // pred_check_branch
      %176 = sbr.rel (%p173) target = $region36
    $region35: #{basic_block_forward.5} parent=5 // pred_region
      %s177 = ssub.s32 %s10, 1
      %p178 = scmp.lt.s32.totalorder %s15, 1
      %s179 = scalar_select %p178, %s15, 1
      %s180 = smul.addr %s179, 41
      %s181 = smul.addr %s180, 4
      %s182 = scalar_lea.vmem %s0, %s181
      %p183 = pneg %p36
      %p184 = pneg %p33
      %p185 = scmp.lt.s32.totalorder %s15, 1
      %s186 = scalar_select %p185, %s15, 1
      %s187 = smul.addr %s186, 41
      %s188 = smul.addr %s187, 8
      %s189 = scalar_lea.vmem %s1, %s188
      %p190 = pneg %p62
      %p191 = pneg %p59
      %p192 = pneg %p83
      %p193 = pneg %p80
      %p194 = pneg %p104
      %p195 = pneg %p101
      %p196 = pneg %p130
      %p197 = pneg %p127
      %p198 = scmp.lt.s32.totalorder %s15, 1
      %s199 = scalar_select %p198, %s15, 1
      %s200 = smul.addr %s199, 41
      %s201 = smul.addr %s200, 8
      %s202 = scalar_lea.vmem %s4, %s201
      %p203 = scmp.lt.s32.totalorder %s15, 1
      %s204 = scalar_select %p203, %s15, 1
      %s205 = smul.addr %s204, 41
      %s206 = smul.addr %s205, 4
      %s207 = scalar_lea.vmem %s0, %s206
      %p208 = scmp.lt.s32.totalorder %s15, 1
      %s209 = scalar_select %p208, %s15, 1
      %s210 = smul.addr %s209, 41
      %s211 = smul.addr %s210, 8
      %s212 = scalar_lea.vmem %s1, %s211
      %p213 = scmp.lt.s32.totalorder %s15, 1
      %s214 = scalar_select %p213, %s15, 1
      %s215 = smul.addr %s214, 41
      %s216 = smul.addr %s215, 8
      %s217 = scalar_lea.vmem %s4, %s216
      %v218 = vld [vmem:[%s207] sm:$0xf]
      %v219 = vld [vmem:[%s207 + $0x4] sm:$0xf]
      %v220 = vld [vmem:[%s207 + $0x8] sm:$0xf]
      %v221 = vld [vmem:[%s207 + $0xc] sm:$0xf]
      %v222 = vld [vmem:[%s207 + $0x10] sm:$0xf]
      %v223 = vld [vmem:[%s207 + $0x14] sm:$0xf]
      %v224 = vld [vmem:[%s207 + $0x18] sm:$0xf]
      %v225 = vld [vmem:[%s207 + $0x1c] sm:$0xf]
      %v226 = vld [vmem:[%s207 + $0x20] sm:$0xf]
      %v227 = vld [vmem:[%s207 + $0x24] sm:$0xf]
      %v228 = vld [vmem:[%s207 + $0x28] sm:$0xf]
      %v229 = vld [vmem:[%s207 + $0x2c] sm:$0xf]
      %v230 = vld [vmem:[%s207 + $0x30] sm:$0xf]
      %v231 = vld [vmem:[%s207 + $0x34] sm:$0xf]
      %v232 = vld [vmem:[%s207 + $0x38] sm:$0xf]
      %v233 = vld [vmem:[%s207 + $0x3c] sm:$0xf]
      %v234 = vld [vmem:[%s207 + $0x40] sm:$0xf]
      %v235 = vld [vmem:[%s207 + $0x44] sm:$0xf]
      %v236 = vld [vmem:[%s207 + $0x48] sm:$0xf]
      %v237 = vld [vmem:[%s207 + $0x4c] sm:$0xf]
      %v238 = vld [vmem:[%s207 + $0x50] sm:$0xf]
      %v239 = vld [vmem:[%s207 + $0x54] sm:$0xf]
      %v240 = vld [vmem:[%s207 + $0x58] sm:$0xf]
      %v241 = vld [vmem:[%s207 + $0x5c] sm:$0xf]
      %v242 = vld [vmem:[%s207 + $0x60] sm:$0xf]
      %v243 = vld [vmem:[%s207 + $0x64] sm:$0xf]
      %v244 = vld [vmem:[%s207 + $0x68] sm:$0xf]
      %v245 = vld [vmem:[%s207 + $0x6c] sm:$0xf]
      %v246 = vld [vmem:[%s207 + $0x70] sm:$0xf]
      %v247 = vld [vmem:[%s207 + $0x74] sm:$0xf]
      %v248 = vld [vmem:[%s207 + $0x78] sm:$0xf]
      %v249 = vld [vmem:[%s207 + $0x7c] sm:$0xf]
      %v250 = vld [vmem:[%s207 + $0x80] sm:$0xf]
      %v251 = vld [vmem:[%s207 + $0x84] sm:$0xf]
      %v252 = vld [vmem:[%s207 + $0x88] sm:$0xf]
      %v253 = vld [vmem:[%s207 + $0x8c] sm:$0xf]
      %v254 = vld [vmem:[%s207 + $0x90] sm:$0xf]
      %v255 = vld [vmem:[%s207 + $0x94] sm:$0xf]
      %v256 = vld [vmem:[%s207 + $0x98] sm:$0xf]
      %v257 = vld [vmem:[%s207 + $0x9c] sm:$0xf]
      %v258 = vld [vmem:[%s207 + $0xa0] sm:$0xf]
      %v259 = vunpack.c.l.bf16 %v218
      %v260 = vunpack.c.l.bf16 %v219
      %v261 = vunpack.c.l.bf16 %v220
      %v262 = vunpack.c.l.bf16 %v221
      %v263 = vunpack.c.l.bf16 %v222
      %v264 = vunpack.c.l.bf16 %v223
      %v265 = vunpack.c.l.bf16 %v224
      %v266 = vunpack.c.l.bf16 %v225
      %v267 = vunpack.c.l.bf16 %v226
      %v268 = vunpack.c.l.bf16 %v227
      %v269 = vunpack.c.l.bf16 %v228
      %v270 = vunpack.c.l.bf16 %v229
      %v271 = vunpack.c.l.bf16 %v230
      %v272 = vunpack.c.l.bf16 %v231
      %v273 = vunpack.c.l.bf16 %v232
      %v274 = vunpack.c.l.bf16 %v233
      %v275 = vunpack.c.l.bf16 %v234
      %v276 = vunpack.c.l.bf16 %v235
      %v277 = vunpack.c.l.bf16 %v236
      %v278 = vunpack.c.l.bf16 %v237
      %v279 = vunpack.c.l.bf16 %v238
      %v280 = vunpack.c.l.bf16 %v239
      %v281 = vunpack.c.l.bf16 %v240
      %v282 = vunpack.c.l.bf16 %v241
      %v283 = vunpack.c.l.bf16 %v242
      %v284 = vunpack.c.l.bf16 %v243
      %v285 = vunpack.c.l.bf16 %v244
      %v286 = vunpack.c.l.bf16 %v245
      %v287 = vunpack.c.l.bf16 %v246
      %v288 = vunpack.c.l.bf16 %v247
      %v289 = vunpack.c.l.bf16 %v248
      %v290 = vunpack.c.l.bf16 %v249
      %v291 = vunpack.c.l.bf16 %v250
      %v292 = vunpack.c.l.bf16 %v251
      %v293 = vunpack.c.l.bf16 %v252
      %v294 = vunpack.c.l.bf16 %v253
      %v295 = vunpack.c.l.bf16 %v254
      %v296 = vunpack.c.l.bf16 %v255
      %v297 = vunpack.c.l.bf16 %v256
      %v298 = vunpack.c.l.bf16 %v257
      %v299 = vunpack.c.l.bf16 %v258
      %v300 = vld [vmem:[%s2] sm:$0x1]
      %v302 = vperm.slane %v300, 0
      %v304 = vmul.f32 %v259, %v302
      %v305 = vmul.f32 %v260, %v302
      %v306 = vmul.f32 %v261, %v302
      %v307 = vmul.f32 %v262, %v302
      %v308 = vmul.f32 %v263, %v302
      %v309 = vmul.f32 %v264, %v302
      %v310 = vmul.f32 %v265, %v302
      %v311 = vmul.f32 %v266, %v302
      %v312 = vmul.f32 %v267, %v302
      %v313 = vmul.f32 %v268, %v302
      %v314 = vmul.f32 %v269, %v302
      %v315 = vmul.f32 %v270, %v302
      %v316 = vmul.f32 %v271, %v302
      %v317 = vmul.f32 %v272, %v302
      %v318 = vmul.f32 %v273, %v302
      %v319 = vmul.f32 %v274, %v302
      %v320 = vmul.f32 %v275, %v302
      %v321 = vmul.f32 %v276, %v302
      %v322 = vmul.f32 %v277, %v302
      %v323 = vmul.f32 %v278, %v302
      %v324 = vmul.f32 %v279, %v302
      %v325 = vmul.f32 %v280, %v302
      %v326 = vmul.f32 %v281, %v302
      %v327 = vmul.f32 %v282, %v302
      %v328 = vmul.f32 %v283, %v302
      %v329 = vmul.f32 %v284, %v302
      %v330 = vmul.f32 %v285, %v302
      %v331 = vmul.f32 %v286, %v302
      %v332 = vmul.f32 %v287, %v302
      %v333 = vmul.f32 %v288, %v302
      %v334 = vmul.f32 %v289, %v302
      %v335 = vmul.f32 %v290, %v302
      %v336 = vmul.f32 %v291, %v302
      %v337 = vmul.f32 %v292, %v302
      %v338 = vmul.f32 %v293, %v302
      %v339 = vmul.f32 %v294, %v302
      %v340 = vmul.f32 %v295, %v302
      %v341 = vmul.f32 %v296, %v302
      %v342 = vmul.f32 %v297, %v302
      %v343 = vmul.f32 %v298, %v302
      %v344 = vmul.f32 %v299, %v302
      %v345 = vld [vmem:[%s3] sm:$0x1]
      %v347 = vperm.slane %v345, 0
      %v349 = vadd.f32 %v304, %v347
      %v350 = vadd.f32 %v305, %v347
      %v351 = vadd.f32 %v306, %v347
      %v352 = vadd.f32 %v307, %v347
      %v353 = vadd.f32 %v308, %v347
      %v354 = vadd.f32 %v309, %v347
      %v355 = vadd.f32 %v310, %v347
      %v356 = vadd.f32 %v311, %v347
      %v357 = vadd.f32 %v312, %v347
      %v358 = vadd.f32 %v313, %v347
      %v359 = vadd.f32 %v314, %v347
      %v360 = vadd.f32 %v315, %v347
      %v361 = vadd.f32 %v316, %v347
      %v362 = vadd.f32 %v317, %v347
      %v363 = vadd.f32 %v318, %v347
      %v364 = vadd.f32 %v319, %v347
      %v365 = vadd.f32 %v320, %v347
      %v366 = vadd.f32 %v321, %v347
      %v367 = vadd.f32 %v322, %v347
      %v368 = vadd.f32 %v323, %v347
      %v369 = vadd.f32 %v324, %v347
      %v370 = vadd.f32 %v325, %v347
      %v371 = vadd.f32 %v326, %v347
      %v372 = vadd.f32 %v327, %v347
      %v373 = vadd.f32 %v328, %v347
      %v374 = vadd.f32 %v329, %v347
      %v375 = vadd.f32 %v330, %v347
      %v376 = vadd.f32 %v331, %v347
      %v377 = vadd.f32 %v332, %v347
      %v378 = vadd.f32 %v333, %v347
      %v379 = vadd.f32 %v334, %v347
      %v380 = vadd.f32 %v335, %v347
      %v381 = vadd.f32 %v336, %v347
      %v382 = vadd.f32 %v337, %v347
      %v383 = vadd.f32 %v338, %v347
      %v384 = vadd.f32 %v339, %v347
      %v385 = vadd.f32 %v340, %v347
      %v386 = vadd.f32 %v341, %v347
      %v387 = vadd.f32 %v342, %v347
      %v388 = vadd.f32 %v343, %v347
      %v389 = vadd.f32 %v344, %v347
      %v390 = vld [vmem:[%s212] sm:$0xff]
      %v391 = vld [vmem:[%s212 + $0x8] sm:$0xff]
      %v392 = vld [vmem:[%s212 + $0x10] sm:$0xff]
      %v393 = vld [vmem:[%s212 + $0x18] sm:$0xff]
      %v394 = vld [vmem:[%s212 + $0x20] sm:$0xff]
      %v395 = vld [vmem:[%s212 + $0x28] sm:$0xff]
      %v396 = vld [vmem:[%s212 + $0x30] sm:$0xff]
      %v397 = vld [vmem:[%s212 + $0x38] sm:$0xff]
      %v398 = vld [vmem:[%s212 + $0x40] sm:$0xff]
      %v399 = vld [vmem:[%s212 + $0x48] sm:$0xff]
      %v400 = vld [vmem:[%s212 + $0x50] sm:$0xff]
      %v401 = vld [vmem:[%s212 + $0x58] sm:$0xff]
      %v402 = vld [vmem:[%s212 + $0x60] sm:$0xff]
      %v403 = vld [vmem:[%s212 + $0x68] sm:$0xff]
      %v404 = vld [vmem:[%s212 + $0x70] sm:$0xff]
      %v405 = vld [vmem:[%s212 + $0x78] sm:$0xff]
      %v406 = vld [vmem:[%s212 + $0x80] sm:$0xff]
      %v407 = vld [vmem:[%s212 + $0x88] sm:$0xff]
      %v408 = vld [vmem:[%s212 + $0x90] sm:$0xff]
      %v409 = vld [vmem:[%s212 + $0x98] sm:$0xff]
      %v410 = vld [vmem:[%s212 + $0xa0] sm:$0xff]
      %v411 = vld [vmem:[%s212 + $0xa8] sm:$0xff]
      %v412 = vld [vmem:[%s212 + $0xb0] sm:$0xff]
      %v413 = vld [vmem:[%s212 + $0xb8] sm:$0xff]
      %v414 = vld [vmem:[%s212 + $0xc0] sm:$0xff]
      %v415 = vld [vmem:[%s212 + $0xc8] sm:$0xff]
      %v416 = vld [vmem:[%s212 + $0xd0] sm:$0xff]
      %v417 = vld [vmem:[%s212 + $0xd8] sm:$0xff]
      %v418 = vld [vmem:[%s212 + $0xe0] sm:$0xff]
      %v419 = vld [vmem:[%s212 + $0xe8] sm:$0xff]
      %v420 = vld [vmem:[%s212 + $0xf0] sm:$0xff]
      %v421 = vld [vmem:[%s212 + $0xf8] sm:$0xff]
      %v422 = vld [vmem:[%s212 + $0x100] sm:$0xff]
      %v423 = vld [vmem:[%s212 + $0x108] sm:$0xff]
      %v424 = vld [vmem:[%s212 + $0x110] sm:$0xff]
      %v425 = vld [vmem:[%s212 + $0x118] sm:$0xff]
      %v426 = vld [vmem:[%s212 + $0x120] sm:$0xff]
      %v427 = vld [vmem:[%s212 + $0x128] sm:$0xff]
      %v428 = vld [vmem:[%s212 + $0x130] sm:$0xff]
      %v429 = vld [vmem:[%s212 + $0x138] sm:$0xff]
      %v430 = vld [vmem:[%s212 + $0x140] sm:$0xff]
      %v431 = vadd.f32 %v349, %v390
      %v432 = vadd.f32 %v350, %v391
      %v433 = vadd.f32 %v351, %v392
      %v434 = vadd.f32 %v352, %v393
      %v435 = vadd.f32 %v353, %v394
      %v436 = vadd.f32 %v354, %v395
      %v437 = vadd.f32 %v355, %v396
      %v438 = vadd.f32 %v356, %v397
      %v439 = vadd.f32 %v357, %v398
      %v440 = vadd.f32 %v358, %v399
      %v441 = vadd.f32 %v359, %v400
      %v442 = vadd.f32 %v360, %v401
      %v443 = vadd.f32 %v361, %v402
      %v444 = vadd.f32 %v362, %v403
      %v445 = vadd.f32 %v363, %v404
      %v446 = vadd.f32 %v364, %v405
      %v447 = vadd.f32 %v365, %v406
      %v448 = vadd.f32 %v366, %v407
      %v449 = vadd.f32 %v367, %v408
      %v450 = vadd.f32 %v368, %v409
      %v451 = vadd.f32 %v369, %v410
      %v452 = vadd.f32 %v370, %v411
      %v453 = vadd.f32 %v371, %v412
      %v454 = vadd.f32 %v372, %v413
      %v455 = vadd.f32 %v373, %v414
      %v456 = vadd.f32 %v374, %v415
      %v457 = vadd.f32 %v375, %v416
      %v458 = vadd.f32 %v376, %v417
      %v459 = vadd.f32 %v377, %v418
      %v460 = vadd.f32 %v378, %v419
      %v461 = vadd.f32 %v379, %v420
      %v462 = vadd.f32 %v380, %v421
      %v463 = vadd.f32 %v381, %v422
      %v464 = vadd.f32 %v382, %v423
      %v465 = vadd.f32 %v383, %v424
      %v466 = vadd.f32 %v384, %v425
      %v467 = vadd.f32 %v385, %v426
      %v468 = vadd.f32 %v386, %v427
      %v469 = vadd.f32 %v387, %v428
      %v470 = vadd.f32 %v388, %v429
      %v471 = vadd.f32 %v389, %v430
      %v472 = vmax.f32 %v431, 0.0
      %v473 = vmax.f32 %v432, 0.0
      %v474 = vmax.f32 %v433, 0.0
      %v475 = vmax.f32 %v434, 0.0
      %v476 = vmax.f32 %v435, 0.0
      %v477 = vmax.f32 %v436, 0.0
      %v478 = vmax.f32 %v437, 0.0
      %v479 = vmax.f32 %v438, 0.0
      %v480 = vmax.f32 %v439, 0.0
      %v481 = vmax.f32 %v440, 0.0
      %v482 = vmax.f32 %v441, 0.0
      %v483 = vmax.f32 %v442, 0.0
      %v484 = vmax.f32 %v443, 0.0
      %v485 = vmax.f32 %v444, 0.0
      %v486 = vmax.f32 %v445, 0.0
      %v487 = vmax.f32 %v446, 0.0
      %v488 = vmax.f32 %v447, 0.0
      %v489 = vmax.f32 %v448, 0.0
      %v490 = vmax.f32 %v449, 0.0
      %v491 = vmax.f32 %v450, 0.0
      %v492 = vmax.f32 %v451, 0.0
      %v493 = vmax.f32 %v452, 0.0
      %v494 = vmax.f32 %v453, 0.0
      %v495 = vmax.f32 %v454, 0.0
      %v496 = vmax.f32 %v455, 0.0
      %v497 = vmax.f32 %v456, 0.0
      %v498 = vmax.f32 %v457, 0.0
      %v499 = vmax.f32 %v458, 0.0
      %v500 = vmax.f32 %v459, 0.0
      %v501 = vmax.f32 %v460, 0.0
      %v502 = vmax.f32 %v461, 0.0
      %v503 = vmax.f32 %v462, 0.0
      %v504 = vmax.f32 %v463, 0.0
      %v505 = vmax.f32 %v464, 0.0
      %v506 = vmax.f32 %v465, 0.0
      %v507 = vmax.f32 %v466, 0.0
      %v508 = vmax.f32 %v467, 0.0
      %v509 = vmax.f32 %v468, 0.0
      %v510 = vmax.f32 %v469, 0.0
      %v511 = vmax.f32 %v470, 0.0
      %v512 = vmax.f32 %v471, 0.0
      %vm513 = vcmask 64512
      %514 = vst.msk [vmem:[%s217] sm:$0xff] %vm513, %v472
      %515 = vst.msk [vmem:[%s217 + $0x8] sm:$0xff] %vm513, %v473
      %516 = vst.msk [vmem:[%s217 + $0x10] sm:$0xff] %vm513, %v474
      %517 = vst.msk [vmem:[%s217 + $0x18] sm:$0xff] %vm513, %v475
      %518 = vst.msk [vmem:[%s217 + $0x20] sm:$0xff] %vm513, %v476
      %519 = vst.msk [vmem:[%s217 + $0x28] sm:$0xff] %vm513, %v477
      %520 = vst.msk [vmem:[%s217 + $0x30] sm:$0xff] %vm513, %v478
      %521 = vst.msk [vmem:[%s217 + $0x38] sm:$0xff] %vm513, %v479
      %522 = vst.msk [vmem:[%s217 + $0x40] sm:$0xff] %vm513, %v480
      %523 = vst.msk [vmem:[%s217 + $0x48] sm:$0xff] %vm513, %v481
      %524 = vst.msk [vmem:[%s217 + $0x50] sm:$0xff] %vm513, %v482
      %525 = vst.msk [vmem:[%s217 + $0x58] sm:$0xff] %vm513, %v483
      %526 = vst.msk [vmem:[%s217 + $0x60] sm:$0xff] %vm513, %v484
      %527 = vst.msk [vmem:[%s217 + $0x68] sm:$0xff] %vm513, %v485
      %528 = vst.msk [vmem:[%s217 + $0x70] sm:$0xff] %vm513, %v486
      %529 = vst.msk [vmem:[%s217 + $0x78] sm:$0xff] %vm513, %v487
      %530 = vst.msk [vmem:[%s217 + $0x80] sm:$0xff] %vm513, %v488
      %531 = vst.msk [vmem:[%s217 + $0x88] sm:$0xff] %vm513, %v489
      %532 = vst.msk [vmem:[%s217 + $0x90] sm:$0xff] %vm513, %v490
      %533 = vst.msk [vmem:[%s217 + $0x98] sm:$0xff] %vm513, %v491
      %534 = vst.msk [vmem:[%s217 + $0xa0] sm:$0xff] %vm513, %v492
      %535 = vst.msk [vmem:[%s217 + $0xa8] sm:$0xff] %vm513, %v493
      %536 = vst.msk [vmem:[%s217 + $0xb0] sm:$0xff] %vm513, %v494
      %537 = vst.msk [vmem:[%s217 + $0xb8] sm:$0xff] %vm513, %v495
      %538 = vst.msk [vmem:[%s217 + $0xc0] sm:$0xff] %vm513, %v496
      %539 = vst.msk [vmem:[%s217 + $0xc8] sm:$0xff] %vm513, %v497
      %540 = vst.msk [vmem:[%s217 + $0xd0] sm:$0xff] %vm513, %v498
      %541 = vst.msk [vmem:[%s217 + $0xd8] sm:$0xff] %vm513, %v499
      %542 = vst.msk [vmem:[%s217 + $0xe0] sm:$0xff] %vm513, %v500
      %543 = vst.msk [vmem:[%s217 + $0xe8] sm:$0xff] %vm513, %v501
      %544 = vst.msk [vmem:[%s217 + $0xf0] sm:$0xff] %vm513, %v502
      %545 = vst.msk [vmem:[%s217 + $0xf8] sm:$0xff] %vm513, %v503
      %546 = vst.msk [vmem:[%s217 + $0x100] sm:$0xff] %vm513, %v504
      %547 = vst.msk [vmem:[%s217 + $0x108] sm:$0xff] %vm513, %v505
      %548 = vst.msk [vmem:[%s217 + $0x110] sm:$0xff] %vm513, %v506
      %549 = vst.msk [vmem:[%s217 + $0x118] sm:$0xff] %vm513, %v507
      %550 = vst.msk [vmem:[%s217 + $0x120] sm:$0xff] %vm513, %v508
      %551 = vst.msk [vmem:[%s217 + $0x128] sm:$0xff] %vm513, %v509
      %552 = vst.msk [vmem:[%s217 + $0x130] sm:$0xff] %vm513, %v510
      %553 = vst.msk [vmem:[%s217 + $0x138] sm:$0xff] %vm513, %v511
      %554 = vst.msk [vmem:[%s217 + $0x140] sm:$0xff] %vm513, %v512
      %p555 = scmp.lt.s32.totalorder %s15, 1
      %s556 = scalar_select %p555, %s15, 1
      %s557 = smul.addr %s556, 41
      %s558 = smul.addr %s557, 8
      %s559 = scalar_lea.vmem %s4, %s558
      // Predicated region
      $region37: #{basic_block_forward.5} parent=35 // pred_check
        %p560 = pneg %p127
      $region38: #{basic_block_forward.5} parent=35 // pred_check_branch
        %562 = sbr.rel (%p560) target = $region40
      $region39: #{basic_block_forward.5} parent=35 // pred_region
        _
      $region40: #{basic_block_forward.5} parent=35 // pred_fallthru
        _
    $region36: #{basic_block_forward.5} parent=5 // pred_fallthru
      _
    %p563 = scmp.le.s32.totalorder 2, %s10
    // Predicated region
    $region41: #{basic_block_forward.5} parent=5 // pred_check
      %p564 = pneg %p563
    $region42: #{basic_block_forward.5} parent=5 // pred_check_branch
      %566 = sbr.rel (%p564) target = $region44
    $region43: #{basic_block_forward.5} parent=5 // pred_region
      %s567 = ssub.s32 %s10, 2
      // Predicated region
      $region45: #{basic_block_forward.5} parent=43 // pred_check
        %p568 = pneg %p133
      $region46: #{basic_block_forward.5} parent=43 // pred_check_branch
        %570 = sbr.rel (%p568) target = $region48
      $region47: #{basic_block_forward.5} parent=43 // pred_region
        %p571 = scmp.lt.s32.totalorder %s16, 1
        %s572 = scalar_select %p571, %s16, 1
        %s573 = smul.addr %s572, 41
        %s574 = smul.addr %s573, 8
        %s575 = scalar_lea.vmem %s4, %s574
      $region48: #{basic_block_forward.5} parent=43 // pred_fallthru
        _
    $region44: #{basic_block_forward.5} parent=5 // pred_fallthru
      _
  $region6: #{basic_block_forward.5} parent=0 // loop_footer
    %s14 = sadd.s32 1, %s10
  $region7: #{basic_block_forward.5} parent=0 // loop_footer_branch
    %9 = sbr.rel target = $region3
  $region8: #{basic_block_forward.5} parent=0 // loop_exit
    _

// kernel: basic_block_forward.3
$region0: #{basic_block_forward.3}
  #allocation0 [shape = 'u32[]', space=smem, size = 0x4, offset = 0x4, fixed_abs, tag = 'smem constant byte address 0x4 - core index']
  #allocation1 [shape = 'u32[72,128]{1,0:T(1,128)}', space=vmem, size = 0x9000, scoped, tag = 'internal scratch']
  #allocation2 [shape = 'f32[376,8]{1,0:T(8,128)}', space=vmem, size = 0x2f000, scoped, tag = 'scratch operand']
  #allocation3 [shape = 'bf16[328,72]{1,0:T(8,128)(2,1)}', space=vmem, size = 0x14800, scoped, tag = 'scratch operand']
  %s0 = inlined_call_operand.vmem [shape: f32[2,328,8], index: 0, kind: input, shape index: {}]
  %s1 = inlined_call_operand.vmem [shape: f32[328,1], index: 1, kind: input, shape index: {}]
  %s2 = inlined_call_operand.vmem [shape: f32[1,8], index: 2, kind: input, shape index: {}]
  %s3 = inlined_call_operand.vmem [shape: f32[1,8], index: 3, kind: input, shape index: {}]
  %s4 = inlined_call_operand.vmem [shape: bf16[72,8], index: 4, kind: input, shape index: {}]
  %s5 = inlined_call_operand.vmem [shape: bf16[2,328,8], index: 5, kind: output, shape index: {0}]
  %s6 = inlined_call_operand.vmem [shape: f32[2,1,8], index: 6, kind: output, shape index: {1}]
  %s7 = inlined_call_operand.vmem [shape: f32[2,1,8], index: 7, kind: output, shape index: {2}]
  %8 = xla_tuple %s5, %s6, %s7
  %s9 = sld [smem:[#allocation0]]
  $region69: #{basic_block_forward.3} parent=0
    _
  %s11 = ssub.s32 1, %s9
  %s12 = scalar_select 0, %s11, %s9
  loop: start=0, step=1, limit=4
  $region2: #{basic_block_forward.3} parent=0 // loop_pre_header
    _
  $region3: #{basic_block_forward.3} parent=0 // loop_header
    %s14 = sphi 0, %s18
    %p15 = scmp.ge.s32.totalorder %s14, 4
    %s24 = sphi 0, %s26
    %s27 = sphi 0, %s24
    %s28 = sphi 0, %s27
    %s44 = sphi 0, %s28
    %s48 = sphi 0, %s48
    %s50 = sphi 0, %s48
    %s51 = sphi 0, %s50
    %s65 = sphi 0, %s51
    %s69 = sphi 0, %s69
    %s71 = sphi 0, %s69
    %s72 = sphi 0, %s71
    %s86 = sphi 0, %s72
    %s90 = sphi 0, %s90
    %s92 = sphi 0, %s90
    %s93 = sphi 0, %s92
    %s107 = sphi 0, %s93
    %s111 = sphi 0, %s111
    %s113 = sphi 0, %s111
    %s114 = sphi 0, %s113
    %s128 = sphi 0, %s114
    %s134 = sphi 0, %s136
    %s137 = sphi 0, %s134
    %s138 = sphi 0, %s137
    %s154 = sphi 0, %s138
    %s160 = sphi 0, %s162
    %s163 = sphi 0, %s160
    %s164 = sphi 0, %s163
    %s180 = sphi 0, %s164
    %s186 = sphi 0, %s188
    %s189 = sphi 0, %s186
    %s190 = sphi 0, %s189
    %s206 = sphi 0, %s190
  $region4: #{basic_block_forward.3} parent=0 // loop_header_branch
    %17 = sbr.rel (%p15) target = $region8
  $region5: #{basic_block_forward.3} parent=0 // loop_body
    %s19 = ssub.s32 %s14, 1
    %s20 = ssub.s32 %s14, 2
    %s21 = sadd.s32 %s14, 1
    %s22 = ssub.s32 %s14, %s21
    %p23 = scmp.eq.s32.totalorder %s22, 0
    %s25 = sadd.s32 %s24, 1
    %s26 = scalar_select %p23, %s24, %s25
    %p29 = pneg %p23
    %p30 = scmp.eq.s32.totalorder %s14, 1
    %p31 = por %p29, %p30
    %p32 = scmp.ne.s32.totalorder %s24, %s27
    %p33 = scmp.eq.s32.totalorder %s14, 0
    %p34 = por %p32, %p33
    %p35 = scmp.ne.s32.totalorder %s24, %s27
    %p36 = scmp.eq.s32.totalorder %s19, 1
    %p37 = por %p35, %p36
    %p38 = scmp.ne.s32.totalorder %s27, %s28
    %p39 = scmp.eq.s32.totalorder %s19, 0
    %p40 = por %p38, %p39
    %p41 = scmp.ne.s32.totalorder %s27, %s28
    %p42 = scmp.eq.s32.totalorder %s20, 1
    %p43 = por %p41, %p42
    %p45 = scmp.ne.s32.totalorder %s28, %s44
    %p46 = scmp.eq.s32.totalorder %s20, 0
    %p47 = por %p45, %p46
    %s49 = sadd.s32 %s48, 1
    %p52 = scmp.eq.s32.totalorder %s14, 1
    %p53 = scmp.ne.s32.totalorder %s48, %s50
    %p54 = scmp.eq.s32.totalorder %s14, 0
    %p55 = por %p53, %p54
    %p56 = scmp.ne.s32.totalorder %s48, %s50
    %p57 = scmp.eq.s32.totalorder %s19, 1
    %p58 = por %p56, %p57
    %p59 = scmp.ne.s32.totalorder %s50, %s51
    %p60 = scmp.eq.s32.totalorder %s19, 0
    %p61 = por %p59, %p60
    %p62 = scmp.ne.s32.totalorder %s50, %s51
    %p63 = scmp.eq.s32.totalorder %s20, 1
    %p64 = por %p62, %p63
    %p66 = scmp.ne.s32.totalorder %s51, %s65
    %p67 = scmp.eq.s32.totalorder %s20, 0
    %p68 = por %p66, %p67
    %s70 = sadd.s32 %s69, 1
    %p73 = scmp.eq.s32.totalorder %s14, 1
    %p74 = scmp.ne.s32.totalorder %s69, %s71
    %p75 = scmp.eq.s32.totalorder %s14, 0
    %p76 = por %p74, %p75
    %p77 = scmp.ne.s32.totalorder %s69, %s71
    %p78 = scmp.eq.s32.totalorder %s19, 1
    %p79 = por %p77, %p78
    %p80 = scmp.ne.s32.totalorder %s71, %s72
    %p81 = scmp.eq.s32.totalorder %s19, 0
    %p82 = por %p80, %p81
    %p83 = scmp.ne.s32.totalorder %s71, %s72
    %p84 = scmp.eq.s32.totalorder %s20, 1
    %p85 = por %p83, %p84
    %p87 = scmp.ne.s32.totalorder %s72, %s86
    %p88 = scmp.eq.s32.totalorder %s20, 0
    %p89 = por %p87, %p88
    %s91 = sadd.s32 %s90, 1
    %p94 = scmp.eq.s32.totalorder %s14, 1
    %p95 = scmp.ne.s32.totalorder %s90, %s92
    %p96 = scmp.eq.s32.totalorder %s14, 0
    %p97 = por %p95, %p96
    %p98 = scmp.ne.s32.totalorder %s90, %s92
    %p99 = scmp.eq.s32.totalorder %s19, 1
    %p100 = por %p98, %p99
    %p101 = scmp.ne.s32.totalorder %s92, %s93
    %p102 = scmp.eq.s32.totalorder %s19, 0
    %p103 = por %p101, %p102
    %p104 = scmp.ne.s32.totalorder %s92, %s93
    %p105 = scmp.eq.s32.totalorder %s20, 1
    %p106 = por %p104, %p105
    %p108 = scmp.ne.s32.totalorder %s93, %s107
    %p109 = scmp.eq.s32.totalorder %s20, 0
    %p110 = por %p108, %p109
    %s112 = sadd.s32 %s111, 1
    %p115 = scmp.eq.s32.totalorder %s14, 1
    %p116 = scmp.ne.s32.totalorder %s111, %s113
    %p117 = scmp.eq.s32.totalorder %s14, 0
    %p118 = por %p116, %p117
    %p119 = scmp.ne.s32.totalorder %s111, %s113
    %p120 = scmp.eq.s32.totalorder %s19, 1
    %p121 = por %p119, %p120
    %p122 = scmp.ne.s32.totalorder %s113, %s114
    %p123 = scmp.eq.s32.totalorder %s19, 0
    %p124 = por %p122, %p123
    %p125 = scmp.ne.s32.totalorder %s113, %s114
    %p126 = scmp.eq.s32.totalorder %s20, 1
    %p127 = por %p125, %p126
    %p129 = scmp.ne.s32.totalorder %s114, %s128
    %p130 = scmp.eq.s32.totalorder %s20, 0
    %p131 = por %p129, %p130
    %s132 = ssub.s32 %s14, %s21
    %p133 = scmp.eq.s32.totalorder %s132, 0
    %s135 = sadd.s32 %s134, 1
    %s136 = scalar_select %p133, %s134, %s135
    %p139 = pneg %p133
    %p140 = scmp.eq.s32.totalorder %s14, 1
    %p141 = por %p139, %p140
    %p142 = scmp.ne.s32.totalorder %s134, %s137
    %p143 = scmp.eq.s32.totalorder %s14, 0
    %p144 = por %p142, %p143
    %p145 = scmp.ne.s32.totalorder %s134, %s137
    %p146 = scmp.eq.s32.totalorder %s19, 1
    %p147 = por %p145, %p146
    %p148 = scmp.ne.s32.totalorder %s137, %s138
    %p149 = scmp.eq.s32.totalorder %s19, 0
    %p150 = por %p148, %p149
    %p151 = scmp.ne.s32.totalorder %s137, %s138
    %p152 = scmp.eq.s32.totalorder %s20, 1
    %p153 = por %p151, %p152
    %p155 = scmp.ne.s32.totalorder %s138, %s154
    %p156 = scmp.eq.s32.totalorder %s20, 0
    %p157 = por %p155, %p156
    %s158 = ssub.s32 %s14, %s21
    %p159 = scmp.eq.s32.totalorder %s158, 0
    %s161 = sadd.s32 %s160, 1
    %s162 = scalar_select %p159, %s160, %s161
    %p165 = pneg %p159
    %p166 = scmp.eq.s32.totalorder %s14, 1
    %p167 = por %p165, %p166
    %p168 = scmp.ne.s32.totalorder %s160, %s163
    %p169 = scmp.eq.s32.totalorder %s14, 0
    %p170 = por %p168, %p169
    %p171 = scmp.ne.s32.totalorder %s160, %s163
    %p172 = scmp.eq.s32.totalorder %s19, 1
    %p173 = por %p171, %p172
    %p174 = scmp.ne.s32.totalorder %s163, %s164
    %p175 = scmp.eq.s32.totalorder %s19, 0
    %p176 = por %p174, %p175
    %p177 = scmp.ne.s32.totalorder %s163, %s164
    %p178 = scmp.eq.s32.totalorder %s20, 1
    %p179 = por %p177, %p178
    %p181 = scmp.ne.s32.totalorder %s164, %s180
    %p182 = scmp.eq.s32.totalorder %s20, 0
    %p183 = por %p181, %p182
    %s184 = ssub.s32 %s14, %s21
    %p185 = scmp.eq.s32.totalorder %s184, 0
    %s187 = sadd.s32 %s186, 1
    %s188 = scalar_select %p185, %s186, %s187
    %p191 = pneg %p185
    %p192 = scmp.eq.s32.totalorder %s14, 1
    %p193 = por %p191, %p192
    %p194 = scmp.ne.s32.totalorder %s186, %s189
    %p195 = scmp.eq.s32.totalorder %s14, 0
    %p196 = por %p194, %p195
    %p197 = scmp.ne.s32.totalorder %s186, %s189
    %p198 = scmp.eq.s32.totalorder %s19, 1
    %p199 = por %p197, %p198
    %p200 = scmp.ne.s32.totalorder %s189, %s190
    %p201 = scmp.eq.s32.totalorder %s19, 0
    %p202 = por %p200, %p201
    %p203 = scmp.ne.s32.totalorder %s189, %s190
    %p204 = scmp.eq.s32.totalorder %s20, 1
    %p205 = por %p203, %p204
    %p207 = scmp.ne.s32.totalorder %s190, %s206
    %p208 = scmp.eq.s32.totalorder %s20, 0
    %p209 = por %p207, %p208
    %p210 = scmp.le.s32.totalorder 1, %s14
    %p211 = scmp.lt.s32.totalorder %s14, 3
    %p212 = pnand %p210, %p211
    %p213 = pneg %p212
    // Predicated region
    $region9: #{basic_block_forward.3} parent=5 // pred_check
      _
    $region10: #{basic_block_forward.3} parent=5 // pred_check_branch
      %215 = sbr.rel (%p212) target = $region12
    $region11: #{basic_block_forward.3} parent=5 // pred_region
      %s216 = ssub.s32 %s14, 1
      // Predicated region
      $region13: #{basic_block_forward.3} parent=11 // pred_check
        %p217 = pneg %p61
      $region14: #{basic_block_forward.3} parent=11 // pred_check_branch
        %219 = sbr.rel (%p217) target = $region16
      $region15: #{basic_block_forward.3} parent=11 // pred_region
        _
      $region16: #{basic_block_forward.3} parent=11 // pred_fallthru
        _
      // Predicated region
      $region17: #{basic_block_forward.3} parent=11 // pred_check
        %p220 = pneg %p82
      $region18: #{basic_block_forward.3} parent=11 // pred_check_branch
        %222 = sbr.rel (%p220) target = $region20
      $region19: #{basic_block_forward.3} parent=11 // pred_region
        _
      $region20: #{basic_block_forward.3} parent=11 // pred_fallthru
        _
      // Predicated region
      $region21: #{basic_block_forward.3} parent=11 // pred_check
        %p223 = pneg %p103
      $region22: #{basic_block_forward.3} parent=11 // pred_check_branch
        %225 = sbr.rel (%p223) target = $region24
      $region23: #{basic_block_forward.3} parent=11 // pred_region
        _
      $region24: #{basic_block_forward.3} parent=11 // pred_fallthru
        _
      // Predicated region
      $region25: #{basic_block_forward.3} parent=11 // pred_check
        %p226 = pneg %p124
      $region26: #{basic_block_forward.3} parent=11 // pred_check_branch
        %228 = sbr.rel (%p226) target = $region28
      $region27: #{basic_block_forward.3} parent=11 // pred_region
        _
      $region28: #{basic_block_forward.3} parent=11 // pred_fallthru
        _
    $region12: #{basic_block_forward.3} parent=5 // pred_fallthru
      _
    %p229 = scmp.lt.s32.totalorder %s14, 2
    // Predicated region
    $region29: #{basic_block_forward.3} parent=5 // pred_check
      %p230 = pneg %p229
    $region30: #{basic_block_forward.3} parent=5 // pred_check_branch
      %232 = sbr.rel (%p230) target = $region32
    $region31: #{basic_block_forward.3} parent=5 // pred_region
      // Predicated region
      $region33: #{basic_block_forward.3} parent=31 // pred_check
        %p233 = pneg %p34
      $region34: #{basic_block_forward.3} parent=31 // pred_check_branch
        %235 = sbr.rel (%p233) target = $region36
      $region35: #{basic_block_forward.3} parent=31 // pred_region
        %p236 = scmp.lt.s32.totalorder %s14, 1
        %s237 = scalar_select %p236, %s14, 1
        %s238 = smul.addr %s237, 41
        %s239 = smul.addr %s238, 8
        %s240 = scalar_lea.vmem %s0, %s239
      $region36: #{basic_block_forward.3} parent=31 // pred_fallthru
        _
    $region32: #{basic_block_forward.3} parent=5 // pred_fallthru
      _
    %p241 = scmp.le.s32.totalorder 1, %s14
    %p242 = scmp.lt.s32.totalorder %s14, 3
    %p243 = pnand %p241, %p242
    %p244 = pneg %p243
    // Predicated region
    $region37: #{basic_block_forward.3} parent=5 // pred_check
      _
    $region38: #{basic_block_forward.3} parent=5 // pred_check_branch
      %246 = sbr.rel (%p243) target = $region40
    $region39: #{basic_block_forward.3} parent=5 // pred_region
      %s247 = ssub.s32 %s14, 1
      %p248 = scmp.lt.s32.totalorder %s19, 1
      %s249 = scalar_select %p248, %s19, 1
      %s250 = smul.addr %s249, 41
      %s251 = smul.addr %s250, 8
      %s252 = scalar_lea.vmem %s0, %s251
      %p253 = pneg %p40
      %p254 = pneg %p37
      %p255 = pneg %p61
      %p256 = pneg %p58
      %p257 = pneg %p82
      %p258 = pneg %p79
      %p259 = pneg %p103
      %p260 = pneg %p100
      %p261 = pneg %p124
      %p262 = pneg %p121
      %p263 = pneg %p150
      %p264 = pneg %p147
      %p265 = scmp.lt.s32.totalorder %s19, 1
      %s266 = scalar_select %p265, %s19, 1
      %s267 = smul.addr %s266, 41
      %s268 = smul.addr %s267, 4
      %s269 = scalar_lea.vmem %s5, %s268
      %p270 = pneg %p176
      %p271 = pneg %p173
      %p272 = scmp.lt.s32.totalorder %s19, 1
      %s273 = scalar_select %p272, %s19, 1
      %s274 = scalar_lea.vmem %s6, %s273
      %p275 = pneg %p202
      %p276 = pneg %p199
      %p277 = scmp.lt.s32.totalorder %s19, 1
      %s278 = scalar_select %p277, %s19, 1
      %s279 = scalar_lea.vmem %s7, %s278
      %p280 = scmp.lt.s32.totalorder %s19, 1
      %s281 = scalar_select %p280, %s19, 1
      %s282 = smul.addr %s281, 41
      %s283 = smul.addr %s282, 8
      %s284 = scalar_lea.vmem %s0, %s283
      %p285 = scmp.lt.s32.totalorder %s19, 1
      %s286 = scalar_select %p285, %s19, 1
      %s287 = smul.addr %s286, 41
      %s288 = smul.addr %s287, 4
      %s289 = scalar_lea.vmem %s5, %s288
      %p290 = scmp.lt.s32.totalorder %s19, 1
      %s291 = scalar_select %p290, %s19, 1
      %s292 = scalar_lea.vmem %s6, %s291
      %p293 = scmp.lt.s32.totalorder %s19, 1
      %s294 = scalar_select %p293, %s19, 1
      %s295 = scalar_lea.vmem %s7, %s294
      %v297 = vld [vmem:[%s284] sm:$0xff]
      %v298 = vld [vmem:[%s284 + $0x8] sm:$0xff]
      %v299 = vld [vmem:[%s284 + $0x10] sm:$0xff]
      %v300 = vld [vmem:[%s284 + $0x18] sm:$0xff]
      %v301 = vld [vmem:[%s284 + $0x20] sm:$0xff]
      %v302 = vld [vmem:[%s284 + $0x28] sm:$0xff]
      %v303 = vld [vmem:[%s284 + $0x30] sm:$0xff]
      %v304 = vld [vmem:[%s284 + $0x38] sm:$0xff]
      %v305 = vld [vmem:[%s284 + $0x40] sm:$0xff]
      %v306 = vld [vmem:[%s284 + $0x48] sm:$0xff]
      %v307 = vld [vmem:[%s284 + $0x50] sm:$0xff]
      %v308 = vld [vmem:[%s284 + $0x58] sm:$0xff]
      %v309 = vld [vmem:[%s284 + $0x60] sm:$0xff]
      %v310 = vld [vmem:[%s284 + $0x68] sm:$0xff]
      %v311 = vld [vmem:[%s284 + $0x70] sm:$0xff]
      %v312 = vld [vmem:[%s284 + $0x78] sm:$0xff]
      %v313 = vld [vmem:[%s284 + $0x80] sm:$0xff]
      %v314 = vld [vmem:[%s284 + $0x88] sm:$0xff]
      %v315 = vld [vmem:[%s284 + $0x90] sm:$0xff]
      %v316 = vld [vmem:[%s284 + $0x98] sm:$0xff]
      %v317 = vld [vmem:[%s284 + $0xa0] sm:$0xff]
      %v318 = vld [vmem:[%s284 + $0xa8] sm:$0xff]
      %v319 = vld [vmem:[%s284 + $0xb0] sm:$0xff]
      %v320 = vld [vmem:[%s284 + $0xb8] sm:$0xff]
      %v321 = vld [vmem:[%s284 + $0xc0] sm:$0xff]
      %v322 = vld [vmem:[%s284 + $0xc8] sm:$0xff]
      %v323 = vld [vmem:[%s284 + $0xd0] sm:$0xff]
      %v324 = vld [vmem:[%s284 + $0xd8] sm:$0xff]
      %v325 = vld [vmem:[%s284 + $0xe0] sm:$0xff]
      %v326 = vld [vmem:[%s284 + $0xe8] sm:$0xff]
      %v327 = vld [vmem:[%s284 + $0xf0] sm:$0xff]
      %v328 = vld [vmem:[%s284 + $0xf8] sm:$0xff]
      %v329 = vld [vmem:[%s284 + $0x100] sm:$0xff]
      %v330 = vld [vmem:[%s284 + $0x108] sm:$0xff]
      %v331 = vld [vmem:[%s284 + $0x110] sm:$0xff]
      %v332 = vld [vmem:[%s284 + $0x118] sm:$0xff]
      %v333 = vld [vmem:[%s284 + $0x120] sm:$0xff]
      %v334 = vld [vmem:[%s284 + $0x128] sm:$0xff]
      %v335 = vld [vmem:[%s284 + $0x130] sm:$0xff]
      %v336 = vld [vmem:[%s284 + $0x138] sm:$0xff]
      %v337 = vld [vmem:[%s284 + $0x140] sm:$0xff]
      %vm338 = vcmask 64512
      %339 = vst.msk [vmem:[#allocation2 + $0x18] sm:$0xff] %vm338, %v297
      %340 = vst.msk [vmem:[#allocation2 + $0x20] sm:$0xff] %vm338, %v298
      %341 = vst.msk [vmem:[#allocation2 + $0x28] sm:$0xff] %vm338, %v299
      %342 = vst.msk [vmem:[#allocation2 + $0x30] sm:$0xff] %vm338, %v300
      %343 = vst.msk [vmem:[#allocation2 + $0x38] sm:$0xff] %vm338, %v301
      %344 = vst.msk [vmem:[#allocation2 + $0x40] sm:$0xff] %vm338, %v302
      %345 = vst.msk [vmem:[#allocation2 + $0x48] sm:$0xff] %vm338, %v303
      %346 = vst.msk [vmem:[#allocation2 + $0x50] sm:$0xff] %vm338, %v304
      %347 = vst.msk [vmem:[#allocation2 + $0x58] sm:$0xff] %vm338, %v305
      %348 = vst.msk [vmem:[#allocation2 + $0x60] sm:$0xff] %vm338, %v306
      %349 = vst.msk [vmem:[#allocation2 + $0x68] sm:$0xff] %vm338, %v307
      %350 = vst.msk [vmem:[#allocation2 + $0x70] sm:$0xff] %vm338, %v308
      %351 = vst.msk [vmem:[#allocation2 + $0x78] sm:$0xff] %vm338, %v309
      %352 = vst.msk [vmem:[#allocation2 + $0x80] sm:$0xff] %vm338, %v310
      %353 = vst.msk [vmem:[#allocation2 + $0x88] sm:$0xff] %vm338, %v311
      %354 = vst.msk [vmem:[#allocation2 + $0x90] sm:$0xff] %vm338, %v312
      %355 = vst.msk [vmem:[#allocation2 + $0x98] sm:$0xff] %vm338, %v313
      %356 = vst.msk [vmem:[#allocation2 + $0xa0] sm:$0xff] %vm338, %v314
      %357 = vst.msk [vmem:[#allocation2 + $0xa8] sm:$0xff] %vm338, %v315
      %358 = vst.msk [vmem:[#allocation2 + $0xb0] sm:$0xff] %vm338, %v316
      %359 = vst.msk [vmem:[#allocation2 + $0xb8] sm:$0xff] %vm338, %v317
      %360 = vst.msk [vmem:[#allocation2 + $0xc0] sm:$0xff] %vm338, %v318
      %361 = vst.msk [vmem:[#allocation2 + $0xc8] sm:$0xff] %vm338, %v319
      %362 = vst.msk [vmem:[#allocation2 + $0xd0] sm:$0xff] %vm338, %v320
      %363 = vst.msk [vmem:[#allocation2 + $0xd8] sm:$0xff] %vm338, %v321
      %364 = vst.msk [vmem:[#allocation2 + $0xe0] sm:$0xff] %vm338, %v322
      %365 = vst.msk [vmem:[#allocation2 + $0xe8] sm:$0xff] %vm338, %v323
      %366 = vst.msk [vmem:[#allocation2 + $0xf0] sm:$0xff] %vm338, %v324
      %367 = vst.msk [vmem:[#allocation2 + $0xf8] sm:$0xff] %vm338, %v325
      %368 = vst.msk [vmem:[#allocation2 + $0x100] sm:$0xff] %vm338, %v326
      %369 = vst.msk [vmem:[#allocation2 + $0x108] sm:$0xff] %vm338, %v327
      %370 = vst.msk [vmem:[#allocation2 + $0x110] sm:$0xff] %vm338, %v328
      %371 = vst.msk [vmem:[#allocation2 + $0x118] sm:$0xff] %vm338, %v329
      %372 = vst.msk [vmem:[#allocation2 + $0x120] sm:$0xff] %vm338, %v330
      %373 = vst.msk [vmem:[#allocation2 + $0x128] sm:$0xff] %vm338, %v331
      %374 = vst.msk [vmem:[#allocation2 + $0x130] sm:$0xff] %vm338, %v332
      %375 = vst.msk [vmem:[#allocation2 + $0x138] sm:$0xff] %vm338, %v333
      %376 = vst.msk [vmem:[#allocation2 + $0x140] sm:$0xff] %vm338, %v334
      %377 = vst.msk [vmem:[#allocation2 + $0x148] sm:$0xff] %vm338, %v335
      %378 = vst.msk [vmem:[#allocation2 + $0x150] sm:$0xff] %vm338, %v336
      %379 = vst.msk [vmem:[#allocation2 + $0x158] sm:$0xff] %vm338, %v337
      %380 = vst.msk [vmem:[#allocation2] sm:$0xff] %vm338, 0.0
      %381 = vst.msk [vmem:[#allocation2 + $0x8] sm:$0xff] %vm338, 0.0
      %382 = vst.msk [vmem:[#allocation2 + $0x10] sm:$0xff] %vm338, 0.0
      %383 = vst.msk [vmem:[#allocation2 + $0x160] sm:$0xff] %vm338, 0.0
      %384 = vst.msk [vmem:[#allocation2 + $0x168] sm:$0xff] %vm338, 0.0
      %385 = vst.msk [vmem:[#allocation2 + $0x170] sm:$0xff] %vm338, 0.0
      %v386 = vld [vmem:[#allocation2 + $0x5] sm:$0xff]
      %v387 = vld [vmem:[#allocation2 + $0xd] sm:$0xff]
      %v388 = vld [vmem:[#allocation2 + $0x15] sm:$0xff]
      %v389 = vld [vmem:[#allocation2 + $0x1d] sm:$0xff]
      %v390 = vld [vmem:[#allocation2 + $0x25] sm:$0xff]
      %v391 = vld [vmem:[#allocation2 + $0x2d] sm:$0xff]
      %v392 = vld [vmem:[#allocation2 + $0x35] sm:$0xff]
      %v393 = vld [vmem:[#allocation2 + $0x3d] sm:$0xff]
      %v394 = vld [vmem:[#allocation2 + $0x45] sm:$0xff]
      %v395 = vld [vmem:[#allocation2 + $0x4d] sm:$0xff]
      %v396 = vld [vmem:[#allocation2 + $0x55] sm:$0xff]
      %v397 = vld [vmem:[#allocation2 + $0x5d] sm:$0xff]
      %v398 = vld [vmem:[#allocation2 + $0x65] sm:$0xff]
      %v399 = vld [vmem:[#allocation2 + $0x6d] sm:$0xff]
      %v400 = vld [vmem:[#allocation2 + $0x75] sm:$0xff]
      %v401 = vld [vmem:[#allocation2 + $0x7d] sm:$0xff]
      %v402 = vld [vmem:[#allocation2 + $0x85] sm:$0xff]
      %v403 = vld [vmem:[#allocation2 + $0x8d] sm:$0xff]
      %v404 = vld [vmem:[#allocation2 + $0x95] sm:$0xff]
      %v405 = vld [vmem:[#allocation2 + $0x9d] sm:$0xff]
      %v406 = vld [vmem:[#allocation2 + $0xa5] sm:$0xff]
      %v407 = vld [vmem:[#allocation2 + $0xad] sm:$0xff]
      %v408 = vld [vmem:[#allocation2 + $0xb5] sm:$0xff]
      %v409 = vld [vmem:[#allocation2 + $0xbd] sm:$0xff]
      %v410 = vld [vmem:[#allocation2 + $0xc5] sm:$0xff]
      %v411 = vld [vmem:[#allocation2 + $0xcd] sm:$0xff]
      %v412 = vld [vmem:[#allocation2 + $0xd5] sm:$0xff]
      %v413 = vld [vmem:[#allocation2 + $0xdd] sm:$0xff]
      %v414 = vld [vmem:[#allocation2 + $0xe5] sm:$0xff]
      %v415 = vld [vmem:[#allocation2 + $0xed] sm:$0xff]
      %v416 = vld [vmem:[#allocation2 + $0xf5] sm:$0xff]
      %v417 = vld [vmem:[#allocation2 + $0xfd] sm:$0xff]
      %v418 = vld [vmem:[#allocation2 + $0x105] sm:$0xff]
      %v419 = vld [vmem:[#allocation2 + $0x10d] sm:$0xff]
      %v420 = vld [vmem:[#allocation2 + $0x115] sm:$0xff]
      %v421 = vld [vmem:[#allocation2 + $0x11d] sm:$0xff]
      %v422 = vld [vmem:[#allocation2 + $0x125] sm:$0xff]
      %v423 = vld [vmem:[#allocation2 + $0x12d] sm:$0xff]
      %v424 = vld [vmem:[#allocation2 + $0x135] sm:$0xff]
      %v425 = vld [vmem:[#allocation2 + $0x13d] sm:$0xff]
      %v426 = vld [vmem:[#allocation2 + $0x145] sm:$0xff]
      %v427 = vpack.c.bf16 %v386, %v386
      %v428 = vpack.c.bf16 %v387, %v387
      %v429 = vpack.c.bf16 %v388, %v388
      %v430 = vpack.c.bf16 %v389, %v389
      %v431 = vpack.c.bf16 %v390, %v390
      %v432 = vpack.c.bf16 %v391, %v391
      %v433 = vpack.c.bf16 %v392, %v392
      %v434 = vpack.c.bf16 %v393, %v393
      %v435 = vpack.c.bf16 %v394, %v394
      %v436 = vpack.c.bf16 %v395, %v395
      %v437 = vpack.c.bf16 %v396, %v396
      %v438 = vpack.c.bf16 %v397, %v397
      %v439 = vpack.c.bf16 %v398, %v398
      %v440 = vpack.c.bf16 %v399, %v399
      %v441 = vpack.c.bf16 %v400, %v400
      %v442 = vpack.c.bf16 %v401, %v401
      %v443 = vpack.c.bf16 %v402, %v402
      %v444 = vpack.c.bf16 %v403, %v403
      %v445 = vpack.c.bf16 %v404, %v404
      %v446 = vpack.c.bf16 %v405, %v405
      %v447 = vpack.c.bf16 %v406, %v406
      %v448 = vpack.c.bf16 %v407, %v407
      %v449 = vpack.c.bf16 %v408, %v408
      %v450 = vpack.c.bf16 %v409, %v409
      %v451 = vpack.c.bf16 %v410, %v410
      %v452 = vpack.c.bf16 %v411, %v411
      %v453 = vpack.c.bf16 %v412, %v412
      %v454 = vpack.c.bf16 %v413, %v413
      %v455 = vpack.c.bf16 %v414, %v414
      %v456 = vpack.c.bf16 %v415, %v415
      %v457 = vpack.c.bf16 %v416, %v416
      %v458 = vpack.c.bf16 %v417, %v417
      %v459 = vpack.c.bf16 %v418, %v418
      %v460 = vpack.c.bf16 %v419, %v419
      %v461 = vpack.c.bf16 %v420, %v420
      %v462 = vpack.c.bf16 %v421, %v421
      %v463 = vpack.c.bf16 %v422, %v422
      %v464 = vpack.c.bf16 %v423, %v423
      %v465 = vpack.c.bf16 %v424, %v424
      %v466 = vpack.c.bf16 %v425, %v425
      %v467 = vpack.c.bf16 %v426, %v426
      %vm468 = vcmask 60416
      %469 = vst.msk [vmem:[#allocation3] sm:$0xf] %vm468, %v427
      %470 = vst.msk [vmem:[#allocation3 + $0x4] sm:$0xf] %vm468, %v428
      %471 = vst.msk [vmem:[#allocation3 + $0x8] sm:$0xf] %vm468, %v429
      %472 = vst.msk [vmem:[#allocation3 + $0xc] sm:$0xf] %vm468, %v430
      %473 = vst.msk [vmem:[#allocation3 + $0x10] sm:$0xf] %vm468, %v431
      %474 = vst.msk [vmem:[#allocation3 + $0x14] sm:$0xf] %vm468, %v432
      %475 = vst.msk [vmem:[#allocation3 + $0x18] sm:$0xf] %vm468, %v433
      %476 = vst.msk [vmem:[#allocation3 + $0x1c] sm:$0xf] %vm468, %v434
      %477 = vst.msk [vmem:[#allocation3 + $0x20] sm:$0xf] %vm468, %v435
      %478 = vst.msk [vmem:[#allocation3 + $0x24] sm:$0xf] %vm468, %v436
      %479 = vst.msk [vmem:[#allocation3 + $0x28] sm:$0xf] %vm468, %v437
      %480 = vst.msk [vmem:[#allocation3 + $0x2c] sm:$0xf] %vm468, %v438
      %481 = vst.msk [vmem:[#allocation3 + $0x30] sm:$0xf] %vm468, %v439
      %482 = vst.msk [vmem:[#allocation3 + $0x34] sm:$0xf] %vm468, %v440
      %483 = vst.msk [vmem:[#allocation3 + $0x38] sm:$0xf] %vm468, %v441
      %484 = vst.msk [vmem:[#allocation3 + $0x3c] sm:$0xf] %vm468, %v442
      %485 = vst.msk [vmem:[#allocation3 + $0x40] sm:$0xf] %vm468, %v443
      %486 = vst.msk [vmem:[#allocation3 + $0x44] sm:$0xf] %vm468, %v444
      %487 = vst.msk [vmem:[#allocation3 + $0x48] sm:$0xf] %vm468, %v445
      %488 = vst.msk [vmem:[#allocation3 + $0x4c] sm:$0xf] %vm468, %v446
      %489 = vst.msk [vmem:[#allocation3 + $0x50] sm:$0xf] %vm468, %v447
      %490 = vst.msk [vmem:[#allocation3 + $0x54] sm:$0xf] %vm468, %v448
      %491 = vst.msk [vmem:[#allocation3 + $0x58] sm:$0xf] %vm468, %v449
      %492 = vst.msk [vmem:[#allocation3 + $0x5c] sm:$0xf] %vm468, %v450
      %493 = vst.msk [vmem:[#allocation3 + $0x60] sm:$0xf] %vm468, %v451
      %494 = vst.msk [vmem:[#allocation3 + $0x64] sm:$0xf] %vm468, %v452
      %495 = vst.msk [vmem:[#allocation3 + $0x68] sm:$0xf] %vm468, %v453
      %496 = vst.msk [vmem:[#allocation3 + $0x6c] sm:$0xf] %vm468, %v454
      %497 = vst.msk [vmem:[#allocation3 + $0x70] sm:$0xf] %vm468, %v455
      %498 = vst.msk [vmem:[#allocation3 + $0x74] sm:$0xf] %vm468, %v456
      %499 = vst.msk [vmem:[#allocation3 + $0x78] sm:$0xf] %vm468, %v457
      %500 = vst.msk [vmem:[#allocation3 + $0x7c] sm:$0xf] %vm468, %v458
      %501 = vst.msk [vmem:[#allocation3 + $0x80] sm:$0xf] %vm468, %v459
      %502 = vst.msk [vmem:[#allocation3 + $0x84] sm:$0xf] %vm468, %v460
      %503 = vst.msk [vmem:[#allocation3 + $0x88] sm:$0xf] %vm468, %v461
      %504 = vst.msk [vmem:[#allocation3 + $0x8c] sm:$0xf] %vm468, %v462
      %505 = vst.msk [vmem:[#allocation3 + $0x90] sm:$0xf] %vm468, %v463
      %506 = vst.msk [vmem:[#allocation3 + $0x94] sm:$0xf] %vm468, %v464
      %507 = vst.msk [vmem:[#allocation3 + $0x98] sm:$0xf] %vm468, %v465
      %508 = vst.msk [vmem:[#allocation3 + $0x9c] sm:$0xf] %vm468, %v466
      %509 = vst.msk [vmem:[#allocation3 + $0xa0] sm:$0xf] %vm468, %v467
      %v510 = vld [vmem:[#allocation2 + $0x6] sm:$0xff]
      %v511 = vld [vmem:[#allocation2 + $0xe] sm:$0xff]
      %v512 = vld [vmem:[#allocation2 + $0x16] sm:$0xff]
      %v513 = vld [vmem:[#allocation2 + $0x1e] sm:$0xff]
      %v514 = vld [vmem:[#allocation2 + $0x26] sm:$0xff]
      %v515 = vld [vmem:[#allocation2 + $0x2e] sm:$0xff]
      %v516 = vld [vmem:[#allocation2 + $0x36] sm:$0xff]
      %v517 = vld [vmem:[#allocation2 + $0x3e] sm:$0xff]
      %v518 = vld [vmem:[#allocation2 + $0x46] sm:$0xff]
      %v519 = vld [vmem:[#allocation2 + $0x4e] sm:$0xff]
      %v520 = vld [vmem:[#allocation2 + $0x56] sm:$0xff]
      %v521 = vld [vmem:[#allocation2 + $0x5e] sm:$0xff]
      %v522 = vld [vmem:[#allocation2 + $0x66] sm:$0xff]
      %v523 = vld [vmem:[#allocation2 + $0x6e] sm:$0xff]
      %v524 = vld [vmem:[#allocation2 + $0x76] sm:$0xff]
      %v525 = vld [vmem:[#allocation2 + $0x7e] sm:$0xff]
      %v526 = vld [vmem:[#allocation2 + $0x86] sm:$0xff]
      %v527 = vld [vmem:[#allocation2 + $0x8e] sm:$0xff]
      %v528 = vld [vmem:[#allocation2 + $0x96] sm:$0xff]
      %v529 = vld [vmem:[#allocation2 + $0x9e] sm:$0xff]
      %v530 = vld [vmem:[#allocation2 + $0xa6] sm:$0xff]
      %v531 = vld [vmem:[#allocation2 + $0xae] sm:$0xff]
      %v532 = vld [vmem:[#allocation2 + $0xb6] sm:$0xff]
      %v533 = vld [vmem:[#allocation2 + $0xbe] sm:$0xff]
      %v534 = vld [vmem:[#allocation2 + $0xc6] sm:$0xff]
      %v535 = vld [vmem:[#allocation2 + $0xce] sm:$0xff]
      %v536 = vld [vmem:[#allocation2 + $0xd6] sm:$0xff]
      %v537 = vld [vmem:[#allocation2 + $0xde] sm:$0xff]
      %v538 = vld [vmem:[#allocation2 + $0xe6] sm:$0xff]
      %v539 = vld [vmem:[#allocation2 + $0xee] sm:$0xff]
      %v540 = vld [vmem:[#allocation2 + $0xf6] sm:$0xff]
      %v541 = vld [vmem:[#allocation2 + $0xfe] sm:$0xff]
      %v542 = vld [vmem:[#allocation2 + $0x106] sm:$0xff]
      %v543 = vld [vmem:[#allocation2 + $0x10e] sm:$0xff]
      %v544 = vld [vmem:[#allocation2 + $0x116] sm:$0xff]
      %v545 = vld [vmem:[#allocation2 + $0x11e] sm:$0xff]
      %v546 = vld [vmem:[#allocation2 + $0x126] sm:$0xff]
      %v547 = vld [vmem:[#allocation2 + $0x12e] sm:$0xff]
      %v548 = vld [vmem:[#allocation2 + $0x136] sm:$0xff]
      %v549 = vld [vmem:[#allocation2 + $0x13e] sm:$0xff]
      %v550 = vld [vmem:[#allocation2 + $0x146] sm:$0xff]
      %v551 = vpack.c.bf16 %v510, %v510
      %v552 = vpack.c.bf16 %v511, %v511
      %v553 = vpack.c.bf16 %v512, %v512
      %v554 = vpack.c.bf16 %v513, %v513
      %v555 = vpack.c.bf16 %v514, %v514
      %v556 = vpack.c.bf16 %v515, %v515
      %v557 = vpack.c.bf16 %v516, %v516
      %v558 = vpack.c.bf16 %v517, %v517
      %v559 = vpack.c.bf16 %v518, %v518
      %v560 = vpack.c.bf16 %v519, %v519
      %v561 = vpack.c.bf16 %v520, %v520
      %v562 = vpack.c.bf16 %v521, %v521
      %v563 = vpack.c.bf16 %v522, %v522
      %v564 = vpack.c.bf16 %v523, %v523
      %v565 = vpack.c.bf16 %v524, %v524
      %v566 = vpack.c.bf16 %v525, %v525
      %v567 = vpack.c.bf16 %v526, %v526
      %v568 = vpack.c.bf16 %v527, %v527
      %v569 = vpack.c.bf16 %v528, %v528
      %v570 = vpack.c.bf16 %v529, %v529
      %v571 = vpack.c.bf16 %v530, %v530
      %v572 = vpack.c.bf16 %v531, %v531
      %v573 = vpack.c.bf16 %v532, %v532
      %v574 = vpack.c.bf16 %v533, %v533
      %v575 = vpack.c.bf16 %v534, %v534
      %v576 = vpack.c.bf16 %v535, %v535
      %v577 = vpack.c.bf16 %v536, %v536
      %v578 = vpack.c.bf16 %v537, %v537
      %v579 = vpack.c.bf16 %v538, %v538
      %v580 = vpack.c.bf16 %v539, %v539
      %v581 = vpack.c.bf16 %v540, %v540
      %v582 = vpack.c.bf16 %v541, %v541
      %v583 = vpack.c.bf16 %v542, %v542
      %v584 = vpack.c.bf16 %v543, %v543
      %v585 = vpack.c.bf16 %v544, %v544
      %v586 = vpack.c.bf16 %v545, %v545
      %v587 = vpack.c.bf16 %v546, %v546
      %v588 = vpack.c.bf16 %v547, %v547
      %v589 = vpack.c.bf16 %v548, %v548
      %v590 = vpack.c.bf16 %v549, %v549
      %v591 = vpack.c.bf16 %v550, %v550
      %633 = vrot.lane.b32.xlu0 %v551, 8
      %v634 = vpop.permute.xlu0 %633
      %635 = vrot.lane.b32.xlu0 %v552, 8
      %v636 = vpop.permute.xlu0 %635
      %637 = vrot.lane.b32.xlu0 %v553, 8
      %v638 = vpop.permute.xlu0 %637
      %639 = vrot.lane.b32.xlu0 %v554, 8
      %v640 = vpop.permute.xlu0 %639
      %641 = vrot.lane.b32.xlu0 %v555, 8
      %v642 = vpop.permute.xlu0 %641
      %643 = vrot.lane.b32.xlu0 %v556, 8
      %v644 = vpop.permute.xlu0 %643
      %645 = vrot.lane.b32.xlu0 %v557, 8
      %v646 = vpop.permute.xlu0 %645
      %647 = vrot.lane.b32.xlu0 %v558, 8
      %v648 = vpop.permute.xlu0 %647
      %649 = vrot.lane.b32.xlu0 %v559, 8
      %v650 = vpop.permute.xlu0 %649
      %651 = vrot.lane.b32.xlu0 %v560, 8
      %v652 = vpop.permute.xlu0 %651
      %653 = vrot.lane.b32.xlu0 %v561, 8
      %v654 = vpop.permute.xlu0 %653
      %655 = vrot.lane.b32.xlu0 %v562, 8
      %v656 = vpop.permute.xlu0 %655
      %657 = vrot.lane.b32.xlu0 %v563, 8
      %v658 = vpop.permute.xlu0 %657
      %659 = vrot.lane.b32.xlu0 %v564, 8
      %v660 = vpop.permute.xlu0 %659
      %661 = vrot.lane.b32.xlu0 %v565, 8
      %v662 = vpop.permute.xlu0 %661
      %663 = vrot.lane.b32.xlu0 %v566, 8
      %v664 = vpop.permute.xlu0 %663
      %665 = vrot.lane.b32.xlu0 %v567, 8
      %v666 = vpop.permute.xlu0 %665
      %667 = vrot.lane.b32.xlu0 %v568, 8
      %v668 = vpop.permute.xlu0 %667
      %669 = vrot.lane.b32.xlu0 %v569, 8
      %v670 = vpop.permute.xlu0 %669
      %671 = vrot.lane.b32.xlu0 %v570, 8
      %v672 = vpop.permute.xlu0 %671
      %673 = vrot.lane.b32.xlu0 %v571, 8
      %v674 = vpop.permute.xlu0 %673
      %675 = vrot.lane.b32.xlu0 %v572, 8
      %v676 = vpop.permute.xlu0 %675
      %677 = vrot.lane.b32.xlu0 %v573, 8
      %v678 = vpop.permute.xlu0 %677
      %679 = vrot.lane.b32.xlu0 %v574, 8
      %v680 = vpop.permute.xlu0 %679
      %681 = vrot.lane.b32.xlu0 %v575, 8
      %v682 = vpop.permute.xlu0 %681
      %683 = vrot.lane.b32.xlu0 %v576, 8
      %v684 = vpop.permute.xlu0 %683
      %685 = vrot.lane.b32.xlu0 %v577, 8
      %v686 = vpop.permute.xlu0 %685
      %687 = vrot.lane.b32.xlu0 %v578, 8
      %v688 = vpop.permute.xlu0 %687
      %689 = vrot.lane.b32.xlu0 %v579, 8
      %v690 = vpop.permute.xlu0 %689
      %691 = vrot.lane.b32.xlu0 %v580, 8
      %v692 = vpop.permute.xlu0 %691
      %693 = vrot.lane.b32.xlu0 %v581, 8
      %v694 = vpop.permute.xlu0 %693
      %695 = vrot.lane.b32.xlu0 %v582, 8
      %v696 = vpop.permute.xlu0 %695
      %697 = vrot.lane.b32.xlu0 %v583, 8
      %v698 = vpop.permute.xlu0 %697
      %699 = vrot.lane.b32.xlu0 %v584, 8
      %v700 = vpop.permute.xlu0 %699
      %701 = vrot.lane.b32.xlu0 %v585, 8
      %v702 = vpop.permute.xlu0 %701
      %703 = vrot.lane.b32.xlu0 %v586, 8
      %v704 = vpop.permute.xlu0 %703
      %705 = vrot.lane.b32.xlu0 %v587, 8
      %v706 = vpop.permute.xlu0 %705
      %707 = vrot.lane.b32.xlu0 %v588, 8
      %v708 = vpop.permute.xlu0 %707
      %709 = vrot.lane.b32.xlu0 %v589, 8
      %v710 = vpop.permute.xlu0 %709
      %711 = vrot.lane.b32.xlu0 %v590, 8
      %v712 = vpop.permute.xlu0 %711
      %713 = vrot.lane.b32.xlu0 %v591, 8
      %v714 = vpop.permute.xlu0 %713
      %vm756 = vcmask 126016
      %757 = vst.msk [vmem:[#allocation3] sm:$0xf] %vm756, %v634
      %758 = vst.msk [vmem:[#allocation3 + $0x4] sm:$0xf] %vm756, %v636
      %759 = vst.msk [vmem:[#allocation3 + $0x8] sm:$0xf] %vm756, %v638
      %760 = vst.msk [vmem:[#allocation3 + $0xc] sm:$0xf] %vm756, %v640
      %761 = vst.msk [vmem:[#allocation3 + $0x10] sm:$0xf] %vm756, %v642
      %762 = vst.msk [vmem:[#allocation3 + $0x14] sm:$0xf] %vm756, %v644
      %763 = vst.msk [vmem:[#allocation3 + $0x18] sm:$0xf] %vm756, %v646
      %764 = vst.msk [vmem:[#allocation3 + $0x1c] sm:$0xf] %vm756, %v648
      %765 = vst.msk [vmem:[#allocation3 + $0x20] sm:$0xf] %vm756, %v650
      %766 = vst.msk [vmem:[#allocation3 + $0x24] sm:$0xf] %vm756, %v652
      %767 = vst.msk [vmem:[#allocation3 + $0x28] sm:$0xf] %vm756, %v654
      %768 = vst.msk [vmem:[#allocation3 + $0x2c] sm:$0xf] %vm756, %v656
      %769 = vst.msk [vmem:[#allocation3 + $0x30] sm:$0xf] %vm756, %v658
      %770 = vst.msk [vmem:[#allocation3 + $0x34] sm:$0xf] %vm756, %v660
      %771 = vst.msk [vmem:[#allocation3 + $0x38] sm:$0xf] %vm756, %v662
      %772 = vst.msk [vmem:[#allocation3 + $0x3c] sm:$0xf] %vm756, %v664
      %773 = vst.msk [vmem:[#allocation3 + $0x40] sm:$0xf] %vm756, %v666
      %774 = vst.msk [vmem:[#allocation3 + $0x44] sm:$0xf] %vm756, %v668
      %775 = vst.msk [vmem:[#allocation3 + $0x48] sm:$0xf] %vm756, %v670
      %776 = vst.msk [vmem:[#allocation3 + $0x4c] sm:$0xf] %vm756, %v672
      %777 = vst.msk [vmem:[#allocation3 + $0x50] sm:$0xf] %vm756, %v674
      %778 = vst.msk [vmem:[#allocation3 + $0x54] sm:$0xf] %vm756, %v676
      %779 = vst.msk [vmem:[#allocation3 + $0x58] sm:$0xf] %vm756, %v678
      %780 = vst.msk [vmem:[#allocation3 + $0x5c] sm:$0xf] %vm756, %v680
      %781 = vst.msk [vmem:[#allocation3 + $0x60] sm:$0xf] %vm756, %v682
      %782 = vst.msk [vmem:[#allocation3 + $0x64] sm:$0xf] %vm756, %v684
      %783 = vst.msk [vmem:[#allocation3 + $0x68] sm:$0xf] %vm756, %v686
      %784 = vst.msk [vmem:[#allocation3 + $0x6c] sm:$0xf] %vm756, %v688
      %785 = vst.msk [vmem:[#allocation3 + $0x70] sm:$0xf] %vm756, %v690
      %786 = vst.msk [vmem:[#allocation3 + $0x74] sm:$0xf] %vm756, %v692
      %787 = vst.msk [vmem:[#allocation3 + $0x78] sm:$0xf] %vm756, %v694
      %788 = vst.msk [vmem:[#allocation3 + $0x7c] sm:$0xf] %vm756, %v696
      %789 = vst.msk [vmem:[#allocation3 + $0x80] sm:$0xf] %vm756, %v698
      %790 = vst.msk [vmem:[#allocation3 + $0x84] sm:$0xf] %vm756, %v700
      %791 = vst.msk [vmem:[#allocation3 + $0x88] sm:$0xf] %vm756, %v702
      %792 = vst.msk [vmem:[#allocation3 + $0x8c] sm:$0xf] %vm756, %v704
      %793 = vst.msk [vmem:[#allocation3 + $0x90] sm:$0xf] %vm756, %v706
      %794 = vst.msk [vmem:[#allocation3 + $0x94] sm:$0xf] %vm756, %v708
      %795 = vst.msk [vmem:[#allocation3 + $0x98] sm:$0xf] %vm756, %v710
      %796 = vst.msk [vmem:[#allocation3 + $0x9c] sm:$0xf] %vm756, %v712
      %797 = vst.msk [vmem:[#allocation3 + $0xa0] sm:$0xf] %vm756, %v714
      %v798 = vld [vmem:[#allocation2 + $0x7] sm:$0xff]
      %v799 = vld [vmem:[#allocation2 + $0xf] sm:$0xff]
      %v800 = vld [vmem:[#allocation2 + $0x17] sm:$0xff]
      %v801 = vld [vmem:[#allocation2 + $0x1f] sm:$0xff]
      %v802 = vld [vmem:[#allocation2 + $0x27] sm:$0xff]
      %v803 = vld [vmem:[#allocation2 + $0x2f] sm:$0xff]
      %v804 = vld [vmem:[#allocation2 + $0x37] sm:$0xff]
      %v805 = vld [vmem:[#allocation2 + $0x3f] sm:$0xff]
      %v806 = vld [vmem:[#allocation2 + $0x47] sm:$0xff]
      %v807 = vld [vmem:[#allocation2 + $0x4f] sm:$0xff]
      %v808 = vld [vmem:[#allocation2 + $0x57] sm:$0xff]
      %v809 = vld [vmem:[#allocation2 + $0x5f] sm:$0xff]
      %v810 = vld [vmem:[#allocation2 + $0x67] sm:$0xff]
      %v811 = vld [vmem:[#allocation2 + $0x6f] sm:$0xff]
      %v812 = vld [vmem:[#allocation2 + $0x77] sm:$0xff]
      %v813 = vld [vmem:[#allocation2 + $0x7f] sm:$0xff]
      %v814 = vld [vmem:[#allocation2 + $0x87] sm:$0xff]
      %v815 = vld [vmem:[#allocation2 + $0x8f] sm:$0xff]
      %v816 = vld [vmem:[#allocation2 + $0x97] sm:$0xff]
      %v817 = vld [vmem:[#allocation2 + $0x9f] sm:$0xff]
      %v818 = vld [vmem:[#allocation2 + $0xa7] sm:$0xff]
      %v819 = vld [vmem:[#allocation2 + $0xaf] sm:$0xff]
      %v820 = vld [vmem:[#allocation2 + $0xb7] sm:$0xff]
      %v821 = vld [vmem:[#allocation2 + $0xbf] sm:$0xff]
      %v822 = vld [vmem:[#allocation2 + $0xc7] sm:$0xff]
      %v823 = vld [vmem:[#allocation2 + $0xcf] sm:$0xff]
      %v824 = vld [vmem:[#allocation2 + $0xd7] sm:$0xff]
      %v825 = vld [vmem:[#allocation2 + $0xdf] sm:$0xff]
      %v826 = vld [vmem:[#allocation2 + $0xe7] sm:$0xff]
      %v827 = vld [vmem:[#allocation2 + $0xef] sm:$0xff]
      %v828 = vld [vmem:[#allocation2 + $0xf7] sm:$0xff]
      %v829 = vld [vmem:[#allocation2 + $0xff] sm:$0xff]
      %v830 = vld [vmem:[#allocation2 + $0x107] sm:$0xff]
      %v831 = vld [vmem:[#allocation2 + $0x10f] sm:$0xff]
      %v832 = vld [vmem:[#allocation2 + $0x117] sm:$0xff]
      %v833 = vld [vmem:[#allocation2 + $0x11f] sm:$0xff]
      %v834 = vld [vmem:[#allocation2 + $0x127] sm:$0xff]
      %v835 = vld [vmem:[#allocation2 + $0x12f] sm:$0xff]
      %v836 = vld [vmem:[#allocation2 + $0x137] sm:$0xff]
      %v837 = vld [vmem:[#allocation2 + $0x13f] sm:$0xff]
      %v838 = vld [vmem:[#allocation2 + $0x147] sm:$0xff]
      %v839 = vpack.c.bf16 %v798, %v798
      %v840 = vpack.c.bf16 %v799, %v799
      %v841 = vpack.c.bf16 %v800, %v800
      %v842 = vpack.c.bf16 %v801, %v801
      %v843 = vpack.c.bf16 %v802, %v802
      %v844 = vpack.c.bf16 %v803, %v803
      %v845 = vpack.c.bf16 %v804, %v804
      %v846 = vpack.c.bf16 %v805, %v805
      %v847 = vpack.c.bf16 %v806, %v806
      %v848 = vpack.c.bf16 %v807, %v807
      %v849 = vpack.c.bf16 %v808, %v808
      %v850 = vpack.c.bf16 %v809, %v809
      %v851 = vpack.c.bf16 %v810, %v810
      %v852 = vpack.c.bf16 %v811, %v811
      %v853 = vpack.c.bf16 %v812, %v812
      %v854 = vpack.c.bf16 %v813, %v813
      %v855 = vpack.c.bf16 %v814, %v814
      %v856 = vpack.c.bf16 %v815, %v815
      %v857 = vpack.c.bf16 %v816, %v816
      %v858 = vpack.c.bf16 %v817, %v817
      %v859 = vpack.c.bf16 %v818, %v818
      %v860 = vpack.c.bf16 %v819, %v819
      %v861 = vpack.c.bf16 %v820, %v820
      %v862 = vpack.c.bf16 %v821, %v821
      %v863 = vpack.c.bf16 %v822, %v822
      %v864 = vpack.c.bf16 %v823, %v823
      %v865 = vpack.c.bf16 %v824, %v824
      %v866 = vpack.c.bf16 %v825, %v825
      %v867 = vpack.c.bf16 %v826, %v826
      %v868 = vpack.c.bf16 %v827, %v827
      %v869 = vpack.c.bf16 %v828, %v828
      %v870 = vpack.c.bf16 %v829, %v829
      %v871 = vpack.c.bf16 %v830, %v830
      %v872 = vpack.c.bf16 %v831, %v831
      %v873 = vpack.c.bf16 %v832, %v832
      %v874 = vpack.c.bf16 %v833, %v833
      %v875 = vpack.c.bf16 %v834, %v834
      %v876 = vpack.c.bf16 %v835, %v835
      %v877 = vpack.c.bf16 %v836, %v836
      %v878 = vpack.c.bf16 %v837, %v837
      %v879 = vpack.c.bf16 %v838, %v838
      %921 = vrot.lane.b32.xlu0 %v839, 16
      %v922 = vpop.permute.xlu0 %921
      %923 = vrot.lane.b32.xlu0 %v840, 16
      %v924 = vpop.permute.xlu0 %923
      %925 = vrot.lane.b32.xlu0 %v841, 16
      %v926 = vpop.permute.xlu0 %925
      %927 = vrot.lane.b32.xlu0 %v842, 16
      %v928 = vpop.permute.xlu0 %927
      %929 = vrot.lane.b32.xlu0 %v843, 16
      %v930 = vpop.permute.xlu0 %929
      %931 = vrot.lane.b32.xlu0 %v844, 16
      %v932 = vpop.permute.xlu0 %931
      %933 = vrot.lane.b32.xlu0 %v845, 16
      %v934 = vpop.permute.xlu0 %933
      %935 = vrot.lane.b32.xlu0 %v846, 16
      %v936 = vpop.permute.xlu0 %935
      %937 = vrot.lane.b32.xlu0 %v847, 16
      %v938 = vpop.permute.xlu0 %937
      %939 = vrot.lane.b32.xlu0 %v848, 16
      %v940 = vpop.permute.xlu0 %939
      %941 = vrot.lane.b32.xlu0 %v849, 16
      %v942 = vpop.permute.xlu0 %941
      %943 = vrot.lane.b32.xlu0 %v850, 16
      %v944 = vpop.permute.xlu0 %943
      %945 = vrot.lane.b32.xlu0 %v851, 16
      %v946 = vpop.permute.xlu0 %945
      %947 = vrot.lane.b32.xlu0 %v852, 16
      %v948 = vpop.permute.xlu0 %947
      %949 = vrot.lane.b32.xlu0 %v853, 16
      %v950 = vpop.permute.xlu0 %949
      %951 = vrot.lane.b32.xlu0 %v854, 16
      %v952 = vpop.permute.xlu0 %951
      %953 = vrot.lane.b32.xlu0 %v855, 16
      %v954 = vpop.permute.xlu0 %953
      %955 = vrot.lane.b32.xlu0 %v856, 16
      %v956 = vpop.permute.xlu0 %955
      %957 = vrot.lane.b32.xlu0 %v857, 16
      %v958 = vpop.permute.xlu0 %957
      %959 = vrot.lane.b32.xlu0 %v858, 16
      %v960 = vpop.permute.xlu0 %959
      %961 = vrot.lane.b32.xlu0 %v859, 16
      %v962 = vpop.permute.xlu0 %961
      %963 = vrot.lane.b32.xlu0 %v860, 16
      %v964 = vpop.permute.xlu0 %963
      %965 = vrot.lane.b32.xlu0 %v861, 16
      %v966 = vpop.permute.xlu0 %965
      %967 = vrot.lane.b32.xlu0 %v862, 16
      %v968 = vpop.permute.xlu0 %967
      %969 = vrot.lane.b32.xlu0 %v863, 16
      %v970 = vpop.permute.xlu0 %969
      %971 = vrot.lane.b32.xlu0 %v864, 16
      %v972 = vpop.permute.xlu0 %971
      %973 = vrot.lane.b32.xlu0 %v865, 16
      %v974 = vpop.permute.xlu0 %973
      %975 = vrot.lane.b32.xlu0 %v866, 16
      %v976 = vpop.permute.xlu0 %975
      %977 = vrot.lane.b32.xlu0 %v867, 16
      %v978 = vpop.permute.xlu0 %977
      %979 = vrot.lane.b32.xlu0 %v868, 16
      %v980 = vpop.permute.xlu0 %979
      %981 = vrot.lane.b32.xlu0 %v869, 16
      %v982 = vpop.permute.xlu0 %981
      %983 = vrot.lane.b32.xlu0 %v870, 16
      %v984 = vpop.permute.xlu0 %983
      %985 = vrot.lane.b32.xlu0 %v871, 16
      %v986 = vpop.permute.xlu0 %985
      %987 = vrot.lane.b32.xlu0 %v872, 16
      %v988 = vpop.permute.xlu0 %987
      %989 = vrot.lane.b32.xlu0 %v873, 16
      %v990 = vpop.permute.xlu0 %989
      %991 = vrot.lane.b32.xlu0 %v874, 16
      %v992 = vpop.permute.xlu0 %991
      %993 = vrot.lane.b32.xlu0 %v875, 16
      %v994 = vpop.permute.xlu0 %993
      %995 = vrot.lane.b32.xlu0 %v876, 16
      %v996 = vpop.permute.xlu0 %995
      %997 = vrot.lane.b32.xlu0 %v877, 16
      %v998 = vpop.permute.xlu0 %997
      %999 = vrot.lane.b32.xlu0 %v878, 16
      %v1000 = vpop.permute.xlu0 %999
      %1001 = vrot.lane.b32.xlu0 %v879, 16
      %v1002 = vpop.permute.xlu0 %1001
      %vm1044 = vcmask 191616
      %1045 = vst.msk [vmem:[#allocation3] sm:$0xf] %vm1044, %v922
      %1046 = vst.msk [vmem:[#allocation3 + $0x4] sm:$0xf] %vm1044, %v924
      %1047 = vst.msk [vmem:[#allocation3 + $0x8] sm:$0xf] %vm1044, %v926
      %1048 = vst.msk [vmem:[#allocation3 + $0xc] sm:$0xf] %vm1044, %v928
      %1049 = vst.msk [vmem:[#allocation3 + $0x10] sm:$0xf] %vm1044, %v930
      %1050 = vst.msk [vmem:[#allocation3 + $0x14] sm:$0xf] %vm1044, %v932
      %1051 = vst.msk [vmem:[#allocation3 + $0x18] sm:$0xf] %vm1044, %v934
      %1052 = vst.msk [vmem:[#allocation3 + $0x1c] sm:$0xf] %vm1044, %v936
      %1053 = vst.msk [vmem:[#allocation3 + $0x20] sm:$0xf] %vm1044, %v938
      %1054 = vst.msk [vmem:[#allocation3 + $0x24] sm:$0xf] %vm1044, %v940
      %1055 = vst.msk [vmem:[#allocation3 + $0x28] sm:$0xf] %vm1044, %v942
      %1056 = vst.msk [vmem:[#allocation3 + $0x2c] sm:$0xf] %vm1044, %v944
      %1057 = vst.msk [vmem:[#allocation3 + $0x30] sm:$0xf] %vm1044, %v946
      %1058 = vst.msk [vmem:[#allocation3 + $0x34] sm:$0xf] %vm1044, %v948
      %1059 = vst.msk [vmem:[#allocation3 + $0x38] sm:$0xf] %vm1044, %v950
      %1060 = vst.msk [vmem:[#allocation3 + $0x3c] sm:$0xf] %vm1044, %v952
      %1061 = vst.msk [vmem:[#allocation3 + $0x40] sm:$0xf] %vm1044, %v954
      %1062 = vst.msk [vmem:[#allocation3 + $0x44] sm:$0xf] %vm1044, %v956
      %1063 = vst.msk [vmem:[#allocation3 + $0x48] sm:$0xf] %vm1044, %v958
      %1064 = vst.msk [vmem:[#allocation3 + $0x4c] sm:$0xf] %vm1044, %v960
      %1065 = vst.msk [vmem:[#allocation3 + $0x50] sm:$0xf] %vm1044, %v962
      %1066 = vst.msk [vmem:[#allocation3 + $0x54] sm:$0xf] %vm1044, %v964
      %1067 = vst.msk [vmem:[#allocation3 + $0x58] sm:$0xf] %vm1044, %v966
      %1068 = vst.msk [vmem:[#allocation3 + $0x5c] sm:$0xf] %vm1044, %v968
      %1069 = vst.msk [vmem:[#allocation3 + $0x60] sm:$0xf] %vm1044, %v970
      %1070 = vst.msk [vmem:[#allocation3 + $0x64] sm:$0xf] %vm1044, %v972
      %1071 = vst.msk [vmem:[#allocation3 + $0x68] sm:$0xf] %vm1044, %v974
      %1072 = vst.msk [vmem:[#allocation3 + $0x6c] sm:$0xf] %vm1044, %v976
      %1073 = vst.msk [vmem:[#allocation3 + $0x70] sm:$0xf] %vm1044, %v978
      %1074 = vst.msk [vmem:[#allocation3 + $0x74] sm:$0xf] %vm1044, %v980
      %1075 = vst.msk [vmem:[#allocation3 + $0x78] sm:$0xf] %vm1044, %v982
      %1076 = vst.msk [vmem:[#allocation3 + $0x7c] sm:$0xf] %vm1044, %v984
      %1077 = vst.msk [vmem:[#allocation3 + $0x80] sm:$0xf] %vm1044, %v986
      %1078 = vst.msk [vmem:[#allocation3 + $0x84] sm:$0xf] %vm1044, %v988
      %1079 = vst.msk [vmem:[#allocation3 + $0x88] sm:$0xf] %vm1044, %v990
      %1080 = vst.msk [vmem:[#allocation3 + $0x8c] sm:$0xf] %vm1044, %v992
      %1081 = vst.msk [vmem:[#allocation3 + $0x90] sm:$0xf] %vm1044, %v994
      %1082 = vst.msk [vmem:[#allocation3 + $0x94] sm:$0xf] %vm1044, %v996
      %1083 = vst.msk [vmem:[#allocation3 + $0x98] sm:$0xf] %vm1044, %v998
      %1084 = vst.msk [vmem:[#allocation3 + $0x9c] sm:$0xf] %vm1044, %v1000
      %1085 = vst.msk [vmem:[#allocation3 + $0xa0] sm:$0xf] %vm1044, %v1002
      %v1086 = vld [vmem:[#allocation2 + $0x17] sm:$0xff]
      %v1087 = vld [vmem:[#allocation2 + $0x1f] sm:$0xff]
      %v1088 = vld [vmem:[#allocation2 + $0x27] sm:$0xff]
      %v1089 = vld [vmem:[#allocation2 + $0x2f] sm:$0xff]
      %v1090 = vld [vmem:[#allocation2 + $0x37] sm:$0xff]
      %v1091 = vld [vmem:[#allocation2 + $0x3f] sm:$0xff]
      %v1092 = vld [vmem:[#allocation2 + $0x47] sm:$0xff]
      %v1093 = vld [vmem:[#allocation2 + $0x4f] sm:$0xff]
      %v1094 = vld [vmem:[#allocation2 + $0x57] sm:$0xff]
      %v1095 = vld [vmem:[#allocation2 + $0x5f] sm:$0xff]
      %v1096 = vld [vmem:[#allocation2 + $0x67] sm:$0xff]
      %v1097 = vld [vmem:[#allocation2 + $0x6f] sm:$0xff]
      %v1098 = vld [vmem:[#allocation2 + $0x77] sm:$0xff]
      %v1099 = vld [vmem:[#allocation2 + $0x7f] sm:$0xff]
      %v1100 = vld [vmem:[#allocation2 + $0x87] sm:$0xff]
      %v1101 = vld [vmem:[#allocation2 + $0x8f] sm:$0xff]
      %v1102 = vld [vmem:[#allocation2 + $0x97] sm:$0xff]
      %v1103 = vld [vmem:[#allocation2 + $0x9f] sm:$0xff]
      %v1104 = vld [vmem:[#allocation2 + $0xa7] sm:$0xff]
      %v1105 = vld [vmem:[#allocation2 + $0xaf] sm:$0xff]
      %v1106 = vld [vmem:[#allocation2 + $0xb7] sm:$0xff]
      %v1107 = vld [vmem:[#allocation2 + $0xbf] sm:$0xff]
      %v1108 = vld [vmem:[#allocation2 + $0xc7] sm:$0xff]
      %v1109 = vld [vmem:[#allocation2 + $0xcf] sm:$0xff]
      %v1110 = vld [vmem:[#allocation2 + $0xd7] sm:$0xff]
      %v1111 = vld [vmem:[#allocation2 + $0xdf] sm:$0xff]
      %v1112 = vld [vmem:[#allocation2 + $0xe7] sm:$0xff]
      %v1113 = vld [vmem:[#allocation2 + $0xef] sm:$0xff]
      %v1114 = vld [vmem:[#allocation2 + $0xf7] sm:$0xff]
      %v1115 = vld [vmem:[#allocation2 + $0xff] sm:$0xff]
      %v1116 = vld [vmem:[#allocation2 + $0x107] sm:$0xff]
      %v1117 = vld [vmem:[#allocation2 + $0x10f] sm:$0xff]
      %v1118 = vld [vmem:[#allocation2 + $0x117] sm:$0xff]
      %v1119 = vld [vmem:[#allocation2 + $0x11f] sm:$0xff]
      %v1120 = vld [vmem:[#allocation2 + $0x127] sm:$0xff]
      %v1121 = vld [vmem:[#allocation2 + $0x12f] sm:$0xff]
      %v1122 = vld [vmem:[#allocation2 + $0x137] sm:$0xff]
      %v1123 = vld [vmem:[#allocation2 + $0x13f] sm:$0xff]
      %v1124 = vld [vmem:[#allocation2 + $0x147] sm:$0xff]
      %v1125 = vld [vmem:[#allocation2 + $0x14f] sm:$0xff]
      %v1126 = vld [vmem:[#allocation2 + $0x157] sm:$0xff]
      %v1127 = vpack.c.bf16 %v1086, %v1086
      %v1128 = vpack.c.bf16 %v1087, %v1087
      %v1129 = vpack.c.bf16 %v1088, %v1088
      %v1130 = vpack.c.bf16 %v1089, %v1089
      %v1131 = vpack.c.bf16 %v1090, %v1090
      %v1132 = vpack.c.bf16 %v1091, %v1091
      %v1133 = vpack.c.bf16 %v1092, %v1092
      %v1134 = vpack.c.bf16 %v1093, %v1093
      %v1135 = vpack.c.bf16 %v1094, %v1094
      %v1136 = vpack.c.bf16 %v1095, %v1095
      %v1137 = vpack.c.bf16 %v1096, %v1096
      %v1138 = vpack.c.bf16 %v1097, %v1097
      %v1139 = vpack.c.bf16 %v1098, %v1098
      %v1140 = vpack.c.bf16 %v1099, %v1099
      %v1141 = vpack.c.bf16 %v1100, %v1100
      %v1142 = vpack.c.bf16 %v1101, %v1101
      %v1143 = vpack.c.bf16 %v1102, %v1102
      %v1144 = vpack.c.bf16 %v1103, %v1103
      %v1145 = vpack.c.bf16 %v1104, %v1104
      %v1146 = vpack.c.bf16 %v1105, %v1105
      %v1147 = vpack.c.bf16 %v1106, %v1106
      %v1148 = vpack.c.bf16 %v1107, %v1107
      %v1149 = vpack.c.bf16 %v1108, %v1108
      %v1150 = vpack.c.bf16 %v1109, %v1109
      %v1151 = vpack.c.bf16 %v1110, %v1110
      %v1152 = vpack.c.bf16 %v1111, %v1111
      %v1153 = vpack.c.bf16 %v1112, %v1112
      %v1154 = vpack.c.bf16 %v1113, %v1113
      %v1155 = vpack.c.bf16 %v1114, %v1114
      %v1156 = vpack.c.bf16 %v1115, %v1115
      %v1157 = vpack.c.bf16 %v1116, %v1116
      %v1158 = vpack.c.bf16 %v1117, %v1117
      %v1159 = vpack.c.bf16 %v1118, %v1118
      %v1160 = vpack.c.bf16 %v1119, %v1119
      %v1161 = vpack.c.bf16 %v1120, %v1120
      %v1162 = vpack.c.bf16 %v1121, %v1121
      %v1163 = vpack.c.bf16 %v1122, %v1122
      %v1164 = vpack.c.bf16 %v1123, %v1123
      %v1165 = vpack.c.bf16 %v1124, %v1124
      %v1166 = vpack.c.bf16 %v1125, %v1125
      %v1167 = vpack.c.bf16 %v1126, %v1126
      %1209 = vrot.lane.b32.xlu0 %v1127, 24
      %v1210 = vpop.permute.xlu0 %1209
      %1211 = vrot.lane.b32.xlu0 %v1128, 24
      %v1212 = vpop.permute.xlu0 %1211
      %1213 = vrot.lane.b32.xlu0 %v1129, 24
      %v1214 = vpop.permute.xlu0 %1213
      %1215 = vrot.lane.b32.xlu0 %v1130, 24
      %v1216 = vpop.permute.xlu0 %1215
      %1217 = vrot.lane.b32.xlu0 %v1131, 24
      %v1218 = vpop.permute.xlu0 %1217
      %1219 = vrot.lane.b32.xlu0 %v1132, 24
      %v1220 = vpop.permute.xlu0 %1219
      %1221 = vrot.lane.b32.xlu0 %v1133, 24
      %v1222 = vpop.permute.xlu0 %1221
      %1223 = vrot.lane.b32.xlu0 %v1134, 24
      %v1224 = vpop.permute.xlu0 %1223
      %1225 = vrot.lane.b32.xlu0 %v1135, 24
      %v1226 = vpop.permute.xlu0 %1225
      %1227 = vrot.lane.b32.xlu0 %v1136, 24
      %v1228 = vpop.permute.xlu0 %1227
      %1229 = vrot.lane.b32.xlu0 %v1137, 24
      %v1230 = vpop.permute.xlu0 %1229
      %1231 = vrot.lane.b32.xlu0 %v1138, 24
      %v1232 = vpop.permute.xlu0 %1231
      %1233 = vrot.lane.b32.xlu0 %v1139, 24
      %v1234 = vpop.permute.xlu0 %1233
      %1235 = vrot.lane.b32.xlu0 %v1140, 24
      %v1236 = vpop.permute.xlu0 %1235
      %1237 = vrot.lane.b32.xlu0 %v1141, 24
      %v1238 = vpop.permute.xlu0 %1237
      %1239 = vrot.lane.b32.xlu0 %v1142, 24
      %v1240 = vpop.permute.xlu0 %1239
      %1241 = vrot.lane.b32.xlu0 %v1143, 24
      %v1242 = vpop.permute.xlu0 %1241
      %1243 = vrot.lane.b32.xlu0 %v1144, 24
      %v1244 = vpop.permute.xlu0 %1243
      %1245 = vrot.lane.b32.xlu0 %v1145, 24
      %v1246 = vpop.permute.xlu0 %1245
      %1247 = vrot.lane.b32.xlu0 %v1146, 24
      %v1248 = vpop.permute.xlu0 %1247
      %1249 = vrot.lane.b32.xlu0 %v1147, 24
      %v1250 = vpop.permute.xlu0 %1249
      %1251 = vrot.lane.b32.xlu0 %v1148, 24
      %v1252 = vpop.permute.xlu0 %1251
      %1253 = vrot.lane.b32.xlu0 %v1149, 24
      %v1254 = vpop.permute.xlu0 %1253
      %1255 = vrot.lane.b32.xlu0 %v1150, 24
      %v1256 = vpop.permute.xlu0 %1255
      %1257 = vrot.lane.b32.xlu0 %v1151, 24
      %v1258 = vpop.permute.xlu0 %1257
      %1259 = vrot.lane.b32.xlu0 %v1152, 24
      %v1260 = vpop.permute.xlu0 %1259
      %1261 = vrot.lane.b32.xlu0 %v1153, 24
      %v1262 = vpop.permute.xlu0 %1261
      %1263 = vrot.lane.b32.xlu0 %v1154, 24
      %v1264 = vpop.permute.xlu0 %1263
      %1265 = vrot.lane.b32.xlu0 %v1155, 24
      %v1266 = vpop.permute.xlu0 %1265
      %1267 = vrot.lane.b32.xlu0 %v1156, 24
      %v1268 = vpop.permute.xlu0 %1267
      %1269 = vrot.lane.b32.xlu0 %v1157, 24
      %v1270 = vpop.permute.xlu0 %1269
      %1271 = vrot.lane.b32.xlu0 %v1158, 24
      %v1272 = vpop.permute.xlu0 %1271
      %1273 = vrot.lane.b32.xlu0 %v1159, 24
      %v1274 = vpop.permute.xlu0 %1273
      %1275 = vrot.lane.b32.xlu0 %v1160, 24
      %v1276 = vpop.permute.xlu0 %1275
      %1277 = vrot.lane.b32.xlu0 %v1161, 24
      %v1278 = vpop.permute.xlu0 %1277
      %1279 = vrot.lane.b32.xlu0 %v1162, 24
      %v1280 = vpop.permute.xlu0 %1279
      %1281 = vrot.lane.b32.xlu0 %v1163, 24
      %v1282 = vpop.permute.xlu0 %1281
      %1283 = vrot.lane.b32.xlu0 %v1164, 24
      %v1284 = vpop.permute.xlu0 %1283
      %1285 = vrot.lane.b32.xlu0 %v1165, 24
      %v1286 = vpop.permute.xlu0 %1285
      %1287 = vrot.lane.b32.xlu0 %v1166, 24
      %v1288 = vpop.permute.xlu0 %1287
      %1289 = vrot.lane.b32.xlu0 %v1167, 24
      %v1290 = vpop.permute.xlu0 %1289
      %vm1332 = vcmask 257216
      %1333 = vst.msk [vmem:[#allocation3] sm:$0xf] %vm1332, %v1210
      %1334 = vst.msk [vmem:[#allocation3 + $0x4] sm:$0xf] %vm1332, %v1212
      %1335 = vst.msk [vmem:[#allocation3 + $0x8] sm:$0xf] %vm1332, %v1214
      %1336 = vst.msk [vmem:[#allocation3 + $0xc] sm:$0xf] %vm1332, %v1216
      %1337 = vst.msk [vmem:[#allocation3 + $0x10] sm:$0xf] %vm1332, %v1218
      %1338 = vst.msk [vmem:[#allocation3 + $0x14] sm:$0xf] %vm1332, %v1220
      %1339 = vst.msk [vmem:[#allocation3 + $0x18] sm:$0xf] %vm1332, %v1222
      %1340 = vst.msk [vmem:[#allocation3 + $0x1c] sm:$0xf] %vm1332, %v1224
      %1341 = vst.msk [vmem:[#allocation3 + $0x20] sm:$0xf] %vm1332, %v1226
      %1342 = vst.msk [vmem:[#allocation3 + $0x24] sm:$0xf] %vm1332, %v1228
      %1343 = vst.msk [vmem:[#allocation3 + $0x28] sm:$0xf] %vm1332, %v1230
      %1344 = vst.msk [vmem:[#allocation3 + $0x2c] sm:$0xf] %vm1332, %v1232
      %1345 = vst.msk [vmem:[#allocation3 + $0x30] sm:$0xf] %vm1332, %v1234
      %1346 = vst.msk [vmem:[#allocation3 + $0x34] sm:$0xf] %vm1332, %v1236
      %1347 = vst.msk [vmem:[#allocation3 + $0x38] sm:$0xf] %vm1332, %v1238
      %1348 = vst.msk [vmem:[#allocation3 + $0x3c] sm:$0xf] %vm1332, %v1240
      %1349 = vst.msk [vmem:[#allocation3 + $0x40] sm:$0xf] %vm1332, %v1242
      %1350 = vst.msk [vmem:[#allocation3 + $0x44] sm:$0xf] %vm1332, %v1244
      %1351 = vst.msk [vmem:[#allocation3 + $0x48] sm:$0xf] %vm1332, %v1246
      %1352 = vst.msk [vmem:[#allocation3 + $0x4c] sm:$0xf] %vm1332, %v1248
      %1353 = vst.msk [vmem:[#allocation3 + $0x50] sm:$0xf] %vm1332, %v1250
      %1354 = vst.msk [vmem:[#allocation3 + $0x54] sm:$0xf] %vm1332, %v1252
      %1355 = vst.msk [vmem:[#allocation3 + $0x58] sm:$0xf] %vm1332, %v1254
      %1356 = vst.msk [vmem:[#allocation3 + $0x5c] sm:$0xf] %vm1332, %v1256
      %1357 = vst.msk [vmem:[#allocation3 + $0x60] sm:$0xf] %vm1332, %v1258
      %1358 = vst.msk [vmem:[#allocation3 + $0x64] sm:$0xf] %vm1332, %v1260
      %1359 = vst.msk [vmem:[#allocation3 + $0x68] sm:$0xf] %vm1332, %v1262
      %1360 = vst.msk [vmem:[#allocation3 + $0x6c] sm:$0xf] %vm1332, %v1264
      %1361 = vst.msk [vmem:[#allocation3 + $0x70] sm:$0xf] %vm1332, %v1266
      %1362 = vst.msk [vmem:[#allocation3 + $0x74] sm:$0xf] %vm1332, %v1268
      %1363 = vst.msk [vmem:[#allocation3 + $0x78] sm:$0xf] %vm1332, %v1270
      %1364 = vst.msk [vmem:[#allocation3 + $0x7c] sm:$0xf] %vm1332, %v1272
      %1365 = vst.msk [vmem:[#allocation3 + $0x80] sm:$0xf] %vm1332, %v1274
      %1366 = vst.msk [vmem:[#allocation3 + $0x84] sm:$0xf] %vm1332, %v1276
      %1367 = vst.msk [vmem:[#allocation3 + $0x88] sm:$0xf] %vm1332, %v1278
      %1368 = vst.msk [vmem:[#allocation3 + $0x8c] sm:$0xf] %vm1332, %v1280
      %1369 = vst.msk [vmem:[#allocation3 + $0x90] sm:$0xf] %vm1332, %v1282
      %1370 = vst.msk [vmem:[#allocation3 + $0x94] sm:$0xf] %vm1332, %v1284
      %1371 = vst.msk [vmem:[#allocation3 + $0x98] sm:$0xf] %vm1332, %v1286
      %1372 = vst.msk [vmem:[#allocation3 + $0x9c] sm:$0xf] %vm1332, %v1288
      %1373 = vst.msk [vmem:[#allocation3 + $0xa0] sm:$0xf] %vm1332, %v1290
      %v1374 = vld [vmem:[#allocation2 + $0x18] sm:$0xff]
      %v1375 = vld [vmem:[#allocation2 + $0x20] sm:$0xff]
      %v1376 = vld [vmem:[#allocation2 + $0x28] sm:$0xff]
      %v1377 = vld [vmem:[#allocation2 + $0x30] sm:$0xff]
      %v1378 = vld [vmem:[#allocation2 + $0x38] sm:$0xff]
      %v1379 = vld [vmem:[#allocation2 + $0x40] sm:$0xff]
      %v1380 = vld [vmem:[#allocation2 + $0x48] sm:$0xff]
      %v1381 = vld [vmem:[#allocation2 + $0x50] sm:$0xff]
      %v1382 = vld [vmem:[#allocation2 + $0x58] sm:$0xff]
      %v1383 = vld [vmem:[#allocation2 + $0x60] sm:$0xff]
      %v1384 = vld [vmem:[#allocation2 + $0x68] sm:$0xff]
      %v1385 = vld [vmem:[#allocation2 + $0x70] sm:$0xff]
      %v1386 = vld [vmem:[#allocation2 + $0x78] sm:$0xff]
      %v1387 = vld [vmem:[#allocation2 + $0x80] sm:$0xff]
      %v1388 = vld [vmem:[#allocation2 + $0x88] sm:$0xff]
      %v1389 = vld [vmem:[#allocation2 + $0x90] sm:$0xff]
      %v1390 = vld [vmem:[#allocation2 + $0x98] sm:$0xff]
      %v1391 = vld [vmem:[#allocation2 + $0xa0] sm:$0xff]
      %v1392 = vld [vmem:[#allocation2 + $0xa8] sm:$0xff]
      %v1393 = vld [vmem:[#allocation2 + $0xb0] sm:$0xff]
      %v1394 = vld [vmem:[#allocation2 + $0xb8] sm:$0xff]
      %v1395 = vld [vmem:[#allocation2 + $0xc0] sm:$0xff]
      %v1396 = vld [vmem:[#allocation2 + $0xc8] sm:$0xff]
      %v1397 = vld [vmem:[#allocation2 + $0xd0] sm:$0xff]
      %v1398 = vld [vmem:[#allocation2 + $0xd8] sm:$0xff]
      %v1399 = vld [vmem:[#allocation2 + $0xe0] sm:$0xff]
      %v1400 = vld [vmem:[#allocation2 + $0xe8] sm:$0xff]
      %v1401 = vld [vmem:[#allocation2 + $0xf0] sm:$0xff]
      %v1402 = vld [vmem:[#allocation2 + $0xf8] sm:$0xff]
      %v1403 = vld [vmem:[#allocation2 + $0x100] sm:$0xff]
      %v1404 = vld [vmem:[#allocation2 + $0x108] sm:$0xff]
      %v1405 = vld [vmem:[#allocation2 + $0x110] sm:$0xff]
      %v1406 = vld [vmem:[#allocation2 + $0x118] sm:$0xff]
      %v1407 = vld [vmem:[#allocation2 + $0x120] sm:$0xff]
      %v1408 = vld [vmem:[#allocation2 + $0x128] sm:$0xff]
      %v1409 = vld [vmem:[#allocation2 + $0x130] sm:$0xff]
      %v1410 = vld [vmem:[#allocation2 + $0x138] sm:$0xff]
      %v1411 = vld [vmem:[#allocation2 + $0x140] sm:$0xff]
      %v1412 = vld [vmem:[#allocation2 + $0x148] sm:$0xff]
      %v1413 = vld [vmem:[#allocation2 + $0x150] sm:$0xff]
      %v1414 = vld [vmem:[#allocation2 + $0x158] sm:$0xff]
      %v1415 = vpack.c.bf16 %v1374, %v1374
      %v1416 = vpack.c.bf16 %v1375, %v1375
      %v1417 = vpack.c.bf16 %v1376, %v1376
      %v1418 = vpack.c.bf16 %v1377, %v1377
      %v1419 = vpack.c.bf16 %v1378, %v1378
      %v1420 = vpack.c.bf16 %v1379, %v1379
      %v1421 = vpack.c.bf16 %v1380, %v1380
      %v1422 = vpack.c.bf16 %v1381, %v1381
      %v1423 = vpack.c.bf16 %v1382, %v1382
      %v1424 = vpack.c.bf16 %v1383, %v1383
      %v1425 = vpack.c.bf16 %v1384, %v1384
      %v1426 = vpack.c.bf16 %v1385, %v1385
      %v1427 = vpack.c.bf16 %v1386, %v1386
      %v1428 = vpack.c.bf16 %v1387, %v1387
      %v1429 = vpack.c.bf16 %v1388, %v1388
      %v1430 = vpack.c.bf16 %v1389, %v1389
      %v1431 = vpack.c.bf16 %v1390, %v1390
      %v1432 = vpack.c.bf16 %v1391, %v1391
      %v1433 = vpack.c.bf16 %v1392, %v1392
      %v1434 = vpack.c.bf16 %v1393, %v1393
      %v1435 = vpack.c.bf16 %v1394, %v1394
      %v1436 = vpack.c.bf16 %v1395, %v1395
      %v1437 = vpack.c.bf16 %v1396, %v1396
      %v1438 = vpack.c.bf16 %v1397, %v1397
      %v1439 = vpack.c.bf16 %v1398, %v1398
      %v1440 = vpack.c.bf16 %v1399, %v1399
      %v1441 = vpack.c.bf16 %v1400, %v1400
      %v1442 = vpack.c.bf16 %v1401, %v1401
      %v1443 = vpack.c.bf16 %v1402, %v1402
      %v1444 = vpack.c.bf16 %v1403, %v1403
      %v1445 = vpack.c.bf16 %v1404, %v1404
      %v1446 = vpack.c.bf16 %v1405, %v1405
      %v1447 = vpack.c.bf16 %v1406, %v1406
      %v1448 = vpack.c.bf16 %v1407, %v1407
      %v1449 = vpack.c.bf16 %v1408, %v1408
      %v1450 = vpack.c.bf16 %v1409, %v1409
      %v1451 = vpack.c.bf16 %v1410, %v1410
      %v1452 = vpack.c.bf16 %v1411, %v1411
      %v1453 = vpack.c.bf16 %v1412, %v1412
      %v1454 = vpack.c.bf16 %v1413, %v1413
      %v1455 = vpack.c.bf16 %v1414, %v1414
      %1497 = vrot.lane.b32.xlu0 %v1415, 32
      %v1498 = vpop.permute.xlu0 %1497
      %1499 = vrot.lane.b32.xlu0 %v1416, 32
      %v1500 = vpop.permute.xlu0 %1499
      %1501 = vrot.lane.b32.xlu0 %v1417, 32
      %v1502 = vpop.permute.xlu0 %1501
      %1503 = vrot.lane.b32.xlu0 %v1418, 32
      %v1504 = vpop.permute.xlu0 %1503
      %1505 = vrot.lane.b32.xlu0 %v1419, 32
      %v1506 = vpop.permute.xlu0 %1505
      %1507 = vrot.lane.b32.xlu0 %v1420, 32
      %v1508 = vpop.permute.xlu0 %1507
      %1509 = vrot.lane.b32.xlu0 %v1421, 32
      %v1510 = vpop.permute.xlu0 %1509
      %1511 = vrot.lane.b32.xlu0 %v1422, 32
      %v1512 = vpop.permute.xlu0 %1511
      %1513 = vrot.lane.b32.xlu0 %v1423, 32
      %v1514 = vpop.permute.xlu0 %1513
      %1515 = vrot.lane.b32.xlu0 %v1424, 32
      %v1516 = vpop.permute.xlu0 %1515
      %1517 = vrot.lane.b32.xlu0 %v1425, 32
      %v1518 = vpop.permute.xlu0 %1517
      %1519 = vrot.lane.b32.xlu0 %v1426, 32
      %v1520 = vpop.permute.xlu0 %1519
      %1521 = vrot.lane.b32.xlu0 %v1427, 32
      %v1522 = vpop.permute.xlu0 %1521
      %1523 = vrot.lane.b32.xlu0 %v1428, 32
      %v1524 = vpop.permute.xlu0 %1523
      %1525 = vrot.lane.b32.xlu0 %v1429, 32
      %v1526 = vpop.permute.xlu0 %1525
      %1527 = vrot.lane.b32.xlu0 %v1430, 32
      %v1528 = vpop.permute.xlu0 %1527
      %1529 = vrot.lane.b32.xlu0 %v1431, 32
      %v1530 = vpop.permute.xlu0 %1529
      %1531 = vrot.lane.b32.xlu0 %v1432, 32
      %v1532 = vpop.permute.xlu0 %1531
      %1533 = vrot.lane.b32.xlu0 %v1433, 32
      %v1534 = vpop.permute.xlu0 %1533
      %1535 = vrot.lane.b32.xlu0 %v1434, 32
      %v1536 = vpop.permute.xlu0 %1535
      %1537 = vrot.lane.b32.xlu0 %v1435, 32
      %v1538 = vpop.permute.xlu0 %1537
      %1539 = vrot.lane.b32.xlu0 %v1436, 32
      %v1540 = vpop.permute.xlu0 %1539
      %1541 = vrot.lane.b32.xlu0 %v1437, 32
      %v1542 = vpop.permute.xlu0 %1541
      %1543 = vrot.lane.b32.xlu0 %v1438, 32
      %v1544 = vpop.permute.xlu0 %1543
      %1545 = vrot.lane.b32.xlu0 %v1439, 32
      %v1546 = vpop.permute.xlu0 %1545
      %1547 = vrot.lane.b32.xlu0 %v1440, 32
      %v1548 = vpop.permute.xlu0 %1547
      %1549 = vrot.lane.b32.xlu0 %v1441, 32
      %v1550 = vpop.permute.xlu0 %1549
      %1551 = vrot.lane.b32.xlu0 %v1442, 32
      %v1552 = vpop.permute.xlu0 %1551
      %1553 = vrot.lane.b32.xlu0 %v1443, 32
      %v1554 = vpop.permute.xlu0 %1553
      %1555 = vrot.lane.b32.xlu0 %v1444, 32
      %v1556 = vpop.permute.xlu0 %1555
      %1557 = vrot.lane.b32.xlu0 %v1445, 32
      %v1558 = vpop.permute.xlu0 %1557
      %1559 = vrot.lane.b32.xlu0 %v1446, 32
      %v1560 = vpop.permute.xlu0 %1559
      %1561 = vrot.lane.b32.xlu0 %v1447, 32
      %v1562 = vpop.permute.xlu0 %1561
      %1563 = vrot.lane.b32.xlu0 %v1448, 32
      %v1564 = vpop.permute.xlu0 %1563
      %1565 = vrot.lane.b32.xlu0 %v1449, 32
      %v1566 = vpop.permute.xlu0 %1565
      %1567 = vrot.lane.b32.xlu0 %v1450, 32
      %v1568 = vpop.permute.xlu0 %1567
      %1569 = vrot.lane.b32.xlu0 %v1451, 32
      %v1570 = vpop.permute.xlu0 %1569
      %1571 = vrot.lane.b32.xlu0 %v1452, 32
      %v1572 = vpop.permute.xlu0 %1571
      %1573 = vrot.lane.b32.xlu0 %v1453, 32
      %v1574 = vpop.permute.xlu0 %1573
      %1575 = vrot.lane.b32.xlu0 %v1454, 32
      %v1576 = vpop.permute.xlu0 %1575
      %1577 = vrot.lane.b32.xlu0 %v1455, 32
      %v1578 = vpop.permute.xlu0 %1577
      %vm1620 = vcmask 322816
      %1621 = vst.msk [vmem:[#allocation3] sm:$0xf] %vm1620, %v1498
      %1622 = vst.msk [vmem:[#allocation3 + $0x4] sm:$0xf] %vm1620, %v1500
      %1623 = vst.msk [vmem:[#allocation3 + $0x8] sm:$0xf] %vm1620, %v1502
      %1624 = vst.msk [vmem:[#allocation3 + $0xc] sm:$0xf] %vm1620, %v1504
      %1625 = vst.msk [vmem:[#allocation3 + $0x10] sm:$0xf] %vm1620, %v1506
      %1626 = vst.msk [vmem:[#allocation3 + $0x14] sm:$0xf] %vm1620, %v1508
      %1627 = vst.msk [vmem:[#allocation3 + $0x18] sm:$0xf] %vm1620, %v1510
      %1628 = vst.msk [vmem:[#allocation3 + $0x1c] sm:$0xf] %vm1620, %v1512
      %1629 = vst.msk [vmem:[#allocation3 + $0x20] sm:$0xf] %vm1620, %v1514
      %1630 = vst.msk [vmem:[#allocation3 + $0x24] sm:$0xf] %vm1620, %v1516
      %1631 = vst.msk [vmem:[#allocation3 + $0x28] sm:$0xf] %vm1620, %v1518
      %1632 = vst.msk [vmem:[#allocation3 + $0x2c] sm:$0xf] %vm1620, %v1520
      %1633 = vst.msk [vmem:[#allocation3 + $0x30] sm:$0xf] %vm1620, %v1522
      %1634 = vst.msk [vmem:[#allocation3 + $0x34] sm:$0xf] %vm1620, %v1524
      %1635 = vst.msk [vmem:[#allocation3 + $0x38] sm:$0xf] %vm1620, %v1526
      %1636 = vst.msk [vmem:[#allocation3 + $0x3c] sm:$0xf] %vm1620, %v1528
      %1637 = vst.msk [vmem:[#allocation3 + $0x40] sm:$0xf] %vm1620, %v1530
      %1638 = vst.msk [vmem:[#allocation3 + $0x44] sm:$0xf] %vm1620, %v1532
      %1639 = vst.msk [vmem:[#allocation3 + $0x48] sm:$0xf] %vm1620, %v1534
      %1640 = vst.msk [vmem:[#allocation3 + $0x4c] sm:$0xf] %vm1620, %v1536
      %1641 = vst.msk [vmem:[#allocation3 + $0x50] sm:$0xf] %vm1620, %v1538
      %1642 = vst.msk [vmem:[#allocation3 + $0x54] sm:$0xf] %vm1620, %v1540
      %1643 = vst.msk [vmem:[#allocation3 + $0x58] sm:$0xf] %vm1620, %v1542
      %1644 = vst.msk [vmem:[#allocation3 + $0x5c] sm:$0xf] %vm1620, %v1544
      %1645 = vst.msk [vmem:[#allocation3 + $0x60] sm:$0xf] %vm1620, %v1546
      %1646 = vst.msk [vmem:[#allocation3 + $0x64] sm:$0xf] %vm1620, %v1548
      %1647 = vst.msk [vmem:[#allocation3 + $0x68] sm:$0xf] %vm1620, %v1550
      %1648 = vst.msk [vmem:[#allocation3 + $0x6c] sm:$0xf] %vm1620, %v1552
      %1649 = vst.msk [vmem:[#allocation3 + $0x70] sm:$0xf] %vm1620, %v1554
      %1650 = vst.msk [vmem:[#allocation3 + $0x74] sm:$0xf] %vm1620, %v1556
      %1651 = vst.msk [vmem:[#allocation3 + $0x78] sm:$0xf] %vm1620, %v1558
      %1652 = vst.msk [vmem:[#allocation3 + $0x7c] sm:$0xf] %vm1620, %v1560
      %1653 = vst.msk [vmem:[#allocation3 + $0x80] sm:$0xf] %vm1620, %v1562
      %1654 = vst.msk [vmem:[#allocation3 + $0x84] sm:$0xf] %vm1620, %v1564
      %1655 = vst.msk [vmem:[#allocation3 + $0x88] sm:$0xf] %vm1620, %v1566
      %1656 = vst.msk [vmem:[#allocation3 + $0x8c] sm:$0xf] %vm1620, %v1568
      %1657 = vst.msk [vmem:[#allocation3 + $0x90] sm:$0xf] %vm1620, %v1570
      %1658 = vst.msk [vmem:[#allocation3 + $0x94] sm:$0xf] %vm1620, %v1572
      %1659 = vst.msk [vmem:[#allocation3 + $0x98] sm:$0xf] %vm1620, %v1574
      %1660 = vst.msk [vmem:[#allocation3 + $0x9c] sm:$0xf] %vm1620, %v1576
      %1661 = vst.msk [vmem:[#allocation3 + $0xa0] sm:$0xf] %vm1620, %v1578
      %v1662 = vld [vmem:[#allocation2 + $0x19] sm:$0xff]
      %v1663 = vld [vmem:[#allocation2 + $0x21] sm:$0xff]
      %v1664 = vld [vmem:[#allocation2 + $0x29] sm:$0xff]
      %v1665 = vld [vmem:[#allocation2 + $0x31] sm:$0xff]
      %v1666 = vld [vmem:[#allocation2 + $0x39] sm:$0xff]
      %v1667 = vld [vmem:[#allocation2 + $0x41] sm:$0xff]
      %v1668 = vld [vmem:[#allocation2 + $0x49] sm:$0xff]
      %v1669 = vld [vmem:[#allocation2 + $0x51] sm:$0xff]
      %v1670 = vld [vmem:[#allocation2 + $0x59] sm:$0xff]
      %v1671 = vld [vmem:[#allocation2 + $0x61] sm:$0xff]
      %v1672 = vld [vmem:[#allocation2 + $0x69] sm:$0xff]
      %v1673 = vld [vmem:[#allocation2 + $0x71] sm:$0xff]
      %v1674 = vld [vmem:[#allocation2 + $0x79] sm:$0xff]
      %v1675 = vld [vmem:[#allocation2 + $0x81] sm:$0xff]
      %v1676 = vld [vmem:[#allocation2 + $0x89] sm:$0xff]
      %v1677 = vld [vmem:[#allocation2 + $0x91] sm:$0xff]
      %v1678 = vld [vmem:[#allocation2 + $0x99] sm:$0xff]
      %v1679 = vld [vmem:[#allocation2 + $0xa1] sm:$0xff]
      %v1680 = vld [vmem:[#allocation2 + $0xa9] sm:$0xff]
      %v1681 = vld [vmem:[#allocation2 + $0xb1] sm:$0xff]
      %v1682 = vld [vmem:[#allocation2 + $0xb9] sm:$0xff]
      %v1683 = vld [vmem:[#allocation2 + $0xc1] sm:$0xff]
      %v1684 = vld [vmem:[#allocation2 + $0xc9] sm:$0xff]
      %v1685 = vld [vmem:[#allocation2 + $0xd1] sm:$0xff]
      %v1686 = vld [vmem:[#allocation2 + $0xd9] sm:$0xff]
      %v1687 = vld [vmem:[#allocation2 + $0xe1] sm:$0xff]
      %v1688 = vld [vmem:[#allocation2 + $0xe9] sm:$0xff]
      %v1689 = vld [vmem:[#allocation2 + $0xf1] sm:$0xff]
      %v1690 = vld [vmem:[#allocation2 + $0xf9] sm:$0xff]
      %v1691 = vld [vmem:[#allocation2 + $0x101] sm:$0xff]
      %v1692 = vld [vmem:[#allocation2 + $0x109] sm:$0xff]
      %v1693 = vld [vmem:[#allocation2 + $0x111] sm:$0xff]
      %v1694 = vld [vmem:[#allocation2 + $0x119] sm:$0xff]
      %v1695 = vld [vmem:[#allocation2 + $0x121] sm:$0xff]
      %v1696 = vld [vmem:[#allocation2 + $0x129] sm:$0xff]
      %v1697 = vld [vmem:[#allocation2 + $0x131] sm:$0xff]
      %v1698 = vld [vmem:[#allocation2 + $0x139] sm:$0xff]
      %v1699 = vld [vmem:[#allocation2 + $0x141] sm:$0xff]
      %v1700 = vld [vmem:[#allocation2 + $0x149] sm:$0xff]
      %v1701 = vld [vmem:[#allocation2 + $0x151] sm:$0xff]
      %v1702 = vld [vmem:[#allocation2 + $0x159] sm:$0xff]
      %v1703 = vpack.c.bf16 %v1662, %v1662
      %v1704 = vpack.c.bf16 %v1663, %v1663
      %v1705 = vpack.c.bf16 %v1664, %v1664
      %v1706 = vpack.c.bf16 %v1665, %v1665
      %v1707 = vpack.c.bf16 %v1666, %v1666
      %v1708 = vpack.c.bf16 %v1667, %v1667
      %v1709 = vpack.c.bf16 %v1668, %v1668
      %v1710 = vpack.c.bf16 %v1669, %v1669
      %v1711 = vpack.c.bf16 %v1670, %v1670
      %v1712 = vpack.c.bf16 %v1671, %v1671
      %v1713 = vpack.c.bf16 %v1672, %v1672
      %v1714 = vpack.c.bf16 %v1673, %v1673
      %v1715 = vpack.c.bf16 %v1674, %v1674
      %v1716 = vpack.c.bf16 %v1675, %v1675
      %v1717 = vpack.c.bf16 %v1676, %v1676
      %v1718 = vpack.c.bf16 %v1677, %v1677
      %v1719 = vpack.c.bf16 %v1678, %v1678
      %v1720 = vpack.c.bf16 %v1679, %v1679
      %v1721 = vpack.c.bf16 %v1680, %v1680
      %v1722 = vpack.c.bf16 %v1681, %v1681
      %v1723 = vpack.c.bf16 %v1682, %v1682
      %v1724 = vpack.c.bf16 %v1683, %v1683
      %v1725 = vpack.c.bf16 %v1684, %v1684
      %v1726 = vpack.c.bf16 %v1685, %v1685
      %v1727 = vpack.c.bf16 %v1686, %v1686
      %v1728 = vpack.c.bf16 %v1687, %v1687
      %v1729 = vpack.c.bf16 %v1688, %v1688
      %v1730 = vpack.c.bf16 %v1689, %v1689
      %v1731 = vpack.c.bf16 %v1690, %v1690
      %v1732 = vpack.c.bf16 %v1691, %v1691
      %v1733 = vpack.c.bf16 %v1692, %v1692
      %v1734 = vpack.c.bf16 %v1693, %v1693
      %v1735 = vpack.c.bf16 %v1694, %v1694
      %v1736 = vpack.c.bf16 %v1695, %v1695
      %v1737 = vpack.c.bf16 %v1696, %v1696
      %v1738 = vpack.c.bf16 %v1697, %v1697
      %v1739 = vpack.c.bf16 %v1698, %v1698
      %v1740 = vpack.c.bf16 %v1699, %v1699
      %v1741 = vpack.c.bf16 %v1700, %v1700
      %v1742 = vpack.c.bf16 %v1701, %v1701
      %v1743 = vpack.c.bf16 %v1702, %v1702
      %1785 = vrot.lane.b32.xlu0 %v1703, 40
      %v1786 = vpop.permute.xlu0 %1785
      %1787 = vrot.lane.b32.xlu0 %v1704, 40
      %v1788 = vpop.permute.xlu0 %1787
      %1789 = vrot.lane.b32.xlu0 %v1705, 40
      %v1790 = vpop.permute.xlu0 %1789
      %1791 = vrot.lane.b32.xlu0 %v1706, 40
      %v1792 = vpop.permute.xlu0 %1791
      %1793 = vrot.lane.b32.xlu0 %v1707, 40
      %v1794 = vpop.permute.xlu0 %1793
      %1795 = vrot.lane.b32.xlu0 %v1708, 40
      %v1796 = vpop.permute.xlu0 %1795
      %1797 = vrot.lane.b32.xlu0 %v1709, 40
      %v1798 = vpop.permute.xlu0 %1797
      %1799 = vrot.lane.b32.xlu0 %v1710, 40
      %v1800 = vpop.permute.xlu0 %1799
      %1801 = vrot.lane.b32.xlu0 %v1711, 40
      %v1802 = vpop.permute.xlu0 %1801
      %1803 = vrot.lane.b32.xlu0 %v1712, 40
      %v1804 = vpop.permute.xlu0 %1803
      %1805 = vrot.lane.b32.xlu0 %v1713, 40
      %v1806 = vpop.permute.xlu0 %1805
      %1807 = vrot.lane.b32.xlu0 %v1714, 40
      %v1808 = vpop.permute.xlu0 %1807
      %1809 = vrot.lane.b32.xlu0 %v1715, 40
      %v1810 = vpop.permute.xlu0 %1809
      %1811 = vrot.lane.b32.xlu0 %v1716, 40
      %v1812 = vpop.permute.xlu0 %1811
      %1813 = vrot.lane.b32.xlu0 %v1717, 40
      %v1814 = vpop.permute.xlu0 %1813
      %1815 = vrot.lane.b32.xlu0 %v1718, 40
      %v1816 = vpop.permute.xlu0 %1815
      %1817 = vrot.lane.b32.xlu0 %v1719, 40
      %v1818 = vpop.permute.xlu0 %1817
      %1819 = vrot.lane.b32.xlu0 %v1720, 40
      %v1820 = vpop.permute.xlu0 %1819
      %1821 = vrot.lane.b32.xlu0 %v1721, 40
      %v1822 = vpop.permute.xlu0 %1821
      %1823 = vrot.lane.b32.xlu0 %v1722, 40
      %v1824 = vpop.permute.xlu0 %1823
      %1825 = vrot.lane.b32.xlu0 %v1723, 40
      %v1826 = vpop.permute.xlu0 %1825
      %1827 = vrot.lane.b32.xlu0 %v1724, 40
      %v1828 = vpop.permute.xlu0 %1827
      %1829 = vrot.lane.b32.xlu0 %v1725, 40
      %v1830 = vpop.permute.xlu0 %1829
      %1831 = vrot.lane.b32.xlu0 %v1726, 40
      %v1832 = vpop.permute.xlu0 %1831
      %1833 = vrot.lane.b32.xlu0 %v1727, 40
      %v1834 = vpop.permute.xlu0 %1833
      %1835 = vrot.lane.b32.xlu0 %v1728, 40
      %v1836 = vpop.permute.xlu0 %1835
      %1837 = vrot.lane.b32.xlu0 %v1729, 40
      %v1838 = vpop.permute.xlu0 %1837
      %1839 = vrot.lane.b32.xlu0 %v1730, 40
      %v1840 = vpop.permute.xlu0 %1839
      %1841 = vrot.lane.b32.xlu0 %v1731, 40
      %v1842 = vpop.permute.xlu0 %1841
      %1843 = vrot.lane.b32.xlu0 %v1732, 40
      %v1844 = vpop.permute.xlu0 %1843
      %1845 = vrot.lane.b32.xlu0 %v1733, 40
      %v1846 = vpop.permute.xlu0 %1845
      %1847 = vrot.lane.b32.xlu0 %v1734, 40
      %v1848 = vpop.permute.xlu0 %1847
      %1849 = vrot.lane.b32.xlu0 %v1735, 40
      %v1850 = vpop.permute.xlu0 %1849
      %1851 = vrot.lane.b32.xlu0 %v1736, 40
      %v1852 = vpop.permute.xlu0 %1851
      %1853 = vrot.lane.b32.xlu0 %v1737, 40
      %v1854 = vpop.permute.xlu0 %1853
      %1855 = vrot.lane.b32.xlu0 %v1738, 40
      %v1856 = vpop.permute.xlu0 %1855
      %1857 = vrot.lane.b32.xlu0 %v1739, 40
      %v1858 = vpop.permute.xlu0 %1857
      %1859 = vrot.lane.b32.xlu0 %v1740, 40
      %v1860 = vpop.permute.xlu0 %1859
      %1861 = vrot.lane.b32.xlu0 %v1741, 40
      %v1862 = vpop.permute.xlu0 %1861
      %1863 = vrot.lane.b32.xlu0 %v1742, 40
      %v1864 = vpop.permute.xlu0 %1863
      %1865 = vrot.lane.b32.xlu0 %v1743, 40
      %v1866 = vpop.permute.xlu0 %1865
      %vm1908 = vcmask 388416
      %1909 = vst.msk [vmem:[#allocation3] sm:$0xf] %vm1908, %v1786
      %1910 = vst.msk [vmem:[#allocation3 + $0x4] sm:$0xf] %vm1908, %v1788
      %1911 = vst.msk [vmem:[#allocation3 + $0x8] sm:$0xf] %vm1908, %v1790
      %1912 = vst.msk [vmem:[#allocation3 + $0xc] sm:$0xf] %vm1908, %v1792
      %1913 = vst.msk [vmem:[#allocation3 + $0x10] sm:$0xf] %vm1908, %v1794
      %1914 = vst.msk [vmem:[#allocation3 + $0x14] sm:$0xf] %vm1908, %v1796
      %1915 = vst.msk [vmem:[#allocation3 + $0x18] sm:$0xf] %vm1908, %v1798
      %1916 = vst.msk [vmem:[#allocation3 + $0x1c] sm:$0xf] %vm1908, %v1800
      %1917 = vst.msk [vmem:[#allocation3 + $0x20] sm:$0xf] %vm1908, %v1802
      %1918 = vst.msk [vmem:[#allocation3 + $0x24] sm:$0xf] %vm1908, %v1804
      %1919 = vst.msk [vmem:[#allocation3 + $0x28] sm:$0xf] %vm1908, %v1806
      %1920 = vst.msk [vmem:[#allocation3 + $0x2c] sm:$0xf] %vm1908, %v1808
      %1921 = vst.msk [vmem:[#allocation3 + $0x30] sm:$0xf] %vm1908, %v1810
      %1922 = vst.msk [vmem:[#allocation3 + $0x34] sm:$0xf] %vm1908, %v1812
      %1923 = vst.msk [vmem:[#allocation3 + $0x38] sm:$0xf] %vm1908, %v1814
      %1924 = vst.msk [vmem:[#allocation3 + $0x3c] sm:$0xf] %vm1908, %v1816
      %1925 = vst.msk [vmem:[#allocation3 + $0x40] sm:$0xf] %vm1908, %v1818
      %1926 = vst.msk [vmem:[#allocation3 + $0x44] sm:$0xf] %vm1908, %v1820
      %1927 = vst.msk [vmem:[#allocation3 + $0x48] sm:$0xf] %vm1908, %v1822
      %1928 = vst.msk [vmem:[#allocation3 + $0x4c] sm:$0xf] %vm1908, %v1824
      %1929 = vst.msk [vmem:[#allocation3 + $0x50] sm:$0xf] %vm1908, %v1826
      %1930 = vst.msk [vmem:[#allocation3 + $0x54] sm:$0xf] %vm1908, %v1828
      %1931 = vst.msk [vmem:[#allocation3 + $0x58] sm:$0xf] %vm1908, %v1830
      %1932 = vst.msk [vmem:[#allocation3 + $0x5c] sm:$0xf] %vm1908, %v1832
      %1933 = vst.msk [vmem:[#allocation3 + $0x60] sm:$0xf] %vm1908, %v1834
      %1934 = vst.msk [vmem:[#allocation3 + $0x64] sm:$0xf] %vm1908, %v1836
      %1935 = vst.msk [vmem:[#allocation3 + $0x68] sm:$0xf] %vm1908, %v1838
      %1936 = vst.msk [vmem:[#allocation3 + $0x6c] sm:$0xf] %vm1908, %v1840
      %1937 = vst.msk [vmem:[#allocation3 + $0x70] sm:$0xf] %vm1908, %v1842
      %1938 = vst.msk [vmem:[#allocation3 + $0x74] sm:$0xf] %vm1908, %v1844
      %1939 = vst.msk [vmem:[#allocation3 + $0x78] sm:$0xf] %vm1908, %v1846
      %1940 = vst.msk [vmem:[#allocation3 + $0x7c] sm:$0xf] %vm1908, %v1848
      %1941 = vst.msk [vmem:[#allocation3 + $0x80] sm:$0xf] %vm1908, %v1850
      %1942 = vst.msk [vmem:[#allocation3 + $0x84] sm:$0xf] %vm1908, %v1852
      %1943 = vst.msk [vmem:[#allocation3 + $0x88] sm:$0xf] %vm1908, %v1854
      %1944 = vst.msk [vmem:[#allocation3 + $0x8c] sm:$0xf] %vm1908, %v1856
      %1945 = vst.msk [vmem:[#allocation3 + $0x90] sm:$0xf] %vm1908, %v1858
      %1946 = vst.msk [vmem:[#allocation3 + $0x94] sm:$0xf] %vm1908, %v1860
      %1947 = vst.msk [vmem:[#allocation3 + $0x98] sm:$0xf] %vm1908, %v1862
      %1948 = vst.msk [vmem:[#allocation3 + $0x9c] sm:$0xf] %vm1908, %v1864
      %1949 = vst.msk [vmem:[#allocation3 + $0xa0] sm:$0xf] %vm1908, %v1866
      %v1950 = vld [vmem:[#allocation2 + $0x29] sm:$0xff]
      %v1951 = vld [vmem:[#allocation2 + $0x31] sm:$0xff]
      %v1952 = vld [vmem:[#allocation2 + $0x39] sm:$0xff]
      %v1953 = vld [vmem:[#allocation2 + $0x41] sm:$0xff]
      %v1954 = vld [vmem:[#allocation2 + $0x49] sm:$0xff]
      %v1955 = vld [vmem:[#allocation2 + $0x51] sm:$0xff]
      %v1956 = vld [vmem:[#allocation2 + $0x59] sm:$0xff]
      %v1957 = vld [vmem:[#allocation2 + $0x61] sm:$0xff]
      %v1958 = vld [vmem:[#allocation2 + $0x69] sm:$0xff]
      %v1959 = vld [vmem:[#allocation2 + $0x71] sm:$0xff]
      %v1960 = vld [vmem:[#allocation2 + $0x79] sm:$0xff]
      %v1961 = vld [vmem:[#allocation2 + $0x81] sm:$0xff]
      %v1962 = vld [vmem:[#allocation2 + $0x89] sm:$0xff]
      %v1963 = vld [vmem:[#allocation2 + $0x91] sm:$0xff]
      %v1964 = vld [vmem:[#allocation2 + $0x99] sm:$0xff]
      %v1965 = vld [vmem:[#allocation2 + $0xa1] sm:$0xff]
      %v1966 = vld [vmem:[#allocation2 + $0xa9] sm:$0xff]
      %v1967 = vld [vmem:[#allocation2 + $0xb1] sm:$0xff]
      %v1968 = vld [vmem:[#allocation2 + $0xb9] sm:$0xff]
      %v1969 = vld [vmem:[#allocation2 + $0xc1] sm:$0xff]
      %v1970 = vld [vmem:[#allocation2 + $0xc9] sm:$0xff]
      %v1971 = vld [vmem:[#allocation2 + $0xd1] sm:$0xff]
      %v1972 = vld [vmem:[#allocation2 + $0xd9] sm:$0xff]
      %v1973 = vld [vmem:[#allocation2 + $0xe1] sm:$0xff]
      %v1974 = vld [vmem:[#allocation2 + $0xe9] sm:$0xff]
      %v1975 = vld [vmem:[#allocation2 + $0xf1] sm:$0xff]
      %v1976 = vld [vmem:[#allocation2 + $0xf9] sm:$0xff]
      %v1977 = vld [vmem:[#allocation2 + $0x101] sm:$0xff]
      %v1978 = vld [vmem:[#allocation2 + $0x109] sm:$0xff]
      %v1979 = vld [vmem:[#allocation2 + $0x111] sm:$0xff]
      %v1980 = vld [vmem:[#allocation2 + $0x119] sm:$0xff]
      %v1981 = vld [vmem:[#allocation2 + $0x121] sm:$0xff]
      %v1982 = vld [vmem:[#allocation2 + $0x129] sm:$0xff]
      %v1983 = vld [vmem:[#allocation2 + $0x131] sm:$0xff]
      %v1984 = vld [vmem:[#allocation2 + $0x139] sm:$0xff]
      %v1985 = vld [vmem:[#allocation2 + $0x141] sm:$0xff]
      %v1986 = vld [vmem:[#allocation2 + $0x149] sm:$0xff]
      %v1987 = vld [vmem:[#allocation2 + $0x151] sm:$0xff]
      %v1988 = vld [vmem:[#allocation2 + $0x159] sm:$0xff]
      %v1989 = vld [vmem:[#allocation2 + $0x161] sm:$0xff]
      %v1990 = vld [vmem:[#allocation2 + $0x169] sm:$0xff]
      %v1991 = vpack.c.bf16 %v1950, %v1950
      %v1992 = vpack.c.bf16 %v1951, %v1951
      %v1993 = vpack.c.bf16 %v1952, %v1952
      %v1994 = vpack.c.bf16 %v1953, %v1953
      %v1995 = vpack.c.bf16 %v1954, %v1954
      %v1996 = vpack.c.bf16 %v1955, %v1955
      %v1997 = vpack.c.bf16 %v1956, %v1956
      %v1998 = vpack.c.bf16 %v1957, %v1957
      %v1999 = vpack.c.bf16 %v1958, %v1958
      %v2000 = vpack.c.bf16 %v1959, %v1959
      %v2001 = vpack.c.bf16 %v1960, %v1960
      %v2002 = vpack.c.bf16 %v1961, %v1961
      %v2003 = vpack.c.bf16 %v1962, %v1962
      %v2004 = vpack.c.bf16 %v1963, %v1963
      %v2005 = vpack.c.bf16 %v1964, %v1964
      %v2006 = vpack.c.bf16 %v1965, %v1965
      %v2007 = vpack.c.bf16 %v1966, %v1966
      %v2008 = vpack.c.bf16 %v1967, %v1967
      %v2009 = vpack.c.bf16 %v1968, %v1968
      %v2010 = vpack.c.bf16 %v1969, %v1969
      %v2011 = vpack.c.bf16 %v1970, %v1970
      %v2012 = vpack.c.bf16 %v1971, %v1971
      %v2013 = vpack.c.bf16 %v1972, %v1972
      %v2014 = vpack.c.bf16 %v1973, %v1973
      %v2015 = vpack.c.bf16 %v1974, %v1974
      %v2016 = vpack.c.bf16 %v1975, %v1975
      %v2017 = vpack.c.bf16 %v1976, %v1976
      %v2018 = vpack.c.bf16 %v1977, %v1977
      %v2019 = vpack.c.bf16 %v1978, %v1978
      %v2020 = vpack.c.bf16 %v1979, %v1979
      %v2021 = vpack.c.bf16 %v1980, %v1980
      %v2022 = vpack.c.bf16 %v1981, %v1981
      %v2023 = vpack.c.bf16 %v1982, %v1982
      %v2024 = vpack.c.bf16 %v1983, %v1983
      %v2025 = vpack.c.bf16 %v1984, %v1984
      %v2026 = vpack.c.bf16 %v1985, %v1985
      %v2027 = vpack.c.bf16 %v1986, %v1986
      %v2028 = vpack.c.bf16 %v1987, %v1987
      %v2029 = vpack.c.bf16 %v1988, %v1988
      %v2030 = vpack.c.bf16 %v1989, %v1989
      %v2031 = vpack.c.bf16 %v1990, %v1990
      %2073 = vrot.lane.b32.xlu0 %v1991, 48
      %v2074 = vpop.permute.xlu0 %2073
      %2075 = vrot.lane.b32.xlu0 %v1992, 48
      %v2076 = vpop.permute.xlu0 %2075
      %2077 = vrot.lane.b32.xlu0 %v1993, 48
      %v2078 = vpop.permute.xlu0 %2077
      %2079 = vrot.lane.b32.xlu0 %v1994, 48
      %v2080 = vpop.permute.xlu0 %2079
      %2081 = vrot.lane.b32.xlu0 %v1995, 48
      %v2082 = vpop.permute.xlu0 %2081
      %2083 = vrot.lane.b32.xlu0 %v1996, 48
      %v2084 = vpop.permute.xlu0 %2083
      %2085 = vrot.lane.b32.xlu0 %v1997, 48
      %v2086 = vpop.permute.xlu0 %2085
      %2087 = vrot.lane.b32.xlu0 %v1998, 48
      %v2088 = vpop.permute.xlu0 %2087
      %2089 = vrot.lane.b32.xlu0 %v1999, 48
      %v2090 = vpop.permute.xlu0 %2089
      %2091 = vrot.lane.b32.xlu0 %v2000, 48
      %v2092 = vpop.permute.xlu0 %2091
      %2093 = vrot.lane.b32.xlu0 %v2001, 48
      %v2094 = vpop.permute.xlu0 %2093
      %2095 = vrot.lane.b32.xlu0 %v2002, 48
      %v2096 = vpop.permute.xlu0 %2095
      %2097 = vrot.lane.b32.xlu0 %v2003, 48
      %v2098 = vpop.permute.xlu0 %2097
      %2099 = vrot.lane.b32.xlu0 %v2004, 48
      %v2100 = vpop.permute.xlu0 %2099
      %2101 = vrot.lane.b32.xlu0 %v2005, 48
      %v2102 = vpop.permute.xlu0 %2101
      %2103 = vrot.lane.b32.xlu0 %v2006, 48
      %v2104 = vpop.permute.xlu0 %2103
      %2105 = vrot.lane.b32.xlu0 %v2007, 48
      %v2106 = vpop.permute.xlu0 %2105
      %2107 = vrot.lane.b32.xlu0 %v2008, 48
      %v2108 = vpop.permute.xlu0 %2107
      %2109 = vrot.lane.b32.xlu0 %v2009, 48
      %v2110 = vpop.permute.xlu0 %2109
      %2111 = vrot.lane.b32.xlu0 %v2010, 48
      %v2112 = vpop.permute.xlu0 %2111
      %2113 = vrot.lane.b32.xlu0 %v2011, 48
      %v2114 = vpop.permute.xlu0 %2113
      %2115 = vrot.lane.b32.xlu0 %v2012, 48
      %v2116 = vpop.permute.xlu0 %2115
      %2117 = vrot.lane.b32.xlu0 %v2013, 48
      %v2118 = vpop.permute.xlu0 %2117
      %2119 = vrot.lane.b32.xlu0 %v2014, 48
      %v2120 = vpop.permute.xlu0 %2119
      %2121 = vrot.lane.b32.xlu0 %v2015, 48
      %v2122 = vpop.permute.xlu0 %2121
      %2123 = vrot.lane.b32.xlu0 %v2016, 48
      %v2124 = vpop.permute.xlu0 %2123
      %2125 = vrot.lane.b32.xlu0 %v2017, 48
      %v2126 = vpop.permute.xlu0 %2125
      %2127 = vrot.lane.b32.xlu0 %v2018, 48
      %v2128 = vpop.permute.xlu0 %2127
      %2129 = vrot.lane.b32.xlu0 %v2019, 48
      %v2130 = vpop.permute.xlu0 %2129
      %2131 = vrot.lane.b32.xlu0 %v2020, 48
      %v2132 = vpop.permute.xlu0 %2131
      %2133 = vrot.lane.b32.xlu0 %v2021, 48
      %v2134 = vpop.permute.xlu0 %2133
      %2135 = vrot.lane.b32.xlu0 %v2022, 48
      %v2136 = vpop.permute.xlu0 %2135
      %2137 = vrot.lane.b32.xlu0 %v2023, 48
      %v2138 = vpop.permute.xlu0 %2137
      %2139 = vrot.lane.b32.xlu0 %v2024, 48
      %v2140 = vpop.permute.xlu0 %2139
      %2141 = vrot.lane.b32.xlu0 %v2025, 48
      %v2142 = vpop.permute.xlu0 %2141
      %2143 = vrot.lane.b32.xlu0 %v2026, 48
      %v2144 = vpop.permute.xlu0 %2143
      %2145 = vrot.lane.b32.xlu0 %v2027, 48
      %v2146 = vpop.permute.xlu0 %2145
      %2147 = vrot.lane.b32.xlu0 %v2028, 48
      %v2148 = vpop.permute.xlu0 %2147
      %2149 = vrot.lane.b32.xlu0 %v2029, 48
      %v2150 = vpop.permute.xlu0 %2149
      %2151 = vrot.lane.b32.xlu0 %v2030, 48
      %v2152 = vpop.permute.xlu0 %2151
      %2153 = vrot.lane.b32.xlu0 %v2031, 48
      %v2154 = vpop.permute.xlu0 %2153
      %vm2196 = vcmask 454016
      %2197 = vst.msk [vmem:[#allocation3] sm:$0xf] %vm2196, %v2074
      %2198 = vst.msk [vmem:[#allocation3 + $0x4] sm:$0xf] %vm2196, %v2076
      %2199 = vst.msk [vmem:[#allocation3 + $0x8] sm:$0xf] %vm2196, %v2078
      %2200 = vst.msk [vmem:[#allocation3 + $0xc] sm:$0xf] %vm2196, %v2080
      %2201 = vst.msk [vmem:[#allocation3 + $0x10] sm:$0xf] %vm2196, %v2082
      %2202 = vst.msk [vmem:[#allocation3 + $0x14] sm:$0xf] %vm2196, %v2084
      %2203 = vst.msk [vmem:[#allocation3 + $0x18] sm:$0xf] %vm2196, %v2086
      %2204 = vst.msk [vmem:[#allocation3 + $0x1c] sm:$0xf] %vm2196, %v2088
      %2205 = vst.msk [vmem:[#allocation3 + $0x20] sm:$0xf] %vm2196, %v2090
      %2206 = vst.msk [vmem:[#allocation3 + $0x24] sm:$0xf] %vm2196, %v2092
      %2207 = vst.msk [vmem:[#allocation3 + $0x28] sm:$0xf] %vm2196, %v2094
      %2208 = vst.msk [vmem:[#allocation3 + $0x2c] sm:$0xf] %vm2196, %v2096
      %2209 = vst.msk [vmem:[#allocation3 + $0x30] sm:$0xf] %vm2196, %v2098
      %2210 = vst.msk [vmem:[#allocation3 + $0x34] sm:$0xf] %vm2196, %v2100
      %2211 = vst.msk [vmem:[#allocation3 + $0x38] sm:$0xf] %vm2196, %v2102
      %2212 = vst.msk [vmem:[#allocation3 + $0x3c] sm:$0xf] %vm2196, %v2104
      %2213 = vst.msk [vmem:[#allocation3 + $0x40] sm:$0xf] %vm2196, %v2106
      %2214 = vst.msk [vmem:[#allocation3 + $0x44] sm:$0xf] %vm2196, %v2108
      %2215 = vst.msk [vmem:[#allocation3 + $0x48] sm:$0xf] %vm2196, %v2110
      %2216 = vst.msk [vmem:[#allocation3 + $0x4c] sm:$0xf] %vm2196, %v2112
      %2217 = vst.msk [vmem:[#allocation3 + $0x50] sm:$0xf] %vm2196, %v2114
      %2218 = vst.msk [vmem:[#allocation3 + $0x54] sm:$0xf] %vm2196, %v2116
      %2219 = vst.msk [vmem:[#allocation3 + $0x58] sm:$0xf] %vm2196, %v2118
      %2220 = vst.msk [vmem:[#allocation3 + $0x5c] sm:$0xf] %vm2196, %v2120
      %2221 = vst.msk [vmem:[#allocation3 + $0x60] sm:$0xf] %vm2196, %v2122
      %2222 = vst.msk [vmem:[#allocation3 + $0x64] sm:$0xf] %vm2196, %v2124
      %2223 = vst.msk [vmem:[#allocation3 + $0x68] sm:$0xf] %vm2196, %v2126
      %2224 = vst.msk [vmem:[#allocation3 + $0x6c] sm:$0xf] %vm2196, %v2128
      %2225 = vst.msk [vmem:[#allocation3 + $0x70] sm:$0xf] %vm2196, %v2130
      %2226 = vst.msk [vmem:[#allocation3 + $0x74] sm:$0xf] %vm2196, %v2132
      %2227 = vst.msk [vmem:[#allocation3 + $0x78] sm:$0xf] %vm2196, %v2134
      %2228 = vst.msk [vmem:[#allocation3 + $0x7c] sm:$0xf] %vm2196, %v2136
      %2229 = vst.msk [vmem:[#allocation3 + $0x80] sm:$0xf] %vm2196, %v2138
      %2230 = vst.msk [vmem:[#allocation3 + $0x84] sm:$0xf] %vm2196, %v2140
      %2231 = vst.msk [vmem:[#allocation3 + $0x88] sm:$0xf] %vm2196, %v2142
      %2232 = vst.msk [vmem:[#allocation3 + $0x8c] sm:$0xf] %vm2196, %v2144
      %2233 = vst.msk [vmem:[#allocation3 + $0x90] sm:$0xf] %vm2196, %v2146
      %2234 = vst.msk [vmem:[#allocation3 + $0x94] sm:$0xf] %vm2196, %v2148
      %2235 = vst.msk [vmem:[#allocation3 + $0x98] sm:$0xf] %vm2196, %v2150
      %2236 = vst.msk [vmem:[#allocation3 + $0x9c] sm:$0xf] %vm2196, %v2152
      %2237 = vst.msk [vmem:[#allocation3 + $0xa0] sm:$0xf] %vm2196, %v2154
      %v2238 = vld [vmem:[#allocation2 + $0x2a] sm:$0xff]
      %v2239 = vld [vmem:[#allocation2 + $0x32] sm:$0xff]
      %v2240 = vld [vmem:[#allocation2 + $0x3a] sm:$0xff]
      %v2241 = vld [vmem:[#allocation2 + $0x42] sm:$0xff]
      %v2242 = vld [vmem:[#allocation2 + $0x4a] sm:$0xff]
      %v2243 = vld [vmem:[#allocation2 + $0x52] sm:$0xff]
      %v2244 = vld [vmem:[#allocation2 + $0x5a] sm:$0xff]
      %v2245 = vld [vmem:[#allocation2 + $0x62] sm:$0xff]
      %v2246 = vld [vmem:[#allocation2 + $0x6a] sm:$0xff]
      %v2247 = vld [vmem:[#allocation2 + $0x72] sm:$0xff]
      %v2248 = vld [vmem:[#allocation2 + $0x7a] sm:$0xff]
      %v2249 = vld [vmem:[#allocation2 + $0x82] sm:$0xff]
      %v2250 = vld [vmem:[#allocation2 + $0x8a] sm:$0xff]
      %v2251 = vld [vmem:[#allocation2 + $0x92] sm:$0xff]
      %v2252 = vld [vmem:[#allocation2 + $0x9a] sm:$0xff]
      %v2253 = vld [vmem:[#allocation2 + $0xa2] sm:$0xff]
      %v2254 = vld [vmem:[#allocation2 + $0xaa] sm:$0xff]
      %v2255 = vld [vmem:[#allocation2 + $0xb2] sm:$0xff]
      %v2256 = vld [vmem:[#allocation2 + $0xba] sm:$0xff]
      %v2257 = vld [vmem:[#allocation2 + $0xc2] sm:$0xff]
      %v2258 = vld [vmem:[#allocation2 + $0xca] sm:$0xff]
      %v2259 = vld [vmem:[#allocation2 + $0xd2] sm:$0xff]
      %v2260 = vld [vmem:[#allocation2 + $0xda] sm:$0xff]
      %v2261 = vld [vmem:[#allocation2 + $0xe2] sm:$0xff]
      %v2262 = vld [vmem:[#allocation2 + $0xea] sm:$0xff]
      %v2263 = vld [vmem:[#allocation2 + $0xf2] sm:$0xff]
      %v2264 = vld [vmem:[#allocation2 + $0xfa] sm:$0xff]
      %v2265 = vld [vmem:[#allocation2 + $0x102] sm:$0xff]
      %v2266 = vld [vmem:[#allocation2 + $0x10a] sm:$0xff]
      %v2267 = vld [vmem:[#allocation2 + $0x112] sm:$0xff]
      %v2268 = vld [vmem:[#allocation2 + $0x11a] sm:$0xff]
      %v2269 = vld [vmem:[#allocation2 + $0x122] sm:$0xff]
      %v2270 = vld [vmem:[#allocation2 + $0x12a] sm:$0xff]
      %v2271 = vld [vmem:[#allocation2 + $0x132] sm:$0xff]
      %v2272 = vld [vmem:[#allocation2 + $0x13a] sm:$0xff]
      %v2273 = vld [vmem:[#allocation2 + $0x142] sm:$0xff]
      %v2274 = vld [vmem:[#allocation2 + $0x14a] sm:$0xff]
      %v2275 = vld [vmem:[#allocation2 + $0x152] sm:$0xff]
      %v2276 = vld [vmem:[#allocation2 + $0x15a] sm:$0xff]
      %v2277 = vld [vmem:[#allocation2 + $0x162] sm:$0xff]
      %v2278 = vld [vmem:[#allocation2 + $0x16a] sm:$0xff]
      %v2279 = vpack.c.bf16 %v2238, %v2238
      %v2280 = vpack.c.bf16 %v2239, %v2239
      %v2281 = vpack.c.bf16 %v2240, %v2240
      %v2282 = vpack.c.bf16 %v2241, %v2241
      %v2283 = vpack.c.bf16 %v2242, %v2242
      %v2284 = vpack.c.bf16 %v2243, %v2243
      %v2285 = vpack.c.bf16 %v2244, %v2244
      %v2286 = vpack.c.bf16 %v2245, %v2245
      %v2287 = vpack.c.bf16 %v2246, %v2246
      %v2288 = vpack.c.bf16 %v2247, %v2247
      %v2289 = vpack.c.bf16 %v2248, %v2248
      %v2290 = vpack.c.bf16 %v2249, %v2249
      %v2291 = vpack.c.bf16 %v2250, %v2250
      %v2292 = vpack.c.bf16 %v2251, %v2251
      %v2293 = vpack.c.bf16 %v2252, %v2252
      %v2294 = vpack.c.bf16 %v2253, %v2253
      %v2295 = vpack.c.bf16 %v2254, %v2254
      %v2296 = vpack.c.bf16 %v2255, %v2255
      %v2297 = vpack.c.bf16 %v2256, %v2256
      %v2298 = vpack.c.bf16 %v2257, %v2257
      %v2299 = vpack.c.bf16 %v2258, %v2258
      %v2300 = vpack.c.bf16 %v2259, %v2259
      %v2301 = vpack.c.bf16 %v2260, %v2260
      %v2302 = vpack.c.bf16 %v2261, %v2261
      %v2303 = vpack.c.bf16 %v2262, %v2262
      %v2304 = vpack.c.bf16 %v2263, %v2263
      %v2305 = vpack.c.bf16 %v2264, %v2264
      %v2306 = vpack.c.bf16 %v2265, %v2265
      %v2307 = vpack.c.bf16 %v2266, %v2266
      %v2308 = vpack.c.bf16 %v2267, %v2267
      %v2309 = vpack.c.bf16 %v2268, %v2268
      %v2310 = vpack.c.bf16 %v2269, %v2269
      %v2311 = vpack.c.bf16 %v2270, %v2270
      %v2312 = vpack.c.bf16 %v2271, %v2271
      %v2313 = vpack.c.bf16 %v2272, %v2272
      %v2314 = vpack.c.bf16 %v2273, %v2273
      %v2315 = vpack.c.bf16 %v2274, %v2274
      %v2316 = vpack.c.bf16 %v2275, %v2275
      %v2317 = vpack.c.bf16 %v2276, %v2276
      %v2318 = vpack.c.bf16 %v2277, %v2277
      %v2319 = vpack.c.bf16 %v2278, %v2278
      %2361 = vrot.lane.b32.xlu0 %v2279, 56
      %v2362 = vpop.permute.xlu0 %2361
      %2363 = vrot.lane.b32.xlu0 %v2280, 56
      %v2364 = vpop.permute.xlu0 %2363
      %2365 = vrot.lane.b32.xlu0 %v2281, 56
      %v2366 = vpop.permute.xlu0 %2365
      %2367 = vrot.lane.b32.xlu0 %v2282, 56
      %v2368 = vpop.permute.xlu0 %2367
      %2369 = vrot.lane.b32.xlu0 %v2283, 56
      %v2370 = vpop.permute.xlu0 %2369
      %2371 = vrot.lane.b32.xlu0 %v2284, 56
      %v2372 = vpop.permute.xlu0 %2371
      %2373 = vrot.lane.b32.xlu0 %v2285, 56
      %v2374 = vpop.permute.xlu0 %2373
      %2375 = vrot.lane.b32.xlu0 %v2286, 56
      %v2376 = vpop.permute.xlu0 %2375
      %2377 = vrot.lane.b32.xlu0 %v2287, 56
      %v2378 = vpop.permute.xlu0 %2377
      %2379 = vrot.lane.b32.xlu0 %v2288, 56
      %v2380 = vpop.permute.xlu0 %2379
      %2381 = vrot.lane.b32.xlu0 %v2289, 56
      %v2382 = vpop.permute.xlu0 %2381
      %2383 = vrot.lane.b32.xlu0 %v2290, 56
      %v2384 = vpop.permute.xlu0 %2383
      %2385 = vrot.lane.b32.xlu0 %v2291, 56
      %v2386 = vpop.permute.xlu0 %2385
      %2387 = vrot.lane.b32.xlu0 %v2292, 56
      %v2388 = vpop.permute.xlu0 %2387
      %2389 = vrot.lane.b32.xlu0 %v2293, 56
      %v2390 = vpop.permute.xlu0 %2389
      %2391 = vrot.lane.b32.xlu0 %v2294, 56
      %v2392 = vpop.permute.xlu0 %2391
      %2393 = vrot.lane.b32.xlu0 %v2295, 56
      %v2394 = vpop.permute.xlu0 %2393
      %2395 = vrot.lane.b32.xlu0 %v2296, 56
      %v2396 = vpop.permute.xlu0 %2395
      %2397 = vrot.lane.b32.xlu0 %v2297, 56
      %v2398 = vpop.permute.xlu0 %2397
      %2399 = vrot.lane.b32.xlu0 %v2298, 56
      %v2400 = vpop.permute.xlu0 %2399
      %2401 = vrot.lane.b32.xlu0 %v2299, 56
      %v2402 = vpop.permute.xlu0 %2401
      %2403 = vrot.lane.b32.xlu0 %v2300, 56
      %v2404 = vpop.permute.xlu0 %2403
      %2405 = vrot.lane.b32.xlu0 %v2301, 56
      %v2406 = vpop.permute.xlu0 %2405
      %2407 = vrot.lane.b32.xlu0 %v2302, 56
      %v2408 = vpop.permute.xlu0 %2407
      %2409 = vrot.lane.b32.xlu0 %v2303, 56
      %v2410 = vpop.permute.xlu0 %2409
      %2411 = vrot.lane.b32.xlu0 %v2304, 56
      %v2412 = vpop.permute.xlu0 %2411
      %2413 = vrot.lane.b32.xlu0 %v2305, 56
      %v2414 = vpop.permute.xlu0 %2413
      %2415 = vrot.lane.b32.xlu0 %v2306, 56
      %v2416 = vpop.permute.xlu0 %2415
      %2417 = vrot.lane.b32.xlu0 %v2307, 56
      %v2418 = vpop.permute.xlu0 %2417
      %2419 = vrot.lane.b32.xlu0 %v2308, 56
      %v2420 = vpop.permute.xlu0 %2419
      %2421 = vrot.lane.b32.xlu0 %v2309, 56
      %v2422 = vpop.permute.xlu0 %2421
      %2423 = vrot.lane.b32.xlu0 %v2310, 56
      %v2424 = vpop.permute.xlu0 %2423
      %2425 = vrot.lane.b32.xlu0 %v2311, 56
      %v2426 = vpop.permute.xlu0 %2425
      %2427 = vrot.lane.b32.xlu0 %v2312, 56
      %v2428 = vpop.permute.xlu0 %2427
      %2429 = vrot.lane.b32.xlu0 %v2313, 56
      %v2430 = vpop.permute.xlu0 %2429
      %2431 = vrot.lane.b32.xlu0 %v2314, 56
      %v2432 = vpop.permute.xlu0 %2431
      %2433 = vrot.lane.b32.xlu0 %v2315, 56
      %v2434 = vpop.permute.xlu0 %2433
      %2435 = vrot.lane.b32.xlu0 %v2316, 56
      %v2436 = vpop.permute.xlu0 %2435
      %2437 = vrot.lane.b32.xlu0 %v2317, 56
      %v2438 = vpop.permute.xlu0 %2437
      %2439 = vrot.lane.b32.xlu0 %v2318, 56
      %v2440 = vpop.permute.xlu0 %2439
      %2441 = vrot.lane.b32.xlu0 %v2319, 56
      %v2442 = vpop.permute.xlu0 %2441
      %vm2484 = vcmask 519616
      %2485 = vst.msk [vmem:[#allocation3] sm:$0xf] %vm2484, %v2362
      %2486 = vst.msk [vmem:[#allocation3 + $0x4] sm:$0xf] %vm2484, %v2364
      %2487 = vst.msk [vmem:[#allocation3 + $0x8] sm:$0xf] %vm2484, %v2366
      %2488 = vst.msk [vmem:[#allocation3 + $0xc] sm:$0xf] %vm2484, %v2368
      %2489 = vst.msk [vmem:[#allocation3 + $0x10] sm:$0xf] %vm2484, %v2370
      %2490 = vst.msk [vmem:[#allocation3 + $0x14] sm:$0xf] %vm2484, %v2372
      %2491 = vst.msk [vmem:[#allocation3 + $0x18] sm:$0xf] %vm2484, %v2374
      %2492 = vst.msk [vmem:[#allocation3 + $0x1c] sm:$0xf] %vm2484, %v2376
      %2493 = vst.msk [vmem:[#allocation3 + $0x20] sm:$0xf] %vm2484, %v2378
      %2494 = vst.msk [vmem:[#allocation3 + $0x24] sm:$0xf] %vm2484, %v2380
      %2495 = vst.msk [vmem:[#allocation3 + $0x28] sm:$0xf] %vm2484, %v2382
      %2496 = vst.msk [vmem:[#allocation3 + $0x2c] sm:$0xf] %vm2484, %v2384
      %2497 = vst.msk [vmem:[#allocation3 + $0x30] sm:$0xf] %vm2484, %v2386
      %2498 = vst.msk [vmem:[#allocation3 + $0x34] sm:$0xf] %vm2484, %v2388
      %2499 = vst.msk [vmem:[#allocation3 + $0x38] sm:$0xf] %vm2484, %v2390
      %2500 = vst.msk [vmem:[#allocation3 + $0x3c] sm:$0xf] %vm2484, %v2392
      %2501 = vst.msk [vmem:[#allocation3 + $0x40] sm:$0xf] %vm2484, %v2394
      %2502 = vst.msk [vmem:[#allocation3 + $0x44] sm:$0xf] %vm2484, %v2396
      %2503 = vst.msk [vmem:[#allocation3 + $0x48] sm:$0xf] %vm2484, %v2398
      %2504 = vst.msk [vmem:[#allocation3 + $0x4c] sm:$0xf] %vm2484, %v2400
      %2505 = vst.msk [vmem:[#allocation3 + $0x50] sm:$0xf] %vm2484, %v2402
      %2506 = vst.msk [vmem:[#allocation3 + $0x54] sm:$0xf] %vm2484, %v2404
      %2507 = vst.msk [vmem:[#allocation3 + $0x58] sm:$0xf] %vm2484, %v2406
      %2508 = vst.msk [vmem:[#allocation3 + $0x5c] sm:$0xf] %vm2484, %v2408
      %2509 = vst.msk [vmem:[#allocation3 + $0x60] sm:$0xf] %vm2484, %v2410
      %2510 = vst.msk [vmem:[#allocation3 + $0x64] sm:$0xf] %vm2484, %v2412
      %2511 = vst.msk [vmem:[#allocation3 + $0x68] sm:$0xf] %vm2484, %v2414
      %2512 = vst.msk [vmem:[#allocation3 + $0x6c] sm:$0xf] %vm2484, %v2416
      %2513 = vst.msk [vmem:[#allocation3 + $0x70] sm:$0xf] %vm2484, %v2418
      %2514 = vst.msk [vmem:[#allocation3 + $0x74] sm:$0xf] %vm2484, %v2420
      %2515 = vst.msk [vmem:[#allocation3 + $0x78] sm:$0xf] %vm2484, %v2422
      %2516 = vst.msk [vmem:[#allocation3 + $0x7c] sm:$0xf] %vm2484, %v2424
      %2517 = vst.msk [vmem:[#allocation3 + $0x80] sm:$0xf] %vm2484, %v2426
      %2518 = vst.msk [vmem:[#allocation3 + $0x84] sm:$0xf] %vm2484, %v2428
      %2519 = vst.msk [vmem:[#allocation3 + $0x88] sm:$0xf] %vm2484, %v2430
      %2520 = vst.msk [vmem:[#allocation3 + $0x8c] sm:$0xf] %vm2484, %v2432
      %2521 = vst.msk [vmem:[#allocation3 + $0x90] sm:$0xf] %vm2484, %v2434
      %2522 = vst.msk [vmem:[#allocation3 + $0x94] sm:$0xf] %vm2484, %v2436
      %2523 = vst.msk [vmem:[#allocation3 + $0x98] sm:$0xf] %vm2484, %v2438
      %2524 = vst.msk [vmem:[#allocation3 + $0x9c] sm:$0xf] %vm2484, %v2440
      %2525 = vst.msk [vmem:[#allocation3 + $0xa0] sm:$0xf] %vm2484, %v2442
      %v2526 = vld [vmem:[#allocation2 + $0x2b] sm:$0xff]
      %v2527 = vld [vmem:[#allocation2 + $0x33] sm:$0xff]
      %v2528 = vld [vmem:[#allocation2 + $0x3b] sm:$0xff]
      %v2529 = vld [vmem:[#allocation2 + $0x43] sm:$0xff]
      %v2530 = vld [vmem:[#allocation2 + $0x4b] sm:$0xff]
      %v2531 = vld [vmem:[#allocation2 + $0x53] sm:$0xff]
      %v2532 = vld [vmem:[#allocation2 + $0x5b] sm:$0xff]
      %v2533 = vld [vmem:[#allocation2 + $0x63] sm:$0xff]
      %v2534 = vld [vmem:[#allocation2 + $0x6b] sm:$0xff]
      %v2535 = vld [vmem:[#allocation2 + $0x73] sm:$0xff]
      %v2536 = vld [vmem:[#allocation2 + $0x7b] sm:$0xff]
      %v2537 = vld [vmem:[#allocation2 + $0x83] sm:$0xff]
      %v2538 = vld [vmem:[#allocation2 + $0x8b] sm:$0xff]
      %v2539 = vld [vmem:[#allocation2 + $0x93] sm:$0xff]
      %v2540 = vld [vmem:[#allocation2 + $0x9b] sm:$0xff]
      %v2541 = vld [vmem:[#allocation2 + $0xa3] sm:$0xff]
      %v2542 = vld [vmem:[#allocation2 + $0xab] sm:$0xff]
      %v2543 = vld [vmem:[#allocation2 + $0xb3] sm:$0xff]
      %v2544 = vld [vmem:[#allocation2 + $0xbb] sm:$0xff]
      %v2545 = vld [vmem:[#allocation2 + $0xc3] sm:$0xff]
      %v2546 = vld [vmem:[#allocation2 + $0xcb] sm:$0xff]
      %v2547 = vld [vmem:[#allocation2 + $0xd3] sm:$0xff]
      %v2548 = vld [vmem:[#allocation2 + $0xdb] sm:$0xff]
      %v2549 = vld [vmem:[#allocation2 + $0xe3] sm:$0xff]
      %v2550 = vld [vmem:[#allocation2 + $0xeb] sm:$0xff]
      %v2551 = vld [vmem:[#allocation2 + $0xf3] sm:$0xff]
      %v2552 = vld [vmem:[#allocation2 + $0xfb] sm:$0xff]
      %v2553 = vld [vmem:[#allocation2 + $0x103] sm:$0xff]
      %v2554 = vld [vmem:[#allocation2 + $0x10b] sm:$0xff]
      %v2555 = vld [vmem:[#allocation2 + $0x113] sm:$0xff]
      %v2556 = vld [vmem:[#allocation2 + $0x11b] sm:$0xff]
      %v2557 = vld [vmem:[#allocation2 + $0x123] sm:$0xff]
      %v2558 = vld [vmem:[#allocation2 + $0x12b] sm:$0xff]
      %v2559 = vld [vmem:[#allocation2 + $0x133] sm:$0xff]
      %v2560 = vld [vmem:[#allocation2 + $0x13b] sm:$0xff]
      %v2561 = vld [vmem:[#allocation2 + $0x143] sm:$0xff]
      %v2562 = vld [vmem:[#allocation2 + $0x14b] sm:$0xff]
      %v2563 = vld [vmem:[#allocation2 + $0x153] sm:$0xff]
      %v2564 = vld [vmem:[#allocation2 + $0x15b] sm:$0xff]
      %v2565 = vld [vmem:[#allocation2 + $0x163] sm:$0xff]
      %v2566 = vld [vmem:[#allocation2 + $0x16b] sm:$0xff]
      %v2567 = vpack.c.bf16 %v2526, %v2526
      %v2568 = vpack.c.bf16 %v2527, %v2527
      %v2569 = vpack.c.bf16 %v2528, %v2528
      %v2570 = vpack.c.bf16 %v2529, %v2529
      %v2571 = vpack.c.bf16 %v2530, %v2530
      %v2572 = vpack.c.bf16 %v2531, %v2531
      %v2573 = vpack.c.bf16 %v2532, %v2532
      %v2574 = vpack.c.bf16 %v2533, %v2533
      %v2575 = vpack.c.bf16 %v2534, %v2534
      %v2576 = vpack.c.bf16 %v2535, %v2535
      %v2577 = vpack.c.bf16 %v2536, %v2536
      %v2578 = vpack.c.bf16 %v2537, %v2537
      %v2579 = vpack.c.bf16 %v2538, %v2538
      %v2580 = vpack.c.bf16 %v2539, %v2539
      %v2581 = vpack.c.bf16 %v2540, %v2540
      %v2582 = vpack.c.bf16 %v2541, %v2541
      %v2583 = vpack.c.bf16 %v2542, %v2542
      %v2584 = vpack.c.bf16 %v2543, %v2543
      %v2585 = vpack.c.bf16 %v2544, %v2544
      %v2586 = vpack.c.bf16 %v2545, %v2545
      %v2587 = vpack.c.bf16 %v2546, %v2546
      %v2588 = vpack.c.bf16 %v2547, %v2547
      %v2589 = vpack.c.bf16 %v2548, %v2548
      %v2590 = vpack.c.bf16 %v2549, %v2549
      %v2591 = vpack.c.bf16 %v2550, %v2550
      %v2592 = vpack.c.bf16 %v2551, %v2551
      %v2593 = vpack.c.bf16 %v2552, %v2552
      %v2594 = vpack.c.bf16 %v2553, %v2553
      %v2595 = vpack.c.bf16 %v2554, %v2554
      %v2596 = vpack.c.bf16 %v2555, %v2555
      %v2597 = vpack.c.bf16 %v2556, %v2556
      %v2598 = vpack.c.bf16 %v2557, %v2557
      %v2599 = vpack.c.bf16 %v2558, %v2558
      %v2600 = vpack.c.bf16 %v2559, %v2559
      %v2601 = vpack.c.bf16 %v2560, %v2560
      %v2602 = vpack.c.bf16 %v2561, %v2561
      %v2603 = vpack.c.bf16 %v2562, %v2562
      %v2604 = vpack.c.bf16 %v2563, %v2563
      %v2605 = vpack.c.bf16 %v2564, %v2564
      %v2606 = vpack.c.bf16 %v2565, %v2565
      %v2607 = vpack.c.bf16 %v2566, %v2566
      %2649 = vrot.lane.b32.xlu0 %v2567, 64
      %v2650 = vpop.permute.xlu0 %2649
      %2651 = vrot.lane.b32.xlu0 %v2568, 64
      %v2652 = vpop.permute.xlu0 %2651
      %2653 = vrot.lane.b32.xlu0 %v2569, 64
      %v2654 = vpop.permute.xlu0 %2653
      %2655 = vrot.lane.b32.xlu0 %v2570, 64
      %v2656 = vpop.permute.xlu0 %2655
      %2657 = vrot.lane.b32.xlu0 %v2571, 64
      %v2658 = vpop.permute.xlu0 %2657
      %2659 = vrot.lane.b32.xlu0 %v2572, 64
      %v2660 = vpop.permute.xlu0 %2659
      %2661 = vrot.lane.b32.xlu0 %v2573, 64
      %v2662 = vpop.permute.xlu0 %2661
      %2663 = vrot.lane.b32.xlu0 %v2574, 64
      %v2664 = vpop.permute.xlu0 %2663
      %2665 = vrot.lane.b32.xlu0 %v2575, 64
      %v2666 = vpop.permute.xlu0 %2665
      %2667 = vrot.lane.b32.xlu0 %v2576, 64
      %v2668 = vpop.permute.xlu0 %2667
      %2669 = vrot.lane.b32.xlu0 %v2577, 64
      %v2670 = vpop.permute.xlu0 %2669
      %2671 = vrot.lane.b32.xlu0 %v2578, 64
      %v2672 = vpop.permute.xlu0 %2671
      %2673 = vrot.lane.b32.xlu0 %v2579, 64
      %v2674 = vpop.permute.xlu0 %2673
      %2675 = vrot.lane.b32.xlu0 %v2580, 64
      %v2676 = vpop.permute.xlu0 %2675
      %2677 = vrot.lane.b32.xlu0 %v2581, 64
      %v2678 = vpop.permute.xlu0 %2677
      %2679 = vrot.lane.b32.xlu0 %v2582, 64
      %v2680 = vpop.permute.xlu0 %2679
      %2681 = vrot.lane.b32.xlu0 %v2583, 64
      %v2682 = vpop.permute.xlu0 %2681
      %2683 = vrot.lane.b32.xlu0 %v2584, 64
      %v2684 = vpop.permute.xlu0 %2683
      %2685 = vrot.lane.b32.xlu0 %v2585, 64
      %v2686 = vpop.permute.xlu0 %2685
      %2687 = vrot.lane.b32.xlu0 %v2586, 64
      %v2688 = vpop.permute.xlu0 %2687
      %2689 = vrot.lane.b32.xlu0 %v2587, 64
      %v2690 = vpop.permute.xlu0 %2689
      %2691 = vrot.lane.b32.xlu0 %v2588, 64
      %v2692 = vpop.permute.xlu0 %2691
      %2693 = vrot.lane.b32.xlu0 %v2589, 64
      %v2694 = vpop.permute.xlu0 %2693
      %2695 = vrot.lane.b32.xlu0 %v2590, 64
      %v2696 = vpop.permute.xlu0 %2695
      %2697 = vrot.lane.b32.xlu0 %v2591, 64
      %v2698 = vpop.permute.xlu0 %2697
      %2699 = vrot.lane.b32.xlu0 %v2592, 64
      %v2700 = vpop.permute.xlu0 %2699
      %2701 = vrot.lane.b32.xlu0 %v2593, 64
      %v2702 = vpop.permute.xlu0 %2701
      %2703 = vrot.lane.b32.xlu0 %v2594, 64
      %v2704 = vpop.permute.xlu0 %2703
      %2705 = vrot.lane.b32.xlu0 %v2595, 64
      %v2706 = vpop.permute.xlu0 %2705
      %2707 = vrot.lane.b32.xlu0 %v2596, 64
      %v2708 = vpop.permute.xlu0 %2707
      %2709 = vrot.lane.b32.xlu0 %v2597, 64
      %v2710 = vpop.permute.xlu0 %2709
      %2711 = vrot.lane.b32.xlu0 %v2598, 64
      %v2712 = vpop.permute.xlu0 %2711
      %2713 = vrot.lane.b32.xlu0 %v2599, 64
      %v2714 = vpop.permute.xlu0 %2713
      %2715 = vrot.lane.b32.xlu0 %v2600, 64
      %v2716 = vpop.permute.xlu0 %2715
      %2717 = vrot.lane.b32.xlu0 %v2601, 64
      %v2718 = vpop.permute.xlu0 %2717
      %2719 = vrot.lane.b32.xlu0 %v2602, 64
      %v2720 = vpop.permute.xlu0 %2719
      %2721 = vrot.lane.b32.xlu0 %v2603, 64
      %v2722 = vpop.permute.xlu0 %2721
      %2723 = vrot.lane.b32.xlu0 %v2604, 64
      %v2724 = vpop.permute.xlu0 %2723
      %2725 = vrot.lane.b32.xlu0 %v2605, 64
      %v2726 = vpop.permute.xlu0 %2725
      %2727 = vrot.lane.b32.xlu0 %v2606, 64
      %v2728 = vpop.permute.xlu0 %2727
      %2729 = vrot.lane.b32.xlu0 %v2607, 64
      %v2730 = vpop.permute.xlu0 %2729
      %vm2772 = vcmask 585216
      %2773 = vst.msk [vmem:[#allocation3] sm:$0xf] %vm2772, %v2650
      %2774 = vst.msk [vmem:[#allocation3 + $0x4] sm:$0xf] %vm2772, %v2652
      %2775 = vst.msk [vmem:[#allocation3 + $0x8] sm:$0xf] %vm2772, %v2654
      %2776 = vst.msk [vmem:[#allocation3 + $0xc] sm:$0xf] %vm2772, %v2656
      %2777 = vst.msk [vmem:[#allocation3 + $0x10] sm:$0xf] %vm2772, %v2658
      %2778 = vst.msk [vmem:[#allocation3 + $0x14] sm:$0xf] %vm2772, %v2660
      %2779 = vst.msk [vmem:[#allocation3 + $0x18] sm:$0xf] %vm2772, %v2662
      %2780 = vst.msk [vmem:[#allocation3 + $0x1c] sm:$0xf] %vm2772, %v2664
      %2781 = vst.msk [vmem:[#allocation3 + $0x20] sm:$0xf] %vm2772, %v2666
      %2782 = vst.msk [vmem:[#allocation3 + $0x24] sm:$0xf] %vm2772, %v2668
      %2783 = vst.msk [vmem:[#allocation3 + $0x28] sm:$0xf] %vm2772, %v2670
      %2784 = vst.msk [vmem:[#allocation3 + $0x2c] sm:$0xf] %vm2772, %v2672
      %2785 = vst.msk [vmem:[#allocation3 + $0x30] sm:$0xf] %vm2772, %v2674
      %2786 = vst.msk [vmem:[#allocation3 + $0x34] sm:$0xf] %vm2772, %v2676
      %2787 = vst.msk [vmem:[#allocation3 + $0x38] sm:$0xf] %vm2772, %v2678
      %2788 = vst.msk [vmem:[#allocation3 + $0x3c] sm:$0xf] %vm2772, %v2680
      %2789 = vst.msk [vmem:[#allocation3 + $0x40] sm:$0xf] %vm2772, %v2682
      %2790 = vst.msk [vmem:[#allocation3 + $0x44] sm:$0xf] %vm2772, %v2684
      %2791 = vst.msk [vmem:[#allocation3 + $0x48] sm:$0xf] %vm2772, %v2686
      %2792 = vst.msk [vmem:[#allocation3 + $0x4c] sm:$0xf] %vm2772, %v2688
      %2793 = vst.msk [vmem:[#allocation3 + $0x50] sm:$0xf] %vm2772, %v2690
      %2794 = vst.msk [vmem:[#allocation3 + $0x54] sm:$0xf] %vm2772, %v2692
      %2795 = vst.msk [vmem:[#allocation3 + $0x58] sm:$0xf] %vm2772, %v2694
      %2796 = vst.msk [vmem:[#allocation3 + $0x5c] sm:$0xf] %vm2772, %v2696
      %2797 = vst.msk [vmem:[#allocation3 + $0x60] sm:$0xf] %vm2772, %v2698
      %2798 = vst.msk [vmem:[#allocation3 + $0x64] sm:$0xf] %vm2772, %v2700
      %2799 = vst.msk [vmem:[#allocation3 + $0x68] sm:$0xf] %vm2772, %v2702
      %2800 = vst.msk [vmem:[#allocation3 + $0x6c] sm:$0xf] %vm2772, %v2704
      %2801 = vst.msk [vmem:[#allocation3 + $0x70] sm:$0xf] %vm2772, %v2706
      %2802 = vst.msk [vmem:[#allocation3 + $0x74] sm:$0xf] %vm2772, %v2708
      %2803 = vst.msk [vmem:[#allocation3 + $0x78] sm:$0xf] %vm2772, %v2710
      %2804 = vst.msk [vmem:[#allocation3 + $0x7c] sm:$0xf] %vm2772, %v2712
      %2805 = vst.msk [vmem:[#allocation3 + $0x80] sm:$0xf] %vm2772, %v2714
      %2806 = vst.msk [vmem:[#allocation3 + $0x84] sm:$0xf] %vm2772, %v2716
      %2807 = vst.msk [vmem:[#allocation3 + $0x88] sm:$0xf] %vm2772, %v2718
      %2808 = vst.msk [vmem:[#allocation3 + $0x8c] sm:$0xf] %vm2772, %v2720
      %2809 = vst.msk [vmem:[#allocation3 + $0x90] sm:$0xf] %vm2772, %v2722
      %2810 = vst.msk [vmem:[#allocation3 + $0x94] sm:$0xf] %vm2772, %v2724
      %2811 = vst.msk [vmem:[#allocation3 + $0x98] sm:$0xf] %vm2772, %v2726
      %2812 = vst.msk [vmem:[#allocation3 + $0x9c] sm:$0xf] %vm2772, %v2728
      %2813 = vst.msk [vmem:[#allocation3 + $0xa0] sm:$0xf] %vm2772, %v2730
      %v2814 = vld [vmem:[#allocation3] sm:$0xf]
      %v2815 = vld [vmem:[#allocation3 + $0x4] sm:$0xf]
      %v2816 = vld [vmem:[#allocation3 + $0x8] sm:$0xf]
      %v2817 = vld [vmem:[#allocation3 + $0xc] sm:$0xf]
      %v2818 = vld [vmem:[#allocation3 + $0x10] sm:$0xf]
      %v2819 = vld [vmem:[#allocation3 + $0x14] sm:$0xf]
      %v2820 = vld [vmem:[#allocation3 + $0x18] sm:$0xf]
      %v2821 = vld [vmem:[#allocation3 + $0x1c] sm:$0xf]
      %v2822 = vld [vmem:[#allocation3 + $0x20] sm:$0xf]
      %v2823 = vld [vmem:[#allocation3 + $0x24] sm:$0xf]
      %v2824 = vld [vmem:[#allocation3 + $0x28] sm:$0xf]
      %v2825 = vld [vmem:[#allocation3 + $0x2c] sm:$0xf]
      %v2826 = vld [vmem:[#allocation3 + $0x30] sm:$0xf]
      %v2827 = vld [vmem:[#allocation3 + $0x34] sm:$0xf]
      %v2828 = vld [vmem:[#allocation3 + $0x38] sm:$0xf]
      %v2829 = vld [vmem:[#allocation3 + $0x3c] sm:$0xf]
      %v2830 = vld [vmem:[#allocation3 + $0x40] sm:$0xf]
      %v2831 = vld [vmem:[#allocation3 + $0x44] sm:$0xf]
      %v2832 = vld [vmem:[#allocation3 + $0x48] sm:$0xf]
      %v2833 = vld [vmem:[#allocation3 + $0x4c] sm:$0xf]
      %v2834 = vld [vmem:[#allocation3 + $0x50] sm:$0xf]
      %v2835 = vld [vmem:[#allocation3 + $0x54] sm:$0xf]
      %v2836 = vld [vmem:[#allocation3 + $0x58] sm:$0xf]
      %v2837 = vld [vmem:[#allocation3 + $0x5c] sm:$0xf]
      %v2838 = vld [vmem:[#allocation3 + $0x60] sm:$0xf]
      %v2839 = vld [vmem:[#allocation3 + $0x64] sm:$0xf]
      %v2840 = vld [vmem:[#allocation3 + $0x68] sm:$0xf]
      %v2841 = vld [vmem:[#allocation3 + $0x6c] sm:$0xf]
      %v2842 = vld [vmem:[#allocation3 + $0x70] sm:$0xf]
      %v2843 = vld [vmem:[#allocation3 + $0x74] sm:$0xf]
      %v2844 = vld [vmem:[#allocation3 + $0x78] sm:$0xf]
      %v2845 = vld [vmem:[#allocation3 + $0x7c] sm:$0xf]
      %v2846 = vld [vmem:[#allocation3 + $0x80] sm:$0xf]
      %v2847 = vld [vmem:[#allocation3 + $0x84] sm:$0xf]
      %v2848 = vld [vmem:[#allocation3 + $0x88] sm:$0xf]
      %v2849 = vld [vmem:[#allocation3 + $0x8c] sm:$0xf]
      %v2850 = vld [vmem:[#allocation3 + $0x90] sm:$0xf]
      %v2851 = vld [vmem:[#allocation3 + $0x94] sm:$0xf]
      %v2852 = vld [vmem:[#allocation3 + $0x98] sm:$0xf]
      %v2853 = vld [vmem:[#allocation3 + $0x9c] sm:$0xf]
      %v2854 = vld [vmem:[#allocation3 + $0xa0] sm:$0xf]
      %v2855 = vld [vmem:[%s4] sm:$0xf]
      %v2856 = vld [vmem:[%s4 + $0x4] sm:$0xf]
      %v2857 = vld [vmem:[%s4 + $0x8] sm:$0xf]
      %v2858 = vld [vmem:[%s4 + $0xc] sm:$0xf]
      %v2859 = vld [vmem:[%s4 + $0x10] sm:$0xf]
      %v2860 = vld [vmem:[%s4 + $0x14] sm:$0xf]
      %v2861 = vld [vmem:[%s4 + $0x18] sm:$0xf]
      %v2862 = vld [vmem:[%s4 + $0x1c] sm:$0xf]
      %v2863 = vld [vmem:[%s4 + $0x20] sm:$0xf]
      %v2905 = vunpack.c.l.b16 %v2814
      %v2906 = vunpack.c.l.b16 %v2815
      %v2907 = vunpack.c.l.b16 %v2816
      %v2908 = vunpack.c.l.b16 %v2817
      %v2909 = vunpack.c.l.b16 %v2818
      %v2910 = vunpack.c.l.b16 %v2819
      %v2911 = vunpack.c.l.b16 %v2820
      %v2912 = vunpack.c.l.b16 %v2821
      %v2913 = vunpack.c.l.b16 %v2822
      %v2914 = vunpack.c.l.b16 %v2823
      %v2915 = vunpack.c.l.b16 %v2824
      %v2916 = vunpack.c.l.b16 %v2825
      %v2917 = vunpack.c.l.b16 %v2826
      %v2918 = vunpack.c.l.b16 %v2827
      %v2919 = vunpack.c.l.b16 %v2828
      %v2920 = vunpack.c.l.b16 %v2829
      %v2921 = vunpack.c.l.b16 %v2830
      %v2922 = vunpack.c.l.b16 %v2831
      %v2923 = vunpack.c.l.b16 %v2832
      %v2924 = vunpack.c.l.b16 %v2833
      %v2925 = vunpack.c.l.b16 %v2834
      %v2926 = vunpack.c.l.b16 %v2835
      %v2927 = vunpack.c.l.b16 %v2836
      %v2928 = vunpack.c.l.b16 %v2837
      %v2929 = vunpack.c.l.b16 %v2838
      %v2930 = vunpack.c.l.b16 %v2839
      %v2931 = vunpack.c.l.b16 %v2840
      %v2932 = vunpack.c.l.b16 %v2841
      %v2933 = vunpack.c.l.b16 %v2842
      %v2934 = vunpack.c.l.b16 %v2843
      %v2935 = vunpack.c.l.b16 %v2844
      %v2936 = vunpack.c.l.b16 %v2845
      %v2937 = vunpack.c.l.b16 %v2846
      %v2938 = vunpack.c.l.b16 %v2847
      %v2939 = vunpack.c.l.b16 %v2848
      %v2940 = vunpack.c.l.b16 %v2849
      %v2941 = vunpack.c.l.b16 %v2850
      %v2942 = vunpack.c.l.b16 %v2851
      %v2943 = vunpack.c.l.b16 %v2852
      %v2944 = vunpack.c.l.b16 %v2853
      %v2945 = vunpack.c.l.b16 %v2854
      %v2946 = vpack.c.b16 %v2906, %v2905
      %v2947 = vpack.c.b16 %v2908, %v2907
      %v2948 = vpack.c.b16 %v2910, %v2909
      %v2949 = vpack.c.b16 %v2912, %v2911
      %v2950 = vpack.c.b16 %v2914, %v2913
      %v2951 = vpack.c.b16 %v2916, %v2915
      %v2952 = vpack.c.b16 %v2918, %v2917
      %v2953 = vpack.c.b16 %v2920, %v2919
      %v2954 = vpack.c.b16 %v2922, %v2921
      %v2955 = vpack.c.b16 %v2924, %v2923
      %v2956 = vpack.c.b16 %v2926, %v2925
      %v2957 = vpack.c.b16 %v2928, %v2927
      %v2958 = vpack.c.b16 %v2930, %v2929
      %v2959 = vpack.c.b16 %v2932, %v2931
      %v2960 = vpack.c.b16 %v2934, %v2933
      %v2961 = vpack.c.b16 %v2936, %v2935
      %v2962 = vpack.c.b16 %v2938, %v2937
      %v2963 = vpack.c.b16 %v2940, %v2939
      %v2964 = vpack.c.b16 %v2942, %v2941
      %v2965 = vpack.c.b16 %v2944, %v2943
      %v2966 = vpack.c.b16 %v2945, %v2945
      %v2976 = vunpack.c.l.b16 %v2855
      %v2977 = vunpack.c.l.b16 %v2856
      %v2978 = vunpack.c.l.b16 %v2857
      %v2979 = vunpack.c.l.b16 %v2858
      %v2980 = vunpack.c.l.b16 %v2859
      %v2981 = vunpack.c.l.b16 %v2860
      %v2982 = vunpack.c.l.b16 %v2861
      %v2983 = vunpack.c.l.b16 %v2862
      %v2984 = vunpack.c.l.b16 %v2863
      %v2985 = vpack.c.b16 %v2977, %v2976
      %v2986 = vpack.c.b16 %v2979, %v2978
      %v2987 = vpack.c.b16 %v2981, %v2980
      %v2988 = vpack.c.b16 %v2983, %v2982
      %v2989 = vpack.c.b16 %v2984, %v2984
      %vm2994 = vcmask 588800
      %v2996 = vsel %vm2994, %v2946, 0
      %v2999 = vsel %vm2994, %v2947, 0
      %v3002 = vsel %vm2994, %v2948, 0
      %v3005 = vsel %vm2994, %v2949, 0
      %v3008 = vsel %vm2994, %v2950, 0
      %v3011 = vsel %vm2994, %v2951, 0
      %v3014 = vsel %vm2994, %v2952, 0
      %v3017 = vsel %vm2994, %v2953, 0
      %v3020 = vsel %vm2994, %v2954, 0
      %v3023 = vsel %vm2994, %v2955, 0
      %v3026 = vsel %vm2994, %v2956, 0
      %v3029 = vsel %vm2994, %v2957, 0
      %v3032 = vsel %vm2994, %v2958, 0
      %v3035 = vsel %vm2994, %v2959, 0
      %v3038 = vsel %vm2994, %v2960, 0
      %v3041 = vsel %vm2994, %v2961, 0
      %v3044 = vsel %vm2994, %v2962, 0
      %v3047 = vsel %vm2994, %v2963, 0
      %v3050 = vsel %vm2994, %v2964, 0
      %v3053 = vsel %vm2994, %v2965, 0
      %v3056 = vsel %vm2994, %v2966, 0
      %vm3058 = vcmask 1043456
      %v3060 = vsel %vm3058, %v2989, 0
      %3062 = vmatpush.bf16.msra.mxu0 0
      %3063 = vmatpush.bf16.msra.mxu0 0
      %3064 = vmatpush.bf16.msra.mxu0 0
      %3065 = vmatpush.bf16.msra.mxu0 %v3060
      %3066 = vmatpush.bf16.msra.mxu0 %v2988
      %3067 = vmatpush.bf16.msra.mxu0 %v2987
      %3068 = vmatpush.bf16.msra.mxu0 %v2986
      %3069 = vmatpush.bf16.msra.mxu0 %v2985
      %3070 = vmatmul.bf16.gmra.mxu0 %v2996
      %v3071 = vpop.f32.mrf.mxu0
      %v3072 = vadd.f32 0.0, %v3071
      %v3073 = vpop.f32.mrf.mxu0
      %v3074 = vadd.f32 0.0, %v3073
      %3075 = vmatmul.bf16.gmra.mxu0 %v2999
      %v3076 = vpop.f32.mrf.mxu0
      %v3077 = vadd.f32 0.0, %v3076
      %v3078 = vpop.f32.mrf.mxu0
      %v3079 = vadd.f32 0.0, %v3078
      %3080 = vmatmul.bf16.gmra.mxu0 %v3002
      %v3081 = vpop.f32.mrf.mxu0
      %v3082 = vadd.f32 0.0, %v3081
      %v3083 = vpop.f32.mrf.mxu0
      %v3084 = vadd.f32 0.0, %v3083
      %3085 = vmatmul.bf16.gmra.mxu0 %v3005
      %v3086 = vpop.f32.mrf.mxu0
      %v3087 = vadd.f32 0.0, %v3086
      %v3088 = vpop.f32.mrf.mxu0
      %v3089 = vadd.f32 0.0, %v3088
      %3090 = vmatmul.bf16.gmra.mxu0 %v3008
      %v3091 = vpop.f32.mrf.mxu0
      %v3092 = vadd.f32 0.0, %v3091
      %v3093 = vpop.f32.mrf.mxu0
      %v3094 = vadd.f32 0.0, %v3093
      %3095 = vmatmul.bf16.gmra.mxu0 %v3011
      %v3096 = vpop.f32.mrf.mxu0
      %v3097 = vadd.f32 0.0, %v3096
      %v3098 = vpop.f32.mrf.mxu0
      %v3099 = vadd.f32 0.0, %v3098
      %3100 = vmatmul.bf16.gmra.mxu0 %v3014
      %v3101 = vpop.f32.mrf.mxu0
      %v3102 = vadd.f32 0.0, %v3101
      %v3103 = vpop.f32.mrf.mxu0
      %v3104 = vadd.f32 0.0, %v3103
      %3105 = vmatmul.bf16.gmra.mxu0 %v3017
      %v3106 = vpop.f32.mrf.mxu0
      %v3107 = vadd.f32 0.0, %v3106
      %v3108 = vpop.f32.mrf.mxu0
      %v3109 = vadd.f32 0.0, %v3108
      %3110 = vmatmul.bf16.gmra.mxu0 %v3020
      %v3111 = vpop.f32.mrf.mxu0
      %v3112 = vadd.f32 0.0, %v3111
      %v3113 = vpop.f32.mrf.mxu0
      %v3114 = vadd.f32 0.0, %v3113
      %3115 = vmatmul.bf16.gmra.mxu0 %v3023
      %v3116 = vpop.f32.mrf.mxu0
      %v3117 = vadd.f32 0.0, %v3116
      %v3118 = vpop.f32.mrf.mxu0
      %v3119 = vadd.f32 0.0, %v3118
      %3120 = vmatmul.bf16.gmra.mxu0 %v3026
      %v3121 = vpop.f32.mrf.mxu0
      %v3122 = vadd.f32 0.0, %v3121
      %v3123 = vpop.f32.mrf.mxu0
      %v3124 = vadd.f32 0.0, %v3123
      %3125 = vmatmul.bf16.gmra.mxu0 %v3029
      %v3126 = vpop.f32.mrf.mxu0
      %v3127 = vadd.f32 0.0, %v3126
      %v3128 = vpop.f32.mrf.mxu0
      %v3129 = vadd.f32 0.0, %v3128
      %3130 = vmatmul.bf16.gmra.mxu0 %v3032
      %v3131 = vpop.f32.mrf.mxu0
      %v3132 = vadd.f32 0.0, %v3131
      %v3133 = vpop.f32.mrf.mxu0
      %v3134 = vadd.f32 0.0, %v3133
      %3135 = vmatmul.bf16.gmra.mxu0 %v3035
      %v3136 = vpop.f32.mrf.mxu0
      %v3137 = vadd.f32 0.0, %v3136
      %v3138 = vpop.f32.mrf.mxu0
      %v3139 = vadd.f32 0.0, %v3138
      %3140 = vmatmul.bf16.gmra.mxu0 %v3038
      %v3141 = vpop.f32.mrf.mxu0
      %v3142 = vadd.f32 0.0, %v3141
      %v3143 = vpop.f32.mrf.mxu0
      %v3144 = vadd.f32 0.0, %v3143
      %3145 = vmatmul.bf16.gmra.mxu0 %v3041
      %v3146 = vpop.f32.mrf.mxu0
      %v3147 = vadd.f32 0.0, %v3146
      %v3148 = vpop.f32.mrf.mxu0
      %v3149 = vadd.f32 0.0, %v3148
      %3150 = vmatmul.bf16.gmra.mxu0 %v3044
      %v3151 = vpop.f32.mrf.mxu0
      %v3152 = vadd.f32 0.0, %v3151
      %v3153 = vpop.f32.mrf.mxu0
      %v3154 = vadd.f32 0.0, %v3153
      %3155 = vmatmul.bf16.gmra.mxu0 %v3047
      %v3156 = vpop.f32.mrf.mxu0
      %v3157 = vadd.f32 0.0, %v3156
      %v3158 = vpop.f32.mrf.mxu0
      %v3159 = vadd.f32 0.0, %v3158
      %3160 = vmatmul.bf16.gmra.mxu0 %v3050
      %v3161 = vpop.f32.mrf.mxu0
      %v3162 = vadd.f32 0.0, %v3161
      %v3163 = vpop.f32.mrf.mxu0
      %v3164 = vadd.f32 0.0, %v3163
      %3165 = vmatmul.bf16.gmra.mxu0 %v3053
      %v3166 = vpop.f32.mrf.mxu0
      %v3167 = vadd.f32 0.0, %v3166
      %v3168 = vpop.f32.mrf.mxu0
      %v3169 = vadd.f32 0.0, %v3168
      %3170 = vmatmul.bf16.gmra.mxu0 %v3056
      %v3171 = vpop.f32.mrf.mxu0
      %v3172 = vadd.f32 0.0, %v3171
      %v3173 = vpop.f32.mrf.mxu0
      %3174 = vdwg.mxu0
      %v3175 = vpack.c.bf16 %v3072, %v3072
      %v3176 = vpack.c.bf16 %v3074, %v3074
      %v3177 = vpack.c.bf16 %v3077, %v3077
      %v3178 = vpack.c.bf16 %v3079, %v3079
      %v3179 = vpack.c.bf16 %v3082, %v3082
      %v3180 = vpack.c.bf16 %v3084, %v3084
      %v3181 = vpack.c.bf16 %v3087, %v3087
      %v3182 = vpack.c.bf16 %v3089, %v3089
      %v3183 = vpack.c.bf16 %v3092, %v3092
      %v3184 = vpack.c.bf16 %v3094, %v3094
      %v3185 = vpack.c.bf16 %v3097, %v3097
      %v3186 = vpack.c.bf16 %v3099, %v3099
      %v3187 = vpack.c.bf16 %v3102, %v3102
      %v3188 = vpack.c.bf16 %v3104, %v3104
      %v3189 = vpack.c.bf16 %v3107, %v3107
      %v3190 = vpack.c.bf16 %v3109, %v3109
      %v3191 = vpack.c.bf16 %v3112, %v3112
      %v3192 = vpack.c.bf16 %v3114, %v3114
      %v3193 = vpack.c.bf16 %v3117, %v3117
      %v3194 = vpack.c.bf16 %v3119, %v3119
      %v3195 = vpack.c.bf16 %v3122, %v3122
      %v3196 = vpack.c.bf16 %v3124, %v3124
      %v3197 = vpack.c.bf16 %v3127, %v3127
      %v3198 = vpack.c.bf16 %v3129, %v3129
      %v3199 = vpack.c.bf16 %v3132, %v3132
      %v3200 = vpack.c.bf16 %v3134, %v3134
      %v3201 = vpack.c.bf16 %v3137, %v3137
      %v3202 = vpack.c.bf16 %v3139, %v3139
      %v3203 = vpack.c.bf16 %v3142, %v3142
      %v3204 = vpack.c.bf16 %v3144, %v3144
      %v3205 = vpack.c.bf16 %v3147, %v3147
      %v3206 = vpack.c.bf16 %v3149, %v3149
      %v3207 = vpack.c.bf16 %v3152, %v3152
      %v3208 = vpack.c.bf16 %v3154, %v3154
      %v3209 = vpack.c.bf16 %v3157, %v3157
      %v3210 = vpack.c.bf16 %v3159, %v3159
      %v3211 = vpack.c.bf16 %v3162, %v3162
      %v3212 = vpack.c.bf16 %v3164, %v3164
      %v3213 = vpack.c.bf16 %v3167, %v3167
      %v3214 = vpack.c.bf16 %v3169, %v3169
      %v3215 = vpack.c.bf16 %v3172, %v3172
      %3216 = vst.msk [vmem:[%s289] sm:$0xf] %vm468, %v3175
      %3217 = vst.msk [vmem:[%s289 + $0x4] sm:$0xf] %vm468, %v3176
      %3218 = vst.msk [vmem:[%s289 + $0x8] sm:$0xf] %vm468, %v3177
      %3219 = vst.msk [vmem:[%s289 + $0xc] sm:$0xf] %vm468, %v3178
      %3220 = vst.msk [vmem:[%s289 + $0x10] sm:$0xf] %vm468, %v3179
      %3221 = vst.msk [vmem:[%s289 + $0x14] sm:$0xf] %vm468, %v3180
      %3222 = vst.msk [vmem:[%s289 + $0x18] sm:$0xf] %vm468, %v3181
      %3223 = vst.msk [vmem:[%s289 + $0x1c] sm:$0xf] %vm468, %v3182
      %3224 = vst.msk [vmem:[%s289 + $0x20] sm:$0xf] %vm468, %v3183
      %3225 = vst.msk [vmem:[%s289 + $0x24] sm:$0xf] %vm468, %v3184
      %3226 = vst.msk [vmem:[%s289 + $0x28] sm:$0xf] %vm468, %v3185
      %3227 = vst.msk [vmem:[%s289 + $0x2c] sm:$0xf] %vm468, %v3186
      %3228 = vst.msk [vmem:[%s289 + $0x30] sm:$0xf] %vm468, %v3187
      %3229 = vst.msk [vmem:[%s289 + $0x34] sm:$0xf] %vm468, %v3188
      %3230 = vst.msk [vmem:[%s289 + $0x38] sm:$0xf] %vm468, %v3189
      %3231 = vst.msk [vmem:[%s289 + $0x3c] sm:$0xf] %vm468, %v3190
      %3232 = vst.msk [vmem:[%s289 + $0x40] sm:$0xf] %vm468, %v3191
      %3233 = vst.msk [vmem:[%s289 + $0x44] sm:$0xf] %vm468, %v3192
      %3234 = vst.msk [vmem:[%s289 + $0x48] sm:$0xf] %vm468, %v3193
      %3235 = vst.msk [vmem:[%s289 + $0x4c] sm:$0xf] %vm468, %v3194
      %3236 = vst.msk [vmem:[%s289 + $0x50] sm:$0xf] %vm468, %v3195
      %3237 = vst.msk [vmem:[%s289 + $0x54] sm:$0xf] %vm468, %v3196
      %3238 = vst.msk [vmem:[%s289 + $0x58] sm:$0xf] %vm468, %v3197
      %3239 = vst.msk [vmem:[%s289 + $0x5c] sm:$0xf] %vm468, %v3198
      %3240 = vst.msk [vmem:[%s289 + $0x60] sm:$0xf] %vm468, %v3199
      %3241 = vst.msk [vmem:[%s289 + $0x64] sm:$0xf] %vm468, %v3200
      %3242 = vst.msk [vmem:[%s289 + $0x68] sm:$0xf] %vm468, %v3201
      %3243 = vst.msk [vmem:[%s289 + $0x6c] sm:$0xf] %vm468, %v3202
      %3244 = vst.msk [vmem:[%s289 + $0x70] sm:$0xf] %vm468, %v3203
      %3245 = vst.msk [vmem:[%s289 + $0x74] sm:$0xf] %vm468, %v3204
      %3246 = vst.msk [vmem:[%s289 + $0x78] sm:$0xf] %vm468, %v3205
      %3247 = vst.msk [vmem:[%s289 + $0x7c] sm:$0xf] %vm468, %v3206
      %3248 = vst.msk [vmem:[%s289 + $0x80] sm:$0xf] %vm468, %v3207
      %3249 = vst.msk [vmem:[%s289 + $0x84] sm:$0xf] %vm468, %v3208
      %3250 = vst.msk [vmem:[%s289 + $0x88] sm:$0xf] %vm468, %v3209
      %3251 = vst.msk [vmem:[%s289 + $0x8c] sm:$0xf] %vm468, %v3210
      %3252 = vst.msk [vmem:[%s289 + $0x90] sm:$0xf] %vm468, %v3211
      %3253 = vst.msk [vmem:[%s289 + $0x94] sm:$0xf] %vm468, %v3212
      %3254 = vst.msk [vmem:[%s289 + $0x98] sm:$0xf] %vm468, %v3213
      %3255 = vst.msk [vmem:[%s289 + $0x9c] sm:$0xf] %vm468, %v3214
      %3256 = vst.msk [vmem:[%s289 + $0xa0] sm:$0xf] %vm468, %v3215
      %v3257 = vld [vmem:[%s1] sm:$0xff]
      %v3258 = vld [vmem:[%s1 + $0x8] sm:$0xff]
      %v3259 = vld [vmem:[%s1 + $0x10] sm:$0xff]
      %v3260 = vld [vmem:[%s1 + $0x18] sm:$0xff]
      %v3261 = vld [vmem:[%s1 + $0x20] sm:$0xff]
      %v3262 = vld [vmem:[%s1 + $0x28] sm:$0xff]
      %v3263 = vld [vmem:[%s1 + $0x30] sm:$0xff]
      %v3264 = vld [vmem:[%s1 + $0x38] sm:$0xff]
      %v3265 = vld [vmem:[%s1 + $0x40] sm:$0xff]
      %v3266 = vld [vmem:[%s1 + $0x48] sm:$0xff]
      %v3267 = vld [vmem:[%s1 + $0x50] sm:$0xff]
      %v3268 = vld [vmem:[%s1 + $0x58] sm:$0xff]
      %v3269 = vld [vmem:[%s1 + $0x60] sm:$0xff]
      %v3270 = vld [vmem:[%s1 + $0x68] sm:$0xff]
      %v3271 = vld [vmem:[%s1 + $0x70] sm:$0xff]
      %v3272 = vld [vmem:[%s1 + $0x78] sm:$0xff]
      %v3273 = vld [vmem:[%s1 + $0x80] sm:$0xff]
      %v3274 = vld [vmem:[%s1 + $0x88] sm:$0xff]
      %v3275 = vld [vmem:[%s1 + $0x90] sm:$0xff]
      %v3276 = vld [vmem:[%s1 + $0x98] sm:$0xff]
      %v3277 = vld [vmem:[%s1 + $0xa0] sm:$0xff]
      %v3278 = vld [vmem:[%s1 + $0xa8] sm:$0xff]
      %v3279 = vld [vmem:[%s1 + $0xb0] sm:$0xff]
      %v3280 = vld [vmem:[%s1 + $0xb8] sm:$0xff]
      %v3281 = vld [vmem:[%s1 + $0xc0] sm:$0xff]
      %v3282 = vld [vmem:[%s1 + $0xc8] sm:$0xff]
      %v3283 = vld [vmem:[%s1 + $0xd0] sm:$0xff]
      %v3284 = vld [vmem:[%s1 + $0xd8] sm:$0xff]
      %v3285 = vld [vmem:[%s1 + $0xe0] sm:$0xff]
      %v3286 = vld [vmem:[%s1 + $0xe8] sm:$0xff]
      %v3287 = vld [vmem:[%s1 + $0xf0] sm:$0xff]
      %v3288 = vld [vmem:[%s1 + $0xf8] sm:$0xff]
      %v3289 = vld [vmem:[%s1 + $0x100] sm:$0xff]
      %v3290 = vld [vmem:[%s1 + $0x108] sm:$0xff]
      %v3291 = vld [vmem:[%s1 + $0x110] sm:$0xff]
      %v3292 = vld [vmem:[%s1 + $0x118] sm:$0xff]
      %v3293 = vld [vmem:[%s1 + $0x120] sm:$0xff]
      %v3294 = vld [vmem:[%s1 + $0x128] sm:$0xff]
      %v3295 = vld [vmem:[%s1 + $0x130] sm:$0xff]
      %v3296 = vld [vmem:[%s1 + $0x138] sm:$0xff]
      %v3297 = vld [vmem:[%s1 + $0x140] sm:$0xff]
      %3299 = vset.pattern.permute.xlu0 0
      %3300 = vperm.xlu0 %3299, %v3257
      %v3301 = vpop.permute.xlu0 %3300
      %3304 = vset.pattern.permute.xlu0 0
      %3305 = vperm.xlu0 %3304, %v3258
      %v3306 = vpop.permute.xlu0 %3305
      %3309 = vset.pattern.permute.xlu0 0
      %3310 = vperm.xlu0 %3309, %v3259
      %v3311 = vpop.permute.xlu0 %3310
      %3314 = vset.pattern.permute.xlu0 0
      %3315 = vperm.xlu0 %3314, %v3260
      %v3316 = vpop.permute.xlu0 %3315
      %3319 = vset.pattern.permute.xlu0 0
      %3320 = vperm.xlu0 %3319, %v3261
      %v3321 = vpop.permute.xlu0 %3320
      %3324 = vset.pattern.permute.xlu0 0
      %3325 = vperm.xlu0 %3324, %v3262
      %v3326 = vpop.permute.xlu0 %3325
      %3329 = vset.pattern.permute.xlu0 0
      %3330 = vperm.xlu0 %3329, %v3263
      %v3331 = vpop.permute.xlu0 %3330
      %3334 = vset.pattern.permute.xlu0 0
      %3335 = vperm.xlu0 %3334, %v3264
      %v3336 = vpop.permute.xlu0 %3335
      %3339 = vset.pattern.permute.xlu0 0
      %3340 = vperm.xlu0 %3339, %v3265
      %v3341 = vpop.permute.xlu0 %3340
      %3344 = vset.pattern.permute.xlu0 0
      %3345 = vperm.xlu0 %3344, %v3266
      %v3346 = vpop.permute.xlu0 %3345
      %3349 = vset.pattern.permute.xlu0 0
      %3350 = vperm.xlu0 %3349, %v3267
      %v3351 = vpop.permute.xlu0 %3350
      %3354 = vset.pattern.permute.xlu0 0
      %3355 = vperm.xlu0 %3354, %v3268
      %v3356 = vpop.permute.xlu0 %3355
      %3359 = vset.pattern.permute.xlu0 0
      %3360 = vperm.xlu0 %3359, %v3269
      %v3361 = vpop.permute.xlu0 %3360
      %3364 = vset.pattern.permute.xlu0 0
      %3365 = vperm.xlu0 %3364, %v3270
      %v3366 = vpop.permute.xlu0 %3365
      %3369 = vset.pattern.permute.xlu0 0
      %3370 = vperm.xlu0 %3369, %v3271
      %v3371 = vpop.permute.xlu0 %3370
      %3374 = vset.pattern.permute.xlu0 0
      %3375 = vperm.xlu0 %3374, %v3272
      %v3376 = vpop.permute.xlu0 %3375
      %3379 = vset.pattern.permute.xlu0 0
      %3380 = vperm.xlu0 %3379, %v3273
      %v3381 = vpop.permute.xlu0 %3380
      %3384 = vset.pattern.permute.xlu0 0
      %3385 = vperm.xlu0 %3384, %v3274
      %v3386 = vpop.permute.xlu0 %3385
      %3389 = vset.pattern.permute.xlu0 0
      %3390 = vperm.xlu0 %3389, %v3275
      %v3391 = vpop.permute.xlu0 %3390
      %3394 = vset.pattern.permute.xlu0 0
      %3395 = vperm.xlu0 %3394, %v3276
      %v3396 = vpop.permute.xlu0 %3395
      %3399 = vset.pattern.permute.xlu0 0
      %3400 = vperm.xlu0 %3399, %v3277
      %v3401 = vpop.permute.xlu0 %3400
      %3404 = vset.pattern.permute.xlu0 0
      %3405 = vperm.xlu0 %3404, %v3278
      %v3406 = vpop.permute.xlu0 %3405
      %3409 = vset.pattern.permute.xlu0 0
      %3410 = vperm.xlu0 %3409, %v3279
      %v3411 = vpop.permute.xlu0 %3410
      %3414 = vset.pattern.permute.xlu0 0
      %3415 = vperm.xlu0 %3414, %v3280
      %v3416 = vpop.permute.xlu0 %3415
      %3419 = vset.pattern.permute.xlu0 0
      %3420 = vperm.xlu0 %3419, %v3281
      %v3421 = vpop.permute.xlu0 %3420
      %3424 = vset.pattern.permute.xlu0 0
      %3425 = vperm.xlu0 %3424, %v3282
      %v3426 = vpop.permute.xlu0 %3425
      %3429 = vset.pattern.permute.xlu0 0
      %3430 = vperm.xlu0 %3429, %v3283
      %v3431 = vpop.permute.xlu0 %3430
      %3434 = vset.pattern.permute.xlu0 0
      %3435 = vperm.xlu0 %3434, %v3284
      %v3436 = vpop.permute.xlu0 %3435
      %3439 = vset.pattern.permute.xlu0 0
      %3440 = vperm.xlu0 %3439, %v3285
      %v3441 = vpop.permute.xlu0 %3440
      %3444 = vset.pattern.permute.xlu0 0
      %3445 = vperm.xlu0 %3444, %v3286
      %v3446 = vpop.permute.xlu0 %3445
      %3449 = vset.pattern.permute.xlu0 0
      %3450 = vperm.xlu0 %3449, %v3287
      %v3451 = vpop.permute.xlu0 %3450
      %3454 = vset.pattern.permute.xlu0 0
      %3455 = vperm.xlu0 %3454, %v3288
      %v3456 = vpop.permute.xlu0 %3455
      %3459 = vset.pattern.permute.xlu0 0
      %3460 = vperm.xlu0 %3459, %v3289
      %v3461 = vpop.permute.xlu0 %3460
      %3464 = vset.pattern.permute.xlu0 0
      %3465 = vperm.xlu0 %3464, %v3290
      %v3466 = vpop.permute.xlu0 %3465
      %3469 = vset.pattern.permute.xlu0 0
      %3470 = vperm.xlu0 %3469, %v3291
      %v3471 = vpop.permute.xlu0 %3470
      %3474 = vset.pattern.permute.xlu0 0
      %3475 = vperm.xlu0 %3474, %v3292
      %v3476 = vpop.permute.xlu0 %3475
      %3479 = vset.pattern.permute.xlu0 0
      %3480 = vperm.xlu0 %3479, %v3293
      %v3481 = vpop.permute.xlu0 %3480
      %3484 = vset.pattern.permute.xlu0 0
      %3485 = vperm.xlu0 %3484, %v3294
      %v3486 = vpop.permute.xlu0 %3485
      %3489 = vset.pattern.permute.xlu0 0
      %3490 = vperm.xlu0 %3489, %v3295
      %v3491 = vpop.permute.xlu0 %3490
      %3494 = vset.pattern.permute.xlu0 0
      %3495 = vperm.xlu0 %3494, %v3296
      %v3496 = vpop.permute.xlu0 %3495
      %3499 = vset.pattern.permute.xlu0 0
      %3500 = vperm.xlu0 %3499, %v3297
      %v3501 = vpop.permute.xlu0 %3500
      %v3503 = vmul.f32 %v3072, %v3301
      %v3504 = vmul.f32 %v3074, %v3306
      %v3505 = vmul.f32 %v3077, %v3311
      %v3506 = vmul.f32 %v3079, %v3316
      %v3507 = vmul.f32 %v3082, %v3321
      %v3508 = vmul.f32 %v3084, %v3326
      %v3509 = vmul.f32 %v3087, %v3331
      %v3510 = vmul.f32 %v3089, %v3336
      %v3511 = vmul.f32 %v3092, %v3341
      %v3512 = vmul.f32 %v3094, %v3346
      %v3513 = vmul.f32 %v3097, %v3351
      %v3514 = vmul.f32 %v3099, %v3356
      %v3515 = vmul.f32 %v3102, %v3361
      %v3516 = vmul.f32 %v3104, %v3366
      %v3517 = vmul.f32 %v3107, %v3371
      %v3518 = vmul.f32 %v3109, %v3376
      %v3519 = vmul.f32 %v3112, %v3381
      %v3520 = vmul.f32 %v3114, %v3386
      %v3521 = vmul.f32 %v3117, %v3391
      %v3522 = vmul.f32 %v3119, %v3396
      %v3523 = vmul.f32 %v3122, %v3401
      %v3524 = vmul.f32 %v3124, %v3406
      %v3525 = vmul.f32 %v3127, %v3411
      %v3526 = vmul.f32 %v3129, %v3416
      %v3527 = vmul.f32 %v3132, %v3421
      %v3528 = vmul.f32 %v3134, %v3426
      %v3529 = vmul.f32 %v3137, %v3431
      %v3530 = vmul.f32 %v3139, %v3436
      %v3531 = vmul.f32 %v3142, %v3441
      %v3532 = vmul.f32 %v3144, %v3446
      %v3533 = vmul.f32 %v3147, %v3451
      %v3534 = vmul.f32 %v3149, %v3456
      %v3535 = vmul.f32 %v3152, %v3461
      %v3536 = vmul.f32 %v3154, %v3466
      %v3537 = vmul.f32 %v3157, %v3471
      %v3538 = vmul.f32 %v3159, %v3476
      %v3539 = vmul.f32 %v3162, %v3481
      %v3540 = vmul.f32 %v3164, %v3486
      %v3541 = vmul.f32 %v3167, %v3491
      %v3542 = vmul.f32 %v3169, %v3496
      %v3543 = vmul.f32 %v3172, %v3501
      %v3544 = vsel %vm338, %v3503, 0.0
      %v3545 = vsel %vm338, %v3504, 0.0
      %v3546 = vadd.f32 %v3544, %v3545
      %v3547 = vsel %vm338, %v3505, 0.0
      %v3548 = vadd.f32 %v3546, %v3547
      %v3549 = vsel %vm338, %v3506, 0.0
      %v3550 = vadd.f32 %v3548, %v3549
      %v3551 = vsel %vm338, %v3507, 0.0
      %v3552 = vadd.f32 %v3550, %v3551
      %v3553 = vsel %vm338, %v3508, 0.0
      %v3554 = vadd.f32 %v3552, %v3553
      %v3555 = vsel %vm338, %v3509, 0.0
      %v3556 = vadd.f32 %v3554, %v3555
      %v3557 = vsel %vm338, %v3510, 0.0
      %v3558 = vadd.f32 %v3556, %v3557
      %v3559 = vsel %vm338, %v3511, 0.0
      %v3560 = vadd.f32 %v3558, %v3559
      %v3561 = vsel %vm338, %v3512, 0.0
      %v3562 = vadd.f32 %v3560, %v3561
      %v3563 = vsel %vm338, %v3513, 0.0
      %v3564 = vadd.f32 %v3562, %v3563
      %v3565 = vsel %vm338, %v3514, 0.0
      %v3566 = vadd.f32 %v3564, %v3565
      %v3567 = vsel %vm338, %v3515, 0.0
      %v3568 = vadd.f32 %v3566, %v3567
      %v3569 = vsel %vm338, %v3516, 0.0
      %v3570 = vadd.f32 %v3568, %v3569
      %v3571 = vsel %vm338, %v3517, 0.0
      %v3572 = vadd.f32 %v3570, %v3571
      %v3573 = vsel %vm338, %v3518, 0.0
      %v3574 = vadd.f32 %v3572, %v3573
      %v3575 = vsel %vm338, %v3519, 0.0
      %v3576 = vadd.f32 %v3574, %v3575
      %v3577 = vsel %vm338, %v3520, 0.0
      %v3578 = vadd.f32 %v3576, %v3577
      %v3579 = vsel %vm338, %v3521, 0.0
      %v3580 = vadd.f32 %v3578, %v3579
      %v3581 = vsel %vm338, %v3522, 0.0
      %v3582 = vadd.f32 %v3580, %v3581
      %v3583 = vsel %vm338, %v3523, 0.0
      %v3584 = vadd.f32 %v3582, %v3583
      %v3585 = vsel %vm338, %v3524, 0.0
      %v3586 = vadd.f32 %v3584, %v3585
      %v3587 = vsel %vm338, %v3525, 0.0
      %v3588 = vadd.f32 %v3586, %v3587
      %v3589 = vsel %vm338, %v3526, 0.0
      %v3590 = vadd.f32 %v3588, %v3589
      %v3591 = vsel %vm338, %v3527, 0.0
      %v3592 = vadd.f32 %v3590, %v3591
      %v3593 = vsel %vm338, %v3528, 0.0
      %v3594 = vadd.f32 %v3592, %v3593
      %v3595 = vsel %vm338, %v3529, 0.0
      %v3596 = vadd.f32 %v3594, %v3595
      %v3597 = vsel %vm338, %v3530, 0.0
      %v3598 = vadd.f32 %v3596, %v3597
      %v3599 = vsel %vm338, %v3531, 0.0
      %v3600 = vadd.f32 %v3598, %v3599
      %v3601 = vsel %vm338, %v3532, 0.0
      %v3602 = vadd.f32 %v3600, %v3601
      %v3603 = vsel %vm338, %v3533, 0.0
      %v3604 = vadd.f32 %v3602, %v3603
      %v3605 = vsel %vm338, %v3534, 0.0
      %v3606 = vadd.f32 %v3604, %v3605
      %v3607 = vsel %vm338, %v3535, 0.0
      %v3608 = vadd.f32 %v3606, %v3607
      %v3609 = vsel %vm338, %v3536, 0.0
      %v3610 = vadd.f32 %v3608, %v3609
      %v3611 = vsel %vm338, %v3537, 0.0
      %v3612 = vadd.f32 %v3610, %v3611
      %v3613 = vsel %vm338, %v3538, 0.0
      %v3614 = vadd.f32 %v3612, %v3613
      %v3615 = vsel %vm338, %v3539, 0.0
      %v3616 = vadd.f32 %v3614, %v3615
      %v3617 = vsel %vm338, %v3540, 0.0
      %v3618 = vadd.f32 %v3616, %v3617
      %v3619 = vsel %vm338, %v3541, 0.0
      %v3620 = vadd.f32 %v3618, %v3619
      %v3621 = vsel %vm338, %v3542, 0.0
      %v3622 = vadd.f32 %v3620, %v3621
      %v3623 = vsel %vm338, %v3543, 0.0
      %v3624 = vadd.f32 %v3622, %v3623
      %v3625 = vrot.slane %v3624, 4
      %v3626 = vadd.f32 %v3624, %v3625
      %v3627 = vrot.slane %v3626, 2
      %v3628 = vadd.f32 %v3626, %v3627
      %v3629 = vrot.slane %v3628, 1
      %v3630 = vadd.f32 %v3628, %v3629
      %vm3631 = vcmask 57344
      %3632 = vst.msk [vmem:[%s292] sm:$0x1] %vm3631, %v3630
      %v3633 = vmul.f32 %v3503, %v3503
      %v3634 = vmul.f32 %v3504, %v3504
      %v3635 = vmul.f32 %v3505, %v3505
      %v3636 = vmul.f32 %v3506, %v3506
      %v3637 = vmul.f32 %v3507, %v3507
      %v3638 = vmul.f32 %v3508, %v3508
      %v3639 = vmul.f32 %v3509, %v3509
      %v3640 = vmul.f32 %v3510, %v3510
      %v3641 = vmul.f32 %v3511, %v3511
      %v3642 = vmul.f32 %v3512, %v3512
      %v3643 = vmul.f32 %v3513, %v3513
      %v3644 = vmul.f32 %v3514, %v3514
      %v3645 = vmul.f32 %v3515, %v3515
      %v3646 = vmul.f32 %v3516, %v3516
      %v3647 = vmul.f32 %v3517, %v3517
      %v3648 = vmul.f32 %v3518, %v3518
      %v3649 = vmul.f32 %v3519, %v3519
      %v3650 = vmul.f32 %v3520, %v3520
      %v3651 = vmul.f32 %v3521, %v3521
      %v3652 = vmul.f32 %v3522, %v3522
      %v3653 = vmul.f32 %v3523, %v3523
      %v3654 = vmul.f32 %v3524, %v3524
      %v3655 = vmul.f32 %v3525, %v3525
      %v3656 = vmul.f32 %v3526, %v3526
      %v3657 = vmul.f32 %v3527, %v3527
      %v3658 = vmul.f32 %v3528, %v3528
      %v3659 = vmul.f32 %v3529, %v3529
      %v3660 = vmul.f32 %v3530, %v3530
      %v3661 = vmul.f32 %v3531, %v3531
      %v3662 = vmul.f32 %v3532, %v3532
      %v3663 = vmul.f32 %v3533, %v3533
      %v3664 = vmul.f32 %v3534, %v3534
      %v3665 = vmul.f32 %v3535, %v3535
      %v3666 = vmul.f32 %v3536, %v3536
      %v3667 = vmul.f32 %v3537, %v3537
      %v3668 = vmul.f32 %v3538, %v3538
      %v3669 = vmul.f32 %v3539, %v3539
      %v3670 = vmul.f32 %v3540, %v3540
      %v3671 = vmul.f32 %v3541, %v3541
      %v3672 = vmul.f32 %v3542, %v3542
      %v3673 = vmul.f32 %v3543, %v3543
      %v3674 = vsel %vm338, %v3633, 0.0
      %v3675 = vsel %vm338, %v3634, 0.0
      %v3676 = vadd.f32 %v3674, %v3675
      %v3677 = vsel %vm338, %v3635, 0.0
      %v3678 = vadd.f32 %v3676, %v3677
      %v3679 = vsel %vm338, %v3636, 0.0
      %v3680 = vadd.f32 %v3678, %v3679
      %v3681 = vsel %vm338, %v3637, 0.0
      %v3682 = vadd.f32 %v3680, %v3681
      %v3683 = vsel %vm338, %v3638, 0.0
      %v3684 = vadd.f32 %v3682, %v3683
      %v3685 = vsel %vm338, %v3639, 0.0
      %v3686 = vadd.f32 %v3684, %v3685
      %v3687 = vsel %vm338, %v3640, 0.0
      %v3688 = vadd.f32 %v3686, %v3687
      %v3689 = vsel %vm338, %v3641, 0.0
      %v3690 = vadd.f32 %v3688, %v3689
      %v3691 = vsel %vm338, %v3642, 0.0
      %v3692 = vadd.f32 %v3690, %v3691
      %v3693 = vsel %vm338, %v3643, 0.0
      %v3694 = vadd.f32 %v3692, %v3693
      %v3695 = vsel %vm338, %v3644, 0.0
      %v3696 = vadd.f32 %v3694, %v3695
      %v3697 = vsel %vm338, %v3645, 0.0
      %v3698 = vadd.f32 %v3696, %v3697
      %v3699 = vsel %vm338, %v3646, 0.0
      %v3700 = vadd.f32 %v3698, %v3699
      %v3701 = vsel %vm338, %v3647, 0.0
      %v3702 = vadd.f32 %v3700, %v3701
      %v3703 = vsel %vm338, %v3648, 0.0
      %v3704 = vadd.f32 %v3702, %v3703
      %v3705 = vsel %vm338, %v3649, 0.0
      %v3706 = vadd.f32 %v3704, %v3705
      %v3707 = vsel %vm338, %v3650, 0.0
      %v3708 = vadd.f32 %v3706, %v3707
      %v3709 = vsel %vm338, %v3651, 0.0
      %v3710 = vadd.f32 %v3708, %v3709
      %v3711 = vsel %vm338, %v3652, 0.0
      %v3712 = vadd.f32 %v3710, %v3711
      %v3713 = vsel %vm338, %v3653, 0.0
      %v3714 = vadd.f32 %v3712, %v3713
      %v3715 = vsel %vm338, %v3654, 0.0
      %v3716 = vadd.f32 %v3714, %v3715
      %v3717 = vsel %vm338, %v3655, 0.0
      %v3718 = vadd.f32 %v3716, %v3717
      %v3719 = vsel %vm338, %v3656, 0.0
      %v3720 = vadd.f32 %v3718, %v3719
      %v3721 = vsel %vm338, %v3657, 0.0
      %v3722 = vadd.f32 %v3720, %v3721
      %v3723 = vsel %vm338, %v3658, 0.0
      %v3724 = vadd.f32 %v3722, %v3723
      %v3725 = vsel %vm338, %v3659, 0.0
      %v3726 = vadd.f32 %v3724, %v3725
      %v3727 = vsel %vm338, %v3660, 0.0
      %v3728 = vadd.f32 %v3726, %v3727
      %v3729 = vsel %vm338, %v3661, 0.0
      %v3730 = vadd.f32 %v3728, %v3729
      %v3731 = vsel %vm338, %v3662, 0.0
      %v3732 = vadd.f32 %v3730, %v3731
      %v3733 = vsel %vm338, %v3663, 0.0
      %v3734 = vadd.f32 %v3732, %v3733
      %v3735 = vsel %vm338, %v3664, 0.0
      %v3736 = vadd.f32 %v3734, %v3735
      %v3737 = vsel %vm338, %v3665, 0.0
      %v3738 = vadd.f32 %v3736, %v3737
      %v3739 = vsel %vm338, %v3666, 0.0
      %v3740 = vadd.f32 %v3738, %v3739
      %v3741 = vsel %vm338, %v3667, 0.0
      %v3742 = vadd.f32 %v3740, %v3741
      %v3743 = vsel %vm338, %v3668, 0.0
      %v3744 = vadd.f32 %v3742, %v3743
      %v3745 = vsel %vm338, %v3669, 0.0
      %v3746 = vadd.f32 %v3744, %v3745
      %v3747 = vsel %vm338, %v3670, 0.0
      %v3748 = vadd.f32 %v3746, %v3747
      %v3749 = vsel %vm338, %v3671, 0.0
      %v3750 = vadd.f32 %v3748, %v3749
      %v3751 = vsel %vm338, %v3672, 0.0
      %v3752 = vadd.f32 %v3750, %v3751
      %v3753 = vsel %vm338, %v3673, 0.0
      %v3754 = vadd.f32 %v3752, %v3753
      %v3755 = vrot.slane %v3754, 4
      %v3756 = vadd.f32 %v3754, %v3755
      %v3757 = vrot.slane %v3756, 2
      %v3758 = vadd.f32 %v3756, %v3757
      %v3759 = vrot.slane %v3758, 1
      %v3760 = vadd.f32 %v3758, %v3759
      %3761 = vst.msk [vmem:[%s295] sm:$0x1] %vm3631, %v3760
      %p3762 = scmp.lt.s32.totalorder %s19, 1
      %s3763 = scalar_select %p3762, %s19, 1
      %s3764 = smul.addr %s3763, 41
      %s3765 = smul.addr %s3764, 4
      %s3766 = scalar_lea.vmem %s5, %s3765
      %p3767 = scmp.lt.s32.totalorder %s19, 1
      %s3768 = scalar_select %p3767, %s19, 1
      %s3769 = scalar_lea.vmem %s6, %s3768
      %p3770 = scmp.lt.s32.totalorder %s19, 1
      %s3771 = scalar_select %p3770, %s19, 1
      %s3772 = scalar_lea.vmem %s7, %s3771
      // Predicated region
      $region41: #{basic_block_forward.3} parent=39 // pred_check
        %p3773 = pneg %p147
      $region42: #{basic_block_forward.3} parent=39 // pred_check_branch
        %3775 = sbr.rel (%p3773) target = $region44
      $region43: #{basic_block_forward.3} parent=39 // pred_region
        _
      $region44: #{basic_block_forward.3} parent=39 // pred_fallthru
        _
      // Predicated region
      $region45: #{basic_block_forward.3} parent=39 // pred_check
        %p3776 = pneg %p173
      $region46: #{basic_block_forward.3} parent=39 // pred_check_branch
        %3778 = sbr.rel (%p3776) target = $region48
      $region47: #{basic_block_forward.3} parent=39 // pred_region
        _
      $region48: #{basic_block_forward.3} parent=39 // pred_fallthru
        _
      // Predicated region
      $region49: #{basic_block_forward.3} parent=39 // pred_check
        %p3779 = pneg %p199
      $region50: #{basic_block_forward.3} parent=39 // pred_check_branch
        %3781 = sbr.rel (%p3779) target = $region52
      $region51: #{basic_block_forward.3} parent=39 // pred_region
        _
      $region52: #{basic_block_forward.3} parent=39 // pred_fallthru
        _
    $region40: #{basic_block_forward.3} parent=5 // pred_fallthru
      _
    %p3782 = scmp.le.s32.totalorder 2, %s14
    // Predicated region
    $region53: #{basic_block_forward.3} parent=5 // pred_check
      %p3783 = pneg %p3782
    $region54: #{basic_block_forward.3} parent=5 // pred_check_branch
      %3785 = sbr.rel (%p3783) target = $region56
    $region55: #{basic_block_forward.3} parent=5 // pred_region
      %s3786 = ssub.s32 %s14, 2
      // Predicated region
      $region57: #{basic_block_forward.3} parent=55 // pred_check
        %p3787 = pneg %p153
      $region58: #{basic_block_forward.3} parent=55 // pred_check_branch
        %3789 = sbr.rel (%p3787) target = $region60
      $region59: #{basic_block_forward.3} parent=55 // pred_region
        %p3790 = scmp.lt.s32.totalorder %s20, 1
        %s3791 = scalar_select %p3790, %s20, 1
        %s3792 = smul.addr %s3791, 41
        %s3793 = smul.addr %s3792, 4
        %s3794 = scalar_lea.vmem %s5, %s3793
      $region60: #{basic_block_forward.3} parent=55 // pred_fallthru
        _
      // Predicated region
      $region61: #{basic_block_forward.3} parent=55 // pred_check
        %p3795 = pneg %p179
      $region62: #{basic_block_forward.3} parent=55 // pred_check_branch
        %3797 = sbr.rel (%p3795) target = $region64
      $region63: #{basic_block_forward.3} parent=55 // pred_region
        %p3798 = scmp.lt.s32.totalorder %s20, 1
        %s3799 = scalar_select %p3798, %s20, 1
        %s3800 = scalar_lea.vmem %s6, %s3799
      $region64: #{basic_block_forward.3} parent=55 // pred_fallthru
        _
      // Predicated region
      $region65: #{basic_block_forward.3} parent=55 // pred_check
        %p3801 = pneg %p205
      $region66: #{basic_block_forward.3} parent=55 // pred_check_branch
        %3803 = sbr.rel (%p3801) target = $region68
      $region67: #{basic_block_forward.3} parent=55 // pred_region
        %p3804 = scmp.lt.s32.totalorder %s20, 1
        %s3805 = scalar_select %p3804, %s20, 1
        %s3806 = scalar_lea.vmem %s7, %s3805
      $region68: #{basic_block_forward.3} parent=55 // pred_fallthru
        _
    $region56: #{basic_block_forward.3} parent=5 // pred_fallthru
      _
  $region6: #{basic_block_forward.3} parent=0 // loop_footer
    %s18 = sadd.s32 1, %s14
  $region7: #{basic_block_forward.3} parent=0 // loop_footer_branch
    %13 = sbr.rel target = $region3
  $region8: #{basic_block_forward.3} parent=0 // loop_exit
    _

// kernel: basic_block_forward.4
$region0: #{basic_block_forward.4}
  #allocation0 [shape = 'u32[]', space=smem, size = 0x4, offset = 0x4, fixed_abs, tag = 'smem constant byte address 0x4 - core index']
  #allocation1 [shape = 'u32[72,128]{1,0:T(1,128)}', space=vmem, size = 0x9000, scoped, tag = 'internal scratch']
  #allocation2 [shape = 'f32[376,8]{1,0:T(8,128)}', space=vmem, size = 0x2f000, scoped, tag = 'scratch operand']
  #allocation3 [shape = 'bf16[328,72]{1,0:T(8,128)(2,1)}', space=vmem, size = 0x14800, scoped, tag = 'scratch operand']
  %s0 = inlined_call_operand.vmem [shape: bf16[2,328,8], index: 0, kind: input, shape index: {}]
  %s1 = inlined_call_operand.vmem [shape: f32[328,1], index: 1, kind: input, shape index: {}]
  %s2 = inlined_call_operand.vmem [shape: f32[1,8], index: 2, kind: input, shape index: {}]
  %s3 = inlined_call_operand.vmem [shape: f32[1,8], index: 3, kind: input, shape index: {}]
  %s4 = inlined_call_operand.vmem [shape: bf16[72,8], index: 4, kind: input, shape index: {}]
  %s5 = inlined_call_operand.vmem [shape: bf16[2,328,8], index: 5, kind: output, shape index: {0}]
  %s6 = inlined_call_operand.vmem [shape: f32[2,1,8], index: 6, kind: output, shape index: {1}]
  %s7 = inlined_call_operand.vmem [shape: f32[2,1,8], index: 7, kind: output, shape index: {2}]
  %8 = xla_tuple %s5, %s6, %s7
  %s9 = sld [smem:[#allocation0]]
  $region69: #{basic_block_forward.4} parent=0
    _
  %s11 = ssub.s32 1, %s9
  %s12 = scalar_select 0, %s11, %s9
  loop: start=0, step=1, limit=4
  $region2: #{basic_block_forward.4} parent=0 // loop_pre_header
    _
  $region3: #{basic_block_forward.4} parent=0 // loop_header
    %s14 = sphi 0, %s18
    %p15 = scmp.ge.s32.totalorder %s14, 4
    %s24 = sphi 0, %s26
    %s27 = sphi 0, %s24
    %s28 = sphi 0, %s27
    %s44 = sphi 0, %s28
    %s48 = sphi 0, %s48
    %s50 = sphi 0, %s48
    %s51 = sphi 0, %s50
    %s65 = sphi 0, %s51
    %s69 = sphi 0, %s69
    %s71 = sphi 0, %s69
    %s72 = sphi 0, %s71
    %s86 = sphi 0, %s72
    %s90 = sphi 0, %s90
    %s92 = sphi 0, %s90
    %s93 = sphi 0, %s92
    %s107 = sphi 0, %s93
    %s111 = sphi 0, %s111
    %s113 = sphi 0, %s111
    %s114 = sphi 0, %s113
    %s128 = sphi 0, %s114
    %s134 = sphi 0, %s136
    %s137 = sphi 0, %s134
    %s138 = sphi 0, %s137
    %s154 = sphi 0, %s138
    %s160 = sphi 0, %s162
    %s163 = sphi 0, %s160
    %s164 = sphi 0, %s163
    %s180 = sphi 0, %s164
    %s186 = sphi 0, %s188
    %s189 = sphi 0, %s186
    %s190 = sphi 0, %s189
    %s206 = sphi 0, %s190
  $region4: #{basic_block_forward.4} parent=0 // loop_header_branch
    %17 = sbr.rel (%p15) target = $region8
  $region5: #{basic_block_forward.4} parent=0 // loop_body
    %s19 = ssub.s32 %s14, 1
    %s20 = ssub.s32 %s14, 2
    %s21 = sadd.s32 %s14, 1
    %s22 = ssub.s32 %s14, %s21
    %p23 = scmp.eq.s32.totalorder %s22, 0
    %s25 = sadd.s32 %s24, 1
    %s26 = scalar_select %p23, %s24, %s25
    %p29 = pneg %p23
    %p30 = scmp.eq.s32.totalorder %s14, 1
    %p31 = por %p29, %p30
    %p32 = scmp.ne.s32.totalorder %s24, %s27
    %p33 = scmp.eq.s32.totalorder %s14, 0
    %p34 = por %p32, %p33
    %p35 = scmp.ne.s32.totalorder %s24, %s27
    %p36 = scmp.eq.s32.totalorder %s19, 1
    %p37 = por %p35, %p36
    %p38 = scmp.ne.s32.totalorder %s27, %s28
    %p39 = scmp.eq.s32.totalorder %s19, 0
    %p40 = por %p38, %p39
    %p41 = scmp.ne.s32.totalorder %s27, %s28
    %p42 = scmp.eq.s32.totalorder %s20, 1
    %p43 = por %p41, %p42
    %p45 = scmp.ne.s32.totalorder %s28, %s44
    %p46 = scmp.eq.s32.totalorder %s20, 0
    %p47 = por %p45, %p46
    %s49 = sadd.s32 %s48, 1
    %p52 = scmp.eq.s32.totalorder %s14, 1
    %p53 = scmp.ne.s32.totalorder %s48, %s50
    %p54 = scmp.eq.s32.totalorder %s14, 0
    %p55 = por %p53, %p54
    %p56 = scmp.ne.s32.totalorder %s48, %s50
    %p57 = scmp.eq.s32.totalorder %s19, 1
    %p58 = por %p56, %p57
    %p59 = scmp.ne.s32.totalorder %s50, %s51
    %p60 = scmp.eq.s32.totalorder %s19, 0
    %p61 = por %p59, %p60
    %p62 = scmp.ne.s32.totalorder %s50, %s51
    %p63 = scmp.eq.s32.totalorder %s20, 1
    %p64 = por %p62, %p63
    %p66 = scmp.ne.s32.totalorder %s51, %s65
    %p67 = scmp.eq.s32.totalorder %s20, 0
    %p68 = por %p66, %p67
    %s70 = sadd.s32 %s69, 1
    %p73 = scmp.eq.s32.totalorder %s14, 1
    %p74 = scmp.ne.s32.totalorder %s69, %s71
    %p75 = scmp.eq.s32.totalorder %s14, 0
    %p76 = por %p74, %p75
    %p77 = scmp.ne.s32.totalorder %s69, %s71
    %p78 = scmp.eq.s32.totalorder %s19, 1
    %p79 = por %p77, %p78
    %p80 = scmp.ne.s32.totalorder %s71, %s72
    %p81 = scmp.eq.s32.totalorder %s19, 0
    %p82 = por %p80, %p81
    %p83 = scmp.ne.s32.totalorder %s71, %s72
    %p84 = scmp.eq.s32.totalorder %s20, 1
    %p85 = por %p83, %p84
    %p87 = scmp.ne.s32.totalorder %s72, %s86
    %p88 = scmp.eq.s32.totalorder %s20, 0
    %p89 = por %p87, %p88
    %s91 = sadd.s32 %s90, 1
    %p94 = scmp.eq.s32.totalorder %s14, 1
    %p95 = scmp.ne.s32.totalorder %s90, %s92
    %p96 = scmp.eq.s32.totalorder %s14, 0
    %p97 = por %p95, %p96
    %p98 = scmp.ne.s32.totalorder %s90, %s92
    %p99 = scmp.eq.s32.totalorder %s19, 1
    %p100 = por %p98, %p99
    %p101 = scmp.ne.s32.totalorder %s92, %s93
    %p102 = scmp.eq.s32.totalorder %s19, 0
    %p103 = por %p101, %p102
    %p104 = scmp.ne.s32.totalorder %s92, %s93
    %p105 = scmp.eq.s32.totalorder %s20, 1
    %p106 = por %p104, %p105
    %p108 = scmp.ne.s32.totalorder %s93, %s107
    %p109 = scmp.eq.s32.totalorder %s20, 0
    %p110 = por %p108, %p109
    %s112 = sadd.s32 %s111, 1
    %p115 = scmp.eq.s32.totalorder %s14, 1
    %p116 = scmp.ne.s32.totalorder %s111, %s113
    %p117 = scmp.eq.s32.totalorder %s14, 0
    %p118 = por %p116, %p117
    %p119 = scmp.ne.s32.totalorder %s111, %s113
    %p120 = scmp.eq.s32.totalorder %s19, 1
    %p121 = por %p119, %p120
    %p122 = scmp.ne.s32.totalorder %s113, %s114
    %p123 = scmp.eq.s32.totalorder %s19, 0
    %p124 = por %p122, %p123
    %p125 = scmp.ne.s32.totalorder %s113, %s114
    %p126 = scmp.eq.s32.totalorder %s20, 1
    %p127 = por %p125, %p126
    %p129 = scmp.ne.s32.totalorder %s114, %s128
    %p130 = scmp.eq.s32.totalorder %s20, 0
    %p131 = por %p129, %p130
    %s132 = ssub.s32 %s14, %s21
    %p133 = scmp.eq.s32.totalorder %s132, 0
    %s135 = sadd.s32 %s134, 1
    %s136 = scalar_select %p133, %s134, %s135
    %p139 = pneg %p133
    %p140 = scmp.eq.s32.totalorder %s14, 1
    %p141 = por %p139, %p140
    %p142 = scmp.ne.s32.totalorder %s134, %s137
    %p143 = scmp.eq.s32.totalorder %s14, 0
    %p144 = por %p142, %p143
    %p145 = scmp.ne.s32.totalorder %s134, %s137
    %p146 = scmp.eq.s32.totalorder %s19, 1
    %p147 = por %p145, %p146
    %p148 = scmp.ne.s32.totalorder %s137, %s138
    %p149 = scmp.eq.s32.totalorder %s19, 0
    %p150 = por %p148, %p149
    %p151 = scmp.ne.s32.totalorder %s137, %s138
    %p152 = scmp.eq.s32.totalorder %s20, 1
    %p153 = por %p151, %p152
    %p155 = scmp.ne.s32.totalorder %s138, %s154
    %p156 = scmp.eq.s32.totalorder %s20, 0
    %p157 = por %p155, %p156
    %s158 = ssub.s32 %s14, %s21
    %p159 = scmp.eq.s32.totalorder %s158, 0
    %s161 = sadd.s32 %s160, 1
    %s162 = scalar_select %p159, %s160, %s161
    %p165 = pneg %p159
    %p166 = scmp.eq.s32.totalorder %s14, 1
    %p167 = por %p165, %p166
    %p168 = scmp.ne.s32.totalorder %s160, %s163
    %p169 = scmp.eq.s32.totalorder %s14, 0
    %p170 = por %p168, %p169
    %p171 = scmp.ne.s32.totalorder %s160, %s163
    %p172 = scmp.eq.s32.totalorder %s19, 1
    %p173 = por %p171, %p172
    %p174 = scmp.ne.s32.totalorder %s163, %s164
    %p175 = scmp.eq.s32.totalorder %s19, 0
    %p176 = por %p174, %p175
    %p177 = scmp.ne.s32.totalorder %s163, %s164
    %p178 = scmp.eq.s32.totalorder %s20, 1
    %p179 = por %p177, %p178
    %p181 = scmp.ne.s32.totalorder %s164, %s180
    %p182 = scmp.eq.s32.totalorder %s20, 0
    %p183 = por %p181, %p182
    %s184 = ssub.s32 %s14, %s21
    %p185 = scmp.eq.s32.totalorder %s184, 0
    %s187 = sadd.s32 %s186, 1
    %s188 = scalar_select %p185, %s186, %s187
    %p191 = pneg %p185
    %p192 = scmp.eq.s32.totalorder %s14, 1
    %p193 = por %p191, %p192
    %p194 = scmp.ne.s32.totalorder %s186, %s189
    %p195 = scmp.eq.s32.totalorder %s14, 0
    %p196 = por %p194, %p195
    %p197 = scmp.ne.s32.totalorder %s186, %s189
    %p198 = scmp.eq.s32.totalorder %s19, 1
    %p199 = por %p197, %p198
    %p200 = scmp.ne.s32.totalorder %s189, %s190
    %p201 = scmp.eq.s32.totalorder %s19, 0
    %p202 = por %p200, %p201
    %p203 = scmp.ne.s32.totalorder %s189, %s190
    %p204 = scmp.eq.s32.totalorder %s20, 1
    %p205 = por %p203, %p204
    %p207 = scmp.ne.s32.totalorder %s190, %s206
    %p208 = scmp.eq.s32.totalorder %s20, 0
    %p209 = por %p207, %p208
    %p210 = scmp.le.s32.totalorder 1, %s14
    %p211 = scmp.lt.s32.totalorder %s14, 3
    %p212 = pnand %p210, %p211
    %p213 = pneg %p212
    // Predicated region
    $region9: #{basic_block_forward.4} parent=5 // pred_check
      _
    $region10: #{basic_block_forward.4} parent=5 // pred_check_branch
      %215 = sbr.rel (%p212) target = $region12
    $region11: #{basic_block_forward.4} parent=5 // pred_region
      %s216 = ssub.s32 %s14, 1
      // Predicated region
      $region13: #{basic_block_forward.4} parent=11 // pred_check
        %p217 = pneg %p61
      $region14: #{basic_block_forward.4} parent=11 // pred_check_branch
        %219 = sbr.rel (%p217) target = $region16
      $region15: #{basic_block_forward.4} parent=11 // pred_region
        _
      $region16: #{basic_block_forward.4} parent=11 // pred_fallthru
        _
      // Predicated region
      $region17: #{basic_block_forward.4} parent=11 // pred_check
        %p220 = pneg %p82
      $region18: #{basic_block_forward.4} parent=11 // pred_check_branch
        %222 = sbr.rel (%p220) target = $region20
      $region19: #{basic_block_forward.4} parent=11 // pred_region
        _
      $region20: #{basic_block_forward.4} parent=11 // pred_fallthru
        _
      // Predicated region
      $region21: #{basic_block_forward.4} parent=11 // pred_check
        %p223 = pneg %p103
      $region22: #{basic_block_forward.4} parent=11 // pred_check_branch
        %225 = sbr.rel (%p223) target = $region24
      $region23: #{basic_block_forward.4} parent=11 // pred_region
        _
      $region24: #{basic_block_forward.4} parent=11 // pred_fallthru
        _
      // Predicated region
      $region25: #{basic_block_forward.4} parent=11 // pred_check
        %p226 = pneg %p124
      $region26: #{basic_block_forward.4} parent=11 // pred_check_branch
        %228 = sbr.rel (%p226) target = $region28
      $region27: #{basic_block_forward.4} parent=11 // pred_region
        _
      $region28: #{basic_block_forward.4} parent=11 // pred_fallthru
        _
    $region12: #{basic_block_forward.4} parent=5 // pred_fallthru
      _
    %p229 = scmp.lt.s32.totalorder %s14, 2
    // Predicated region
    $region29: #{basic_block_forward.4} parent=5 // pred_check
      %p230 = pneg %p229
    $region30: #{basic_block_forward.4} parent=5 // pred_check_branch
      %232 = sbr.rel (%p230) target = $region32
    $region31: #{basic_block_forward.4} parent=5 // pred_region
      // Predicated region
      $region33: #{basic_block_forward.4} parent=31 // pred_check
        %p233 = pneg %p34
      $region34: #{basic_block_forward.4} parent=31 // pred_check_branch
        %235 = sbr.rel (%p233) target = $region36
      $region35: #{basic_block_forward.4} parent=31 // pred_region
        %p236 = scmp.lt.s32.totalorder %s14, 1
        %s237 = scalar_select %p236, %s14, 1
        %s238 = smul.addr %s237, 41
        %s239 = smul.addr %s238, 4
        %s240 = scalar_lea.vmem %s0, %s239
      $region36: #{basic_block_forward.4} parent=31 // pred_fallthru
        _
    $region32: #{basic_block_forward.4} parent=5 // pred_fallthru
      _
    %p241 = scmp.le.s32.totalorder 1, %s14
    %p242 = scmp.lt.s32.totalorder %s14, 3
    %p243 = pnand %p241, %p242
    %p244 = pneg %p243
    // Predicated region
    $region37: #{basic_block_forward.4} parent=5 // pred_check
      _
    $region38: #{basic_block_forward.4} parent=5 // pred_check_branch
      %246 = sbr.rel (%p243) target = $region40
    $region39: #{basic_block_forward.4} parent=5 // pred_region
      %s247 = ssub.s32 %s14, 1
      %p248 = scmp.lt.s32.totalorder %s19, 1
      %s249 = scalar_select %p248, %s19, 1
      %s250 = smul.addr %s249, 41
      %s251 = smul.addr %s250, 4
      %s252 = scalar_lea.vmem %s0, %s251
      %p253 = pneg %p40
      %p254 = pneg %p37
      %p255 = pneg %p61
      %p256 = pneg %p58
      %p257 = pneg %p82
      %p258 = pneg %p79
      %p259 = pneg %p103
      %p260 = pneg %p100
      %p261 = pneg %p124
      %p262 = pneg %p121
      %p263 = pneg %p150
      %p264 = pneg %p147
      %p265 = scmp.lt.s32.totalorder %s19, 1
      %s266 = scalar_select %p265, %s19, 1
      %s267 = smul.addr %s266, 41
      %s268 = smul.addr %s267, 4
      %s269 = scalar_lea.vmem %s5, %s268
      %p270 = pneg %p176
      %p271 = pneg %p173
      %p272 = scmp.lt.s32.totalorder %s19, 1
      %s273 = scalar_select %p272, %s19, 1
      %s274 = scalar_lea.vmem %s6, %s273
      %p275 = pneg %p202
      %p276 = pneg %p199
      %p277 = scmp.lt.s32.totalorder %s19, 1
      %s278 = scalar_select %p277, %s19, 1
      %s279 = scalar_lea.vmem %s7, %s278
      %p280 = scmp.lt.s32.totalorder %s19, 1
      %s281 = scalar_select %p280, %s19, 1
      %s282 = smul.addr %s281, 41
      %s283 = smul.addr %s282, 4
      %s284 = scalar_lea.vmem %s0, %s283
      %p285 = scmp.lt.s32.totalorder %s19, 1
      %s286 = scalar_select %p285, %s19, 1
      %s287 = smul.addr %s286, 41
      %s288 = smul.addr %s287, 4
      %s289 = scalar_lea.vmem %s5, %s288
      %p290 = scmp.lt.s32.totalorder %s19, 1
      %s291 = scalar_select %p290, %s19, 1
      %s292 = scalar_lea.vmem %s6, %s291
      %p293 = scmp.lt.s32.totalorder %s19, 1
      %s294 = scalar_select %p293, %s19, 1
      %s295 = scalar_lea.vmem %s7, %s294
      %v297 = vld [vmem:[%s284] sm:$0xf]
      %v298 = vld [vmem:[%s284 + $0x4] sm:$0xf]
      %v299 = vld [vmem:[%s284 + $0x8] sm:$0xf]
      %v300 = vld [vmem:[%s284 + $0xc] sm:$0xf]
      %v301 = vld [vmem:[%s284 + $0x10] sm:$0xf]
      %v302 = vld [vmem:[%s284 + $0x14] sm:$0xf]
      %v303 = vld [vmem:[%s284 + $0x18] sm:$0xf]
      %v304 = vld [vmem:[%s284 + $0x1c] sm:$0xf]
      %v305 = vld [vmem:[%s284 + $0x20] sm:$0xf]
      %v306 = vld [vmem:[%s284 + $0x24] sm:$0xf]
      %v307 = vld [vmem:[%s284 + $0x28] sm:$0xf]
      %v308 = vld [vmem:[%s284 + $0x2c] sm:$0xf]
      %v309 = vld [vmem:[%s284 + $0x30] sm:$0xf]
      %v310 = vld [vmem:[%s284 + $0x34] sm:$0xf]
      %v311 = vld [vmem:[%s284 + $0x38] sm:$0xf]
      %v312 = vld [vmem:[%s284 + $0x3c] sm:$0xf]
      %v313 = vld [vmem:[%s284 + $0x40] sm:$0xf]
      %v314 = vld [vmem:[%s284 + $0x44] sm:$0xf]
      %v315 = vld [vmem:[%s284 + $0x48] sm:$0xf]
      %v316 = vld [vmem:[%s284 + $0x4c] sm:$0xf]
      %v317 = vld [vmem:[%s284 + $0x50] sm:$0xf]
      %v318 = vld [vmem:[%s284 + $0x54] sm:$0xf]
      %v319 = vld [vmem:[%s284 + $0x58] sm:$0xf]
      %v320 = vld [vmem:[%s284 + $0x5c] sm:$0xf]
      %v321 = vld [vmem:[%s284 + $0x60] sm:$0xf]
      %v322 = vld [vmem:[%s284 + $0x64] sm:$0xf]
      %v323 = vld [vmem:[%s284 + $0x68] sm:$0xf]
      %v324 = vld [vmem:[%s284 + $0x6c] sm:$0xf]
      %v325 = vld [vmem:[%s284 + $0x70] sm:$0xf]
      %v326 = vld [vmem:[%s284 + $0x74] sm:$0xf]
      %v327 = vld [vmem:[%s284 + $0x78] sm:$0xf]
      %v328 = vld [vmem:[%s284 + $0x7c] sm:$0xf]
      %v329 = vld [vmem:[%s284 + $0x80] sm:$0xf]
      %v330 = vld [vmem:[%s284 + $0x84] sm:$0xf]
      %v331 = vld [vmem:[%s284 + $0x88] sm:$0xf]
      %v332 = vld [vmem:[%s284 + $0x8c] sm:$0xf]
      %v333 = vld [vmem:[%s284 + $0x90] sm:$0xf]
      %v334 = vld [vmem:[%s284 + $0x94] sm:$0xf]
      %v335 = vld [vmem:[%s284 + $0x98] sm:$0xf]
      %v336 = vld [vmem:[%s284 + $0x9c] sm:$0xf]
      %v337 = vld [vmem:[%s284 + $0xa0] sm:$0xf]
      %v338 = vunpack.c.l.bf16 %v297
      %v339 = vunpack.c.l.bf16 %v298
      %v340 = vunpack.c.l.bf16 %v299
      %v341 = vunpack.c.l.bf16 %v300
      %v342 = vunpack.c.l.bf16 %v301
      %v343 = vunpack.c.l.bf16 %v302
      %v344 = vunpack.c.l.bf16 %v303
      %v345 = vunpack.c.l.bf16 %v304
      %v346 = vunpack.c.l.bf16 %v305
      %v347 = vunpack.c.l.bf16 %v306
      %v348 = vunpack.c.l.bf16 %v307
      %v349 = vunpack.c.l.bf16 %v308
      %v350 = vunpack.c.l.bf16 %v309
      %v351 = vunpack.c.l.bf16 %v310
      %v352 = vunpack.c.l.bf16 %v311
      %v353 = vunpack.c.l.bf16 %v312
      %v354 = vunpack.c.l.bf16 %v313
      %v355 = vunpack.c.l.bf16 %v314
      %v356 = vunpack.c.l.bf16 %v315
      %v357 = vunpack.c.l.bf16 %v316
      %v358 = vunpack.c.l.bf16 %v317
      %v359 = vunpack.c.l.bf16 %v318
      %v360 = vunpack.c.l.bf16 %v319
      %v361 = vunpack.c.l.bf16 %v320
      %v362 = vunpack.c.l.bf16 %v321
      %v363 = vunpack.c.l.bf16 %v322
      %v364 = vunpack.c.l.bf16 %v323
      %v365 = vunpack.c.l.bf16 %v324
      %v366 = vunpack.c.l.bf16 %v325
      %v367 = vunpack.c.l.bf16 %v326
      %v368 = vunpack.c.l.bf16 %v327
      %v369 = vunpack.c.l.bf16 %v328
      %v370 = vunpack.c.l.bf16 %v329
      %v371 = vunpack.c.l.bf16 %v330
      %v372 = vunpack.c.l.bf16 %v331
      %v373 = vunpack.c.l.bf16 %v332
      %v374 = vunpack.c.l.bf16 %v333
      %v375 = vunpack.c.l.bf16 %v334
      %v376 = vunpack.c.l.bf16 %v335
      %v377 = vunpack.c.l.bf16 %v336
      %v378 = vunpack.c.l.bf16 %v337
      %v379 = vld [vmem:[%s1] sm:$0xff]
      %v380 = vld [vmem:[%s1 + $0x8] sm:$0xff]
      %v381 = vld [vmem:[%s1 + $0x10] sm:$0xff]
      %v382 = vld [vmem:[%s1 + $0x18] sm:$0xff]
      %v383 = vld [vmem:[%s1 + $0x20] sm:$0xff]
      %v384 = vld [vmem:[%s1 + $0x28] sm:$0xff]
      %v385 = vld [vmem:[%s1 + $0x30] sm:$0xff]
      %v386 = vld [vmem:[%s1 + $0x38] sm:$0xff]
      %v387 = vld [vmem:[%s1 + $0x40] sm:$0xff]
      %v388 = vld [vmem:[%s1 + $0x48] sm:$0xff]
      %v389 = vld [vmem:[%s1 + $0x50] sm:$0xff]
      %v390 = vld [vmem:[%s1 + $0x58] sm:$0xff]
      %v391 = vld [vmem:[%s1 + $0x60] sm:$0xff]
      %v392 = vld [vmem:[%s1 + $0x68] sm:$0xff]
      %v393 = vld [vmem:[%s1 + $0x70] sm:$0xff]
      %v394 = vld [vmem:[%s1 + $0x78] sm:$0xff]
      %v395 = vld [vmem:[%s1 + $0x80] sm:$0xff]
      %v396 = vld [vmem:[%s1 + $0x88] sm:$0xff]
      %v397 = vld [vmem:[%s1 + $0x90] sm:$0xff]
      %v398 = vld [vmem:[%s1 + $0x98] sm:$0xff]
      %v399 = vld [vmem:[%s1 + $0xa0] sm:$0xff]
      %v400 = vld [vmem:[%s1 + $0xa8] sm:$0xff]
      %v401 = vld [vmem:[%s1 + $0xb0] sm:$0xff]
      %v402 = vld [vmem:[%s1 + $0xb8] sm:$0xff]
      %v403 = vld [vmem:[%s1 + $0xc0] sm:$0xff]
      %v404 = vld [vmem:[%s1 + $0xc8] sm:$0xff]
      %v405 = vld [vmem:[%s1 + $0xd0] sm:$0xff]
      %v406 = vld [vmem:[%s1 + $0xd8] sm:$0xff]
      %v407 = vld [vmem:[%s1 + $0xe0] sm:$0xff]
      %v408 = vld [vmem:[%s1 + $0xe8] sm:$0xff]
      %v409 = vld [vmem:[%s1 + $0xf0] sm:$0xff]
      %v410 = vld [vmem:[%s1 + $0xf8] sm:$0xff]
      %v411 = vld [vmem:[%s1 + $0x100] sm:$0xff]
      %v412 = vld [vmem:[%s1 + $0x108] sm:$0xff]
      %v413 = vld [vmem:[%s1 + $0x110] sm:$0xff]
      %v414 = vld [vmem:[%s1 + $0x118] sm:$0xff]
      %v415 = vld [vmem:[%s1 + $0x120] sm:$0xff]
      %v416 = vld [vmem:[%s1 + $0x128] sm:$0xff]
      %v417 = vld [vmem:[%s1 + $0x130] sm:$0xff]
      %v418 = vld [vmem:[%s1 + $0x138] sm:$0xff]
      %v419 = vld [vmem:[%s1 + $0x140] sm:$0xff]
      %v420 = vld [vmem:[%s2] sm:$0x1]
      %v422 = vperm.slane %v420, 0
      %v424 = vmul.f32 %v338, %v422
      %v425 = vmul.f32 %v339, %v422
      %v426 = vmul.f32 %v340, %v422
      %v427 = vmul.f32 %v341, %v422
      %v428 = vmul.f32 %v342, %v422
      %v429 = vmul.f32 %v343, %v422
      %v430 = vmul.f32 %v344, %v422
      %v431 = vmul.f32 %v345, %v422
      %v432 = vmul.f32 %v346, %v422
      %v433 = vmul.f32 %v347, %v422
      %v434 = vmul.f32 %v348, %v422
      %v435 = vmul.f32 %v349, %v422
      %v436 = vmul.f32 %v350, %v422
      %v437 = vmul.f32 %v351, %v422
      %v438 = vmul.f32 %v352, %v422
      %v439 = vmul.f32 %v353, %v422
      %v440 = vmul.f32 %v354, %v422
      %v441 = vmul.f32 %v355, %v422
      %v442 = vmul.f32 %v356, %v422
      %v443 = vmul.f32 %v357, %v422
      %v444 = vmul.f32 %v358, %v422
      %v445 = vmul.f32 %v359, %v422
      %v446 = vmul.f32 %v360, %v422
      %v447 = vmul.f32 %v361, %v422
      %v448 = vmul.f32 %v362, %v422
      %v449 = vmul.f32 %v363, %v422
      %v450 = vmul.f32 %v364, %v422
      %v451 = vmul.f32 %v365, %v422
      %v452 = vmul.f32 %v366, %v422
      %v453 = vmul.f32 %v367, %v422
      %v454 = vmul.f32 %v368, %v422
      %v455 = vmul.f32 %v369, %v422
      %v456 = vmul.f32 %v370, %v422
      %v457 = vmul.f32 %v371, %v422
      %v458 = vmul.f32 %v372, %v422
      %v459 = vmul.f32 %v373, %v422
      %v460 = vmul.f32 %v374, %v422
      %v461 = vmul.f32 %v375, %v422
      %v462 = vmul.f32 %v376, %v422
      %v463 = vmul.f32 %v377, %v422
      %v464 = vmul.f32 %v378, %v422
      %v465 = vld [vmem:[%s3] sm:$0x1]
      %v467 = vperm.slane %v465, 0
      %v469 = vadd.f32 %v424, %v467
      %v470 = vadd.f32 %v425, %v467
      %v471 = vadd.f32 %v426, %v467
      %v472 = vadd.f32 %v427, %v467
      %v473 = vadd.f32 %v428, %v467
      %v474 = vadd.f32 %v429, %v467
      %v475 = vadd.f32 %v430, %v467
      %v476 = vadd.f32 %v431, %v467
      %v477 = vadd.f32 %v432, %v467
      %v478 = vadd.f32 %v433, %v467
      %v479 = vadd.f32 %v434, %v467
      %v480 = vadd.f32 %v435, %v467
      %v481 = vadd.f32 %v436, %v467
      %v482 = vadd.f32 %v437, %v467
      %v483 = vadd.f32 %v438, %v467
      %v484 = vadd.f32 %v439, %v467
      %v485 = vadd.f32 %v440, %v467
      %v486 = vadd.f32 %v441, %v467
      %v487 = vadd.f32 %v442, %v467
      %v488 = vadd.f32 %v443, %v467
      %v489 = vadd.f32 %v444, %v467
      %v490 = vadd.f32 %v445, %v467
      %v491 = vadd.f32 %v446, %v467
      %v492 = vadd.f32 %v447, %v467
      %v493 = vadd.f32 %v448, %v467
      %v494 = vadd.f32 %v449, %v467
      %v495 = vadd.f32 %v450, %v467
      %v496 = vadd.f32 %v451, %v467
      %v497 = vadd.f32 %v452, %v467
      %v498 = vadd.f32 %v453, %v467
      %v499 = vadd.f32 %v454, %v467
      %v500 = vadd.f32 %v455, %v467
      %v501 = vadd.f32 %v456, %v467
      %v502 = vadd.f32 %v457, %v467
      %v503 = vadd.f32 %v458, %v467
      %v504 = vadd.f32 %v459, %v467
      %v505 = vadd.f32 %v460, %v467
      %v506 = vadd.f32 %v461, %v467
      %v507 = vadd.f32 %v462, %v467
      %v508 = vadd.f32 %v463, %v467
      %v509 = vadd.f32 %v464, %v467
      %v510 = vmax.f32 %v469, 0.0
      %v511 = vmax.f32 %v470, 0.0
      %v512 = vmax.f32 %v471, 0.0
      %v513 = vmax.f32 %v472, 0.0
      %v514 = vmax.f32 %v473, 0.0
      %v515 = vmax.f32 %v474, 0.0
      %v516 = vmax.f32 %v475, 0.0
      %v517 = vmax.f32 %v476, 0.0
      %v518 = vmax.f32 %v477, 0.0
      %v519 = vmax.f32 %v478, 0.0
      %v520 = vmax.f32 %v479, 0.0
      %v521 = vmax.f32 %v480, 0.0
      %v522 = vmax.f32 %v481, 0.0
      %v523 = vmax.f32 %v482, 0.0
      %v524 = vmax.f32 %v483, 0.0
      %v525 = vmax.f32 %v484, 0.0
      %v526 = vmax.f32 %v485, 0.0
      %v527 = vmax.f32 %v486, 0.0
      %v528 = vmax.f32 %v487, 0.0
      %v529 = vmax.f32 %v488, 0.0
      %v530 = vmax.f32 %v489, 0.0
      %v531 = vmax.f32 %v490, 0.0
      %v532 = vmax.f32 %v491, 0.0
      %v533 = vmax.f32 %v492, 0.0
      %v534 = vmax.f32 %v493, 0.0
      %v535 = vmax.f32 %v494, 0.0
      %v536 = vmax.f32 %v495, 0.0
      %v537 = vmax.f32 %v496, 0.0
      %v538 = vmax.f32 %v497, 0.0
      %v539 = vmax.f32 %v498, 0.0
      %v540 = vmax.f32 %v499, 0.0
      %v541 = vmax.f32 %v500, 0.0
      %v542 = vmax.f32 %v501, 0.0
      %v543 = vmax.f32 %v502, 0.0
      %v544 = vmax.f32 %v503, 0.0
      %v545 = vmax.f32 %v504, 0.0
      %v546 = vmax.f32 %v505, 0.0
      %v547 = vmax.f32 %v506, 0.0
      %v548 = vmax.f32 %v507, 0.0
      %v549 = vmax.f32 %v508, 0.0
      %v550 = vmax.f32 %v509, 0.0
      %552 = vset.pattern.permute.xlu0 0
      %553 = vperm.xlu0 %552, %v379
      %v554 = vpop.permute.xlu0 %553
      %557 = vset.pattern.permute.xlu0 0
      %558 = vperm.xlu0 %557, %v380
      %v559 = vpop.permute.xlu0 %558
      %562 = vset.pattern.permute.xlu0 0
      %563 = vperm.xlu0 %562, %v381
      %v564 = vpop.permute.xlu0 %563
      %567 = vset.pattern.permute.xlu0 0
      %568 = vperm.xlu0 %567, %v382
      %v569 = vpop.permute.xlu0 %568
      %572 = vset.pattern.permute.xlu0 0
      %573 = vperm.xlu0 %572, %v383
      %v574 = vpop.permute.xlu0 %573
      %577 = vset.pattern.permute.xlu0 0
      %578 = vperm.xlu0 %577, %v384
      %v579 = vpop.permute.xlu0 %578
      %582 = vset.pattern.permute.xlu0 0
      %583 = vperm.xlu0 %582, %v385
      %v584 = vpop.permute.xlu0 %583
      %587 = vset.pattern.permute.xlu0 0
      %588 = vperm.xlu0 %587, %v386
      %v589 = vpop.permute.xlu0 %588
      %592 = vset.pattern.permute.xlu0 0
      %593 = vperm.xlu0 %592, %v387
      %v594 = vpop.permute.xlu0 %593
      %597 = vset.pattern.permute.xlu0 0
      %598 = vperm.xlu0 %597, %v388
      %v599 = vpop.permute.xlu0 %598
      %602 = vset.pattern.permute.xlu0 0
      %603 = vperm.xlu0 %602, %v389
      %v604 = vpop.permute.xlu0 %603
      %607 = vset.pattern.permute.xlu0 0
      %608 = vperm.xlu0 %607, %v390
      %v609 = vpop.permute.xlu0 %608
      %612 = vset.pattern.permute.xlu0 0
      %613 = vperm.xlu0 %612, %v391
      %v614 = vpop.permute.xlu0 %613
      %617 = vset.pattern.permute.xlu0 0
      %618 = vperm.xlu0 %617, %v392
      %v619 = vpop.permute.xlu0 %618
      %622 = vset.pattern.permute.xlu0 0
      %623 = vperm.xlu0 %622, %v393
      %v624 = vpop.permute.xlu0 %623
      %627 = vset.pattern.permute.xlu0 0
      %628 = vperm.xlu0 %627, %v394
      %v629 = vpop.permute.xlu0 %628
      %632 = vset.pattern.permute.xlu0 0
      %633 = vperm.xlu0 %632, %v395
      %v634 = vpop.permute.xlu0 %633
      %637 = vset.pattern.permute.xlu0 0
      %638 = vperm.xlu0 %637, %v396
      %v639 = vpop.permute.xlu0 %638
      %642 = vset.pattern.permute.xlu0 0
      %643 = vperm.xlu0 %642, %v397
      %v644 = vpop.permute.xlu0 %643
      %647 = vset.pattern.permute.xlu0 0
      %648 = vperm.xlu0 %647, %v398
      %v649 = vpop.permute.xlu0 %648
      %652 = vset.pattern.permute.xlu0 0
      %653 = vperm.xlu0 %652, %v399
      %v654 = vpop.permute.xlu0 %653
      %657 = vset.pattern.permute.xlu0 0
      %658 = vperm.xlu0 %657, %v400
      %v659 = vpop.permute.xlu0 %658
      %662 = vset.pattern.permute.xlu0 0
      %663 = vperm.xlu0 %662, %v401
      %v664 = vpop.permute.xlu0 %663
      %667 = vset.pattern.permute.xlu0 0
      %668 = vperm.xlu0 %667, %v402
      %v669 = vpop.permute.xlu0 %668
      %672 = vset.pattern.permute.xlu0 0
      %673 = vperm.xlu0 %672, %v403
      %v674 = vpop.permute.xlu0 %673
      %677 = vset.pattern.permute.xlu0 0
      %678 = vperm.xlu0 %677, %v404
      %v679 = vpop.permute.xlu0 %678
      %682 = vset.pattern.permute.xlu0 0
      %683 = vperm.xlu0 %682, %v405
      %v684 = vpop.permute.xlu0 %683
      %687 = vset.pattern.permute.xlu0 0
      %688 = vperm.xlu0 %687, %v406
      %v689 = vpop.permute.xlu0 %688
      %692 = vset.pattern.permute.xlu0 0
      %693 = vperm.xlu0 %692, %v407
      %v694 = vpop.permute.xlu0 %693
      %697 = vset.pattern.permute.xlu0 0
      %698 = vperm.xlu0 %697, %v408
      %v699 = vpop.permute.xlu0 %698
      %702 = vset.pattern.permute.xlu0 0
      %703 = vperm.xlu0 %702, %v409
      %v704 = vpop.permute.xlu0 %703
      %707 = vset.pattern.permute.xlu0 0
      %708 = vperm.xlu0 %707, %v410
      %v709 = vpop.permute.xlu0 %708
      %712 = vset.pattern.permute.xlu0 0
      %713 = vperm.xlu0 %712, %v411
      %v714 = vpop.permute.xlu0 %713
      %717 = vset.pattern.permute.xlu0 0
      %718 = vperm.xlu0 %717, %v412
      %v719 = vpop.permute.xlu0 %718
      %722 = vset.pattern.permute.xlu0 0
      %723 = vperm.xlu0 %722, %v413
      %v724 = vpop.permute.xlu0 %723
      %727 = vset.pattern.permute.xlu0 0
      %728 = vperm.xlu0 %727, %v414
      %v729 = vpop.permute.xlu0 %728
      %732 = vset.pattern.permute.xlu0 0
      %733 = vperm.xlu0 %732, %v415
      %v734 = vpop.permute.xlu0 %733
      %737 = vset.pattern.permute.xlu0 0
      %738 = vperm.xlu0 %737, %v416
      %v739 = vpop.permute.xlu0 %738
      %742 = vset.pattern.permute.xlu0 0
      %743 = vperm.xlu0 %742, %v417
      %v744 = vpop.permute.xlu0 %743
      %747 = vset.pattern.permute.xlu0 0
      %748 = vperm.xlu0 %747, %v418
      %v749 = vpop.permute.xlu0 %748
      %752 = vset.pattern.permute.xlu0 0
      %753 = vperm.xlu0 %752, %v419
      %v754 = vpop.permute.xlu0 %753
      %v756 = vmul.f32 %v554, %v510
      %v757 = vmul.f32 %v559, %v511
      %v758 = vmul.f32 %v564, %v512
      %v759 = vmul.f32 %v569, %v513
      %v760 = vmul.f32 %v574, %v514
      %v761 = vmul.f32 %v579, %v515
      %v762 = vmul.f32 %v584, %v516
      %v763 = vmul.f32 %v589, %v517
      %v764 = vmul.f32 %v594, %v518
      %v765 = vmul.f32 %v599, %v519
      %v766 = vmul.f32 %v604, %v520
      %v767 = vmul.f32 %v609, %v521
      %v768 = vmul.f32 %v614, %v522
      %v769 = vmul.f32 %v619, %v523
      %v770 = vmul.f32 %v624, %v524
      %v771 = vmul.f32 %v629, %v525
      %v772 = vmul.f32 %v634, %v526
      %v773 = vmul.f32 %v639, %v527
      %v774 = vmul.f32 %v644, %v528
      %v775 = vmul.f32 %v649, %v529
      %v776 = vmul.f32 %v654, %v530
      %v777 = vmul.f32 %v659, %v531
      %v778 = vmul.f32 %v664, %v532
      %v779 = vmul.f32 %v669, %v533
      %v780 = vmul.f32 %v674, %v534
      %v781 = vmul.f32 %v679, %v535
      %v782 = vmul.f32 %v684, %v536
      %v783 = vmul.f32 %v689, %v537
      %v784 = vmul.f32 %v694, %v538
      %v785 = vmul.f32 %v699, %v539
      %v786 = vmul.f32 %v704, %v540
      %v787 = vmul.f32 %v709, %v541
      %v788 = vmul.f32 %v714, %v542
      %v789 = vmul.f32 %v719, %v543
      %v790 = vmul.f32 %v724, %v544
      %v791 = vmul.f32 %v729, %v545
      %v792 = vmul.f32 %v734, %v546
      %v793 = vmul.f32 %v739, %v547
      %v794 = vmul.f32 %v744, %v548
      %v795 = vmul.f32 %v749, %v549
      %v796 = vmul.f32 %v754, %v550
      %vm797 = vcmask 64512
      %798 = vst.msk [vmem:[#allocation2 + $0x18] sm:$0xff] %vm797, %v756
      %799 = vst.msk [vmem:[#allocation2 + $0x20] sm:$0xff] %vm797, %v757
      %800 = vst.msk [vmem:[#allocation2 + $0x28] sm:$0xff] %vm797, %v758
      %801 = vst.msk [vmem:[#allocation2 + $0x30] sm:$0xff] %vm797, %v759
      %802 = vst.msk [vmem:[#allocation2 + $0x38] sm:$0xff] %vm797, %v760
      %803 = vst.msk [vmem:[#allocation2 + $0x40] sm:$0xff] %vm797, %v761
      %804 = vst.msk [vmem:[#allocation2 + $0x48] sm:$0xff] %vm797, %v762
      %805 = vst.msk [vmem:[#allocation2 + $0x50] sm:$0xff] %vm797, %v763
      %806 = vst.msk [vmem:[#allocation2 + $0x58] sm:$0xff] %vm797, %v764
      %807 = vst.msk [vmem:[#allocation2 + $0x60] sm:$0xff] %vm797, %v765
      %808 = vst.msk [vmem:[#allocation2 + $0x68] sm:$0xff] %vm797, %v766
      %809 = vst.msk [vmem:[#allocation2 + $0x70] sm:$0xff] %vm797, %v767
      %810 = vst.msk [vmem:[#allocation2 + $0x78] sm:$0xff] %vm797, %v768
      %811 = vst.msk [vmem:[#allocation2 + $0x80] sm:$0xff] %vm797, %v769
      %812 = vst.msk [vmem:[#allocation2 + $0x88] sm:$0xff] %vm797, %v770
      %813 = vst.msk [vmem:[#allocation2 + $0x90] sm:$0xff] %vm797, %v771
      %814 = vst.msk [vmem:[#allocation2 + $0x98] sm:$0xff] %vm797, %v772
      %815 = vst.msk [vmem:[#allocation2 + $0xa0] sm:$0xff] %vm797, %v773
      %816 = vst.msk [vmem:[#allocation2 + $0xa8] sm:$0xff] %vm797, %v774
      %817 = vst.msk [vmem:[#allocation2 + $0xb0] sm:$0xff] %vm797, %v775
      %818 = vst.msk [vmem:[#allocation2 + $0xb8] sm:$0xff] %vm797, %v776
      %819 = vst.msk [vmem:[#allocation2 + $0xc0] sm:$0xff] %vm797, %v777
      %820 = vst.msk [vmem:[#allocation2 + $0xc8] sm:$0xff] %vm797, %v778
      %821 = vst.msk [vmem:[#allocation2 + $0xd0] sm:$0xff] %vm797, %v779
      %822 = vst.msk [vmem:[#allocation2 + $0xd8] sm:$0xff] %vm797, %v780
      %823 = vst.msk [vmem:[#allocation2 + $0xe0] sm:$0xff] %vm797, %v781
      %824 = vst.msk [vmem:[#allocation2 + $0xe8] sm:$0xff] %vm797, %v782
      %825 = vst.msk [vmem:[#allocation2 + $0xf0] sm:$0xff] %vm797, %v783
      %826 = vst.msk [vmem:[#allocation2 + $0xf8] sm:$0xff] %vm797, %v784
      %827 = vst.msk [vmem:[#allocation2 + $0x100] sm:$0xff] %vm797, %v785
      %828 = vst.msk [vmem:[#allocation2 + $0x108] sm:$0xff] %vm797, %v786
      %829 = vst.msk [vmem:[#allocation2 + $0x110] sm:$0xff] %vm797, %v787
      %830 = vst.msk [vmem:[#allocation2 + $0x118] sm:$0xff] %vm797, %v788
      %831 = vst.msk [vmem:[#allocation2 + $0x120] sm:$0xff] %vm797, %v789
      %832 = vst.msk [vmem:[#allocation2 + $0x128] sm:$0xff] %vm797, %v790
      %833 = vst.msk [vmem:[#allocation2 + $0x130] sm:$0xff] %vm797, %v791
      %834 = vst.msk [vmem:[#allocation2 + $0x138] sm:$0xff] %vm797, %v792
      %835 = vst.msk [vmem:[#allocation2 + $0x140] sm:$0xff] %vm797, %v793
      %836 = vst.msk [vmem:[#allocation2 + $0x148] sm:$0xff] %vm797, %v794
      %837 = vst.msk [vmem:[#allocation2 + $0x150] sm:$0xff] %vm797, %v795
      %838 = vst.msk [vmem:[#allocation2 + $0x158] sm:$0xff] %vm797, %v796
      %839 = vst.msk [vmem:[#allocation2] sm:$0xff] %vm797, 0.0
      %840 = vst.msk [vmem:[#allocation2 + $0x8] sm:$0xff] %vm797, 0.0
      %841 = vst.msk [vmem:[#allocation2 + $0x10] sm:$0xff] %vm797, 0.0
      %842 = vst.msk [vmem:[#allocation2 + $0x160] sm:$0xff] %vm797, 0.0
      %843 = vst.msk [vmem:[#allocation2 + $0x168] sm:$0xff] %vm797, 0.0
      %844 = vst.msk [vmem:[#allocation2 + $0x170] sm:$0xff] %vm797, 0.0
      %v845 = vld [vmem:[#allocation2 + $0x5] sm:$0xff]
      %v846 = vld [vmem:[#allocation2 + $0xd] sm:$0xff]
      %v847 = vld [vmem:[#allocation2 + $0x15] sm:$0xff]
      %v848 = vld [vmem:[#allocation2 + $0x1d] sm:$0xff]
      %v849 = vld [vmem:[#allocation2 + $0x25] sm:$0xff]
      %v850 = vld [vmem:[#allocation2 + $0x2d] sm:$0xff]
      %v851 = vld [vmem:[#allocation2 + $0x35] sm:$0xff]
      %v852 = vld [vmem:[#allocation2 + $0x3d] sm:$0xff]
      %v853 = vld [vmem:[#allocation2 + $0x45] sm:$0xff]
      %v854 = vld [vmem:[#allocation2 + $0x4d] sm:$0xff]
      %v855 = vld [vmem:[#allocation2 + $0x55] sm:$0xff]
      %v856 = vld [vmem:[#allocation2 + $0x5d] sm:$0xff]
      %v857 = vld [vmem:[#allocation2 + $0x65] sm:$0xff]
      %v858 = vld [vmem:[#allocation2 + $0x6d] sm:$0xff]
      %v859 = vld [vmem:[#allocation2 + $0x75] sm:$0xff]
      %v860 = vld [vmem:[#allocation2 + $0x7d] sm:$0xff]
      %v861 = vld [vmem:[#allocation2 + $0x85] sm:$0xff]
      %v862 = vld [vmem:[#allocation2 + $0x8d] sm:$0xff]
      %v863 = vld [vmem:[#allocation2 + $0x95] sm:$0xff]
      %v864 = vld [vmem:[#allocation2 + $0x9d] sm:$0xff]
      %v865 = vld [vmem:[#allocation2 + $0xa5] sm:$0xff]
      %v866 = vld [vmem:[#allocation2 + $0xad] sm:$0xff]
      %v867 = vld [vmem:[#allocation2 + $0xb5] sm:$0xff]
      %v868 = vld [vmem:[#allocation2 + $0xbd] sm:$0xff]
      %v869 = vld [vmem:[#allocation2 + $0xc5] sm:$0xff]
      %v870 = vld [vmem:[#allocation2 + $0xcd] sm:$0xff]
      %v871 = vld [vmem:[#allocation2 + $0xd5] sm:$0xff]
      %v872 = vld [vmem:[#allocation2 + $0xdd] sm:$0xff]
      %v873 = vld [vmem:[#allocation2 + $0xe5] sm:$0xff]
      %v874 = vld [vmem:[#allocation2 + $0xed] sm:$0xff]
      %v875 = vld [vmem:[#allocation2 + $0xf5] sm:$0xff]
      %v876 = vld [vmem:[#allocation2 + $0xfd] sm:$0xff]
      %v877 = vld [vmem:[#allocation2 + $0x105] sm:$0xff]
      %v878 = vld [vmem:[#allocation2 + $0x10d] sm:$0xff]
      %v879 = vld [vmem:[#allocation2 + $0x115] sm:$0xff]
      %v880 = vld [vmem:[#allocation2 + $0x11d] sm:$0xff]
      %v881 = vld [vmem:[#allocation2 + $0x125] sm:$0xff]
      %v882 = vld [vmem:[#allocation2 + $0x12d] sm:$0xff]
      %v883 = vld [vmem:[#allocation2 + $0x135] sm:$0xff]
      %v884 = vld [vmem:[#allocation2 + $0x13d] sm:$0xff]
      %v885 = vld [vmem:[#allocation2 + $0x145] sm:$0xff]
      %v886 = vpack.c.bf16 %v845, %v845
      %v887 = vpack.c.bf16 %v846, %v846
      %v888 = vpack.c.bf16 %v847, %v847
      %v889 = vpack.c.bf16 %v848, %v848
      %v890 = vpack.c.bf16 %v849, %v849
      %v891 = vpack.c.bf16 %v850, %v850
      %v892 = vpack.c.bf16 %v851, %v851
      %v893 = vpack.c.bf16 %v852, %v852
      %v894 = vpack.c.bf16 %v853, %v853
      %v895 = vpack.c.bf16 %v854, %v854
      %v896 = vpack.c.bf16 %v855, %v855
      %v897 = vpack.c.bf16 %v856, %v856
      %v898 = vpack.c.bf16 %v857, %v857
      %v899 = vpack.c.bf16 %v858, %v858
      %v900 = vpack.c.bf16 %v859, %v859
      %v901 = vpack.c.bf16 %v860, %v860
      %v902 = vpack.c.bf16 %v861, %v861
      %v903 = vpack.c.bf16 %v862, %v862
      %v904 = vpack.c.bf16 %v863, %v863
      %v905 = vpack.c.bf16 %v864, %v864
      %v906 = vpack.c.bf16 %v865, %v865
      %v907 = vpack.c.bf16 %v866, %v866
      %v908 = vpack.c.bf16 %v867, %v867
      %v909 = vpack.c.bf16 %v868, %v868
      %v910 = vpack.c.bf16 %v869, %v869
      %v911 = vpack.c.bf16 %v870, %v870
      %v912 = vpack.c.bf16 %v871, %v871
      %v913 = vpack.c.bf16 %v872, %v872
      %v914 = vpack.c.bf16 %v873, %v873
      %v915 = vpack.c.bf16 %v874, %v874
      %v916 = vpack.c.bf16 %v875, %v875
      %v917 = vpack.c.bf16 %v876, %v876
      %v918 = vpack.c.bf16 %v877, %v877
      %v919 = vpack.c.bf16 %v878, %v878
      %v920 = vpack.c.bf16 %v879, %v879
      %v921 = vpack.c.bf16 %v880, %v880
      %v922 = vpack.c.bf16 %v881, %v881
      %v923 = vpack.c.bf16 %v882, %v882
      %v924 = vpack.c.bf16 %v883, %v883
      %v925 = vpack.c.bf16 %v884, %v884
      %v926 = vpack.c.bf16 %v885, %v885
      %vm927 = vcmask 60416
      %928 = vst.msk [vmem:[#allocation3] sm:$0xf] %vm927, %v886
      %929 = vst.msk [vmem:[#allocation3 + $0x4] sm:$0xf] %vm927, %v887
      %930 = vst.msk [vmem:[#allocation3 + $0x8] sm:$0xf] %vm927, %v888
      %931 = vst.msk [vmem:[#allocation3 + $0xc] sm:$0xf] %vm927, %v889
      %932 = vst.msk [vmem:[#allocation3 + $0x10] sm:$0xf] %vm927, %v890
      %933 = vst.msk [vmem:[#allocation3 + $0x14] sm:$0xf] %vm927, %v891
      %934 = vst.msk [vmem:[#allocation3 + $0x18] sm:$0xf] %vm927, %v892
      %935 = vst.msk [vmem:[#allocation3 + $0x1c] sm:$0xf] %vm927, %v893
      %936 = vst.msk [vmem:[#allocation3 + $0x20] sm:$0xf] %vm927, %v894
      %937 = vst.msk [vmem:[#allocation3 + $0x24] sm:$0xf] %vm927, %v895
      %938 = vst.msk [vmem:[#allocation3 + $0x28] sm:$0xf] %vm927, %v896
      %939 = vst.msk [vmem:[#allocation3 + $0x2c] sm:$0xf] %vm927, %v897
      %940 = vst.msk [vmem:[#allocation3 + $0x30] sm:$0xf] %vm927, %v898
      %941 = vst.msk [vmem:[#allocation3 + $0x34] sm:$0xf] %vm927, %v899
      %942 = vst.msk [vmem:[#allocation3 + $0x38] sm:$0xf] %vm927, %v900
      %943 = vst.msk [vmem:[#allocation3 + $0x3c] sm:$0xf] %vm927, %v901
      %944 = vst.msk [vmem:[#allocation3 + $0x40] sm:$0xf] %vm927, %v902
      %945 = vst.msk [vmem:[#allocation3 + $0x44] sm:$0xf] %vm927, %v903
      %946 = vst.msk [vmem:[#allocation3 + $0x48] sm:$0xf] %vm927, %v904
      %947 = vst.msk [vmem:[#allocation3 + $0x4c] sm:$0xf] %vm927, %v905
      %948 = vst.msk [vmem:[#allocation3 + $0x50] sm:$0xf] %vm927, %v906
      %949 = vst.msk [vmem:[#allocation3 + $0x54] sm:$0xf] %vm927, %v907
      %950 = vst.msk [vmem:[#allocation3 + $0x58] sm:$0xf] %vm927, %v908
      %951 = vst.msk [vmem:[#allocation3 + $0x5c] sm:$0xf] %vm927, %v909
      %952 = vst.msk [vmem:[#allocation3 + $0x60] sm:$0xf] %vm927, %v910
      %953 = vst.msk [vmem:[#allocation3 + $0x64] sm:$0xf] %vm927, %v911
      %954 = vst.msk [vmem:[#allocation3 + $0x68] sm:$0xf] %vm927, %v912
      %955 = vst.msk [vmem:[#allocation3 + $0x6c] sm:$0xf] %vm927, %v913
      %956 = vst.msk [vmem:[#allocation3 + $0x70] sm:$0xf] %vm927, %v914
      %957 = vst.msk [vmem:[#allocation3 + $0x74] sm:$0xf] %vm927, %v915
      %958 = vst.msk [vmem:[#allocation3 + $0x78] sm:$0xf] %vm927, %v916
      %959 = vst.msk [vmem:[#allocation3 + $0x7c] sm:$0xf] %vm927, %v917
      %960 = vst.msk [vmem:[#allocation3 + $0x80] sm:$0xf] %vm927, %v918
      %961 = vst.msk [vmem:[#allocation3 + $0x84] sm:$0xf] %vm927, %v919
      %962 = vst.msk [vmem:[#allocation3 + $0x88] sm:$0xf] %vm927, %v920
      %963 = vst.msk [vmem:[#allocation3 + $0x8c] sm:$0xf] %vm927, %v921
      %964 = vst.msk [vmem:[#allocation3 + $0x90] sm:$0xf] %vm927, %v922
      %965 = vst.msk [vmem:[#allocation3 + $0x94] sm:$0xf] %vm927, %v923
      %966 = vst.msk [vmem:[#allocation3 + $0x98] sm:$0xf] %vm927, %v924
      %967 = vst.msk [vmem:[#allocation3 + $0x9c] sm:$0xf] %vm927, %v925
      %968 = vst.msk [vmem:[#allocation3 + $0xa0] sm:$0xf] %vm927, %v926
      %v969 = vld [vmem:[#allocation2 + $0x6] sm:$0xff]
      %v970 = vld [vmem:[#allocation2 + $0xe] sm:$0xff]
      %v971 = vld [vmem:[#allocation2 + $0x16] sm:$0xff]
      %v972 = vld [vmem:[#allocation2 + $0x1e] sm:$0xff]
      %v973 = vld [vmem:[#allocation2 + $0x26] sm:$0xff]
      %v974 = vld [vmem:[#allocation2 + $0x2e] sm:$0xff]
      %v975 = vld [vmem:[#allocation2 + $0x36] sm:$0xff]
      %v976 = vld [vmem:[#allocation2 + $0x3e] sm:$0xff]
      %v977 = vld [vmem:[#allocation2 + $0x46] sm:$0xff]
      %v978 = vld [vmem:[#allocation2 + $0x4e] sm:$0xff]
      %v979 = vld [vmem:[#allocation2 + $0x56] sm:$0xff]
      %v980 = vld [vmem:[#allocation2 + $0x5e] sm:$0xff]
      %v981 = vld [vmem:[#allocation2 + $0x66] sm:$0xff]
      %v982 = vld [vmem:[#allocation2 + $0x6e] sm:$0xff]
      %v983 = vld [vmem:[#allocation2 + $0x76] sm:$0xff]
      %v984 = vld [vmem:[#allocation2 + $0x7e] sm:$0xff]
      %v985 = vld [vmem:[#allocation2 + $0x86] sm:$0xff]
      %v986 = vld [vmem:[#allocation2 + $0x8e] sm:$0xff]
      %v987 = vld [vmem:[#allocation2 + $0x96] sm:$0xff]
      %v988 = vld [vmem:[#allocation2 + $0x9e] sm:$0xff]
      %v989 = vld [vmem:[#allocation2 + $0xa6] sm:$0xff]
      %v990 = vld [vmem:[#allocation2 + $0xae] sm:$0xff]
      %v991 = vld [vmem:[#allocation2 + $0xb6] sm:$0xff]
      %v992 = vld [vmem:[#allocation2 + $0xbe] sm:$0xff]
      %v993 = vld [vmem:[#allocation2 + $0xc6] sm:$0xff]
      %v994 = vld [vmem:[#allocation2 + $0xce] sm:$0xff]
      %v995 = vld [vmem:[#allocation2 + $0xd6] sm:$0xff]
      %v996 = vld [vmem:[#allocation2 + $0xde] sm:$0xff]
      %v997 = vld [vmem:[#allocation2 + $0xe6] sm:$0xff]
      %v998 = vld [vmem:[#allocation2 + $0xee] sm:$0xff]
      %v999 = vld [vmem:[#allocation2 + $0xf6] sm:$0xff]
      %v1000 = vld [vmem:[#allocation2 + $0xfe] sm:$0xff]
      %v1001 = vld [vmem:[#allocation2 + $0x106] sm:$0xff]
      %v1002 = vld [vmem:[#allocation2 + $0x10e] sm:$0xff]
      %v1003 = vld [vmem:[#allocation2 + $0x116] sm:$0xff]
      %v1004 = vld [vmem:[#allocation2 + $0x11e] sm:$0xff]
      %v1005 = vld [vmem:[#allocation2 + $0x126] sm:$0xff]
      %v1006 = vld [vmem:[#allocation2 + $0x12e] sm:$0xff]
      %v1007 = vld [vmem:[#allocation2 + $0x136] sm:$0xff]
      %v1008 = vld [vmem:[#allocation2 + $0x13e] sm:$0xff]
      %v1009 = vld [vmem:[#allocation2 + $0x146] sm:$0xff]
      %v1010 = vpack.c.bf16 %v969, %v969
      %v1011 = vpack.c.bf16 %v970, %v970
      %v1012 = vpack.c.bf16 %v971, %v971
      %v1013 = vpack.c.bf16 %v972, %v972
      %v1014 = vpack.c.bf16 %v973, %v973
      %v1015 = vpack.c.bf16 %v974, %v974
      %v1016 = vpack.c.bf16 %v975, %v975
      %v1017 = vpack.c.bf16 %v976, %v976
      %v1018 = vpack.c.bf16 %v977, %v977
      %v1019 = vpack.c.bf16 %v978, %v978
      %v1020 = vpack.c.bf16 %v979, %v979
      %v1021 = vpack.c.bf16 %v980, %v980
      %v1022 = vpack.c.bf16 %v981, %v981
      %v1023 = vpack.c.bf16 %v982, %v982
      %v1024 = vpack.c.bf16 %v983, %v983
      %v1025 = vpack.c.bf16 %v984, %v984
      %v1026 = vpack.c.bf16 %v985, %v985
      %v1027 = vpack.c.bf16 %v986, %v986
      %v1028 = vpack.c.bf16 %v987, %v987
      %v1029 = vpack.c.bf16 %v988, %v988
      %v1030 = vpack.c.bf16 %v989, %v989
      %v1031 = vpack.c.bf16 %v990, %v990
      %v1032 = vpack.c.bf16 %v991, %v991
      %v1033 = vpack.c.bf16 %v992, %v992
      %v1034 = vpack.c.bf16 %v993, %v993
      %v1035 = vpack.c.bf16 %v994, %v994
      %v1036 = vpack.c.bf16 %v995, %v995
      %v1037 = vpack.c.bf16 %v996, %v996
      %v1038 = vpack.c.bf16 %v997, %v997
      %v1039 = vpack.c.bf16 %v998, %v998
      %v1040 = vpack.c.bf16 %v999, %v999
      %v1041 = vpack.c.bf16 %v1000, %v1000
      %v1042 = vpack.c.bf16 %v1001, %v1001
      %v1043 = vpack.c.bf16 %v1002, %v1002
      %v1044 = vpack.c.bf16 %v1003, %v1003
      %v1045 = vpack.c.bf16 %v1004, %v1004
      %v1046 = vpack.c.bf16 %v1005, %v1005
      %v1047 = vpack.c.bf16 %v1006, %v1006
      %v1048 = vpack.c.bf16 %v1007, %v1007
      %v1049 = vpack.c.bf16 %v1008, %v1008
      %v1050 = vpack.c.bf16 %v1009, %v1009
      %1092 = vrot.lane.b32.xlu0 %v1010, 8
      %v1093 = vpop.permute.xlu0 %1092
      %1094 = vrot.lane.b32.xlu0 %v1011, 8
      %v1095 = vpop.permute.xlu0 %1094
      %1096 = vrot.lane.b32.xlu0 %v1012, 8
      %v1097 = vpop.permute.xlu0 %1096
      %1098 = vrot.lane.b32.xlu0 %v1013, 8
      %v1099 = vpop.permute.xlu0 %1098
      %1100 = vrot.lane.b32.xlu0 %v1014, 8
      %v1101 = vpop.permute.xlu0 %1100
      %1102 = vrot.lane.b32.xlu0 %v1015, 8
      %v1103 = vpop.permute.xlu0 %1102
      %1104 = vrot.lane.b32.xlu0 %v1016, 8
      %v1105 = vpop.permute.xlu0 %1104
      %1106 = vrot.lane.b32.xlu0 %v1017, 8
      %v1107 = vpop.permute.xlu0 %1106
      %1108 = vrot.lane.b32.xlu0 %v1018, 8
      %v1109 = vpop.permute.xlu0 %1108
      %1110 = vrot.lane.b32.xlu0 %v1019, 8
      %v1111 = vpop.permute.xlu0 %1110
      %1112 = vrot.lane.b32.xlu0 %v1020, 8
      %v1113 = vpop.permute.xlu0 %1112
      %1114 = vrot.lane.b32.xlu0 %v1021, 8
      %v1115 = vpop.permute.xlu0 %1114
      %1116 = vrot.lane.b32.xlu0 %v1022, 8
      %v1117 = vpop.permute.xlu0 %1116
      %1118 = vrot.lane.b32.xlu0 %v1023, 8
      %v1119 = vpop.permute.xlu0 %1118
      %1120 = vrot.lane.b32.xlu0 %v1024, 8
      %v1121 = vpop.permute.xlu0 %1120
      %1122 = vrot.lane.b32.xlu0 %v1025, 8
      %v1123 = vpop.permute.xlu0 %1122
      %1124 = vrot.lane.b32.xlu0 %v1026, 8
      %v1125 = vpop.permute.xlu0 %1124
      %1126 = vrot.lane.b32.xlu0 %v1027, 8
      %v1127 = vpop.permute.xlu0 %1126
      %1128 = vrot.lane.b32.xlu0 %v1028, 8
      %v1129 = vpop.permute.xlu0 %1128
      %1130 = vrot.lane.b32.xlu0 %v1029, 8
      %v1131 = vpop.permute.xlu0 %1130
      %1132 = vrot.lane.b32.xlu0 %v1030, 8
      %v1133 = vpop.permute.xlu0 %1132
      %1134 = vrot.lane.b32.xlu0 %v1031, 8
      %v1135 = vpop.permute.xlu0 %1134
      %1136 = vrot.lane.b32.xlu0 %v1032, 8
      %v1137 = vpop.permute.xlu0 %1136
      %1138 = vrot.lane.b32.xlu0 %v1033, 8
      %v1139 = vpop.permute.xlu0 %1138
      %1140 = vrot.lane.b32.xlu0 %v1034, 8
      %v1141 = vpop.permute.xlu0 %1140
      %1142 = vrot.lane.b32.xlu0 %v1035, 8
      %v1143 = vpop.permute.xlu0 %1142
      %1144 = vrot.lane.b32.xlu0 %v1036, 8
      %v1145 = vpop.permute.xlu0 %1144
      %1146 = vrot.lane.b32.xlu0 %v1037, 8
      %v1147 = vpop.permute.xlu0 %1146
      %1148 = vrot.lane.b32.xlu0 %v1038, 8
      %v1149 = vpop.permute.xlu0 %1148
      %1150 = vrot.lane.b32.xlu0 %v1039, 8
      %v1151 = vpop.permute.xlu0 %1150
      %1152 = vrot.lane.b32.xlu0 %v1040, 8
      %v1153 = vpop.permute.xlu0 %1152
      %1154 = vrot.lane.b32.xlu0 %v1041, 8
      %v1155 = vpop.permute.xlu0 %1154
      %1156 = vrot.lane.b32.xlu0 %v1042, 8
      %v1157 = vpop.permute.xlu0 %1156
      %1158 = vrot.lane.b32.xlu0 %v1043, 8
      %v1159 = vpop.permute.xlu0 %1158
      %1160 = vrot.lane.b32.xlu0 %v1044, 8
      %v1161 = vpop.permute.xlu0 %1160
      %1162 = vrot.lane.b32.xlu0 %v1045, 8
      %v1163 = vpop.permute.xlu0 %1162
      %1164 = vrot.lane.b32.xlu0 %v1046, 8
      %v1165 = vpop.permute.xlu0 %1164
      %1166 = vrot.lane.b32.xlu0 %v1047, 8
      %v1167 = vpop.permute.xlu0 %1166
      %1168 = vrot.lane.b32.xlu0 %v1048, 8
      %v1169 = vpop.permute.xlu0 %1168
      %1170 = vrot.lane.b32.xlu0 %v1049, 8
      %v1171 = vpop.permute.xlu0 %1170
      %1172 = vrot.lane.b32.xlu0 %v1050, 8
      %v1173 = vpop.permute.xlu0 %1172
      %vm1215 = vcmask 126016
      %1216 = vst.msk [vmem:[#allocation3] sm:$0xf] %vm1215, %v1093
      %1217 = vst.msk [vmem:[#allocation3 + $0x4] sm:$0xf] %vm1215, %v1095
      %1218 = vst.msk [vmem:[#allocation3 + $0x8] sm:$0xf] %vm1215, %v1097
      %1219 = vst.msk [vmem:[#allocation3 + $0xc] sm:$0xf] %vm1215, %v1099
      %1220 = vst.msk [vmem:[#allocation3 + $0x10] sm:$0xf] %vm1215, %v1101
      %1221 = vst.msk [vmem:[#allocation3 + $0x14] sm:$0xf] %vm1215, %v1103
      %1222 = vst.msk [vmem:[#allocation3 + $0x18] sm:$0xf] %vm1215, %v1105
      %1223 = vst.msk [vmem:[#allocation3 + $0x1c] sm:$0xf] %vm1215, %v1107
      %1224 = vst.msk [vmem:[#allocation3 + $0x20] sm:$0xf] %vm1215, %v1109
      %1225 = vst.msk [vmem:[#allocation3 + $0x24] sm:$0xf] %vm1215, %v1111
      %1226 = vst.msk [vmem:[#allocation3 + $0x28] sm:$0xf] %vm1215, %v1113
      %1227 = vst.msk [vmem:[#allocation3 + $0x2c] sm:$0xf] %vm1215, %v1115
      %1228 = vst.msk [vmem:[#allocation3 + $0x30] sm:$0xf] %vm1215, %v1117
      %1229 = vst.msk [vmem:[#allocation3 + $0x34] sm:$0xf] %vm1215, %v1119
      %1230 = vst.msk [vmem:[#allocation3 + $0x38] sm:$0xf] %vm1215, %v1121
      %1231 = vst.msk [vmem:[#allocation3 + $0x3c] sm:$0xf] %vm1215, %v1123
      %1232 = vst.msk [vmem:[#allocation3 + $0x40] sm:$0xf] %vm1215, %v1125
      %1233 = vst.msk [vmem:[#allocation3 + $0x44] sm:$0xf] %vm1215, %v1127
      %1234 = vst.msk [vmem:[#allocation3 + $0x48] sm:$0xf] %vm1215, %v1129
      %1235 = vst.msk [vmem:[#allocation3 + $0x4c] sm:$0xf] %vm1215, %v1131
      %1236 = vst.msk [vmem:[#allocation3 + $0x50] sm:$0xf] %vm1215, %v1133
      %1237 = vst.msk [vmem:[#allocation3 + $0x54] sm:$0xf] %vm1215, %v1135
      %1238 = vst.msk [vmem:[#allocation3 + $0x58] sm:$0xf] %vm1215, %v1137
      %1239 = vst.msk [vmem:[#allocation3 + $0x5c] sm:$0xf] %vm1215, %v1139
      %1240 = vst.msk [vmem:[#allocation3 + $0x60] sm:$0xf] %vm1215, %v1141
      %1241 = vst.msk [vmem:[#allocation3 + $0x64] sm:$0xf] %vm1215, %v1143
      %1242 = vst.msk [vmem:[#allocation3 + $0x68] sm:$0xf] %vm1215, %v1145
      %1243 = vst.msk [vmem:[#allocation3 + $0x6c] sm:$0xf] %vm1215, %v1147
      %1244 = vst.msk [vmem:[#allocation3 + $0x70] sm:$0xf] %vm1215, %v1149
      %1245 = vst.msk [vmem:[#allocation3 + $0x74] sm:$0xf] %vm1215, %v1151
      %1246 = vst.msk [vmem:[#allocation3 + $0x78] sm:$0xf] %vm1215, %v1153
      %1247 = vst.msk [vmem:[#allocation3 + $0x7c] sm:$0xf] %vm1215, %v1155
      %1248 = vst.msk [vmem:[#allocation3 + $0x80] sm:$0xf] %vm1215, %v1157
      %1249 = vst.msk [vmem:[#allocation3 + $0x84] sm:$0xf] %vm1215, %v1159
      %1250 = vst.msk [vmem:[#allocation3 + $0x88] sm:$0xf] %vm1215, %v1161
      %1251 = vst.msk [vmem:[#allocation3 + $0x8c] sm:$0xf] %vm1215, %v1163
      %1252 = vst.msk [vmem:[#allocation3 + $0x90] sm:$0xf] %vm1215, %v1165
      %1253 = vst.msk [vmem:[#allocation3 + $0x94] sm:$0xf] %vm1215, %v1167
      %1254 = vst.msk [vmem:[#allocation3 + $0x98] sm:$0xf] %vm1215, %v1169
      %1255 = vst.msk [vmem:[#allocation3 + $0x9c] sm:$0xf] %vm1215, %v1171
      %1256 = vst.msk [vmem:[#allocation3 + $0xa0] sm:$0xf] %vm1215, %v1173
      %v1257 = vld [vmem:[#allocation2 + $0x7] sm:$0xff]
      %v1258 = vld [vmem:[#allocation2 + $0xf] sm:$0xff]
      %v1259 = vld [vmem:[#allocation2 + $0x17] sm:$0xff]
      %v1260 = vld [vmem:[#allocation2 + $0x1f] sm:$0xff]
      %v1261 = vld [vmem:[#allocation2 + $0x27] sm:$0xff]
      %v1262 = vld [vmem:[#allocation2 + $0x2f] sm:$0xff]
      %v1263 = vld [vmem:[#allocation2 + $0x37] sm:$0xff]
      %v1264 = vld [vmem:[#allocation2 + $0x3f] sm:$0xff]
      %v1265 = vld [vmem:[#allocation2 + $0x47] sm:$0xff]
      %v1266 = vld [vmem:[#allocation2 + $0x4f] sm:$0xff]
      %v1267 = vld [vmem:[#allocation2 + $0x57] sm:$0xff]
      %v1268 = vld [vmem:[#allocation2 + $0x5f] sm:$0xff]
      %v1269 = vld [vmem:[#allocation2 + $0x67] sm:$0xff]
      %v1270 = vld [vmem:[#allocation2 + $0x6f] sm:$0xff]
      %v1271 = vld [vmem:[#allocation2 + $0x77] sm:$0xff]
      %v1272 = vld [vmem:[#allocation2 + $0x7f] sm:$0xff]
      %v1273 = vld [vmem:[#allocation2 + $0x87] sm:$0xff]
      %v1274 = vld [vmem:[#allocation2 + $0x8f] sm:$0xff]
      %v1275 = vld [vmem:[#allocation2 + $0x97] sm:$0xff]
      %v1276 = vld [vmem:[#allocation2 + $0x9f] sm:$0xff]
      %v1277 = vld [vmem:[#allocation2 + $0xa7] sm:$0xff]
      %v1278 = vld [vmem:[#allocation2 + $0xaf] sm:$0xff]
      %v1279 = vld [vmem:[#allocation2 + $0xb7] sm:$0xff]
      %v1280 = vld [vmem:[#allocation2 + $0xbf] sm:$0xff]
      %v1281 = vld [vmem:[#allocation2 + $0xc7] sm:$0xff]
      %v1282 = vld [vmem:[#allocation2 + $0xcf] sm:$0xff]
      %v1283 = vld [vmem:[#allocation2 + $0xd7] sm:$0xff]
      %v1284 = vld [vmem:[#allocation2 + $0xdf] sm:$0xff]
      %v1285 = vld [vmem:[#allocation2 + $0xe7] sm:$0xff]
      %v1286 = vld [vmem:[#allocation2 + $0xef] sm:$0xff]
      %v1287 = vld [vmem:[#allocation2 + $0xf7] sm:$0xff]
      %v1288 = vld [vmem:[#allocation2 + $0xff] sm:$0xff]
      %v1289 = vld [vmem:[#allocation2 + $0x107] sm:$0xff]
      %v1290 = vld [vmem:[#allocation2 + $0x10f] sm:$0xff]
      %v1291 = vld [vmem:[#allocation2 + $0x117] sm:$0xff]
      %v1292 = vld [vmem:[#allocation2 + $0x11f] sm:$0xff]
      %v1293 = vld [vmem:[#allocation2 + $0x127] sm:$0xff]
      %v1294 = vld [vmem:[#allocation2 + $0x12f] sm:$0xff]
      %v1295 = vld [vmem:[#allocation2 + $0x137] sm:$0xff]
      %v1296 = vld [vmem:[#allocation2 + $0x13f] sm:$0xff]
      %v1297 = vld [vmem:[#allocation2 + $0x147] sm:$0xff]
      %v1298 = vpack.c.bf16 %v1257, %v1257
      %v1299 = vpack.c.bf16 %v1258, %v1258
      %v1300 = vpack.c.bf16 %v1259, %v1259
      %v1301 = vpack.c.bf16 %v1260, %v1260
      %v1302 = vpack.c.bf16 %v1261, %v1261
      %v1303 = vpack.c.bf16 %v1262, %v1262
      %v1304 = vpack.c.bf16 %v1263, %v1263
      %v1305 = vpack.c.bf16 %v1264, %v1264
      %v1306 = vpack.c.bf16 %v1265, %v1265
      %v1307 = vpack.c.bf16 %v1266, %v1266
      %v1308 = vpack.c.bf16 %v1267, %v1267
      %v1309 = vpack.c.bf16 %v1268, %v1268
      %v1310 = vpack.c.bf16 %v1269, %v1269
      %v1311 = vpack.c.bf16 %v1270, %v1270
      %v1312 = vpack.c.bf16 %v1271, %v1271
      %v1313 = vpack.c.bf16 %v1272, %v1272
      %v1314 = vpack.c.bf16 %v1273, %v1273
      %v1315 = vpack.c.bf16 %v1274, %v1274
      %v1316 = vpack.c.bf16 %v1275, %v1275
      %v1317 = vpack.c.bf16 %v1276, %v1276
      %v1318 = vpack.c.bf16 %v1277, %v1277
      %v1319 = vpack.c.bf16 %v1278, %v1278
      %v1320 = vpack.c.bf16 %v1279, %v1279
      %v1321 = vpack.c.bf16 %v1280, %v1280
      %v1322 = vpack.c.bf16 %v1281, %v1281
      %v1323 = vpack.c.bf16 %v1282, %v1282
      %v1324 = vpack.c.bf16 %v1283, %v1283
      %v1325 = vpack.c.bf16 %v1284, %v1284
      %v1326 = vpack.c.bf16 %v1285, %v1285
      %v1327 = vpack.c.bf16 %v1286, %v1286
      %v1328 = vpack.c.bf16 %v1287, %v1287
      %v1329 = vpack.c.bf16 %v1288, %v1288
      %v1330 = vpack.c.bf16 %v1289, %v1289
      %v1331 = vpack.c.bf16 %v1290, %v1290
      %v1332 = vpack.c.bf16 %v1291, %v1291
      %v1333 = vpack.c.bf16 %v1292, %v1292
      %v1334 = vpack.c.bf16 %v1293, %v1293
      %v1335 = vpack.c.bf16 %v1294, %v1294
      %v1336 = vpack.c.bf16 %v1295, %v1295
      %v1337 = vpack.c.bf16 %v1296, %v1296
      %v1338 = vpack.c.bf16 %v1297, %v1297
      %1380 = vrot.lane.b32.xlu0 %v1298, 16
      %v1381 = vpop.permute.xlu0 %1380
      %1382 = vrot.lane.b32.xlu0 %v1299, 16
      %v1383 = vpop.permute.xlu0 %1382
      %1384 = vrot.lane.b32.xlu0 %v1300, 16
      %v1385 = vpop.permute.xlu0 %1384
      %1386 = vrot.lane.b32.xlu0 %v1301, 16
      %v1387 = vpop.permute.xlu0 %1386
      %1388 = vrot.lane.b32.xlu0 %v1302, 16
      %v1389 = vpop.permute.xlu0 %1388
      %1390 = vrot.lane.b32.xlu0 %v1303, 16
      %v1391 = vpop.permute.xlu0 %1390
      %1392 = vrot.lane.b32.xlu0 %v1304, 16
      %v1393 = vpop.permute.xlu0 %1392
      %1394 = vrot.lane.b32.xlu0 %v1305, 16
      %v1395 = vpop.permute.xlu0 %1394
      %1396 = vrot.lane.b32.xlu0 %v1306, 16
      %v1397 = vpop.permute.xlu0 %1396
      %1398 = vrot.lane.b32.xlu0 %v1307, 16
      %v1399 = vpop.permute.xlu0 %1398
      %1400 = vrot.lane.b32.xlu0 %v1308, 16
      %v1401 = vpop.permute.xlu0 %1400
      %1402 = vrot.lane.b32.xlu0 %v1309, 16
      %v1403 = vpop.permute.xlu0 %1402
      %1404 = vrot.lane.b32.xlu0 %v1310, 16
      %v1405 = vpop.permute.xlu0 %1404
      %1406 = vrot.lane.b32.xlu0 %v1311, 16
      %v1407 = vpop.permute.xlu0 %1406
      %1408 = vrot.lane.b32.xlu0 %v1312, 16
      %v1409 = vpop.permute.xlu0 %1408
      %1410 = vrot.lane.b32.xlu0 %v1313, 16
      %v1411 = vpop.permute.xlu0 %1410
      %1412 = vrot.lane.b32.xlu0 %v1314, 16
      %v1413 = vpop.permute.xlu0 %1412
      %1414 = vrot.lane.b32.xlu0 %v1315, 16
      %v1415 = vpop.permute.xlu0 %1414
      %1416 = vrot.lane.b32.xlu0 %v1316, 16
      %v1417 = vpop.permute.xlu0 %1416
      %1418 = vrot.lane.b32.xlu0 %v1317, 16
      %v1419 = vpop.permute.xlu0 %1418
      %1420 = vrot.lane.b32.xlu0 %v1318, 16
      %v1421 = vpop.permute.xlu0 %1420
      %1422 = vrot.lane.b32.xlu0 %v1319, 16
      %v1423 = vpop.permute.xlu0 %1422
      %1424 = vrot.lane.b32.xlu0 %v1320, 16
      %v1425 = vpop.permute.xlu0 %1424
      %1426 = vrot.lane.b32.xlu0 %v1321, 16
      %v1427 = vpop.permute.xlu0 %1426
      %1428 = vrot.lane.b32.xlu0 %v1322, 16
      %v1429 = vpop.permute.xlu0 %1428
      %1430 = vrot.lane.b32.xlu0 %v1323, 16
      %v1431 = vpop.permute.xlu0 %1430
      %1432 = vrot.lane.b32.xlu0 %v1324, 16
      %v1433 = vpop.permute.xlu0 %1432
      %1434 = vrot.lane.b32.xlu0 %v1325, 16
      %v1435 = vpop.permute.xlu0 %1434
      %1436 = vrot.lane.b32.xlu0 %v1326, 16
      %v1437 = vpop.permute.xlu0 %1436
      %1438 = vrot.lane.b32.xlu0 %v1327, 16
      %v1439 = vpop.permute.xlu0 %1438
      %1440 = vrot.lane.b32.xlu0 %v1328, 16
      %v1441 = vpop.permute.xlu0 %1440
      %1442 = vrot.lane.b32.xlu0 %v1329, 16
      %v1443 = vpop.permute.xlu0 %1442
      %1444 = vrot.lane.b32.xlu0 %v1330, 16
      %v1445 = vpop.permute.xlu0 %1444
      %1446 = vrot.lane.b32.xlu0 %v1331, 16
      %v1447 = vpop.permute.xlu0 %1446
      %1448 = vrot.lane.b32.xlu0 %v1332, 16
      %v1449 = vpop.permute.xlu0 %1448
      %1450 = vrot.lane.b32.xlu0 %v1333, 16
      %v1451 = vpop.permute.xlu0 %1450
      %1452 = vrot.lane.b32.xlu0 %v1334, 16
      %v1453 = vpop.permute.xlu0 %1452
      %1454 = vrot.lane.b32.xlu0 %v1335, 16
      %v1455 = vpop.permute.xlu0 %1454
      %1456 = vrot.lane.b32.xlu0 %v1336, 16
      %v1457 = vpop.permute.xlu0 %1456
      %1458 = vrot.lane.b32.xlu0 %v1337, 16
      %v1459 = vpop.permute.xlu0 %1458
      %1460 = vrot.lane.b32.xlu0 %v1338, 16
      %v1461 = vpop.permute.xlu0 %1460
      %vm1503 = vcmask 191616
      %1504 = vst.msk [vmem:[#allocation3] sm:$0xf] %vm1503, %v1381
      %1505 = vst.msk [vmem:[#allocation3 + $0x4] sm:$0xf] %vm1503, %v1383
      %1506 = vst.msk [vmem:[#allocation3 + $0x8] sm:$0xf] %vm1503, %v1385
      %1507 = vst.msk [vmem:[#allocation3 + $0xc] sm:$0xf] %vm1503, %v1387
      %1508 = vst.msk [vmem:[#allocation3 + $0x10] sm:$0xf] %vm1503, %v1389
      %1509 = vst.msk [vmem:[#allocation3 + $0x14] sm:$0xf] %vm1503, %v1391
      %1510 = vst.msk [vmem:[#allocation3 + $0x18] sm:$0xf] %vm1503, %v1393
      %1511 = vst.msk [vmem:[#allocation3 + $0x1c] sm:$0xf] %vm1503, %v1395
      %1512 = vst.msk [vmem:[#allocation3 + $0x20] sm:$0xf] %vm1503, %v1397
      %1513 = vst.msk [vmem:[#allocation3 + $0x24] sm:$0xf] %vm1503, %v1399
      %1514 = vst.msk [vmem:[#allocation3 + $0x28] sm:$0xf] %vm1503, %v1401
      %1515 = vst.msk [vmem:[#allocation3 + $0x2c] sm:$0xf] %vm1503, %v1403
      %1516 = vst.msk [vmem:[#allocation3 + $0x30] sm:$0xf] %vm1503, %v1405
      %1517 = vst.msk [vmem:[#allocation3 + $0x34] sm:$0xf] %vm1503, %v1407
      %1518 = vst.msk [vmem:[#allocation3 + $0x38] sm:$0xf] %vm1503, %v1409
      %1519 = vst.msk [vmem:[#allocation3 + $0x3c] sm:$0xf] %vm1503, %v1411
      %1520 = vst.msk [vmem:[#allocation3 + $0x40] sm:$0xf] %vm1503, %v1413
      %1521 = vst.msk [vmem:[#allocation3 + $0x44] sm:$0xf] %vm1503, %v1415
      %1522 = vst.msk [vmem:[#allocation3 + $0x48] sm:$0xf] %vm1503, %v1417
      %1523 = vst.msk [vmem:[#allocation3 + $0x4c] sm:$0xf] %vm1503, %v1419
      %1524 = vst.msk [vmem:[#allocation3 + $0x50] sm:$0xf] %vm1503, %v1421
      %1525 = vst.msk [vmem:[#allocation3 + $0x54] sm:$0xf] %vm1503, %v1423
      %1526 = vst.msk [vmem:[#allocation3 + $0x58] sm:$0xf] %vm1503, %v1425
      %1527 = vst.msk [vmem:[#allocation3 + $0x5c] sm:$0xf] %vm1503, %v1427
      %1528 = vst.msk [vmem:[#allocation3 + $0x60] sm:$0xf] %vm1503, %v1429
      %1529 = vst.msk [vmem:[#allocation3 + $0x64] sm:$0xf] %vm1503, %v1431
      %1530 = vst.msk [vmem:[#allocation3 + $0x68] sm:$0xf] %vm1503, %v1433
      %1531 = vst.msk [vmem:[#allocation3 + $0x6c] sm:$0xf] %vm1503, %v1435
      %1532 = vst.msk [vmem:[#allocation3 + $0x70] sm:$0xf] %vm1503, %v1437
      %1533 = vst.msk [vmem:[#allocation3 + $0x74] sm:$0xf] %vm1503, %v1439
      %1534 = vst.msk [vmem:[#allocation3 + $0x78] sm:$0xf] %vm1503, %v1441
      %1535 = vst.msk [vmem:[#allocation3 + $0x7c] sm:$0xf] %vm1503, %v1443
      %1536 = vst.msk [vmem:[#allocation3 + $0x80] sm:$0xf] %vm1503, %v1445
      %1537 = vst.msk [vmem:[#allocation3 + $0x84] sm:$0xf] %vm1503, %v1447
      %1538 = vst.msk [vmem:[#allocation3 + $0x88] sm:$0xf] %vm1503, %v1449
      %1539 = vst.msk [vmem:[#allocation3 + $0x8c] sm:$0xf] %vm1503, %v1451
      %1540 = vst.msk [vmem:[#allocation3 + $0x90] sm:$0xf] %vm1503, %v1453
      %1541 = vst.msk [vmem:[#allocation3 + $0x94] sm:$0xf] %vm1503, %v1455
      %1542 = vst.msk [vmem:[#allocation3 + $0x98] sm:$0xf] %vm1503, %v1457
      %1543 = vst.msk [vmem:[#allocation3 + $0x9c] sm:$0xf] %vm1503, %v1459
      %1544 = vst.msk [vmem:[#allocation3 + $0xa0] sm:$0xf] %vm1503, %v1461
      %v1545 = vld [vmem:[#allocation2 + $0x17] sm:$0xff]
      %v1546 = vld [vmem:[#allocation2 + $0x1f] sm:$0xff]
      %v1547 = vld [vmem:[#allocation2 + $0x27] sm:$0xff]
      %v1548 = vld [vmem:[#allocation2 + $0x2f] sm:$0xff]
      %v1549 = vld [vmem:[#allocation2 + $0x37] sm:$0xff]
      %v1550 = vld [vmem:[#allocation2 + $0x3f] sm:$0xff]
      %v1551 = vld [vmem:[#allocation2 + $0x47] sm:$0xff]
      %v1552 = vld [vmem:[#allocation2 + $0x4f] sm:$0xff]
      %v1553 = vld [vmem:[#allocation2 + $0x57] sm:$0xff]
      %v1554 = vld [vmem:[#allocation2 + $0x5f] sm:$0xff]
      %v1555 = vld [vmem:[#allocation2 + $0x67] sm:$0xff]
      %v1556 = vld [vmem:[#allocation2 + $0x6f] sm:$0xff]
      %v1557 = vld [vmem:[#allocation2 + $0x77] sm:$0xff]
      %v1558 = vld [vmem:[#allocation2 + $0x7f] sm:$0xff]
      %v1559 = vld [vmem:[#allocation2 + $0x87] sm:$0xff]
      %v1560 = vld [vmem:[#allocation2 + $0x8f] sm:$0xff]
      %v1561 = vld [vmem:[#allocation2 + $0x97] sm:$0xff]
      %v1562 = vld [vmem:[#allocation2 + $0x9f] sm:$0xff]
      %v1563 = vld [vmem:[#allocation2 + $0xa7] sm:$0xff]
      %v1564 = vld [vmem:[#allocation2 + $0xaf] sm:$0xff]
      %v1565 = vld [vmem:[#allocation2 + $0xb7] sm:$0xff]
      %v1566 = vld [vmem:[#allocation2 + $0xbf] sm:$0xff]
      %v1567 = vld [vmem:[#allocation2 + $0xc7] sm:$0xff]
      %v1568 = vld [vmem:[#allocation2 + $0xcf] sm:$0xff]
      %v1569 = vld [vmem:[#allocation2 + $0xd7] sm:$0xff]
      %v1570 = vld [vmem:[#allocation2 + $0xdf] sm:$0xff]
      %v1571 = vld [vmem:[#allocation2 + $0xe7] sm:$0xff]
      %v1572 = vld [vmem:[#allocation2 + $0xef] sm:$0xff]
      %v1573 = vld [vmem:[#allocation2 + $0xf7] sm:$0xff]
      %v1574 = vld [vmem:[#allocation2 + $0xff] sm:$0xff]
      %v1575 = vld [vmem:[#allocation2 + $0x107] sm:$0xff]
      %v1576 = vld [vmem:[#allocation2 + $0x10f] sm:$0xff]
      %v1577 = vld [vmem:[#allocation2 + $0x117] sm:$0xff]
      %v1578 = vld [vmem:[#allocation2 + $0x11f] sm:$0xff]
      %v1579 = vld [vmem:[#allocation2 + $0x127] sm:$0xff]
      %v1580 = vld [vmem:[#allocation2 + $0x12f] sm:$0xff]
      %v1581 = vld [vmem:[#allocation2 + $0x137] sm:$0xff]
      %v1582 = vld [vmem:[#allocation2 + $0x13f] sm:$0xff]
      %v1583 = vld [vmem:[#allocation2 + $0x147] sm:$0xff]
      %v1584 = vld [vmem:[#allocation2 + $0x14f] sm:$0xff]
      %v1585 = vld [vmem:[#allocation2 + $0x157] sm:$0xff]
      %v1586 = vpack.c.bf16 %v1545, %v1545
      %v1587 = vpack.c.bf16 %v1546, %v1546
      %v1588 = vpack.c.bf16 %v1547, %v1547
      %v1589 = vpack.c.bf16 %v1548, %v1548
      %v1590 = vpack.c.bf16 %v1549, %v1549
      %v1591 = vpack.c.bf16 %v1550, %v1550
      %v1592 = vpack.c.bf16 %v1551, %v1551
      %v1593 = vpack.c.bf16 %v1552, %v1552
      %v1594 = vpack.c.bf16 %v1553, %v1553
      %v1595 = vpack.c.bf16 %v1554, %v1554
      %v1596 = vpack.c.bf16 %v1555, %v1555
      %v1597 = vpack.c.bf16 %v1556, %v1556
      %v1598 = vpack.c.bf16 %v1557, %v1557
      %v1599 = vpack.c.bf16 %v1558, %v1558
      %v1600 = vpack.c.bf16 %v1559, %v1559
      %v1601 = vpack.c.bf16 %v1560, %v1560
      %v1602 = vpack.c.bf16 %v1561, %v1561
      %v1603 = vpack.c.bf16 %v1562, %v1562
      %v1604 = vpack.c.bf16 %v1563, %v1563
      %v1605 = vpack.c.bf16 %v1564, %v1564
      %v1606 = vpack.c.bf16 %v1565, %v1565
      %v1607 = vpack.c.bf16 %v1566, %v1566
      %v1608 = vpack.c.bf16 %v1567, %v1567
      %v1609 = vpack.c.bf16 %v1568, %v1568
      %v1610 = vpack.c.bf16 %v1569, %v1569
      %v1611 = vpack.c.bf16 %v1570, %v1570
      %v1612 = vpack.c.bf16 %v1571, %v1571
      %v1613 = vpack.c.bf16 %v1572, %v1572
      %v1614 = vpack.c.bf16 %v1573, %v1573
      %v1615 = vpack.c.bf16 %v1574, %v1574
      %v1616 = vpack.c.bf16 %v1575, %v1575
      %v1617 = vpack.c.bf16 %v1576, %v1576
      %v1618 = vpack.c.bf16 %v1577, %v1577
      %v1619 = vpack.c.bf16 %v1578, %v1578
      %v1620 = vpack.c.bf16 %v1579, %v1579
      %v1621 = vpack.c.bf16 %v1580, %v1580
      %v1622 = vpack.c.bf16 %v1581, %v1581
      %v1623 = vpack.c.bf16 %v1582, %v1582
      %v1624 = vpack.c.bf16 %v1583, %v1583
      %v1625 = vpack.c.bf16 %v1584, %v1584
      %v1626 = vpack.c.bf16 %v1585, %v1585
      %1668 = vrot.lane.b32.xlu0 %v1586, 24
      %v1669 = vpop.permute.xlu0 %1668
      %1670 = vrot.lane.b32.xlu0 %v1587, 24
      %v1671 = vpop.permute.xlu0 %1670
      %1672 = vrot.lane.b32.xlu0 %v1588, 24
      %v1673 = vpop.permute.xlu0 %1672
      %1674 = vrot.lane.b32.xlu0 %v1589, 24
      %v1675 = vpop.permute.xlu0 %1674
      %1676 = vrot.lane.b32.xlu0 %v1590, 24
      %v1677 = vpop.permute.xlu0 %1676
      %1678 = vrot.lane.b32.xlu0 %v1591, 24
      %v1679 = vpop.permute.xlu0 %1678
      %1680 = vrot.lane.b32.xlu0 %v1592, 24
      %v1681 = vpop.permute.xlu0 %1680
      %1682 = vrot.lane.b32.xlu0 %v1593, 24
      %v1683 = vpop.permute.xlu0 %1682
      %1684 = vrot.lane.b32.xlu0 %v1594, 24
      %v1685 = vpop.permute.xlu0 %1684
      %1686 = vrot.lane.b32.xlu0 %v1595, 24
      %v1687 = vpop.permute.xlu0 %1686
      %1688 = vrot.lane.b32.xlu0 %v1596, 24
      %v1689 = vpop.permute.xlu0 %1688
      %1690 = vrot.lane.b32.xlu0 %v1597, 24
      %v1691 = vpop.permute.xlu0 %1690
      %1692 = vrot.lane.b32.xlu0 %v1598, 24
      %v1693 = vpop.permute.xlu0 %1692
      %1694 = vrot.lane.b32.xlu0 %v1599, 24
      %v1695 = vpop.permute.xlu0 %1694
      %1696 = vrot.lane.b32.xlu0 %v1600, 24
      %v1697 = vpop.permute.xlu0 %1696
      %1698 = vrot.lane.b32.xlu0 %v1601, 24
      %v1699 = vpop.permute.xlu0 %1698
      %1700 = vrot.lane.b32.xlu0 %v1602, 24
      %v1701 = vpop.permute.xlu0 %1700
      %1702 = vrot.lane.b32.xlu0 %v1603, 24
      %v1703 = vpop.permute.xlu0 %1702
      %1704 = vrot.lane.b32.xlu0 %v1604, 24
      %v1705 = vpop.permute.xlu0 %1704
      %1706 = vrot.lane.b32.xlu0 %v1605, 24
      %v1707 = vpop.permute.xlu0 %1706
      %1708 = vrot.lane.b32.xlu0 %v1606, 24
      %v1709 = vpop.permute.xlu0 %1708
      %1710 = vrot.lane.b32.xlu0 %v1607, 24
      %v1711 = vpop.permute.xlu0 %1710
      %1712 = vrot.lane.b32.xlu0 %v1608, 24
      %v1713 = vpop.permute.xlu0 %1712
      %1714 = vrot.lane.b32.xlu0 %v1609, 24
      %v1715 = vpop.permute.xlu0 %1714
      %1716 = vrot.lane.b32.xlu0 %v1610, 24
      %v1717 = vpop.permute.xlu0 %1716
      %1718 = vrot.lane.b32.xlu0 %v1611, 24
      %v1719 = vpop.permute.xlu0 %1718
      %1720 = vrot.lane.b32.xlu0 %v1612, 24
      %v1721 = vpop.permute.xlu0 %1720
      %1722 = vrot.lane.b32.xlu0 %v1613, 24
      %v1723 = vpop.permute.xlu0 %1722
      %1724 = vrot.lane.b32.xlu0 %v1614, 24
      %v1725 = vpop.permute.xlu0 %1724
      %1726 = vrot.lane.b32.xlu0 %v1615, 24
      %v1727 = vpop.permute.xlu0 %1726
      %1728 = vrot.lane.b32.xlu0 %v1616, 24
      %v1729 = vpop.permute.xlu0 %1728
      %1730 = vrot.lane.b32.xlu0 %v1617, 24
      %v1731 = vpop.permute.xlu0 %1730
      %1732 = vrot.lane.b32.xlu0 %v1618, 24
      %v1733 = vpop.permute.xlu0 %1732
      %1734 = vrot.lane.b32.xlu0 %v1619, 24
      %v1735 = vpop.permute.xlu0 %1734
      %1736 = vrot.lane.b32.xlu0 %v1620, 24
      %v1737 = vpop.permute.xlu0 %1736
      %1738 = vrot.lane.b32.xlu0 %v1621, 24
      %v1739 = vpop.permute.xlu0 %1738
      %1740 = vrot.lane.b32.xlu0 %v1622, 24
      %v1741 = vpop.permute.xlu0 %1740
      %1742 = vrot.lane.b32.xlu0 %v1623, 24
      %v1743 = vpop.permute.xlu0 %1742
      %1744 = vrot.lane.b32.xlu0 %v1624, 24
      %v1745 = vpop.permute.xlu0 %1744
      %1746 = vrot.lane.b32.xlu0 %v1625, 24
      %v1747 = vpop.permute.xlu0 %1746
      %1748 = vrot.lane.b32.xlu0 %v1626, 24
      %v1749 = vpop.permute.xlu0 %1748
      %vm1791 = vcmask 257216
      %1792 = vst.msk [vmem:[#allocation3] sm:$0xf] %vm1791, %v1669
      %1793 = vst.msk [vmem:[#allocation3 + $0x4] sm:$0xf] %vm1791, %v1671
      %1794 = vst.msk [vmem:[#allocation3 + $0x8] sm:$0xf] %vm1791, %v1673
      %1795 = vst.msk [vmem:[#allocation3 + $0xc] sm:$0xf] %vm1791, %v1675
      %1796 = vst.msk [vmem:[#allocation3 + $0x10] sm:$0xf] %vm1791, %v1677
      %1797 = vst.msk [vmem:[#allocation3 + $0x14] sm:$0xf] %vm1791, %v1679
      %1798 = vst.msk [vmem:[#allocation3 + $0x18] sm:$0xf] %vm1791, %v1681
      %1799 = vst.msk [vmem:[#allocation3 + $0x1c] sm:$0xf] %vm1791, %v1683
      %1800 = vst.msk [vmem:[#allocation3 + $0x20] sm:$0xf] %vm1791, %v1685
      %1801 = vst.msk [vmem:[#allocation3 + $0x24] sm:$0xf] %vm1791, %v1687
      %1802 = vst.msk [vmem:[#allocation3 + $0x28] sm:$0xf] %vm1791, %v1689
      %1803 = vst.msk [vmem:[#allocation3 + $0x2c] sm:$0xf] %vm1791, %v1691
      %1804 = vst.msk [vmem:[#allocation3 + $0x30] sm:$0xf] %vm1791, %v1693
      %1805 = vst.msk [vmem:[#allocation3 + $0x34] sm:$0xf] %vm1791, %v1695
      %1806 = vst.msk [vmem:[#allocation3 + $0x38] sm:$0xf] %vm1791, %v1697
      %1807 = vst.msk [vmem:[#allocation3 + $0x3c] sm:$0xf] %vm1791, %v1699
      %1808 = vst.msk [vmem:[#allocation3 + $0x40] sm:$0xf] %vm1791, %v1701
      %1809 = vst.msk [vmem:[#allocation3 + $0x44] sm:$0xf] %vm1791, %v1703
      %1810 = vst.msk [vmem:[#allocation3 + $0x48] sm:$0xf] %vm1791, %v1705
      %1811 = vst.msk [vmem:[#allocation3 + $0x4c] sm:$0xf] %vm1791, %v1707
      %1812 = vst.msk [vmem:[#allocation3 + $0x50] sm:$0xf] %vm1791, %v1709
      %1813 = vst.msk [vmem:[#allocation3 + $0x54] sm:$0xf] %vm1791, %v1711
      %1814 = vst.msk [vmem:[#allocation3 + $0x58] sm:$0xf] %vm1791, %v1713
      %1815 = vst.msk [vmem:[#allocation3 + $0x5c] sm:$0xf] %vm1791, %v1715
      %1816 = vst.msk [vmem:[#allocation3 + $0x60] sm:$0xf] %vm1791, %v1717
      %1817 = vst.msk [vmem:[#allocation3 + $0x64] sm:$0xf] %vm1791, %v1719
      %1818 = vst.msk [vmem:[#allocation3 + $0x68] sm:$0xf] %vm1791, %v1721
      %1819 = vst.msk [vmem:[#allocation3 + $0x6c] sm:$0xf] %vm1791, %v1723
      %1820 = vst.msk [vmem:[#allocation3 + $0x70] sm:$0xf] %vm1791, %v1725
      %1821 = vst.msk [vmem:[#allocation3 + $0x74] sm:$0xf] %vm1791, %v1727
      %1822 = vst.msk [vmem:[#allocation3 + $0x78] sm:$0xf] %vm1791, %v1729
      %1823 = vst.msk [vmem:[#allocation3 + $0x7c] sm:$0xf] %vm1791, %v1731
      %1824 = vst.msk [vmem:[#allocation3 + $0x80] sm:$0xf] %vm1791, %v1733
      %1825 = vst.msk [vmem:[#allocation3 + $0x84] sm:$0xf] %vm1791, %v1735
      %1826 = vst.msk [vmem:[#allocation3 + $0x88] sm:$0xf] %vm1791, %v1737
      %1827 = vst.msk [vmem:[#allocation3 + $0x8c] sm:$0xf] %vm1791, %v1739
      %1828 = vst.msk [vmem:[#allocation3 + $0x90] sm:$0xf] %vm1791, %v1741
      %1829 = vst.msk [vmem:[#allocation3 + $0x94] sm:$0xf] %vm1791, %v1743
      %1830 = vst.msk [vmem:[#allocation3 + $0x98] sm:$0xf] %vm1791, %v1745
      %1831 = vst.msk [vmem:[#allocation3 + $0x9c] sm:$0xf] %vm1791, %v1747
      %1832 = vst.msk [vmem:[#allocation3 + $0xa0] sm:$0xf] %vm1791, %v1749
      %v1833 = vld [vmem:[#allocation2 + $0x18] sm:$0xff]
      %v1834 = vld [vmem:[#allocation2 + $0x20] sm:$0xff]
      %v1835 = vld [vmem:[#allocation2 + $0x28] sm:$0xff]
      %v1836 = vld [vmem:[#allocation2 + $0x30] sm:$0xff]
      %v1837 = vld [vmem:[#allocation2 + $0x38] sm:$0xff]
      %v1838 = vld [vmem:[#allocation2 + $0x40] sm:$0xff]
      %v1839 = vld [vmem:[#allocation2 + $0x48] sm:$0xff]
      %v1840 = vld [vmem:[#allocation2 + $0x50] sm:$0xff]
      %v1841 = vld [vmem:[#allocation2 + $0x58] sm:$0xff]
      %v1842 = vld [vmem:[#allocation2 + $0x60] sm:$0xff]
      %v1843 = vld [vmem:[#allocation2 + $0x68] sm:$0xff]
      %v1844 = vld [vmem:[#allocation2 + $0x70] sm:$0xff]
      %v1845 = vld [vmem:[#allocation2 + $0x78] sm:$0xff]
      %v1846 = vld [vmem:[#allocation2 + $0x80] sm:$0xff]
      %v1847 = vld [vmem:[#allocation2 + $0x88] sm:$0xff]
      %v1848 = vld [vmem:[#allocation2 + $0x90] sm:$0xff]
      %v1849 = vld [vmem:[#allocation2 + $0x98] sm:$0xff]
      %v1850 = vld [vmem:[#allocation2 + $0xa0] sm:$0xff]
      %v1851 = vld [vmem:[#allocation2 + $0xa8] sm:$0xff]
      %v1852 = vld [vmem:[#allocation2 + $0xb0] sm:$0xff]
      %v1853 = vld [vmem:[#allocation2 + $0xb8] sm:$0xff]
      %v1854 = vld [vmem:[#allocation2 + $0xc0] sm:$0xff]
      %v1855 = vld [vmem:[#allocation2 + $0xc8] sm:$0xff]
      %v1856 = vld [vmem:[#allocation2 + $0xd0] sm:$0xff]
      %v1857 = vld [vmem:[#allocation2 + $0xd8] sm:$0xff]
      %v1858 = vld [vmem:[#allocation2 + $0xe0] sm:$0xff]
      %v1859 = vld [vmem:[#allocation2 + $0xe8] sm:$0xff]
      %v1860 = vld [vmem:[#allocation2 + $0xf0] sm:$0xff]
      %v1861 = vld [vmem:[#allocation2 + $0xf8] sm:$0xff]
      %v1862 = vld [vmem:[#allocation2 + $0x100] sm:$0xff]
      %v1863 = vld [vmem:[#allocation2 + $0x108] sm:$0xff]
      %v1864 = vld [vmem:[#allocation2 + $0x110] sm:$0xff]
      %v1865 = vld [vmem:[#allocation2 + $0x118] sm:$0xff]
      %v1866 = vld [vmem:[#allocation2 + $0x120] sm:$0xff]
      %v1867 = vld [vmem:[#allocation2 + $0x128] sm:$0xff]
      %v1868 = vld [vmem:[#allocation2 + $0x130] sm:$0xff]
      %v1869 = vld [vmem:[#allocation2 + $0x138] sm:$0xff]
      %v1870 = vld [vmem:[#allocation2 + $0x140] sm:$0xff]
      %v1871 = vld [vmem:[#allocation2 + $0x148] sm:$0xff]
      %v1872 = vld [vmem:[#allocation2 + $0x150] sm:$0xff]
      %v1873 = vld [vmem:[#allocation2 + $0x158] sm:$0xff]
      %v1874 = vpack.c.bf16 %v1833, %v1833
      %v1875 = vpack.c.bf16 %v1834, %v1834
      %v1876 = vpack.c.bf16 %v1835, %v1835
      %v1877 = vpack.c.bf16 %v1836, %v1836
      %v1878 = vpack.c.bf16 %v1837, %v1837
      %v1879 = vpack.c.bf16 %v1838, %v1838
      %v1880 = vpack.c.bf16 %v1839, %v1839
      %v1881 = vpack.c.bf16 %v1840, %v1840
      %v1882 = vpack.c.bf16 %v1841, %v1841
      %v1883 = vpack.c.bf16 %v1842, %v1842
      %v1884 = vpack.c.bf16 %v1843, %v1843
      %v1885 = vpack.c.bf16 %v1844, %v1844
      %v1886 = vpack.c.bf16 %v1845, %v1845
      %v1887 = vpack.c.bf16 %v1846, %v1846
      %v1888 = vpack.c.bf16 %v1847, %v1847
      %v1889 = vpack.c.bf16 %v1848, %v1848
      %v1890 = vpack.c.bf16 %v1849, %v1849
      %v1891 = vpack.c.bf16 %v1850, %v1850
      %v1892 = vpack.c.bf16 %v1851, %v1851
      %v1893 = vpack.c.bf16 %v1852, %v1852
      %v1894 = vpack.c.bf16 %v1853, %v1853
      %v1895 = vpack.c.bf16 %v1854, %v1854
      %v1896 = vpack.c.bf16 %v1855, %v1855
      %v1897 = vpack.c.bf16 %v1856, %v1856
      %v1898 = vpack.c.bf16 %v1857, %v1857
      %v1899 = vpack.c.bf16 %v1858, %v1858
      %v1900 = vpack.c.bf16 %v1859, %v1859
      %v1901 = vpack.c.bf16 %v1860, %v1860
      %v1902 = vpack.c.bf16 %v1861, %v1861
      %v1903 = vpack.c.bf16 %v1862, %v1862
      %v1904 = vpack.c.bf16 %v1863, %v1863
      %v1905 = vpack.c.bf16 %v1864, %v1864
      %v1906 = vpack.c.bf16 %v1865, %v1865
      %v1907 = vpack.c.bf16 %v1866, %v1866
      %v1908 = vpack.c.bf16 %v1867, %v1867
      %v1909 = vpack.c.bf16 %v1868, %v1868
      %v1910 = vpack.c.bf16 %v1869, %v1869
      %v1911 = vpack.c.bf16 %v1870, %v1870
      %v1912 = vpack.c.bf16 %v1871, %v1871
      %v1913 = vpack.c.bf16 %v1872, %v1872
      %v1914 = vpack.c.bf16 %v1873, %v1873
      %1956 = vrot.lane.b32.xlu0 %v1874, 32
      %v1957 = vpop.permute.xlu0 %1956
      %1958 = vrot.lane.b32.xlu0 %v1875, 32
      %v1959 = vpop.permute.xlu0 %1958
      %1960 = vrot.lane.b32.xlu0 %v1876, 32
      %v1961 = vpop.permute.xlu0 %1960
      %1962 = vrot.lane.b32.xlu0 %v1877, 32
      %v1963 = vpop.permute.xlu0 %1962
      %1964 = vrot.lane.b32.xlu0 %v1878, 32
      %v1965 = vpop.permute.xlu0 %1964
      %1966 = vrot.lane.b32.xlu0 %v1879, 32
      %v1967 = vpop.permute.xlu0 %1966
      %1968 = vrot.lane.b32.xlu0 %v1880, 32
      %v1969 = vpop.permute.xlu0 %1968
      %1970 = vrot.lane.b32.xlu0 %v1881, 32
      %v1971 = vpop.permute.xlu0 %1970
      %1972 = vrot.lane.b32.xlu0 %v1882, 32
      %v1973 = vpop.permute.xlu0 %1972
      %1974 = vrot.lane.b32.xlu0 %v1883, 32
      %v1975 = vpop.permute.xlu0 %1974
      %1976 = vrot.lane.b32.xlu0 %v1884, 32
      %v1977 = vpop.permute.xlu0 %1976
      %1978 = vrot.lane.b32.xlu0 %v1885, 32
      %v1979 = vpop.permute.xlu0 %1978
      %1980 = vrot.lane.b32.xlu0 %v1886, 32
      %v1981 = vpop.permute.xlu0 %1980
      %1982 = vrot.lane.b32.xlu0 %v1887, 32
      %v1983 = vpop.permute.xlu0 %1982
      %1984 = vrot.lane.b32.xlu0 %v1888, 32
      %v1985 = vpop.permute.xlu0 %1984
      %1986 = vrot.lane.b32.xlu0 %v1889, 32
      %v1987 = vpop.permute.xlu0 %1986
      %1988 = vrot.lane.b32.xlu0 %v1890, 32
      %v1989 = vpop.permute.xlu0 %1988
      %1990 = vrot.lane.b32.xlu0 %v1891, 32
      %v1991 = vpop.permute.xlu0 %1990
      %1992 = vrot.lane.b32.xlu0 %v1892, 32
      %v1993 = vpop.permute.xlu0 %1992
      %1994 = vrot.lane.b32.xlu0 %v1893, 32
      %v1995 = vpop.permute.xlu0 %1994
      %1996 = vrot.lane.b32.xlu0 %v1894, 32
      %v1997 = vpop.permute.xlu0 %1996
      %1998 = vrot.lane.b32.xlu0 %v1895, 32
      %v1999 = vpop.permute.xlu0 %1998
      %2000 = vrot.lane.b32.xlu0 %v1896, 32
      %v2001 = vpop.permute.xlu0 %2000
      %2002 = vrot.lane.b32.xlu0 %v1897, 32
      %v2003 = vpop.permute.xlu0 %2002
      %2004 = vrot.lane.b32.xlu0 %v1898, 32
      %v2005 = vpop.permute.xlu0 %2004
      %2006 = vrot.lane.b32.xlu0 %v1899, 32
      %v2007 = vpop.permute.xlu0 %2006
      %2008 = vrot.lane.b32.xlu0 %v1900, 32
      %v2009 = vpop.permute.xlu0 %2008
      %2010 = vrot.lane.b32.xlu0 %v1901, 32
      %v2011 = vpop.permute.xlu0 %2010
      %2012 = vrot.lane.b32.xlu0 %v1902, 32
      %v2013 = vpop.permute.xlu0 %2012
      %2014 = vrot.lane.b32.xlu0 %v1903, 32
      %v2015 = vpop.permute.xlu0 %2014
      %2016 = vrot.lane.b32.xlu0 %v1904, 32
      %v2017 = vpop.permute.xlu0 %2016
      %2018 = vrot.lane.b32.xlu0 %v1905, 32
      %v2019 = vpop.permute.xlu0 %2018
      %2020 = vrot.lane.b32.xlu0 %v1906, 32
      %v2021 = vpop.permute.xlu0 %2020
      %2022 = vrot.lane.b32.xlu0 %v1907, 32
      %v2023 = vpop.permute.xlu0 %2022
      %2024 = vrot.lane.b32.xlu0 %v1908, 32
      %v2025 = vpop.permute.xlu0 %2024
      %2026 = vrot.lane.b32.xlu0 %v1909, 32
      %v2027 = vpop.permute.xlu0 %2026
      %2028 = vrot.lane.b32.xlu0 %v1910, 32
      %v2029 = vpop.permute.xlu0 %2028
      %2030 = vrot.lane.b32.xlu0 %v1911, 32
      %v2031 = vpop.permute.xlu0 %2030
      %2032 = vrot.lane.b32.xlu0 %v1912, 32
      %v2033 = vpop.permute.xlu0 %2032
      %2034 = vrot.lane.b32.xlu0 %v1913, 32
      %v2035 = vpop.permute.xlu0 %2034
      %2036 = vrot.lane.b32.xlu0 %v1914, 32
      %v2037 = vpop.permute.xlu0 %2036
      %vm2079 = vcmask 322816
      %2080 = vst.msk [vmem:[#allocation3] sm:$0xf] %vm2079, %v1957
      %2081 = vst.msk [vmem:[#allocation3 + $0x4] sm:$0xf] %vm2079, %v1959
      %2082 = vst.msk [vmem:[#allocation3 + $0x8] sm:$0xf] %vm2079, %v1961
      %2083 = vst.msk [vmem:[#allocation3 + $0xc] sm:$0xf] %vm2079, %v1963
      %2084 = vst.msk [vmem:[#allocation3 + $0x10] sm:$0xf] %vm2079, %v1965
      %2085 = vst.msk [vmem:[#allocation3 + $0x14] sm:$0xf] %vm2079, %v1967
      %2086 = vst.msk [vmem:[#allocation3 + $0x18] sm:$0xf] %vm2079, %v1969
      %2087 = vst.msk [vmem:[#allocation3 + $0x1c] sm:$0xf] %vm2079, %v1971
      %2088 = vst.msk [vmem:[#allocation3 + $0x20] sm:$0xf] %vm2079, %v1973
      %2089 = vst.msk [vmem:[#allocation3 + $0x24] sm:$0xf] %vm2079, %v1975
      %2090 = vst.msk [vmem:[#allocation3 + $0x28] sm:$0xf] %vm2079, %v1977
      %2091 = vst.msk [vmem:[#allocation3 + $0x2c] sm:$0xf] %vm2079, %v1979
      %2092 = vst.msk [vmem:[#allocation3 + $0x30] sm:$0xf] %vm2079, %v1981
      %2093 = vst.msk [vmem:[#allocation3 + $0x34] sm:$0xf] %vm2079, %v1983
      %2094 = vst.msk [vmem:[#allocation3 + $0x38] sm:$0xf] %vm2079, %v1985
      %2095 = vst.msk [vmem:[#allocation3 + $0x3c] sm:$0xf] %vm2079, %v1987
      %2096 = vst.msk [vmem:[#allocation3 + $0x40] sm:$0xf] %vm2079, %v1989
      %2097 = vst.msk [vmem:[#allocation3 + $0x44] sm:$0xf] %vm2079, %v1991
      %2098 = vst.msk [vmem:[#allocation3 + $0x48] sm:$0xf] %vm2079, %v1993
      %2099 = vst.msk [vmem:[#allocation3 + $0x4c] sm:$0xf] %vm2079, %v1995
      %2100 = vst.msk [vmem:[#allocation3 + $0x50] sm:$0xf] %vm2079, %v1997
      %2101 = vst.msk [vmem:[#allocation3 + $0x54] sm:$0xf] %vm2079, %v1999
      %2102 = vst.msk [vmem:[#allocation3 + $0x58] sm:$0xf] %vm2079, %v2001
      %2103 = vst.msk [vmem:[#allocation3 + $0x5c] sm:$0xf] %vm2079, %v2003
      %2104 = vst.msk [vmem:[#allocation3 + $0x60] sm:$0xf] %vm2079, %v2005
      %2105 = vst.msk [vmem:[#allocation3 + $0x64] sm:$0xf] %vm2079, %v2007
      %2106 = vst.msk [vmem:[#allocation3 + $0x68] sm:$0xf] %vm2079, %v2009
      %2107 = vst.msk [vmem:[#allocation3 + $0x6c] sm:$0xf] %vm2079, %v2011
      %2108 = vst.msk [vmem:[#allocation3 + $0x70] sm:$0xf] %vm2079, %v2013
      %2109 = vst.msk [vmem:[#allocation3 + $0x74] sm:$0xf] %vm2079, %v2015
      %2110 = vst.msk [vmem:[#allocation3 + $0x78] sm:$0xf] %vm2079, %v2017
      %2111 = vst.msk [vmem:[#allocation3 + $0x7c] sm:$0xf] %vm2079, %v2019
      %2112 = vst.msk [vmem:[#allocation3 + $0x80] sm:$0xf] %vm2079, %v2021
      %2113 = vst.msk [vmem:[#allocation3 + $0x84] sm:$0xf] %vm2079, %v2023
      %2114 = vst.msk [vmem:[#allocation3 + $0x88] sm:$0xf] %vm2079, %v2025
      %2115 = vst.msk [vmem:[#allocation3 + $0x8c] sm:$0xf] %vm2079, %v2027
      %2116 = vst.msk [vmem:[#allocation3 + $0x90] sm:$0xf] %vm2079, %v2029
      %2117 = vst.msk [vmem:[#allocation3 + $0x94] sm:$0xf] %vm2079, %v2031
      %2118 = vst.msk [vmem:[#allocation3 + $0x98] sm:$0xf] %vm2079, %v2033
      %2119 = vst.msk [vmem:[#allocation3 + $0x9c] sm:$0xf] %vm2079, %v2035
      %2120 = vst.msk [vmem:[#allocation3 + $0xa0] sm:$0xf] %vm2079, %v2037
      %v2121 = vld [vmem:[#allocation2 + $0x19] sm:$0xff]
      %v2122 = vld [vmem:[#allocation2 + $0x21] sm:$0xff]
      %v2123 = vld [vmem:[#allocation2 + $0x29] sm:$0xff]
      %v2124 = vld [vmem:[#allocation2 + $0x31] sm:$0xff]
      %v2125 = vld [vmem:[#allocation2 + $0x39] sm:$0xff]
      %v2126 = vld [vmem:[#allocation2 + $0x41] sm:$0xff]
      %v2127 = vld [vmem:[#allocation2 + $0x49] sm:$0xff]
      %v2128 = vld [vmem:[#allocation2 + $0x51] sm:$0xff]
      %v2129 = vld [vmem:[#allocation2 + $0x59] sm:$0xff]
      %v2130 = vld [vmem:[#allocation2 + $0x61] sm:$0xff]
      %v2131 = vld [vmem:[#allocation2 + $0x69] sm:$0xff]
      %v2132 = vld [vmem:[#allocation2 + $0x71] sm:$0xff]
      %v2133 = vld [vmem:[#allocation2 + $0x79] sm:$0xff]
      %v2134 = vld [vmem:[#allocation2 + $0x81] sm:$0xff]
      %v2135 = vld [vmem:[#allocation2 + $0x89] sm:$0xff]
      %v2136 = vld [vmem:[#allocation2 + $0x91] sm:$0xff]
      %v2137 = vld [vmem:[#allocation2 + $0x99] sm:$0xff]
      %v2138 = vld [vmem:[#allocation2 + $0xa1] sm:$0xff]
      %v2139 = vld [vmem:[#allocation2 + $0xa9] sm:$0xff]
      %v2140 = vld [vmem:[#allocation2 + $0xb1] sm:$0xff]
      %v2141 = vld [vmem:[#allocation2 + $0xb9] sm:$0xff]
      %v2142 = vld [vmem:[#allocation2 + $0xc1] sm:$0xff]
      %v2143 = vld [vmem:[#allocation2 + $0xc9] sm:$0xff]
      %v2144 = vld [vmem:[#allocation2 + $0xd1] sm:$0xff]
      %v2145 = vld [vmem:[#allocation2 + $0xd9] sm:$0xff]
      %v2146 = vld [vmem:[#allocation2 + $0xe1] sm:$0xff]
      %v2147 = vld [vmem:[#allocation2 + $0xe9] sm:$0xff]
      %v2148 = vld [vmem:[#allocation2 + $0xf1] sm:$0xff]
      %v2149 = vld [vmem:[#allocation2 + $0xf9] sm:$0xff]
      %v2150 = vld [vmem:[#allocation2 + $0x101] sm:$0xff]
      %v2151 = vld [vmem:[#allocation2 + $0x109] sm:$0xff]
      %v2152 = vld [vmem:[#allocation2 + $0x111] sm:$0xff]
      %v2153 = vld [vmem:[#allocation2 + $0x119] sm:$0xff]
      %v2154 = vld [vmem:[#allocation2 + $0x121] sm:$0xff]
      %v2155 = vld [vmem:[#allocation2 + $0x129] sm:$0xff]
      %v2156 = vld [vmem:[#allocation2 + $0x131] sm:$0xff]
      %v2157 = vld [vmem:[#allocation2 + $0x139] sm:$0xff]
      %v2158 = vld [vmem:[#allocation2 + $0x141] sm:$0xff]
      %v2159 = vld [vmem:[#allocation2 + $0x149] sm:$0xff]
      %v2160 = vld [vmem:[#allocation2 + $0x151] sm:$0xff]
      %v2161 = vld [vmem:[#allocation2 + $0x159] sm:$0xff]
      %v2162 = vpack.c.bf16 %v2121, %v2121
      %v2163 = vpack.c.bf16 %v2122, %v2122
      %v2164 = vpack.c.bf16 %v2123, %v2123
      %v2165 = vpack.c.bf16 %v2124, %v2124
      %v2166 = vpack.c.bf16 %v2125, %v2125
      %v2167 = vpack.c.bf16 %v2126, %v2126
      %v2168 = vpack.c.bf16 %v2127, %v2127
      %v2169 = vpack.c.bf16 %v2128, %v2128
      %v2170 = vpack.c.bf16 %v2129, %v2129
      %v2171 = vpack.c.bf16 %v2130, %v2130
      %v2172 = vpack.c.bf16 %v2131, %v2131
      %v2173 = vpack.c.bf16 %v2132, %v2132
      %v2174 = vpack.c.bf16 %v2133, %v2133
      %v2175 = vpack.c.bf16 %v2134, %v2134
      %v2176 = vpack.c.bf16 %v2135, %v2135
      %v2177 = vpack.c.bf16 %v2136, %v2136
      %v2178 = vpack.c.bf16 %v2137, %v2137
      %v2179 = vpack.c.bf16 %v2138, %v2138
      %v2180 = vpack.c.bf16 %v2139, %v2139
      %v2181 = vpack.c.bf16 %v2140, %v2140
      %v2182 = vpack.c.bf16 %v2141, %v2141
      %v2183 = vpack.c.bf16 %v2142, %v2142
      %v2184 = vpack.c.bf16 %v2143, %v2143
      %v2185 = vpack.c.bf16 %v2144, %v2144
      %v2186 = vpack.c.bf16 %v2145, %v2145
      %v2187 = vpack.c.bf16 %v2146, %v2146
      %v2188 = vpack.c.bf16 %v2147, %v2147
      %v2189 = vpack.c.bf16 %v2148, %v2148
      %v2190 = vpack.c.bf16 %v2149, %v2149
      %v2191 = vpack.c.bf16 %v2150, %v2150
      %v2192 = vpack.c.bf16 %v2151, %v2151
      %v2193 = vpack.c.bf16 %v2152, %v2152
      %v2194 = vpack.c.bf16 %v2153, %v2153
      %v2195 = vpack.c.bf16 %v2154, %v2154
      %v2196 = vpack.c.bf16 %v2155, %v2155
      %v2197 = vpack.c.bf16 %v2156, %v2156
      %v2198 = vpack.c.bf16 %v2157, %v2157
      %v2199 = vpack.c.bf16 %v2158, %v2158
      %v2200 = vpack.c.bf16 %v2159, %v2159
      %v2201 = vpack.c.bf16 %v2160, %v2160
      %v2202 = vpack.c.bf16 %v2161, %v2161
      %2244 = vrot.lane.b32.xlu0 %v2162, 40
      %v2245 = vpop.permute.xlu0 %2244
      %2246 = vrot.lane.b32.xlu0 %v2163, 40
      %v2247 = vpop.permute.xlu0 %2246
      %2248 = vrot.lane.b32.xlu0 %v2164, 40
      %v2249 = vpop.permute.xlu0 %2248
      %2250 = vrot.lane.b32.xlu0 %v2165, 40
      %v2251 = vpop.permute.xlu0 %2250
      %2252 = vrot.lane.b32.xlu0 %v2166, 40
      %v2253 = vpop.permute.xlu0 %2252
      %2254 = vrot.lane.b32.xlu0 %v2167, 40
      %v2255 = vpop.permute.xlu0 %2254
      %2256 = vrot.lane.b32.xlu0 %v2168, 40
      %v2257 = vpop.permute.xlu0 %2256
      %2258 = vrot.lane.b32.xlu0 %v2169, 40
      %v2259 = vpop.permute.xlu0 %2258
      %2260 = vrot.lane.b32.xlu0 %v2170, 40
      %v2261 = vpop.permute.xlu0 %2260
      %2262 = vrot.lane.b32.xlu0 %v2171, 40
      %v2263 = vpop.permute.xlu0 %2262
      %2264 = vrot.lane.b32.xlu0 %v2172, 40
      %v2265 = vpop.permute.xlu0 %2264
      %2266 = vrot.lane.b32.xlu0 %v2173, 40
      %v2267 = vpop.permute.xlu0 %2266
      %2268 = vrot.lane.b32.xlu0 %v2174, 40
      %v2269 = vpop.permute.xlu0 %2268
      %2270 = vrot.lane.b32.xlu0 %v2175, 40
      %v2271 = vpop.permute.xlu0 %2270
      %2272 = vrot.lane.b32.xlu0 %v2176, 40
      %v2273 = vpop.permute.xlu0 %2272
      %2274 = vrot.lane.b32.xlu0 %v2177, 40
      %v2275 = vpop.permute.xlu0 %2274
      %2276 = vrot.lane.b32.xlu0 %v2178, 40
      %v2277 = vpop.permute.xlu0 %2276
      %2278 = vrot.lane.b32.xlu0 %v2179, 40
      %v2279 = vpop.permute.xlu0 %2278
      %2280 = vrot.lane.b32.xlu0 %v2180, 40
      %v2281 = vpop.permute.xlu0 %2280
      %2282 = vrot.lane.b32.xlu0 %v2181, 40
      %v2283 = vpop.permute.xlu0 %2282
      %2284 = vrot.lane.b32.xlu0 %v2182, 40
      %v2285 = vpop.permute.xlu0 %2284
      %2286 = vrot.lane.b32.xlu0 %v2183, 40
      %v2287 = vpop.permute.xlu0 %2286
      %2288 = vrot.lane.b32.xlu0 %v2184, 40
      %v2289 = vpop.permute.xlu0 %2288
      %2290 = vrot.lane.b32.xlu0 %v2185, 40
      %v2291 = vpop.permute.xlu0 %2290
      %2292 = vrot.lane.b32.xlu0 %v2186, 40
      %v2293 = vpop.permute.xlu0 %2292
      %2294 = vrot.lane.b32.xlu0 %v2187, 40
      %v2295 = vpop.permute.xlu0 %2294
      %2296 = vrot.lane.b32.xlu0 %v2188, 40
      %v2297 = vpop.permute.xlu0 %2296
      %2298 = vrot.lane.b32.xlu0 %v2189, 40
      %v2299 = vpop.permute.xlu0 %2298
      %2300 = vrot.lane.b32.xlu0 %v2190, 40
      %v2301 = vpop.permute.xlu0 %2300
      %2302 = vrot.lane.b32.xlu0 %v2191, 40
      %v2303 = vpop.permute.xlu0 %2302
      %2304 = vrot.lane.b32.xlu0 %v2192, 40
      %v2305 = vpop.permute.xlu0 %2304
      %2306 = vrot.lane.b32.xlu0 %v2193, 40
      %v2307 = vpop.permute.xlu0 %2306
      %2308 = vrot.lane.b32.xlu0 %v2194, 40
      %v2309 = vpop.permute.xlu0 %2308
      %2310 = vrot.lane.b32.xlu0 %v2195, 40
      %v2311 = vpop.permute.xlu0 %2310
      %2312 = vrot.lane.b32.xlu0 %v2196, 40
      %v2313 = vpop.permute.xlu0 %2312
      %2314 = vrot.lane.b32.xlu0 %v2197, 40
      %v2315 = vpop.permute.xlu0 %2314
      %2316 = vrot.lane.b32.xlu0 %v2198, 40
      %v2317 = vpop.permute.xlu0 %2316
      %2318 = vrot.lane.b32.xlu0 %v2199, 40
      %v2319 = vpop.permute.xlu0 %2318
      %2320 = vrot.lane.b32.xlu0 %v2200, 40
      %v2321 = vpop.permute.xlu0 %2320
      %2322 = vrot.lane.b32.xlu0 %v2201, 40
      %v2323 = vpop.permute.xlu0 %2322
      %2324 = vrot.lane.b32.xlu0 %v2202, 40
      %v2325 = vpop.permute.xlu0 %2324
      %vm2367 = vcmask 388416
      %2368 = vst.msk [vmem:[#allocation3] sm:$0xf] %vm2367, %v2245
      %2369 = vst.msk [vmem:[#allocation3 + $0x4] sm:$0xf] %vm2367, %v2247
      %2370 = vst.msk [vmem:[#allocation3 + $0x8] sm:$0xf] %vm2367, %v2249
      %2371 = vst.msk [vmem:[#allocation3 + $0xc] sm:$0xf] %vm2367, %v2251
      %2372 = vst.msk [vmem:[#allocation3 + $0x10] sm:$0xf] %vm2367, %v2253
      %2373 = vst.msk [vmem:[#allocation3 + $0x14] sm:$0xf] %vm2367, %v2255
      %2374 = vst.msk [vmem:[#allocation3 + $0x18] sm:$0xf] %vm2367, %v2257
      %2375 = vst.msk [vmem:[#allocation3 + $0x1c] sm:$0xf] %vm2367, %v2259
      %2376 = vst.msk [vmem:[#allocation3 + $0x20] sm:$0xf] %vm2367, %v2261
      %2377 = vst.msk [vmem:[#allocation3 + $0x24] sm:$0xf] %vm2367, %v2263
      %2378 = vst.msk [vmem:[#allocation3 + $0x28] sm:$0xf] %vm2367, %v2265
      %2379 = vst.msk [vmem:[#allocation3 + $0x2c] sm:$0xf] %vm2367, %v2267
      %2380 = vst.msk [vmem:[#allocation3 + $0x30] sm:$0xf] %vm2367, %v2269
      %2381 = vst.msk [vmem:[#allocation3 + $0x34] sm:$0xf] %vm2367, %v2271
      %2382 = vst.msk [vmem:[#allocation3 + $0x38] sm:$0xf] %vm2367, %v2273
      %2383 = vst.msk [vmem:[#allocation3 + $0x3c] sm:$0xf] %vm2367, %v2275
      %2384 = vst.msk [vmem:[#allocation3 + $0x40] sm:$0xf] %vm2367, %v2277
      %2385 = vst.msk [vmem:[#allocation3 + $0x44] sm:$0xf] %vm2367, %v2279
      %2386 = vst.msk [vmem:[#allocation3 + $0x48] sm:$0xf] %vm2367, %v2281
      %2387 = vst.msk [vmem:[#allocation3 + $0x4c] sm:$0xf] %vm2367, %v2283
      %2388 = vst.msk [vmem:[#allocation3 + $0x50] sm:$0xf] %vm2367, %v2285
      %2389 = vst.msk [vmem:[#allocation3 + $0x54] sm:$0xf] %vm2367, %v2287
      %2390 = vst.msk [vmem:[#allocation3 + $0x58] sm:$0xf] %vm2367, %v2289
      %2391 = vst.msk [vmem:[#allocation3 + $0x5c] sm:$0xf] %vm2367, %v2291
      %2392 = vst.msk [vmem:[#allocation3 + $0x60] sm:$0xf] %vm2367, %v2293
      %2393 = vst.msk [vmem:[#allocation3 + $0x64] sm:$0xf] %vm2367, %v2295
      %2394 = vst.msk [vmem:[#allocation3 + $0x68] sm:$0xf] %vm2367, %v2297
      %2395 = vst.msk [vmem:[#allocation3 + $0x6c] sm:$0xf] %vm2367, %v2299
      %2396 = vst.msk [vmem:[#allocation3 + $0x70] sm:$0xf] %vm2367, %v2301
      %2397 = vst.msk [vmem:[#allocation3 + $0x74] sm:$0xf] %vm2367, %v2303
      %2398 = vst.msk [vmem:[#allocation3 + $0x78] sm:$0xf] %vm2367, %v2305
      %2399 = vst.msk [vmem:[#allocation3 + $0x7c] sm:$0xf] %vm2367, %v2307
      %2400 = vst.msk [vmem:[#allocation3 + $0x80] sm:$0xf] %vm2367, %v2309
      %2401 = vst.msk [vmem:[#allocation3 + $0x84] sm:$0xf] %vm2367, %v2311
      %2402 = vst.msk [vmem:[#allocation3 + $0x88] sm:$0xf] %vm2367, %v2313
      %2403 = vst.msk [vmem:[#allocation3 + $0x8c] sm:$0xf] %vm2367, %v2315
      %2404 = vst.msk [vmem:[#allocation3 + $0x90] sm:$0xf] %vm2367, %v2317
      %2405 = vst.msk [vmem:[#allocation3 + $0x94] sm:$0xf] %vm2367, %v2319
      %2406 = vst.msk [vmem:[#allocation3 + $0x98] sm:$0xf] %vm2367, %v2321
      %2407 = vst.msk [vmem:[#allocation3 + $0x9c] sm:$0xf] %vm2367, %v2323
      %2408 = vst.msk [vmem:[#allocation3 + $0xa0] sm:$0xf] %vm2367, %v2325
      %v2409 = vld [vmem:[#allocation2 + $0x29] sm:$0xff]
      %v2410 = vld [vmem:[#allocation2 + $0x31] sm:$0xff]
      %v2411 = vld [vmem:[#allocation2 + $0x39] sm:$0xff]
      %v2412 = vld [vmem:[#allocation2 + $0x41] sm:$0xff]
      %v2413 = vld [vmem:[#allocation2 + $0x49] sm:$0xff]
      %v2414 = vld [vmem:[#allocation2 + $0x51] sm:$0xff]
      %v2415 = vld [vmem:[#allocation2 + $0x59] sm:$0xff]
      %v2416 = vld [vmem:[#allocation2 + $0x61] sm:$0xff]
      %v2417 = vld [vmem:[#allocation2 + $0x69] sm:$0xff]
      %v2418 = vld [vmem:[#allocation2 + $0x71] sm:$0xff]
      %v2419 = vld [vmem:[#allocation2 + $0x79] sm:$0xff]
      %v2420 = vld [vmem:[#allocation2 + $0x81] sm:$0xff]
      %v2421 = vld [vmem:[#allocation2 + $0x89] sm:$0xff]
      %v2422 = vld [vmem:[#allocation2 + $0x91] sm:$0xff]
      %v2423 = vld [vmem:[#allocation2 + $0x99] sm:$0xff]
      %v2424 = vld [vmem:[#allocation2 + $0xa1] sm:$0xff]
      %v2425 = vld [vmem:[#allocation2 + $0xa9] sm:$0xff]
      %v2426 = vld [vmem:[#allocation2 + $0xb1] sm:$0xff]
      %v2427 = vld [vmem:[#allocation2 + $0xb9] sm:$0xff]
      %v2428 = vld [vmem:[#allocation2 + $0xc1] sm:$0xff]
      %v2429 = vld [vmem:[#allocation2 + $0xc9] sm:$0xff]
      %v2430 = vld [vmem:[#allocation2 + $0xd1] sm:$0xff]
      %v2431 = vld [vmem:[#allocation2 + $0xd9] sm:$0xff]
      %v2432 = vld [vmem:[#allocation2 + $0xe1] sm:$0xff]
      %v2433 = vld [vmem:[#allocation2 + $0xe9] sm:$0xff]
      %v2434 = vld [vmem:[#allocation2 + $0xf1] sm:$0xff]
      %v2435 = vld [vmem:[#allocation2 + $0xf9] sm:$0xff]
      %v2436 = vld [vmem:[#allocation2 + $0x101] sm:$0xff]
      %v2437 = vld [vmem:[#allocation2 + $0x109] sm:$0xff]
      %v2438 = vld [vmem:[#allocation2 + $0x111] sm:$0xff]
      %v2439 = vld [vmem:[#allocation2 + $0x119] sm:$0xff]
      %v2440 = vld [vmem:[#allocation2 + $0x121] sm:$0xff]
      %v2441 = vld [vmem:[#allocation2 + $0x129] sm:$0xff]
      %v2442 = vld [vmem:[#allocation2 + $0x131] sm:$0xff]
      %v2443 = vld [vmem:[#allocation2 + $0x139] sm:$0xff]
      %v2444 = vld [vmem:[#allocation2 + $0x141] sm:$0xff]
      %v2445 = vld [vmem:[#allocation2 + $0x149] sm:$0xff]
      %v2446 = vld [vmem:[#allocation2 + $0x151] sm:$0xff]
      %v2447 = vld [vmem:[#allocation2 + $0x159] sm:$0xff]
      %v2448 = vld [vmem:[#allocation2 + $0x161] sm:$0xff]
      %v2449 = vld [vmem:[#allocation2 + $0x169] sm:$0xff]
      %v2450 = vpack.c.bf16 %v2409, %v2409
      %v2451 = vpack.c.bf16 %v2410, %v2410
      %v2452 = vpack.c.bf16 %v2411, %v2411
      %v2453 = vpack.c.bf16 %v2412, %v2412
      %v2454 = vpack.c.bf16 %v2413, %v2413
      %v2455 = vpack.c.bf16 %v2414, %v2414
      %v2456 = vpack.c.bf16 %v2415, %v2415
      %v2457 = vpack.c.bf16 %v2416, %v2416
      %v2458 = vpack.c.bf16 %v2417, %v2417
      %v2459 = vpack.c.bf16 %v2418, %v2418
      %v2460 = vpack.c.bf16 %v2419, %v2419
      %v2461 = vpack.c.bf16 %v2420, %v2420
      %v2462 = vpack.c.bf16 %v2421, %v2421
      %v2463 = vpack.c.bf16 %v2422, %v2422
      %v2464 = vpack.c.bf16 %v2423, %v2423
      %v2465 = vpack.c.bf16 %v2424, %v2424
      %v2466 = vpack.c.bf16 %v2425, %v2425
      %v2467 = vpack.c.bf16 %v2426, %v2426
      %v2468 = vpack.c.bf16 %v2427, %v2427
      %v2469 = vpack.c.bf16 %v2428, %v2428
      %v2470 = vpack.c.bf16 %v2429, %v2429
      %v2471 = vpack.c.bf16 %v2430, %v2430
      %v2472 = vpack.c.bf16 %v2431, %v2431
      %v2473 = vpack.c.bf16 %v2432, %v2432
      %v2474 = vpack.c.bf16 %v2433, %v2433
      %v2475 = vpack.c.bf16 %v2434, %v2434
      %v2476 = vpack.c.bf16 %v2435, %v2435
      %v2477 = vpack.c.bf16 %v2436, %v2436
      %v2478 = vpack.c.bf16 %v2437, %v2437
      %v2479 = vpack.c.bf16 %v2438, %v2438
      %v2480 = vpack.c.bf16 %v2439, %v2439
      %v2481 = vpack.c.bf16 %v2440, %v2440
      %v2482 = vpack.c.bf16 %v2441, %v2441
      %v2483 = vpack.c.bf16 %v2442, %v2442
      %v2484 = vpack.c.bf16 %v2443, %v2443
      %v2485 = vpack.c.bf16 %v2444, %v2444
      %v2486 = vpack.c.bf16 %v2445, %v2445
      %v2487 = vpack.c.bf16 %v2446, %v2446
      %v2488 = vpack.c.bf16 %v2447, %v2447
      %v2489 = vpack.c.bf16 %v2448, %v2448
      %v2490 = vpack.c.bf16 %v2449, %v2449
      %2532 = vrot.lane.b32.xlu0 %v2450, 48
      %v2533 = vpop.permute.xlu0 %2532
      %2534 = vrot.lane.b32.xlu0 %v2451, 48
      %v2535 = vpop.permute.xlu0 %2534
      %2536 = vrot.lane.b32.xlu0 %v2452, 48
      %v2537 = vpop.permute.xlu0 %2536
      %2538 = vrot.lane.b32.xlu0 %v2453, 48
      %v2539 = vpop.permute.xlu0 %2538
      %2540 = vrot.lane.b32.xlu0 %v2454, 48
      %v2541 = vpop.permute.xlu0 %2540
      %2542 = vrot.lane.b32.xlu0 %v2455, 48
      %v2543 = vpop.permute.xlu0 %2542
      %2544 = vrot.lane.b32.xlu0 %v2456, 48
      %v2545 = vpop.permute.xlu0 %2544
      %2546 = vrot.lane.b32.xlu0 %v2457, 48
      %v2547 = vpop.permute.xlu0 %2546
      %2548 = vrot.lane.b32.xlu0 %v2458, 48
      %v2549 = vpop.permute.xlu0 %2548
      %2550 = vrot.lane.b32.xlu0 %v2459, 48
      %v2551 = vpop.permute.xlu0 %2550
      %2552 = vrot.lane.b32.xlu0 %v2460, 48
      %v2553 = vpop.permute.xlu0 %2552
      %2554 = vrot.lane.b32.xlu0 %v2461, 48
      %v2555 = vpop.permute.xlu0 %2554
      %2556 = vrot.lane.b32.xlu0 %v2462, 48
      %v2557 = vpop.permute.xlu0 %2556
      %2558 = vrot.lane.b32.xlu0 %v2463, 48
      %v2559 = vpop.permute.xlu0 %2558
      %2560 = vrot.lane.b32.xlu0 %v2464, 48
      %v2561 = vpop.permute.xlu0 %2560
      %2562 = vrot.lane.b32.xlu0 %v2465, 48
      %v2563 = vpop.permute.xlu0 %2562
      %2564 = vrot.lane.b32.xlu0 %v2466, 48
      %v2565 = vpop.permute.xlu0 %2564
      %2566 = vrot.lane.b32.xlu0 %v2467, 48
      %v2567 = vpop.permute.xlu0 %2566
      %2568 = vrot.lane.b32.xlu0 %v2468, 48
      %v2569 = vpop.permute.xlu0 %2568
      %2570 = vrot.lane.b32.xlu0 %v2469, 48
      %v2571 = vpop.permute.xlu0 %2570
      %2572 = vrot.lane.b32.xlu0 %v2470, 48
      %v2573 = vpop.permute.xlu0 %2572
      %2574 = vrot.lane.b32.xlu0 %v2471, 48
      %v2575 = vpop.permute.xlu0 %2574
      %2576 = vrot.lane.b32.xlu0 %v2472, 48
      %v2577 = vpop.permute.xlu0 %2576
      %2578 = vrot.lane.b32.xlu0 %v2473, 48
      %v2579 = vpop.permute.xlu0 %2578
      %2580 = vrot.lane.b32.xlu0 %v2474, 48
      %v2581 = vpop.permute.xlu0 %2580
      %2582 = vrot.lane.b32.xlu0 %v2475, 48
      %v2583 = vpop.permute.xlu0 %2582
      %2584 = vrot.lane.b32.xlu0 %v2476, 48
      %v2585 = vpop.permute.xlu0 %2584
      %2586 = vrot.lane.b32.xlu0 %v2477, 48
      %v2587 = vpop.permute.xlu0 %2586
      %2588 = vrot.lane.b32.xlu0 %v2478, 48
      %v2589 = vpop.permute.xlu0 %2588
      %2590 = vrot.lane.b32.xlu0 %v2479, 48
      %v2591 = vpop.permute.xlu0 %2590
      %2592 = vrot.lane.b32.xlu0 %v2480, 48
      %v2593 = vpop.permute.xlu0 %2592
      %2594 = vrot.lane.b32.xlu0 %v2481, 48
      %v2595 = vpop.permute.xlu0 %2594
      %2596 = vrot.lane.b32.xlu0 %v2482, 48
      %v2597 = vpop.permute.xlu0 %2596
      %2598 = vrot.lane.b32.xlu0 %v2483, 48
      %v2599 = vpop.permute.xlu0 %2598
      %2600 = vrot.lane.b32.xlu0 %v2484, 48
      %v2601 = vpop.permute.xlu0 %2600
      %2602 = vrot.lane.b32.xlu0 %v2485, 48
      %v2603 = vpop.permute.xlu0 %2602
      %2604 = vrot.lane.b32.xlu0 %v2486, 48
      %v2605 = vpop.permute.xlu0 %2604
      %2606 = vrot.lane.b32.xlu0 %v2487, 48
      %v2607 = vpop.permute.xlu0 %2606
      %2608 = vrot.lane.b32.xlu0 %v2488, 48
      %v2609 = vpop.permute.xlu0 %2608
      %2610 = vrot.lane.b32.xlu0 %v2489, 48
      %v2611 = vpop.permute.xlu0 %2610
      %2612 = vrot.lane.b32.xlu0 %v2490, 48
      %v2613 = vpop.permute.xlu0 %2612
      %vm2655 = vcmask 454016
      %2656 = vst.msk [vmem:[#allocation3] sm:$0xf] %vm2655, %v2533
      %2657 = vst.msk [vmem:[#allocation3 + $0x4] sm:$0xf] %vm2655, %v2535
      %2658 = vst.msk [vmem:[#allocation3 + $0x8] sm:$0xf] %vm2655, %v2537
      %2659 = vst.msk [vmem:[#allocation3 + $0xc] sm:$0xf] %vm2655, %v2539
      %2660 = vst.msk [vmem:[#allocation3 + $0x10] sm:$0xf] %vm2655, %v2541
      %2661 = vst.msk [vmem:[#allocation3 + $0x14] sm:$0xf] %vm2655, %v2543
      %2662 = vst.msk [vmem:[#allocation3 + $0x18] sm:$0xf] %vm2655, %v2545
      %2663 = vst.msk [vmem:[#allocation3 + $0x1c] sm:$0xf] %vm2655, %v2547
      %2664 = vst.msk [vmem:[#allocation3 + $0x20] sm:$0xf] %vm2655, %v2549
      %2665 = vst.msk [vmem:[#allocation3 + $0x24] sm:$0xf] %vm2655, %v2551
      %2666 = vst.msk [vmem:[#allocation3 + $0x28] sm:$0xf] %vm2655, %v2553
      %2667 = vst.msk [vmem:[#allocation3 + $0x2c] sm:$0xf] %vm2655, %v2555
      %2668 = vst.msk [vmem:[#allocation3 + $0x30] sm:$0xf] %vm2655, %v2557
      %2669 = vst.msk [vmem:[#allocation3 + $0x34] sm:$0xf] %vm2655, %v2559
      %2670 = vst.msk [vmem:[#allocation3 + $0x38] sm:$0xf] %vm2655, %v2561
      %2671 = vst.msk [vmem:[#allocation3 + $0x3c] sm:$0xf] %vm2655, %v2563
      %2672 = vst.msk [vmem:[#allocation3 + $0x40] sm:$0xf] %vm2655, %v2565
      %2673 = vst.msk [vmem:[#allocation3 + $0x44] sm:$0xf] %vm2655, %v2567
      %2674 = vst.msk [vmem:[#allocation3 + $0x48] sm:$0xf] %vm2655, %v2569
      %2675 = vst.msk [vmem:[#allocation3 + $0x4c] sm:$0xf] %vm2655, %v2571
      %2676 = vst.msk [vmem:[#allocation3 + $0x50] sm:$0xf] %vm2655, %v2573
      %2677 = vst.msk [vmem:[#allocation3 + $0x54] sm:$0xf] %vm2655, %v2575
      %2678 = vst.msk [vmem:[#allocation3 + $0x58] sm:$0xf] %vm2655, %v2577
      %2679 = vst.msk [vmem:[#allocation3 + $0x5c] sm:$0xf] %vm2655, %v2579
      %2680 = vst.msk [vmem:[#allocation3 + $0x60] sm:$0xf] %vm2655, %v2581
      %2681 = vst.msk [vmem:[#allocation3 + $0x64] sm:$0xf] %vm2655, %v2583
      %2682 = vst.msk [vmem:[#allocation3 + $0x68] sm:$0xf] %vm2655, %v2585
      %2683 = vst.msk [vmem:[#allocation3 + $0x6c] sm:$0xf] %vm2655, %v2587
      %2684 = vst.msk [vmem:[#allocation3 + $0x70] sm:$0xf] %vm2655, %v2589
      %2685 = vst.msk [vmem:[#allocation3 + $0x74] sm:$0xf] %vm2655, %v2591
      %2686 = vst.msk [vmem:[#allocation3 + $0x78] sm:$0xf] %vm2655, %v2593
      %2687 = vst.msk [vmem:[#allocation3 + $0x7c] sm:$0xf] %vm2655, %v2595
      %2688 = vst.msk [vmem:[#allocation3 + $0x80] sm:$0xf] %vm2655, %v2597
      %2689 = vst.msk [vmem:[#allocation3 + $0x84] sm:$0xf] %vm2655, %v2599
      %2690 = vst.msk [vmem:[#allocation3 + $0x88] sm:$0xf] %vm2655, %v2601
      %2691 = vst.msk [vmem:[#allocation3 + $0x8c] sm:$0xf] %vm2655, %v2603
      %2692 = vst.msk [vmem:[#allocation3 + $0x90] sm:$0xf] %vm2655, %v2605
      %2693 = vst.msk [vmem:[#allocation3 + $0x94] sm:$0xf] %vm2655, %v2607
      %2694 = vst.msk [vmem:[#allocation3 + $0x98] sm:$0xf] %vm2655, %v2609
      %2695 = vst.msk [vmem:[#allocation3 + $0x9c] sm:$0xf] %vm2655, %v2611
      %2696 = vst.msk [vmem:[#allocation3 + $0xa0] sm:$0xf] %vm2655, %v2613
      %v2697 = vld [vmem:[#allocation2 + $0x2a] sm:$0xff]
      %v2698 = vld [vmem:[#allocation2 + $0x32] sm:$0xff]
      %v2699 = vld [vmem:[#allocation2 + $0x3a] sm:$0xff]
      %v2700 = vld [vmem:[#allocation2 + $0x42] sm:$0xff]
      %v2701 = vld [vmem:[#allocation2 + $0x4a] sm:$0xff]
      %v2702 = vld [vmem:[#allocation2 + $0x52] sm:$0xff]
      %v2703 = vld [vmem:[#allocation2 + $0x5a] sm:$0xff]
      %v2704 = vld [vmem:[#allocation2 + $0x62] sm:$0xff]
      %v2705 = vld [vmem:[#allocation2 + $0x6a] sm:$0xff]
      %v2706 = vld [vmem:[#allocation2 + $0x72] sm:$0xff]
      %v2707 = vld [vmem:[#allocation2 + $0x7a] sm:$0xff]
      %v2708 = vld [vmem:[#allocation2 + $0x82] sm:$0xff]
      %v2709 = vld [vmem:[#allocation2 + $0x8a] sm:$0xff]
      %v2710 = vld [vmem:[#allocation2 + $0x92] sm:$0xff]
      %v2711 = vld [vmem:[#allocation2 + $0x9a] sm:$0xff]
      %v2712 = vld [vmem:[#allocation2 + $0xa2] sm:$0xff]
      %v2713 = vld [vmem:[#allocation2 + $0xaa] sm:$0xff]
      %v2714 = vld [vmem:[#allocation2 + $0xb2] sm:$0xff]
      %v2715 = vld [vmem:[#allocation2 + $0xba] sm:$0xff]
      %v2716 = vld [vmem:[#allocation2 + $0xc2] sm:$0xff]
      %v2717 = vld [vmem:[#allocation2 + $0xca] sm:$0xff]
      %v2718 = vld [vmem:[#allocation2 + $0xd2] sm:$0xff]
      %v2719 = vld [vmem:[#allocation2 + $0xda] sm:$0xff]
      %v2720 = vld [vmem:[#allocation2 + $0xe2] sm:$0xff]
      %v2721 = vld [vmem:[#allocation2 + $0xea] sm:$0xff]
      %v2722 = vld [vmem:[#allocation2 + $0xf2] sm:$0xff]
      %v2723 = vld [vmem:[#allocation2 + $0xfa] sm:$0xff]
      %v2724 = vld [vmem:[#allocation2 + $0x102] sm:$0xff]
      %v2725 = vld [vmem:[#allocation2 + $0x10a] sm:$0xff]
      %v2726 = vld [vmem:[#allocation2 + $0x112] sm:$0xff]
      %v2727 = vld [vmem:[#allocation2 + $0x11a] sm:$0xff]
      %v2728 = vld [vmem:[#allocation2 + $0x122] sm:$0xff]
      %v2729 = vld [vmem:[#allocation2 + $0x12a] sm:$0xff]
      %v2730 = vld [vmem:[#allocation2 + $0x132] sm:$0xff]
      %v2731 = vld [vmem:[#allocation2 + $0x13a] sm:$0xff]
      %v2732 = vld [vmem:[#allocation2 + $0x142] sm:$0xff]
      %v2733 = vld [vmem:[#allocation2 + $0x14a] sm:$0xff]
      %v2734 = vld [vmem:[#allocation2 + $0x152] sm:$0xff]
      %v2735 = vld [vmem:[#allocation2 + $0x15a] sm:$0xff]
      %v2736 = vld [vmem:[#allocation2 + $0x162] sm:$0xff]
      %v2737 = vld [vmem:[#allocation2 + $0x16a] sm:$0xff]
      %v2738 = vpack.c.bf16 %v2697, %v2697
      %v2739 = vpack.c.bf16 %v2698, %v2698
      %v2740 = vpack.c.bf16 %v2699, %v2699
      %v2741 = vpack.c.bf16 %v2700, %v2700
      %v2742 = vpack.c.bf16 %v2701, %v2701
      %v2743 = vpack.c.bf16 %v2702, %v2702
      %v2744 = vpack.c.bf16 %v2703, %v2703
      %v2745 = vpack.c.bf16 %v2704, %v2704
      %v2746 = vpack.c.bf16 %v2705, %v2705
      %v2747 = vpack.c.bf16 %v2706, %v2706
      %v2748 = vpack.c.bf16 %v2707, %v2707
      %v2749 = vpack.c.bf16 %v2708, %v2708
      %v2750 = vpack.c.bf16 %v2709, %v2709
      %v2751 = vpack.c.bf16 %v2710, %v2710
      %v2752 = vpack.c.bf16 %v2711, %v2711
      %v2753 = vpack.c.bf16 %v2712, %v2712
      %v2754 = vpack.c.bf16 %v2713, %v2713
      %v2755 = vpack.c.bf16 %v2714, %v2714
      %v2756 = vpack.c.bf16 %v2715, %v2715
      %v2757 = vpack.c.bf16 %v2716, %v2716
      %v2758 = vpack.c.bf16 %v2717, %v2717
      %v2759 = vpack.c.bf16 %v2718, %v2718
      %v2760 = vpack.c.bf16 %v2719, %v2719
      %v2761 = vpack.c.bf16 %v2720, %v2720
      %v2762 = vpack.c.bf16 %v2721, %v2721
      %v2763 = vpack.c.bf16 %v2722, %v2722
      %v2764 = vpack.c.bf16 %v2723, %v2723
      %v2765 = vpack.c.bf16 %v2724, %v2724
      %v2766 = vpack.c.bf16 %v2725, %v2725
      %v2767 = vpack.c.bf16 %v2726, %v2726
      %v2768 = vpack.c.bf16 %v2727, %v2727
      %v2769 = vpack.c.bf16 %v2728, %v2728
      %v2770 = vpack.c.bf16 %v2729, %v2729
      %v2771 = vpack.c.bf16 %v2730, %v2730
      %v2772 = vpack.c.bf16 %v2731, %v2731
      %v2773 = vpack.c.bf16 %v2732, %v2732
      %v2774 = vpack.c.bf16 %v2733, %v2733
      %v2775 = vpack.c.bf16 %v2734, %v2734
      %v2776 = vpack.c.bf16 %v2735, %v2735
      %v2777 = vpack.c.bf16 %v2736, %v2736
      %v2778 = vpack.c.bf16 %v2737, %v2737
      %2820 = vrot.lane.b32.xlu0 %v2738, 56
      %v2821 = vpop.permute.xlu0 %2820
      %2822 = vrot.lane.b32.xlu0 %v2739, 56
      %v2823 = vpop.permute.xlu0 %2822
      %2824 = vrot.lane.b32.xlu0 %v2740, 56
      %v2825 = vpop.permute.xlu0 %2824
      %2826 = vrot.lane.b32.xlu0 %v2741, 56
      %v2827 = vpop.permute.xlu0 %2826
      %2828 = vrot.lane.b32.xlu0 %v2742, 56
      %v2829 = vpop.permute.xlu0 %2828
      %2830 = vrot.lane.b32.xlu0 %v2743, 56
      %v2831 = vpop.permute.xlu0 %2830
      %2832 = vrot.lane.b32.xlu0 %v2744, 56
      %v2833 = vpop.permute.xlu0 %2832
      %2834 = vrot.lane.b32.xlu0 %v2745, 56
      %v2835 = vpop.permute.xlu0 %2834
      %2836 = vrot.lane.b32.xlu0 %v2746, 56
      %v2837 = vpop.permute.xlu0 %2836
      %2838 = vrot.lane.b32.xlu0 %v2747, 56
      %v2839 = vpop.permute.xlu0 %2838
      %2840 = vrot.lane.b32.xlu0 %v2748, 56
      %v2841 = vpop.permute.xlu0 %2840
      %2842 = vrot.lane.b32.xlu0 %v2749, 56
      %v2843 = vpop.permute.xlu0 %2842
      %2844 = vrot.lane.b32.xlu0 %v2750, 56
      %v2845 = vpop.permute.xlu0 %2844
      %2846 = vrot.lane.b32.xlu0 %v2751, 56
      %v2847 = vpop.permute.xlu0 %2846
      %2848 = vrot.lane.b32.xlu0 %v2752, 56
      %v2849 = vpop.permute.xlu0 %2848
      %2850 = vrot.lane.b32.xlu0 %v2753, 56
      %v2851 = vpop.permute.xlu0 %2850
      %2852 = vrot.lane.b32.xlu0 %v2754, 56
      %v2853 = vpop.permute.xlu0 %2852
      %2854 = vrot.lane.b32.xlu0 %v2755, 56
      %v2855 = vpop.permute.xlu0 %2854
      %2856 = vrot.lane.b32.xlu0 %v2756, 56
      %v2857 = vpop.permute.xlu0 %2856
      %2858 = vrot.lane.b32.xlu0 %v2757, 56
      %v2859 = vpop.permute.xlu0 %2858
      %2860 = vrot.lane.b32.xlu0 %v2758, 56
      %v2861 = vpop.permute.xlu0 %2860
      %2862 = vrot.lane.b32.xlu0 %v2759, 56
      %v2863 = vpop.permute.xlu0 %2862
      %2864 = vrot.lane.b32.xlu0 %v2760, 56
      %v2865 = vpop.permute.xlu0 %2864
      %2866 = vrot.lane.b32.xlu0 %v2761, 56
      %v2867 = vpop.permute.xlu0 %2866
      %2868 = vrot.lane.b32.xlu0 %v2762, 56
      %v2869 = vpop.permute.xlu0 %2868
      %2870 = vrot.lane.b32.xlu0 %v2763, 56
      %v2871 = vpop.permute.xlu0 %2870
      %2872 = vrot.lane.b32.xlu0 %v2764, 56
      %v2873 = vpop.permute.xlu0 %2872
      %2874 = vrot.lane.b32.xlu0 %v2765, 56
      %v2875 = vpop.permute.xlu0 %2874
      %2876 = vrot.lane.b32.xlu0 %v2766, 56
      %v2877 = vpop.permute.xlu0 %2876
      %2878 = vrot.lane.b32.xlu0 %v2767, 56
      %v2879 = vpop.permute.xlu0 %2878
      %2880 = vrot.lane.b32.xlu0 %v2768, 56
      %v2881 = vpop.permute.xlu0 %2880
      %2882 = vrot.lane.b32.xlu0 %v2769, 56
      %v2883 = vpop.permute.xlu0 %2882
      %2884 = vrot.lane.b32.xlu0 %v2770, 56
      %v2885 = vpop.permute.xlu0 %2884
      %2886 = vrot.lane.b32.xlu0 %v2771, 56
      %v2887 = vpop.permute.xlu0 %2886
      %2888 = vrot.lane.b32.xlu0 %v2772, 56
      %v2889 = vpop.permute.xlu0 %2888
      %2890 = vrot.lane.b32.xlu0 %v2773, 56
      %v2891 = vpop.permute.xlu0 %2890
      %2892 = vrot.lane.b32.xlu0 %v2774, 56
      %v2893 = vpop.permute.xlu0 %2892
      %2894 = vrot.lane.b32.xlu0 %v2775, 56
      %v2895 = vpop.permute.xlu0 %2894
      %2896 = vrot.lane.b32.xlu0 %v2776, 56
      %v2897 = vpop.permute.xlu0 %2896
      %2898 = vrot.lane.b32.xlu0 %v2777, 56
      %v2899 = vpop.permute.xlu0 %2898
      %2900 = vrot.lane.b32.xlu0 %v2778, 56
      %v2901 = vpop.permute.xlu0 %2900
      %vm2943 = vcmask 519616
      %2944 = vst.msk [vmem:[#allocation3] sm:$0xf] %vm2943, %v2821
      %2945 = vst.msk [vmem:[#allocation3 + $0x4] sm:$0xf] %vm2943, %v2823
      %2946 = vst.msk [vmem:[#allocation3 + $0x8] sm:$0xf] %vm2943, %v2825
      %2947 = vst.msk [vmem:[#allocation3 + $0xc] sm:$0xf] %vm2943, %v2827
      %2948 = vst.msk [vmem:[#allocation3 + $0x10] sm:$0xf] %vm2943, %v2829
      %2949 = vst.msk [vmem:[#allocation3 + $0x14] sm:$0xf] %vm2943, %v2831
      %2950 = vst.msk [vmem:[#allocation3 + $0x18] sm:$0xf] %vm2943, %v2833
      %2951 = vst.msk [vmem:[#allocation3 + $0x1c] sm:$0xf] %vm2943, %v2835
      %2952 = vst.msk [vmem:[#allocation3 + $0x20] sm:$0xf] %vm2943, %v2837
      %2953 = vst.msk [vmem:[#allocation3 + $0x24] sm:$0xf] %vm2943, %v2839
      %2954 = vst.msk [vmem:[#allocation3 + $0x28] sm:$0xf] %vm2943, %v2841
      %2955 = vst.msk [vmem:[#allocation3 + $0x2c] sm:$0xf] %vm2943, %v2843
      %2956 = vst.msk [vmem:[#allocation3 + $0x30] sm:$0xf] %vm2943, %v2845
      %2957 = vst.msk [vmem:[#allocation3 + $0x34] sm:$0xf] %vm2943, %v2847
      %2958 = vst.msk [vmem:[#allocation3 + $0x38] sm:$0xf] %vm2943, %v2849
      %2959 = vst.msk [vmem:[#allocation3 + $0x3c] sm:$0xf] %vm2943, %v2851
      %2960 = vst.msk [vmem:[#allocation3 + $0x40] sm:$0xf] %vm2943, %v2853
      %2961 = vst.msk [vmem:[#allocation3 + $0x44] sm:$0xf] %vm2943, %v2855
      %2962 = vst.msk [vmem:[#allocation3 + $0x48] sm:$0xf] %vm2943, %v2857
      %2963 = vst.msk [vmem:[#allocation3 + $0x4c] sm:$0xf] %vm2943, %v2859
      %2964 = vst.msk [vmem:[#allocation3 + $0x50] sm:$0xf] %vm2943, %v2861
      %2965 = vst.msk [vmem:[#allocation3 + $0x54] sm:$0xf] %vm2943, %v2863
      %2966 = vst.msk [vmem:[#allocation3 + $0x58] sm:$0xf] %vm2943, %v2865
      %2967 = vst.msk [vmem:[#allocation3 + $0x5c] sm:$0xf] %vm2943, %v2867
      %2968 = vst.msk [vmem:[#allocation3 + $0x60] sm:$0xf] %vm2943, %v2869
      %2969 = vst.msk [vmem:[#allocation3 + $0x64] sm:$0xf] %vm2943, %v2871
      %2970 = vst.msk [vmem:[#allocation3 + $0x68] sm:$0xf] %vm2943, %v2873
      %2971 = vst.msk [vmem:[#allocation3 + $0x6c] sm:$0xf] %vm2943, %v2875
      %2972 = vst.msk [vmem:[#allocation3 + $0x70] sm:$0xf] %vm2943, %v2877
      %2973 = vst.msk [vmem:[#allocation3 + $0x74] sm:$0xf] %vm2943, %v2879
      %2974 = vst.msk [vmem:[#allocation3 + $0x78] sm:$0xf] %vm2943, %v2881
      %2975 = vst.msk [vmem:[#allocation3 + $0x7c] sm:$0xf] %vm2943, %v2883
      %2976 = vst.msk [vmem:[#allocation3 + $0x80] sm:$0xf] %vm2943, %v2885
      %2977 = vst.msk [vmem:[#allocation3 + $0x84] sm:$0xf] %vm2943, %v2887
      %2978 = vst.msk [vmem:[#allocation3 + $0x88] sm:$0xf] %vm2943, %v2889
      %2979 = vst.msk [vmem:[#allocation3 + $0x8c] sm:$0xf] %vm2943, %v2891
      %2980 = vst.msk [vmem:[#allocation3 + $0x90] sm:$0xf] %vm2943, %v2893
      %2981 = vst.msk [vmem:[#allocation3 + $0x94] sm:$0xf] %vm2943, %v2895
      %2982 = vst.msk [vmem:[#allocation3 + $0x98] sm:$0xf] %vm2943, %v2897
      %2983 = vst.msk [vmem:[#allocation3 + $0x9c] sm:$0xf] %vm2943, %v2899
      %2984 = vst.msk [vmem:[#allocation3 + $0xa0] sm:$0xf] %vm2943, %v2901
      %v2985 = vld [vmem:[#allocation2 + $0x2b] sm:$0xff]
      %v2986 = vld [vmem:[#allocation2 + $0x33] sm:$0xff]
      %v2987 = vld [vmem:[#allocation2 + $0x3b] sm:$0xff]
      %v2988 = vld [vmem:[#allocation2 + $0x43] sm:$0xff]
      %v2989 = vld [vmem:[#allocation2 + $0x4b] sm:$0xff]
      %v2990 = vld [vmem:[#allocation2 + $0x53] sm:$0xff]
      %v2991 = vld [vmem:[#allocation2 + $0x5b] sm:$0xff]
      %v2992 = vld [vmem:[#allocation2 + $0x63] sm:$0xff]
      %v2993 = vld [vmem:[#allocation2 + $0x6b] sm:$0xff]
      %v2994 = vld [vmem:[#allocation2 + $0x73] sm:$0xff]
      %v2995 = vld [vmem:[#allocation2 + $0x7b] sm:$0xff]
      %v2996 = vld [vmem:[#allocation2 + $0x83] sm:$0xff]
      %v2997 = vld [vmem:[#allocation2 + $0x8b] sm:$0xff]
      %v2998 = vld [vmem:[#allocation2 + $0x93] sm:$0xff]
      %v2999 = vld [vmem:[#allocation2 + $0x9b] sm:$0xff]
      %v3000 = vld [vmem:[#allocation2 + $0xa3] sm:$0xff]
      %v3001 = vld [vmem:[#allocation2 + $0xab] sm:$0xff]
      %v3002 = vld [vmem:[#allocation2 + $0xb3] sm:$0xff]
      %v3003 = vld [vmem:[#allocation2 + $0xbb] sm:$0xff]
      %v3004 = vld [vmem:[#allocation2 + $0xc3] sm:$0xff]
      %v3005 = vld [vmem:[#allocation2 + $0xcb] sm:$0xff]
      %v3006 = vld [vmem:[#allocation2 + $0xd3] sm:$0xff]
      %v3007 = vld [vmem:[#allocation2 + $0xdb] sm:$0xff]
      %v3008 = vld [vmem:[#allocation2 + $0xe3] sm:$0xff]
      %v3009 = vld [vmem:[#allocation2 + $0xeb] sm:$0xff]
      %v3010 = vld [vmem:[#allocation2 + $0xf3] sm:$0xff]
      %v3011 = vld [vmem:[#allocation2 + $0xfb] sm:$0xff]
      %v3012 = vld [vmem:[#allocation2 + $0x103] sm:$0xff]
      %v3013 = vld [vmem:[#allocation2 + $0x10b] sm:$0xff]
      %v3014 = vld [vmem:[#allocation2 + $0x113] sm:$0xff]
      %v3015 = vld [vmem:[#allocation2 + $0x11b] sm:$0xff]
      %v3016 = vld [vmem:[#allocation2 + $0x123] sm:$0xff]
      %v3017 = vld [vmem:[#allocation2 + $0x12b] sm:$0xff]
      %v3018 = vld [vmem:[#allocation2 + $0x133] sm:$0xff]
      %v3019 = vld [vmem:[#allocation2 + $0x13b] sm:$0xff]
      %v3020 = vld [vmem:[#allocation2 + $0x143] sm:$0xff]
      %v3021 = vld [vmem:[#allocation2 + $0x14b] sm:$0xff]
      %v3022 = vld [vmem:[#allocation2 + $0x153] sm:$0xff]
      %v3023 = vld [vmem:[#allocation2 + $0x15b] sm:$0xff]
      %v3024 = vld [vmem:[#allocation2 + $0x163] sm:$0xff]
      %v3025 = vld [vmem:[#allocation2 + $0x16b] sm:$0xff]
      %v3026 = vpack.c.bf16 %v2985, %v2985
      %v3027 = vpack.c.bf16 %v2986, %v2986
      %v3028 = vpack.c.bf16 %v2987, %v2987
      %v3029 = vpack.c.bf16 %v2988, %v2988
      %v3030 = vpack.c.bf16 %v2989, %v2989
      %v3031 = vpack.c.bf16 %v2990, %v2990
      %v3032 = vpack.c.bf16 %v2991, %v2991
      %v3033 = vpack.c.bf16 %v2992, %v2992
      %v3034 = vpack.c.bf16 %v2993, %v2993
      %v3035 = vpack.c.bf16 %v2994, %v2994
      %v3036 = vpack.c.bf16 %v2995, %v2995
      %v3037 = vpack.c.bf16 %v2996, %v2996
      %v3038 = vpack.c.bf16 %v2997, %v2997
      %v3039 = vpack.c.bf16 %v2998, %v2998
      %v3040 = vpack.c.bf16 %v2999, %v2999
      %v3041 = vpack.c.bf16 %v3000, %v3000
      %v3042 = vpack.c.bf16 %v3001, %v3001
      %v3043 = vpack.c.bf16 %v3002, %v3002
      %v3044 = vpack.c.bf16 %v3003, %v3003
      %v3045 = vpack.c.bf16 %v3004, %v3004
      %v3046 = vpack.c.bf16 %v3005, %v3005
      %v3047 = vpack.c.bf16 %v3006, %v3006
      %v3048 = vpack.c.bf16 %v3007, %v3007
      %v3049 = vpack.c.bf16 %v3008, %v3008
      %v3050 = vpack.c.bf16 %v3009, %v3009
      %v3051 = vpack.c.bf16 %v3010, %v3010
      %v3052 = vpack.c.bf16 %v3011, %v3011
      %v3053 = vpack.c.bf16 %v3012, %v3012
      %v3054 = vpack.c.bf16 %v3013, %v3013
      %v3055 = vpack.c.bf16 %v3014, %v3014
      %v3056 = vpack.c.bf16 %v3015, %v3015
      %v3057 = vpack.c.bf16 %v3016, %v3016
      %v3058 = vpack.c.bf16 %v3017, %v3017
      %v3059 = vpack.c.bf16 %v3018, %v3018
      %v3060 = vpack.c.bf16 %v3019, %v3019
      %v3061 = vpack.c.bf16 %v3020, %v3020
      %v3062 = vpack.c.bf16 %v3021, %v3021
      %v3063 = vpack.c.bf16 %v3022, %v3022
      %v3064 = vpack.c.bf16 %v3023, %v3023
      %v3065 = vpack.c.bf16 %v3024, %v3024
      %v3066 = vpack.c.bf16 %v3025, %v3025
      %3108 = vrot.lane.b32.xlu0 %v3026, 64
      %v3109 = vpop.permute.xlu0 %3108
      %3110 = vrot.lane.b32.xlu0 %v3027, 64
      %v3111 = vpop.permute.xlu0 %3110
      %3112 = vrot.lane.b32.xlu0 %v3028, 64
      %v3113 = vpop.permute.xlu0 %3112
      %3114 = vrot.lane.b32.xlu0 %v3029, 64
      %v3115 = vpop.permute.xlu0 %3114
      %3116 = vrot.lane.b32.xlu0 %v3030, 64
      %v3117 = vpop.permute.xlu0 %3116
      %3118 = vrot.lane.b32.xlu0 %v3031, 64
      %v3119 = vpop.permute.xlu0 %3118
      %3120 = vrot.lane.b32.xlu0 %v3032, 64
      %v3121 = vpop.permute.xlu0 %3120
      %3122 = vrot.lane.b32.xlu0 %v3033, 64
      %v3123 = vpop.permute.xlu0 %3122
      %3124 = vrot.lane.b32.xlu0 %v3034, 64
      %v3125 = vpop.permute.xlu0 %3124
      %3126 = vrot.lane.b32.xlu0 %v3035, 64
      %v3127 = vpop.permute.xlu0 %3126
      %3128 = vrot.lane.b32.xlu0 %v3036, 64
      %v3129 = vpop.permute.xlu0 %3128
      %3130 = vrot.lane.b32.xlu0 %v3037, 64
      %v3131 = vpop.permute.xlu0 %3130
      %3132 = vrot.lane.b32.xlu0 %v3038, 64
      %v3133 = vpop.permute.xlu0 %3132
      %3134 = vrot.lane.b32.xlu0 %v3039, 64
      %v3135 = vpop.permute.xlu0 %3134
      %3136 = vrot.lane.b32.xlu0 %v3040, 64
      %v3137 = vpop.permute.xlu0 %3136
      %3138 = vrot.lane.b32.xlu0 %v3041, 64
      %v3139 = vpop.permute.xlu0 %3138
      %3140 = vrot.lane.b32.xlu0 %v3042, 64
      %v3141 = vpop.permute.xlu0 %3140
      %3142 = vrot.lane.b32.xlu0 %v3043, 64
      %v3143 = vpop.permute.xlu0 %3142
      %3144 = vrot.lane.b32.xlu0 %v3044, 64
      %v3145 = vpop.permute.xlu0 %3144
      %3146 = vrot.lane.b32.xlu0 %v3045, 64
      %v3147 = vpop.permute.xlu0 %3146
      %3148 = vrot.lane.b32.xlu0 %v3046, 64
      %v3149 = vpop.permute.xlu0 %3148
      %3150 = vrot.lane.b32.xlu0 %v3047, 64
      %v3151 = vpop.permute.xlu0 %3150
      %3152 = vrot.lane.b32.xlu0 %v3048, 64
      %v3153 = vpop.permute.xlu0 %3152
      %3154 = vrot.lane.b32.xlu0 %v3049, 64
      %v3155 = vpop.permute.xlu0 %3154
      %3156 = vrot.lane.b32.xlu0 %v3050, 64
      %v3157 = vpop.permute.xlu0 %3156
      %3158 = vrot.lane.b32.xlu0 %v3051, 64
      %v3159 = vpop.permute.xlu0 %3158
      %3160 = vrot.lane.b32.xlu0 %v3052, 64
      %v3161 = vpop.permute.xlu0 %3160
      %3162 = vrot.lane.b32.xlu0 %v3053, 64
      %v3163 = vpop.permute.xlu0 %3162
      %3164 = vrot.lane.b32.xlu0 %v3054, 64
      %v3165 = vpop.permute.xlu0 %3164
      %3166 = vrot.lane.b32.xlu0 %v3055, 64
      %v3167 = vpop.permute.xlu0 %3166
      %3168 = vrot.lane.b32.xlu0 %v3056, 64
      %v3169 = vpop.permute.xlu0 %3168
      %3170 = vrot.lane.b32.xlu0 %v3057, 64
      %v3171 = vpop.permute.xlu0 %3170
      %3172 = vrot.lane.b32.xlu0 %v3058, 64
      %v3173 = vpop.permute.xlu0 %3172
      %3174 = vrot.lane.b32.xlu0 %v3059, 64
      %v3175 = vpop.permute.xlu0 %3174
      %3176 = vrot.lane.b32.xlu0 %v3060, 64
      %v3177 = vpop.permute.xlu0 %3176
      %3178 = vrot.lane.b32.xlu0 %v3061, 64
      %v3179 = vpop.permute.xlu0 %3178
      %3180 = vrot.lane.b32.xlu0 %v3062, 64
      %v3181 = vpop.permute.xlu0 %3180
      %3182 = vrot.lane.b32.xlu0 %v3063, 64
      %v3183 = vpop.permute.xlu0 %3182
      %3184 = vrot.lane.b32.xlu0 %v3064, 64
      %v3185 = vpop.permute.xlu0 %3184
      %3186 = vrot.lane.b32.xlu0 %v3065, 64
      %v3187 = vpop.permute.xlu0 %3186
      %3188 = vrot.lane.b32.xlu0 %v3066, 64
      %v3189 = vpop.permute.xlu0 %3188
      %vm3231 = vcmask 585216
      %3232 = vst.msk [vmem:[#allocation3] sm:$0xf] %vm3231, %v3109
      %3233 = vst.msk [vmem:[#allocation3 + $0x4] sm:$0xf] %vm3231, %v3111
      %3234 = vst.msk [vmem:[#allocation3 + $0x8] sm:$0xf] %vm3231, %v3113
      %3235 = vst.msk [vmem:[#allocation3 + $0xc] sm:$0xf] %vm3231, %v3115
      %3236 = vst.msk [vmem:[#allocation3 + $0x10] sm:$0xf] %vm3231, %v3117
      %3237 = vst.msk [vmem:[#allocation3 + $0x14] sm:$0xf] %vm3231, %v3119
      %3238 = vst.msk [vmem:[#allocation3 + $0x18] sm:$0xf] %vm3231, %v3121
      %3239 = vst.msk [vmem:[#allocation3 + $0x1c] sm:$0xf] %vm3231, %v3123
      %3240 = vst.msk [vmem:[#allocation3 + $0x20] sm:$0xf] %vm3231, %v3125
      %3241 = vst.msk [vmem:[#allocation3 + $0x24] sm:$0xf] %vm3231, %v3127
      %3242 = vst.msk [vmem:[#allocation3 + $0x28] sm:$0xf] %vm3231, %v3129
      %3243 = vst.msk [vmem:[#allocation3 + $0x2c] sm:$0xf] %vm3231, %v3131
      %3244 = vst.msk [vmem:[#allocation3 + $0x30] sm:$0xf] %vm3231, %v3133
      %3245 = vst.msk [vmem:[#allocation3 + $0x34] sm:$0xf] %vm3231, %v3135
      %3246 = vst.msk [vmem:[#allocation3 + $0x38] sm:$0xf] %vm3231, %v3137
      %3247 = vst.msk [vmem:[#allocation3 + $0x3c] sm:$0xf] %vm3231, %v3139
      %3248 = vst.msk [vmem:[#allocation3 + $0x40] sm:$0xf] %vm3231, %v3141
      %3249 = vst.msk [vmem:[#allocation3 + $0x44] sm:$0xf] %vm3231, %v3143
      %3250 = vst.msk [vmem:[#allocation3 + $0x48] sm:$0xf] %vm3231, %v3145
      %3251 = vst.msk [vmem:[#allocation3 + $0x4c] sm:$0xf] %vm3231, %v3147
      %3252 = vst.msk [vmem:[#allocation3 + $0x50] sm:$0xf] %vm3231, %v3149
      %3253 = vst.msk [vmem:[#allocation3 + $0x54] sm:$0xf] %vm3231, %v3151
      %3254 = vst.msk [vmem:[#allocation3 + $0x58] sm:$0xf] %vm3231, %v3153
      %3255 = vst.msk [vmem:[#allocation3 + $0x5c] sm:$0xf] %vm3231, %v3155
      %3256 = vst.msk [vmem:[#allocation3 + $0x60] sm:$0xf] %vm3231, %v3157
      %3257 = vst.msk [vmem:[#allocation3 + $0x64] sm:$0xf] %vm3231, %v3159
      %3258 = vst.msk [vmem:[#allocation3 + $0x68] sm:$0xf] %vm3231, %v3161
      %3259 = vst.msk [vmem:[#allocation3 + $0x6c] sm:$0xf] %vm3231, %v3163
      %3260 = vst.msk [vmem:[#allocation3 + $0x70] sm:$0xf] %vm3231, %v3165
      %3261 = vst.msk [vmem:[#allocation3 + $0x74] sm:$0xf] %vm3231, %v3167
      %3262 = vst.msk [vmem:[#allocation3 + $0x78] sm:$0xf] %vm3231, %v3169
      %3263 = vst.msk [vmem:[#allocation3 + $0x7c] sm:$0xf] %vm3231, %v3171
      %3264 = vst.msk [vmem:[#allocation3 + $0x80] sm:$0xf] %vm3231, %v3173
      %3265 = vst.msk [vmem:[#allocation3 + $0x84] sm:$0xf] %vm3231, %v3175
      %3266 = vst.msk [vmem:[#allocation3 + $0x88] sm:$0xf] %vm3231, %v3177
      %3267 = vst.msk [vmem:[#allocation3 + $0x8c] sm:$0xf] %vm3231, %v3179
      %3268 = vst.msk [vmem:[#allocation3 + $0x90] sm:$0xf] %vm3231, %v3181
      %3269 = vst.msk [vmem:[#allocation3 + $0x94] sm:$0xf] %vm3231, %v3183
      %3270 = vst.msk [vmem:[#allocation3 + $0x98] sm:$0xf] %vm3231, %v3185
      %3271 = vst.msk [vmem:[#allocation3 + $0x9c] sm:$0xf] %vm3231, %v3187
      %3272 = vst.msk [vmem:[#allocation3 + $0xa0] sm:$0xf] %vm3231, %v3189
      %v3273 = vld [vmem:[#allocation3] sm:$0xf]
      %v3274 = vld [vmem:[#allocation3 + $0x4] sm:$0xf]
      %v3275 = vld [vmem:[#allocation3 + $0x8] sm:$0xf]
      %v3276 = vld [vmem:[#allocation3 + $0xc] sm:$0xf]
      %v3277 = vld [vmem:[#allocation3 + $0x10] sm:$0xf]
      %v3278 = vld [vmem:[#allocation3 + $0x14] sm:$0xf]
      %v3279 = vld [vmem:[#allocation3 + $0x18] sm:$0xf]
      %v3280 = vld [vmem:[#allocation3 + $0x1c] sm:$0xf]
      %v3281 = vld [vmem:[#allocation3 + $0x20] sm:$0xf]
      %v3282 = vld [vmem:[#allocation3 + $0x24] sm:$0xf]
      %v3283 = vld [vmem:[#allocation3 + $0x28] sm:$0xf]
      %v3284 = vld [vmem:[#allocation3 + $0x2c] sm:$0xf]
      %v3285 = vld [vmem:[#allocation3 + $0x30] sm:$0xf]
      %v3286 = vld [vmem:[#allocation3 + $0x34] sm:$0xf]
      %v3287 = vld [vmem:[#allocation3 + $0x38] sm:$0xf]
      %v3288 = vld [vmem:[#allocation3 + $0x3c] sm:$0xf]
      %v3289 = vld [vmem:[#allocation3 + $0x40] sm:$0xf]
      %v3290 = vld [vmem:[#allocation3 + $0x44] sm:$0xf]
      %v3291 = vld [vmem:[#allocation3 + $0x48] sm:$0xf]
      %v3292 = vld [vmem:[#allocation3 + $0x4c] sm:$0xf]
      %v3293 = vld [vmem:[#allocation3 + $0x50] sm:$0xf]
      %v3294 = vld [vmem:[#allocation3 + $0x54] sm:$0xf]
      %v3295 = vld [vmem:[#allocation3 + $0x58] sm:$0xf]
      %v3296 = vld [vmem:[#allocation3 + $0x5c] sm:$0xf]
      %v3297 = vld [vmem:[#allocation3 + $0x60] sm:$0xf]
      %v3298 = vld [vmem:[#allocation3 + $0x64] sm:$0xf]
      %v3299 = vld [vmem:[#allocation3 + $0x68] sm:$0xf]
      %v3300 = vld [vmem:[#allocation3 + $0x6c] sm:$0xf]
      %v3301 = vld [vmem:[#allocation3 + $0x70] sm:$0xf]
      %v3302 = vld [vmem:[#allocation3 + $0x74] sm:$0xf]
      %v3303 = vld [vmem:[#allocation3 + $0x78] sm:$0xf]
      %v3304 = vld [vmem:[#allocation3 + $0x7c] sm:$0xf]
      %v3305 = vld [vmem:[#allocation3 + $0x80] sm:$0xf]
      %v3306 = vld [vmem:[#allocation3 + $0x84] sm:$0xf]
      %v3307 = vld [vmem:[#allocation3 + $0x88] sm:$0xf]
      %v3308 = vld [vmem:[#allocation3 + $0x8c] sm:$0xf]
      %v3309 = vld [vmem:[#allocation3 + $0x90] sm:$0xf]
      %v3310 = vld [vmem:[#allocation3 + $0x94] sm:$0xf]
      %v3311 = vld [vmem:[#allocation3 + $0x98] sm:$0xf]
      %v3312 = vld [vmem:[#allocation3 + $0x9c] sm:$0xf]
      %v3313 = vld [vmem:[#allocation3 + $0xa0] sm:$0xf]
      %v3314 = vld [vmem:[%s4] sm:$0xf]
      %v3315 = vld [vmem:[%s4 + $0x4] sm:$0xf]
      %v3316 = vld [vmem:[%s4 + $0x8] sm:$0xf]
      %v3317 = vld [vmem:[%s4 + $0xc] sm:$0xf]
      %v3318 = vld [vmem:[%s4 + $0x10] sm:$0xf]
      %v3319 = vld [vmem:[%s4 + $0x14] sm:$0xf]
      %v3320 = vld [vmem:[%s4 + $0x18] sm:$0xf]
      %v3321 = vld [vmem:[%s4 + $0x1c] sm:$0xf]
      %v3322 = vld [vmem:[%s4 + $0x20] sm:$0xf]
      %v3364 = vunpack.c.l.b16 %v3273
      %v3365 = vunpack.c.l.b16 %v3274
      %v3366 = vunpack.c.l.b16 %v3275
      %v3367 = vunpack.c.l.b16 %v3276
      %v3368 = vunpack.c.l.b16 %v3277
      %v3369 = vunpack.c.l.b16 %v3278
      %v3370 = vunpack.c.l.b16 %v3279
      %v3371 = vunpack.c.l.b16 %v3280
      %v3372 = vunpack.c.l.b16 %v3281
      %v3373 = vunpack.c.l.b16 %v3282
      %v3374 = vunpack.c.l.b16 %v3283
      %v3375 = vunpack.c.l.b16 %v3284
      %v3376 = vunpack.c.l.b16 %v3285
      %v3377 = vunpack.c.l.b16 %v3286
      %v3378 = vunpack.c.l.b16 %v3287
      %v3379 = vunpack.c.l.b16 %v3288
      %v3380 = vunpack.c.l.b16 %v3289
      %v3381 = vunpack.c.l.b16 %v3290
      %v3382 = vunpack.c.l.b16 %v3291
      %v3383 = vunpack.c.l.b16 %v3292
      %v3384 = vunpack.c.l.b16 %v3293
      %v3385 = vunpack.c.l.b16 %v3294
      %v3386 = vunpack.c.l.b16 %v3295
      %v3387 = vunpack.c.l.b16 %v3296
      %v3388 = vunpack.c.l.b16 %v3297
      %v3389 = vunpack.c.l.b16 %v3298
      %v3390 = vunpack.c.l.b16 %v3299
      %v3391 = vunpack.c.l.b16 %v3300
      %v3392 = vunpack.c.l.b16 %v3301
      %v3393 = vunpack.c.l.b16 %v3302
      %v3394 = vunpack.c.l.b16 %v3303
      %v3395 = vunpack.c.l.b16 %v3304
      %v3396 = vunpack.c.l.b16 %v3305
      %v3397 = vunpack.c.l.b16 %v3306
      %v3398 = vunpack.c.l.b16 %v3307
      %v3399 = vunpack.c.l.b16 %v3308
      %v3400 = vunpack.c.l.b16 %v3309
      %v3401 = vunpack.c.l.b16 %v3310
      %v3402 = vunpack.c.l.b16 %v3311
      %v3403 = vunpack.c.l.b16 %v3312
      %v3404 = vunpack.c.l.b16 %v3313
      %v3405 = vpack.c.b16 %v3365, %v3364
      %v3406 = vpack.c.b16 %v3367, %v3366
      %v3407 = vpack.c.b16 %v3369, %v3368
      %v3408 = vpack.c.b16 %v3371, %v3370
      %v3409 = vpack.c.b16 %v3373, %v3372
      %v3410 = vpack.c.b16 %v3375, %v3374
      %v3411 = vpack.c.b16 %v3377, %v3376
      %v3412 = vpack.c.b16 %v3379, %v3378
      %v3413 = vpack.c.b16 %v3381, %v3380
      %v3414 = vpack.c.b16 %v3383, %v3382
      %v3415 = vpack.c.b16 %v3385, %v3384
      %v3416 = vpack.c.b16 %v3387, %v3386
      %v3417 = vpack.c.b16 %v3389, %v3388
      %v3418 = vpack.c.b16 %v3391, %v3390
      %v3419 = vpack.c.b16 %v3393, %v3392
      %v3420 = vpack.c.b16 %v3395, %v3394
      %v3421 = vpack.c.b16 %v3397, %v3396
      %v3422 = vpack.c.b16 %v3399, %v3398
      %v3423 = vpack.c.b16 %v3401, %v3400
      %v3424 = vpack.c.b16 %v3403, %v3402
      %v3425 = vpack.c.b16 %v3404, %v3404
      %v3435 = vunpack.c.l.b16 %v3314
      %v3436 = vunpack.c.l.b16 %v3315
      %v3437 = vunpack.c.l.b16 %v3316
      %v3438 = vunpack.c.l.b16 %v3317
      %v3439 = vunpack.c.l.b16 %v3318
      %v3440 = vunpack.c.l.b16 %v3319
      %v3441 = vunpack.c.l.b16 %v3320
      %v3442 = vunpack.c.l.b16 %v3321
      %v3443 = vunpack.c.l.b16 %v3322
      %v3444 = vpack.c.b16 %v3436, %v3435
      %v3445 = vpack.c.b16 %v3438, %v3437
      %v3446 = vpack.c.b16 %v3440, %v3439
      %v3447 = vpack.c.b16 %v3442, %v3441
      %v3448 = vpack.c.b16 %v3443, %v3443
      %vm3453 = vcmask 588800
      %v3455 = vsel %vm3453, %v3405, 0
      %v3458 = vsel %vm3453, %v3406, 0
      %v3461 = vsel %vm3453, %v3407, 0
      %v3464 = vsel %vm3453, %v3408, 0
      %v3467 = vsel %vm3453, %v3409, 0
      %v3470 = vsel %vm3453, %v3410, 0
      %v3473 = vsel %vm3453, %v3411, 0
      %v3476 = vsel %vm3453, %v3412, 0
      %v3479 = vsel %vm3453, %v3413, 0
      %v3482 = vsel %vm3453, %v3414, 0
      %v3485 = vsel %vm3453, %v3415, 0
      %v3488 = vsel %vm3453, %v3416, 0
      %v3491 = vsel %vm3453, %v3417, 0
      %v3494 = vsel %vm3453, %v3418, 0
      %v3497 = vsel %vm3453, %v3419, 0
      %v3500 = vsel %vm3453, %v3420, 0
      %v3503 = vsel %vm3453, %v3421, 0
      %v3506 = vsel %vm3453, %v3422, 0
      %v3509 = vsel %vm3453, %v3423, 0
      %v3512 = vsel %vm3453, %v3424, 0
      %v3515 = vsel %vm3453, %v3425, 0
      %vm3517 = vcmask 1043456
      %v3519 = vsel %vm3517, %v3448, 0
      %3521 = vmatpush.bf16.msra.mxu0 0
      %3522 = vmatpush.bf16.msra.mxu0 0
      %3523 = vmatpush.bf16.msra.mxu0 0
      %3524 = vmatpush.bf16.msra.mxu0 %v3519
      %3525 = vmatpush.bf16.msra.mxu0 %v3447
      %3526 = vmatpush.bf16.msra.mxu0 %v3446
      %3527 = vmatpush.bf16.msra.mxu0 %v3445
      %3528 = vmatpush.bf16.msra.mxu0 %v3444
      %3529 = vmatmul.bf16.gmra.mxu0 %v3455
      %v3530 = vpop.f32.mrf.mxu0
      %v3531 = vadd.f32 0.0, %v3530
      %v3532 = vpop.f32.mrf.mxu0
      %v3533 = vadd.f32 0.0, %v3532
      %3534 = vmatmul.bf16.gmra.mxu0 %v3458
      %v3535 = vpop.f32.mrf.mxu0
      %v3536 = vadd.f32 0.0, %v3535
      %v3537 = vpop.f32.mrf.mxu0
      %v3538 = vadd.f32 0.0, %v3537
      %3539 = vmatmul.bf16.gmra.mxu0 %v3461
      %v3540 = vpop.f32.mrf.mxu0
      %v3541 = vadd.f32 0.0, %v3540
      %v3542 = vpop.f32.mrf.mxu0
      %v3543 = vadd.f32 0.0, %v3542
      %3544 = vmatmul.bf16.gmra.mxu0 %v3464
      %v3545 = vpop.f32.mrf.mxu0
      %v3546 = vadd.f32 0.0, %v3545
      %v3547 = vpop.f32.mrf.mxu0
      %v3548 = vadd.f32 0.0, %v3547
      %3549 = vmatmul.bf16.gmra.mxu0 %v3467
      %v3550 = vpop.f32.mrf.mxu0
      %v3551 = vadd.f32 0.0, %v3550
      %v3552 = vpop.f32.mrf.mxu0
      %v3553 = vadd.f32 0.0, %v3552
      %3554 = vmatmul.bf16.gmra.mxu0 %v3470
      %v3555 = vpop.f32.mrf.mxu0
      %v3556 = vadd.f32 0.0, %v3555
      %v3557 = vpop.f32.mrf.mxu0
      %v3558 = vadd.f32 0.0, %v3557
      %3559 = vmatmul.bf16.gmra.mxu0 %v3473
      %v3560 = vpop.f32.mrf.mxu0
      %v3561 = vadd.f32 0.0, %v3560
      %v3562 = vpop.f32.mrf.mxu0
      %v3563 = vadd.f32 0.0, %v3562
      %3564 = vmatmul.bf16.gmra.mxu0 %v3476
      %v3565 = vpop.f32.mrf.mxu0
      %v3566 = vadd.f32 0.0, %v3565
      %v3567 = vpop.f32.mrf.mxu0
      %v3568 = vadd.f32 0.0, %v3567
      %3569 = vmatmul.bf16.gmra.mxu0 %v3479
      %v3570 = vpop.f32.mrf.mxu0
      %v3571 = vadd.f32 0.0, %v3570
      %v3572 = vpop.f32.mrf.mxu0
      %v3573 = vadd.f32 0.0, %v3572
      %3574 = vmatmul.bf16.gmra.mxu0 %v3482
      %v3575 = vpop.f32.mrf.mxu0
      %v3576 = vadd.f32 0.0, %v3575
      %v3577 = vpop.f32.mrf.mxu0
      %v3578 = vadd.f32 0.0, %v3577
      %3579 = vmatmul.bf16.gmra.mxu0 %v3485
      %v3580 = vpop.f32.mrf.mxu0
      %v3581 = vadd.f32 0.0, %v3580
      %v3582 = vpop.f32.mrf.mxu0
      %v3583 = vadd.f32 0.0, %v3582
      %3584 = vmatmul.bf16.gmra.mxu0 %v3488
      %v3585 = vpop.f32.mrf.mxu0
      %v3586 = vadd.f32 0.0, %v3585
      %v3587 = vpop.f32.mrf.mxu0
      %v3588 = vadd.f32 0.0, %v3587
      %3589 = vmatmul.bf16.gmra.mxu0 %v3491
      %v3590 = vpop.f32.mrf.mxu0
      %v3591 = vadd.f32 0.0, %v3590
      %v3592 = vpop.f32.mrf.mxu0
      %v3593 = vadd.f32 0.0, %v3592
      %3594 = vmatmul.bf16.gmra.mxu0 %v3494
      %v3595 = vpop.f32.mrf.mxu0
      %v3596 = vadd.f32 0.0, %v3595
      %v3597 = vpop.f32.mrf.mxu0
      %v3598 = vadd.f32 0.0, %v3597
      %3599 = vmatmul.bf16.gmra.mxu0 %v3497
      %v3600 = vpop.f32.mrf.mxu0
      %v3601 = vadd.f32 0.0, %v3600
      %v3602 = vpop.f32.mrf.mxu0
      %v3603 = vadd.f32 0.0, %v3602
      %3604 = vmatmul.bf16.gmra.mxu0 %v3500
      %v3605 = vpop.f32.mrf.mxu0
      %v3606 = vadd.f32 0.0, %v3605
      %v3607 = vpop.f32.mrf.mxu0
      %v3608 = vadd.f32 0.0, %v3607
      %3609 = vmatmul.bf16.gmra.mxu0 %v3503
      %v3610 = vpop.f32.mrf.mxu0
      %v3611 = vadd.f32 0.0, %v3610
      %v3612 = vpop.f32.mrf.mxu0
      %v3613 = vadd.f32 0.0, %v3612
      %3614 = vmatmul.bf16.gmra.mxu0 %v3506
      %v3615 = vpop.f32.mrf.mxu0
      %v3616 = vadd.f32 0.0, %v3615
      %v3617 = vpop.f32.mrf.mxu0
      %v3618 = vadd.f32 0.0, %v3617
      %3619 = vmatmul.bf16.gmra.mxu0 %v3509
      %v3620 = vpop.f32.mrf.mxu0
      %v3621 = vadd.f32 0.0, %v3620
      %v3622 = vpop.f32.mrf.mxu0
      %v3623 = vadd.f32 0.0, %v3622
      %3624 = vmatmul.bf16.gmra.mxu0 %v3512
      %v3625 = vpop.f32.mrf.mxu0
      %v3626 = vadd.f32 0.0, %v3625
      %v3627 = vpop.f32.mrf.mxu0
      %v3628 = vadd.f32 0.0, %v3627
      %3629 = vmatmul.bf16.gmra.mxu0 %v3515
      %v3630 = vpop.f32.mrf.mxu0
      %v3631 = vadd.f32 0.0, %v3630
      %v3632 = vpop.f32.mrf.mxu0
      %3633 = vdwg.mxu0
      %v3634 = vpack.c.bf16 %v3531, %v3531
      %v3635 = vpack.c.bf16 %v3533, %v3533
      %v3636 = vpack.c.bf16 %v3536, %v3536
      %v3637 = vpack.c.bf16 %v3538, %v3538
      %v3638 = vpack.c.bf16 %v3541, %v3541
      %v3639 = vpack.c.bf16 %v3543, %v3543
      %v3640 = vpack.c.bf16 %v3546, %v3546
      %v3641 = vpack.c.bf16 %v3548, %v3548
      %v3642 = vpack.c.bf16 %v3551, %v3551
      %v3643 = vpack.c.bf16 %v3553, %v3553
      %v3644 = vpack.c.bf16 %v3556, %v3556
      %v3645 = vpack.c.bf16 %v3558, %v3558
      %v3646 = vpack.c.bf16 %v3561, %v3561
      %v3647 = vpack.c.bf16 %v3563, %v3563
      %v3648 = vpack.c.bf16 %v3566, %v3566
      %v3649 = vpack.c.bf16 %v3568, %v3568
      %v3650 = vpack.c.bf16 %v3571, %v3571
      %v3651 = vpack.c.bf16 %v3573, %v3573
      %v3652 = vpack.c.bf16 %v3576, %v3576
      %v3653 = vpack.c.bf16 %v3578, %v3578
      %v3654 = vpack.c.bf16 %v3581, %v3581
      %v3655 = vpack.c.bf16 %v3583, %v3583
      %v3656 = vpack.c.bf16 %v3586, %v3586
      %v3657 = vpack.c.bf16 %v3588, %v3588
      %v3658 = vpack.c.bf16 %v3591, %v3591
      %v3659 = vpack.c.bf16 %v3593, %v3593
      %v3660 = vpack.c.bf16 %v3596, %v3596
      %v3661 = vpack.c.bf16 %v3598, %v3598
      %v3662 = vpack.c.bf16 %v3601, %v3601
      %v3663 = vpack.c.bf16 %v3603, %v3603
      %v3664 = vpack.c.bf16 %v3606, %v3606
      %v3665 = vpack.c.bf16 %v3608, %v3608
      %v3666 = vpack.c.bf16 %v3611, %v3611
      %v3667 = vpack.c.bf16 %v3613, %v3613
      %v3668 = vpack.c.bf16 %v3616, %v3616
      %v3669 = vpack.c.bf16 %v3618, %v3618
      %v3670 = vpack.c.bf16 %v3621, %v3621
      %v3671 = vpack.c.bf16 %v3623, %v3623
      %v3672 = vpack.c.bf16 %v3626, %v3626
      %v3673 = vpack.c.bf16 %v3628, %v3628
      %v3674 = vpack.c.bf16 %v3631, %v3631
      %3675 = vst.msk [vmem:[%s289] sm:$0xf] %vm927, %v3634
      %3676 = vst.msk [vmem:[%s289 + $0x4] sm:$0xf] %vm927, %v3635
      %3677 = vst.msk [vmem:[%s289 + $0x8] sm:$0xf] %vm927, %v3636
      %3678 = vst.msk [vmem:[%s289 + $0xc] sm:$0xf] %vm927, %v3637
      %3679 = vst.msk [vmem:[%s289 + $0x10] sm:$0xf] %vm927, %v3638
      %3680 = vst.msk [vmem:[%s289 + $0x14] sm:$0xf] %vm927, %v3639
      %3681 = vst.msk [vmem:[%s289 + $0x18] sm:$0xf] %vm927, %v3640
      %3682 = vst.msk [vmem:[%s289 + $0x1c] sm:$0xf] %vm927, %v3641
      %3683 = vst.msk [vmem:[%s289 + $0x20] sm:$0xf] %vm927, %v3642
      %3684 = vst.msk [vmem:[%s289 + $0x24] sm:$0xf] %vm927, %v3643
      %3685 = vst.msk [vmem:[%s289 + $0x28] sm:$0xf] %vm927, %v3644
      %3686 = vst.msk [vmem:[%s289 + $0x2c] sm:$0xf] %vm927, %v3645
      %3687 = vst.msk [vmem:[%s289 + $0x30] sm:$0xf] %vm927, %v3646
      %3688 = vst.msk [vmem:[%s289 + $0x34] sm:$0xf] %vm927, %v3647
      %3689 = vst.msk [vmem:[%s289 + $0x38] sm:$0xf] %vm927, %v3648
      %3690 = vst.msk [vmem:[%s289 + $0x3c] sm:$0xf] %vm927, %v3649
      %3691 = vst.msk [vmem:[%s289 + $0x40] sm:$0xf] %vm927, %v3650
      %3692 = vst.msk [vmem:[%s289 + $0x44] sm:$0xf] %vm927, %v3651
      %3693 = vst.msk [vmem:[%s289 + $0x48] sm:$0xf] %vm927, %v3652
      %3694 = vst.msk [vmem:[%s289 + $0x4c] sm:$0xf] %vm927, %v3653
      %3695 = vst.msk [vmem:[%s289 + $0x50] sm:$0xf] %vm927, %v3654
      %3696 = vst.msk [vmem:[%s289 + $0x54] sm:$0xf] %vm927, %v3655
      %3697 = vst.msk [vmem:[%s289 + $0x58] sm:$0xf] %vm927, %v3656
      %3698 = vst.msk [vmem:[%s289 + $0x5c] sm:$0xf] %vm927, %v3657
      %3699 = vst.msk [vmem:[%s289 + $0x60] sm:$0xf] %vm927, %v3658
      %3700 = vst.msk [vmem:[%s289 + $0x64] sm:$0xf] %vm927, %v3659
      %3701 = vst.msk [vmem:[%s289 + $0x68] sm:$0xf] %vm927, %v3660
      %3702 = vst.msk [vmem:[%s289 + $0x6c] sm:$0xf] %vm927, %v3661
      %3703 = vst.msk [vmem:[%s289 + $0x70] sm:$0xf] %vm927, %v3662
      %3704 = vst.msk [vmem:[%s289 + $0x74] sm:$0xf] %vm927, %v3663
      %3705 = vst.msk [vmem:[%s289 + $0x78] sm:$0xf] %vm927, %v3664
      %3706 = vst.msk [vmem:[%s289 + $0x7c] sm:$0xf] %vm927, %v3665
      %3707 = vst.msk [vmem:[%s289 + $0x80] sm:$0xf] %vm927, %v3666
      %3708 = vst.msk [vmem:[%s289 + $0x84] sm:$0xf] %vm927, %v3667
      %3709 = vst.msk [vmem:[%s289 + $0x88] sm:$0xf] %vm927, %v3668
      %3710 = vst.msk [vmem:[%s289 + $0x8c] sm:$0xf] %vm927, %v3669
      %3711 = vst.msk [vmem:[%s289 + $0x90] sm:$0xf] %vm927, %v3670
      %3712 = vst.msk [vmem:[%s289 + $0x94] sm:$0xf] %vm927, %v3671
      %3713 = vst.msk [vmem:[%s289 + $0x98] sm:$0xf] %vm927, %v3672
      %3714 = vst.msk [vmem:[%s289 + $0x9c] sm:$0xf] %vm927, %v3673
      %3715 = vst.msk [vmem:[%s289 + $0xa0] sm:$0xf] %vm927, %v3674
      %v3716 = vld [vmem:[%s1] sm:$0xff]
      %v3717 = vld [vmem:[%s1 + $0x8] sm:$0xff]
      %v3718 = vld [vmem:[%s1 + $0x10] sm:$0xff]
      %v3719 = vld [vmem:[%s1 + $0x18] sm:$0xff]
      %v3720 = vld [vmem:[%s1 + $0x20] sm:$0xff]
      %v3721 = vld [vmem:[%s1 + $0x28] sm:$0xff]
      %v3722 = vld [vmem:[%s1 + $0x30] sm:$0xff]
      %v3723 = vld [vmem:[%s1 + $0x38] sm:$0xff]
      %v3724 = vld [vmem:[%s1 + $0x40] sm:$0xff]
      %v3725 = vld [vmem:[%s1 + $0x48] sm:$0xff]
      %v3726 = vld [vmem:[%s1 + $0x50] sm:$0xff]
      %v3727 = vld [vmem:[%s1 + $0x58] sm:$0xff]
      %v3728 = vld [vmem:[%s1 + $0x60] sm:$0xff]
      %v3729 = vld [vmem:[%s1 + $0x68] sm:$0xff]
      %v3730 = vld [vmem:[%s1 + $0x70] sm:$0xff]
      %v3731 = vld [vmem:[%s1 + $0x78] sm:$0xff]
      %v3732 = vld [vmem:[%s1 + $0x80] sm:$0xff]
      %v3733 = vld [vmem:[%s1 + $0x88] sm:$0xff]
      %v3734 = vld [vmem:[%s1 + $0x90] sm:$0xff]
      %v3735 = vld [vmem:[%s1 + $0x98] sm:$0xff]
      %v3736 = vld [vmem:[%s1 + $0xa0] sm:$0xff]
      %v3737 = vld [vmem:[%s1 + $0xa8] sm:$0xff]
      %v3738 = vld [vmem:[%s1 + $0xb0] sm:$0xff]
      %v3739 = vld [vmem:[%s1 + $0xb8] sm:$0xff]
      %v3740 = vld [vmem:[%s1 + $0xc0] sm:$0xff]
      %v3741 = vld [vmem:[%s1 + $0xc8] sm:$0xff]
      %v3742 = vld [vmem:[%s1 + $0xd0] sm:$0xff]
      %v3743 = vld [vmem:[%s1 + $0xd8] sm:$0xff]
      %v3744 = vld [vmem:[%s1 + $0xe0] sm:$0xff]
      %v3745 = vld [vmem:[%s1 + $0xe8] sm:$0xff]
      %v3746 = vld [vmem:[%s1 + $0xf0] sm:$0xff]
      %v3747 = vld [vmem:[%s1 + $0xf8] sm:$0xff]
      %v3748 = vld [vmem:[%s1 + $0x100] sm:$0xff]
      %v3749 = vld [vmem:[%s1 + $0x108] sm:$0xff]
      %v3750 = vld [vmem:[%s1 + $0x110] sm:$0xff]
      %v3751 = vld [vmem:[%s1 + $0x118] sm:$0xff]
      %v3752 = vld [vmem:[%s1 + $0x120] sm:$0xff]
      %v3753 = vld [vmem:[%s1 + $0x128] sm:$0xff]
      %v3754 = vld [vmem:[%s1 + $0x130] sm:$0xff]
      %v3755 = vld [vmem:[%s1 + $0x138] sm:$0xff]
      %v3756 = vld [vmem:[%s1 + $0x140] sm:$0xff]
      %3758 = vset.pattern.permute.xlu0 0
      %3759 = vperm.xlu0 %3758, %v3716
      %v3760 = vpop.permute.xlu0 %3759
      %3763 = vset.pattern.permute.xlu0 0
      %3764 = vperm.xlu0 %3763, %v3717
      %v3765 = vpop.permute.xlu0 %3764
      %3768 = vset.pattern.permute.xlu0 0
      %3769 = vperm.xlu0 %3768, %v3718
      %v3770 = vpop.permute.xlu0 %3769
      %3773 = vset.pattern.permute.xlu0 0
      %3774 = vperm.xlu0 %3773, %v3719
      %v3775 = vpop.permute.xlu0 %3774
      %3778 = vset.pattern.permute.xlu0 0
      %3779 = vperm.xlu0 %3778, %v3720
      %v3780 = vpop.permute.xlu0 %3779
      %3783 = vset.pattern.permute.xlu0 0
      %3784 = vperm.xlu0 %3783, %v3721
      %v3785 = vpop.permute.xlu0 %3784
      %3788 = vset.pattern.permute.xlu0 0
      %3789 = vperm.xlu0 %3788, %v3722
      %v3790 = vpop.permute.xlu0 %3789
      %3793 = vset.pattern.permute.xlu0 0
      %3794 = vperm.xlu0 %3793, %v3723
      %v3795 = vpop.permute.xlu0 %3794
      %3798 = vset.pattern.permute.xlu0 0
      %3799 = vperm.xlu0 %3798, %v3724
      %v3800 = vpop.permute.xlu0 %3799
      %3803 = vset.pattern.permute.xlu0 0
      %3804 = vperm.xlu0 %3803, %v3725
      %v3805 = vpop.permute.xlu0 %3804
      %3808 = vset.pattern.permute.xlu0 0
      %3809 = vperm.xlu0 %3808, %v3726
      %v3810 = vpop.permute.xlu0 %3809
      %3813 = vset.pattern.permute.xlu0 0
      %3814 = vperm.xlu0 %3813, %v3727
      %v3815 = vpop.permute.xlu0 %3814
      %3818 = vset.pattern.permute.xlu0 0
      %3819 = vperm.xlu0 %3818, %v3728
      %v3820 = vpop.permute.xlu0 %3819
      %3823 = vset.pattern.permute.xlu0 0
      %3824 = vperm.xlu0 %3823, %v3729
      %v3825 = vpop.permute.xlu0 %3824
      %3828 = vset.pattern.permute.xlu0 0
      %3829 = vperm.xlu0 %3828, %v3730
      %v3830 = vpop.permute.xlu0 %3829
      %3833 = vset.pattern.permute.xlu0 0
      %3834 = vperm.xlu0 %3833, %v3731
      %v3835 = vpop.permute.xlu0 %3834
      %3838 = vset.pattern.permute.xlu0 0
      %3839 = vperm.xlu0 %3838, %v3732
      %v3840 = vpop.permute.xlu0 %3839
      %3843 = vset.pattern.permute.xlu0 0
      %3844 = vperm.xlu0 %3843, %v3733
      %v3845 = vpop.permute.xlu0 %3844
      %3848 = vset.pattern.permute.xlu0 0
      %3849 = vperm.xlu0 %3848, %v3734
      %v3850 = vpop.permute.xlu0 %3849
      %3853 = vset.pattern.permute.xlu0 0
      %3854 = vperm.xlu0 %3853, %v3735
      %v3855 = vpop.permute.xlu0 %3854
      %3858 = vset.pattern.permute.xlu0 0
      %3859 = vperm.xlu0 %3858, %v3736
      %v3860 = vpop.permute.xlu0 %3859
      %3863 = vset.pattern.permute.xlu0 0
      %3864 = vperm.xlu0 %3863, %v3737
      %v3865 = vpop.permute.xlu0 %3864
      %3868 = vset.pattern.permute.xlu0 0
      %3869 = vperm.xlu0 %3868, %v3738
      %v3870 = vpop.permute.xlu0 %3869
      %3873 = vset.pattern.permute.xlu0 0
      %3874 = vperm.xlu0 %3873, %v3739
      %v3875 = vpop.permute.xlu0 %3874
      %3878 = vset.pattern.permute.xlu0 0
      %3879 = vperm.xlu0 %3878, %v3740
      %v3880 = vpop.permute.xlu0 %3879
      %3883 = vset.pattern.permute.xlu0 0
      %3884 = vperm.xlu0 %3883, %v3741
      %v3885 = vpop.permute.xlu0 %3884
      %3888 = vset.pattern.permute.xlu0 0
      %3889 = vperm.xlu0 %3888, %v3742
      %v3890 = vpop.permute.xlu0 %3889
      %3893 = vset.pattern.permute.xlu0 0
      %3894 = vperm.xlu0 %3893, %v3743
      %v3895 = vpop.permute.xlu0 %3894
      %3898 = vset.pattern.permute.xlu0 0
      %3899 = vperm.xlu0 %3898, %v3744
      %v3900 = vpop.permute.xlu0 %3899
      %3903 = vset.pattern.permute.xlu0 0
      %3904 = vperm.xlu0 %3903, %v3745
      %v3905 = vpop.permute.xlu0 %3904
      %3908 = vset.pattern.permute.xlu0 0
      %3909 = vperm.xlu0 %3908, %v3746
      %v3910 = vpop.permute.xlu0 %3909
      %3913 = vset.pattern.permute.xlu0 0
      %3914 = vperm.xlu0 %3913, %v3747
      %v3915 = vpop.permute.xlu0 %3914
      %3918 = vset.pattern.permute.xlu0 0
      %3919 = vperm.xlu0 %3918, %v3748
      %v3920 = vpop.permute.xlu0 %3919
      %3923 = vset.pattern.permute.xlu0 0
      %3924 = vperm.xlu0 %3923, %v3749
      %v3925 = vpop.permute.xlu0 %3924
      %3928 = vset.pattern.permute.xlu0 0
      %3929 = vperm.xlu0 %3928, %v3750
      %v3930 = vpop.permute.xlu0 %3929
      %3933 = vset.pattern.permute.xlu0 0
      %3934 = vperm.xlu0 %3933, %v3751
      %v3935 = vpop.permute.xlu0 %3934
      %3938 = vset.pattern.permute.xlu0 0
      %3939 = vperm.xlu0 %3938, %v3752
      %v3940 = vpop.permute.xlu0 %3939
      %3943 = vset.pattern.permute.xlu0 0
      %3944 = vperm.xlu0 %3943, %v3753
      %v3945 = vpop.permute.xlu0 %3944
      %3948 = vset.pattern.permute.xlu0 0
      %3949 = vperm.xlu0 %3948, %v3754
      %v3950 = vpop.permute.xlu0 %3949
      %3953 = vset.pattern.permute.xlu0 0
      %3954 = vperm.xlu0 %3953, %v3755
      %v3955 = vpop.permute.xlu0 %3954
      %3958 = vset.pattern.permute.xlu0 0
      %3959 = vperm.xlu0 %3958, %v3756
      %v3960 = vpop.permute.xlu0 %3959
      %v3962 = vmul.f32 %v3531, %v3760
      %v3963 = vmul.f32 %v3533, %v3765
      %v3964 = vmul.f32 %v3536, %v3770
      %v3965 = vmul.f32 %v3538, %v3775
      %v3966 = vmul.f32 %v3541, %v3780
      %v3967 = vmul.f32 %v3543, %v3785
      %v3968 = vmul.f32 %v3546, %v3790
      %v3969 = vmul.f32 %v3548, %v3795
      %v3970 = vmul.f32 %v3551, %v3800
      %v3971 = vmul.f32 %v3553, %v3805
      %v3972 = vmul.f32 %v3556, %v3810
      %v3973 = vmul.f32 %v3558, %v3815
      %v3974 = vmul.f32 %v3561, %v3820
      %v3975 = vmul.f32 %v3563, %v3825
      %v3976 = vmul.f32 %v3566, %v3830
      %v3977 = vmul.f32 %v3568, %v3835
      %v3978 = vmul.f32 %v3571, %v3840
      %v3979 = vmul.f32 %v3573, %v3845
      %v3980 = vmul.f32 %v3576, %v3850
      %v3981 = vmul.f32 %v3578, %v3855
      %v3982 = vmul.f32 %v3581, %v3860
      %v3983 = vmul.f32 %v3583, %v3865
      %v3984 = vmul.f32 %v3586, %v3870
      %v3985 = vmul.f32 %v3588, %v3875
      %v3986 = vmul.f32 %v3591, %v3880
      %v3987 = vmul.f32 %v3593, %v3885
      %v3988 = vmul.f32 %v3596, %v3890
      %v3989 = vmul.f32 %v3598, %v3895
      %v3990 = vmul.f32 %v3601, %v3900
      %v3991 = vmul.f32 %v3603, %v3905
      %v3992 = vmul.f32 %v3606, %v3910
      %v3993 = vmul.f32 %v3608, %v3915
      %v3994 = vmul.f32 %v3611, %v3920
      %v3995 = vmul.f32 %v3613, %v3925
      %v3996 = vmul.f32 %v3616, %v3930
      %v3997 = vmul.f32 %v3618, %v3935
      %v3998 = vmul.f32 %v3621, %v3940
      %v3999 = vmul.f32 %v3623, %v3945
      %v4000 = vmul.f32 %v3626, %v3950
      %v4001 = vmul.f32 %v3628, %v3955
      %v4002 = vmul.f32 %v3631, %v3960
      %v4003 = vsel %vm797, %v3962, 0.0
      %v4004 = vsel %vm797, %v3963, 0.0
      %v4005 = vadd.f32 %v4003, %v4004
      %v4006 = vsel %vm797, %v3964, 0.0
      %v4007 = vadd.f32 %v4005, %v4006
      %v4008 = vsel %vm797, %v3965, 0.0
      %v4009 = vadd.f32 %v4007, %v4008
      %v4010 = vsel %vm797, %v3966, 0.0
      %v4011 = vadd.f32 %v4009, %v4010
      %v4012 = vsel %vm797, %v3967, 0.0
      %v4013 = vadd.f32 %v4011, %v4012
      %v4014 = vsel %vm797, %v3968, 0.0
      %v4015 = vadd.f32 %v4013, %v4014
      %v4016 = vsel %vm797, %v3969, 0.0
      %v4017 = vadd.f32 %v4015, %v4016
      %v4018 = vsel %vm797, %v3970, 0.0
      %v4019 = vadd.f32 %v4017, %v4018
      %v4020 = vsel %vm797, %v3971, 0.0
      %v4021 = vadd.f32 %v4019, %v4020
      %v4022 = vsel %vm797, %v3972, 0.0
      %v4023 = vadd.f32 %v4021, %v4022
      %v4024 = vsel %vm797, %v3973, 0.0
      %v4025 = vadd.f32 %v4023, %v4024
      %v4026 = vsel %vm797, %v3974, 0.0
      %v4027 = vadd.f32 %v4025, %v4026
      %v4028 = vsel %vm797, %v3975, 0.0
      %v4029 = vadd.f32 %v4027, %v4028
      %v4030 = vsel %vm797, %v3976, 0.0
      %v4031 = vadd.f32 %v4029, %v4030
      %v4032 = vsel %vm797, %v3977, 0.0
      %v4033 = vadd.f32 %v4031, %v4032
      %v4034 = vsel %vm797, %v3978, 0.0
      %v4035 = vadd.f32 %v4033, %v4034
      %v4036 = vsel %vm797, %v3979, 0.0
      %v4037 = vadd.f32 %v4035, %v4036
      %v4038 = vsel %vm797, %v3980, 0.0
      %v4039 = vadd.f32 %v4037, %v4038
      %v4040 = vsel %vm797, %v3981, 0.0
      %v4041 = vadd.f32 %v4039, %v4040
      %v4042 = vsel %vm797, %v3982, 0.0
      %v4043 = vadd.f32 %v4041, %v4042
      %v4044 = vsel %vm797, %v3983, 0.0
      %v4045 = vadd.f32 %v4043, %v4044
      %v4046 = vsel %vm797, %v3984, 0.0
      %v4047 = vadd.f32 %v4045, %v4046
      %v4048 = vsel %vm797, %v3985, 0.0
      %v4049 = vadd.f32 %v4047, %v4048
      %v4050 = vsel %vm797, %v3986, 0.0
      %v4051 = vadd.f32 %v4049, %v4050
      %v4052 = vsel %vm797, %v3987, 0.0
      %v4053 = vadd.f32 %v4051, %v4052
      %v4054 = vsel %vm797, %v3988, 0.0
      %v4055 = vadd.f32 %v4053, %v4054
      %v4056 = vsel %vm797, %v3989, 0.0
      %v4057 = vadd.f32 %v4055, %v4056
      %v4058 = vsel %vm797, %v3990, 0.0
      %v4059 = vadd.f32 %v4057, %v4058
      %v4060 = vsel %vm797, %v3991, 0.0
      %v4061 = vadd.f32 %v4059, %v4060
      %v4062 = vsel %vm797, %v3992, 0.0
      %v4063 = vadd.f32 %v4061, %v4062
      %v4064 = vsel %vm797, %v3993, 0.0
      %v4065 = vadd.f32 %v4063, %v4064
      %v4066 = vsel %vm797, %v3994, 0.0
      %v4067 = vadd.f32 %v4065, %v4066
      %v4068 = vsel %vm797, %v3995, 0.0
      %v4069 = vadd.f32 %v4067, %v4068
      %v4070 = vsel %vm797, %v3996, 0.0
      %v4071 = vadd.f32 %v4069, %v4070
      %v4072 = vsel %vm797, %v3997, 0.0
      %v4073 = vadd.f32 %v4071, %v4072
      %v4074 = vsel %vm797, %v3998, 0.0
      %v4075 = vadd.f32 %v4073, %v4074
      %v4076 = vsel %vm797, %v3999, 0.0
      %v4077 = vadd.f32 %v4075, %v4076
      %v4078 = vsel %vm797, %v4000, 0.0
      %v4079 = vadd.f32 %v4077, %v4078
      %v4080 = vsel %vm797, %v4001, 0.0
      %v4081 = vadd.f32 %v4079, %v4080
      %v4082 = vsel %vm797, %v4002, 0.0
      %v4083 = vadd.f32 %v4081, %v4082
      %v4084 = vrot.slane %v4083, 4
      %v4085 = vadd.f32 %v4083, %v4084
      %v4086 = vrot.slane %v4085, 2
      %v4087 = vadd.f32 %v4085, %v4086
      %v4088 = vrot.slane %v4087, 1
      %v4089 = vadd.f32 %v4087, %v4088
      %vm4090 = vcmask 57344
      %4091 = vst.msk [vmem:[%s292] sm:$0x1] %vm4090, %v4089
      %v4092 = vmul.f32 %v3962, %v3962
      %v4093 = vmul.f32 %v3963, %v3963
      %v4094 = vmul.f32 %v3964, %v3964
      %v4095 = vmul.f32 %v3965, %v3965
      %v4096 = vmul.f32 %v3966, %v3966
      %v4097 = vmul.f32 %v3967, %v3967
      %v4098 = vmul.f32 %v3968, %v3968
      %v4099 = vmul.f32 %v3969, %v3969
      %v4100 = vmul.f32 %v3970, %v3970
      %v4101 = vmul.f32 %v3971, %v3971
      %v4102 = vmul.f32 %v3972, %v3972
      %v4103 = vmul.f32 %v3973, %v3973
      %v4104 = vmul.f32 %v3974, %v3974
      %v4105 = vmul.f32 %v3975, %v3975
      %v4106 = vmul.f32 %v3976, %v3976
      %v4107 = vmul.f32 %v3977, %v3977
      %v4108 = vmul.f32 %v3978, %v3978
      %v4109 = vmul.f32 %v3979, %v3979
      %v4110 = vmul.f32 %v3980, %v3980
      %v4111 = vmul.f32 %v3981, %v3981
      %v4112 = vmul.f32 %v3982, %v3982
      %v4113 = vmul.f32 %v3983, %v3983
      %v4114 = vmul.f32 %v3984, %v3984
      %v4115 = vmul.f32 %v3985, %v3985
      %v4116 = vmul.f32 %v3986, %v3986
      %v4117 = vmul.f32 %v3987, %v3987
      %v4118 = vmul.f32 %v3988, %v3988
      %v4119 = vmul.f32 %v3989, %v3989
      %v4120 = vmul.f32 %v3990, %v3990
      %v4121 = vmul.f32 %v3991, %v3991
      %v4122 = vmul.f32 %v3992, %v3992
      %v4123 = vmul.f32 %v3993, %v3993
      %v4124 = vmul.f32 %v3994, %v3994
      %v4125 = vmul.f32 %v3995, %v3995
      %v4126 = vmul.f32 %v3996, %v3996
      %v4127 = vmul.f32 %v3997, %v3997
      %v4128 = vmul.f32 %v3998, %v3998
      %v4129 = vmul.f32 %v3999, %v3999
      %v4130 = vmul.f32 %v4000, %v4000
      %v4131 = vmul.f32 %v4001, %v4001
      %v4132 = vmul.f32 %v4002, %v4002
      %v4133 = vsel %vm797, %v4092, 0.0
      %v4134 = vsel %vm797, %v4093, 0.0
      %v4135 = vadd.f32 %v4133, %v4134
      %v4136 = vsel %vm797, %v4094, 0.0
      %v4137 = vadd.f32 %v4135, %v4136
      %v4138 = vsel %vm797, %v4095, 0.0
      %v4139 = vadd.f32 %v4137, %v4138
      %v4140 = vsel %vm797, %v4096, 0.0
      %v4141 = vadd.f32 %v4139, %v4140
      %v4142 = vsel %vm797, %v4097, 0.0
      %v4143 = vadd.f32 %v4141, %v4142
      %v4144 = vsel %vm797, %v4098, 0.0
      %v4145 = vadd.f32 %v4143, %v4144
      %v4146 = vsel %vm797, %v4099, 0.0
      %v4147 = vadd.f32 %v4145, %v4146
      %v4148 = vsel %vm797, %v4100, 0.0
      %v4149 = vadd.f32 %v4147, %v4148
      %v4150 = vsel %vm797, %v4101, 0.0
      %v4151 = vadd.f32 %v4149, %v4150
      %v4152 = vsel %vm797, %v4102, 0.0
      %v4153 = vadd.f32 %v4151, %v4152
      %v4154 = vsel %vm797, %v4103, 0.0
      %v4155 = vadd.f32 %v4153, %v4154
      %v4156 = vsel %vm797, %v4104, 0.0
      %v4157 = vadd.f32 %v4155, %v4156
      %v4158 = vsel %vm797, %v4105, 0.0
      %v4159 = vadd.f32 %v4157, %v4158
      %v4160 = vsel %vm797, %v4106, 0.0
      %v4161 = vadd.f32 %v4159, %v4160
      %v4162 = vsel %vm797, %v4107, 0.0
      %v4163 = vadd.f32 %v4161, %v4162
      %v4164 = vsel %vm797, %v4108, 0.0
      %v4165 = vadd.f32 %v4163, %v4164
      %v4166 = vsel %vm797, %v4109, 0.0
      %v4167 = vadd.f32 %v4165, %v4166
      %v4168 = vsel %vm797, %v4110, 0.0
      %v4169 = vadd.f32 %v4167, %v4168
      %v4170 = vsel %vm797, %v4111, 0.0
      %v4171 = vadd.f32 %v4169, %v4170
      %v4172 = vsel %vm797, %v4112, 0.0
      %v4173 = vadd.f32 %v4171, %v4172
      %v4174 = vsel %vm797, %v4113, 0.0
      %v4175 = vadd.f32 %v4173, %v4174
      %v4176 = vsel %vm797, %v4114, 0.0
      %v4177 = vadd.f32 %v4175, %v4176
      %v4178 = vsel %vm797, %v4115, 0.0
      %v4179 = vadd.f32 %v4177, %v4178
      %v4180 = vsel %vm797, %v4116, 0.0
      %v4181 = vadd.f32 %v4179, %v4180
      %v4182 = vsel %vm797, %v4117, 0.0
      %v4183 = vadd.f32 %v4181, %v4182
      %v4184 = vsel %vm797, %v4118, 0.0
      %v4185 = vadd.f32 %v4183, %v4184
      %v4186 = vsel %vm797, %v4119, 0.0
      %v4187 = vadd.f32 %v4185, %v4186
      %v4188 = vsel %vm797, %v4120, 0.0
      %v4189 = vadd.f32 %v4187, %v4188
      %v4190 = vsel %vm797, %v4121, 0.0
      %v4191 = vadd.f32 %v4189, %v4190
      %v4192 = vsel %vm797, %v4122, 0.0
      %v4193 = vadd.f32 %v4191, %v4192
      %v4194 = vsel %vm797, %v4123, 0.0
      %v4195 = vadd.f32 %v4193, %v4194
      %v4196 = vsel %vm797, %v4124, 0.0
      %v4197 = vadd.f32 %v4195, %v4196
      %v4198 = vsel %vm797, %v4125, 0.0
      %v4199 = vadd.f32 %v4197, %v4198
      %v4200 = vsel %vm797, %v4126, 0.0
      %v4201 = vadd.f32 %v4199, %v4200
      %v4202 = vsel %vm797, %v4127, 0.0
      %v4203 = vadd.f32 %v4201, %v4202
      %v4204 = vsel %vm797, %v4128, 0.0
      %v4205 = vadd.f32 %v4203, %v4204
      %v4206 = vsel %vm797, %v4129, 0.0
      %v4207 = vadd.f32 %v4205, %v4206
      %v4208 = vsel %vm797, %v4130, 0.0
      %v4209 = vadd.f32 %v4207, %v4208
      %v4210 = vsel %vm797, %v4131, 0.0
      %v4211 = vadd.f32 %v4209, %v4210
      %v4212 = vsel %vm797, %v4132, 0.0
      %v4213 = vadd.f32 %v4211, %v4212
      %v4214 = vrot.slane %v4213, 4
      %v4215 = vadd.f32 %v4213, %v4214
      %v4216 = vrot.slane %v4215, 2
      %v4217 = vadd.f32 %v4215, %v4216
      %v4218 = vrot.slane %v4217, 1
      %v4219 = vadd.f32 %v4217, %v4218
      %4220 = vst.msk [vmem:[%s295] sm:$0x1] %vm4090, %v4219
      %p4221 = scmp.lt.s32.totalorder %s19, 1
      %s4222 = scalar_select %p4221, %s19, 1
      %s4223 = smul.addr %s4222, 41
      %s4224 = smul.addr %s4223, 4
      %s4225 = scalar_lea.vmem %s5, %s4224
      %p4226 = scmp.lt.s32.totalorder %s19, 1
      %s4227 = scalar_select %p4226, %s19, 1
      %s4228 = scalar_lea.vmem %s6, %s4227
      %p4229 = scmp.lt.s32.totalorder %s19, 1
      %s4230 = scalar_select %p4229, %s19, 1
      %s4231 = scalar_lea.vmem %s7, %s4230
      // Predicated region
      $region41: #{basic_block_forward.4} parent=39 // pred_check
        %p4232 = pneg %p147
      $region42: #{basic_block_forward.4} parent=39 // pred_check_branch
        %4234 = sbr.rel (%p4232) target = $region44
      $region43: #{basic_block_forward.4} parent=39 // pred_region
        _
      $region44: #{basic_block_forward.4} parent=39 // pred_fallthru
        _
      // Predicated region
      $region45: #{basic_block_forward.4} parent=39 // pred_check
        %p4235 = pneg %p173
      $region46: #{basic_block_forward.4} parent=39 // pred_check_branch
        %4237 = sbr.rel (%p4235) target = $region48
      $region47: #{basic_block_forward.4} parent=39 // pred_region
        _
      $region48: #{basic_block_forward.4} parent=39 // pred_fallthru
        _
      // Predicated region
      $region49: #{basic_block_forward.4} parent=39 // pred_check
        %p4238 = pneg %p199
      $region50: #{basic_block_forward.4} parent=39 // pred_check_branch
        %4240 = sbr.rel (%p4238) target = $region52
      $region51: #{basic_block_forward.4} parent=39 // pred_region
        _
      $region52: #{basic_block_forward.4} parent=39 // pred_fallthru
        _
    $region40: #{basic_block_forward.4} parent=5 // pred_fallthru
      _
    %p4241 = scmp.le.s32.totalorder 2, %s14
    // Predicated region
    $region53: #{basic_block_forward.4} parent=5 // pred_check
      %p4242 = pneg %p4241
    $region54: #{basic_block_forward.4} parent=5 // pred_check_branch
      %4244 = sbr.rel (%p4242) target = $region56
    $region55: #{basic_block_forward.4} parent=5 // pred_region
      %s4245 = ssub.s32 %s14, 2
      // Predicated region
      $region57: #{basic_block_forward.4} parent=55 // pred_check
        %p4246 = pneg %p153
      $region58: #{basic_block_forward.4} parent=55 // pred_check_branch
        %4248 = sbr.rel (%p4246) target = $region60
      $region59: #{basic_block_forward.4} parent=55 // pred_region
        %p4249 = scmp.lt.s32.totalorder %s20, 1
        %s4250 = scalar_select %p4249, %s20, 1
        %s4251 = smul.addr %s4250, 41
        %s4252 = smul.addr %s4251, 4
        %s4253 = scalar_lea.vmem %s5, %s4252
      $region60: #{basic_block_forward.4} parent=55 // pred_fallthru
        _
      // Predicated region
      $region61: #{basic_block_forward.4} parent=55 // pred_check
        %p4254 = pneg %p179
      $region62: #{basic_block_forward.4} parent=55 // pred_check_branch
        %4256 = sbr.rel (%p4254) target = $region64
      $region63: #{basic_block_forward.4} parent=55 // pred_region
        %p4257 = scmp.lt.s32.totalorder %s20, 1
        %s4258 = scalar_select %p4257, %s20, 1
        %s4259 = scalar_lea.vmem %s6, %s4258
      $region64: #{basic_block_forward.4} parent=55 // pred_fallthru
        _
      // Predicated region
      $region65: #{basic_block_forward.4} parent=55 // pred_check
        %p4260 = pneg %p205
      $region66: #{basic_block_forward.4} parent=55 // pred_check_branch
        %4262 = sbr.rel (%p4260) target = $region68
      $region67: #{basic_block_forward.4} parent=55 // pred_region
        %p4263 = scmp.lt.s32.totalorder %s20, 1
        %s4264 = scalar_select %p4263, %s20, 1
        %s4265 = scalar_lea.vmem %s7, %s4264
      $region68: #{basic_block_forward.4} parent=55 // pred_fallthru
        _
    $region56: #{basic_block_forward.4} parent=5 // pred_fallthru
      _
  $region6: #{basic_block_forward.4} parent=0 // loop_footer
    %s18 = sadd.s32 1, %s14
  $region7: #{basic_block_forward.4} parent=0 // loop_footer_branch
    %13 = sbr.rel target = $region3
  $region8: #{basic_block_forward.4} parent=0 // loop_exit
    _

</llo_original>
